<compile_context>
chip_gen: v7x
topology: tpu7x:2x2x1
jax: 0.10.0
libtpu: 0.0.40
codegen_flags: <defaults>
</compile_context>

<pallas_src>
import functools
import math

import jax
import jax.numpy as jnp
from jax.experimental import pallas as pl
from jax.experimental.pallas import tpu as pltpu


def _siren_fused_kernel(*refs, n_layers):
    """Fused SIREN forward on one sample tile.

    refs = (x_ref, w0, b0, w1, b1, ..., w_{L-1}, b_{L-1}, o_ref)
      x_ref : (n_in,  tile_n)   feature-major coordinate tile
      w_l   : (out_f, in_f)     resident weight (omega already folded in for sine layers)
      b_l   : (out_f, 1)        resident bias   (omega already folded in for sine layers)
      o_ref : (n_out, tile_n)   lane-dense output tile
    """
    x_ref = refs[0]
    o_ref = refs[-1]
    wb = refs[1:-1]

    h = x_ref[...].astype(jnp.float32)  # (in_f, tile_n)
    for li in range(n_layers):
        w = wb[2 * li][...]              # (out_f, in_f)
        b = wb[2 * li + 1][...]          # (out_f, 1) -> broadcasts over lanes
        out_f, in_f = w.shape
        if in_f <= 4:
            # Tiny contraction depth (first layer, n_in=2): broadcast multiply-adds on the
            # VPU beat a ~1%-utilized MXU pass and keep the MXU free for hidden layers.
            y = b
            for k in range(in_f):
                y = y + w[:, k:k + 1] * h[k:k + 1, :]
        elif out_f == 1:
            # Final 1-wide layer: VPU broadcast-mul + XLU sublane reduce; avoids an M=1 MXU
            # pass whose result pop would sit on the epilogue.
            y = jnp.sum(w.reshape(in_f, 1) * h, axis=0, keepdims=True) + b
        else:
            y = jnp.dot(w, h, preferred_element_type=jnp.float32) + b
        # omega is pre-folded into w/b, so the sine layers are just sin(y).
        h = jnp.sin(y) if li < n_layers - 1 else y
    o_ref[...] = h.astype(o_ref.dtype)


def siren_forward(x, params, first_omega_0=30.0, hidden_omega_0=30.0, *, tile_n=2048):
    """Full SIREN forward pass as ONE fused Pallas kernel.

    x      : (N, n_in) float32, row-major samples (PyTorch convention).
    params : list of (w, b) with w: (out_f, in_f), b: (out_f, 1)  (un-scaled, torch layout).
    Returns (N, n_out) float32.
    """
    n, n_in = x.shape
    n_layers = len(params)
    n_out = params[-1][0].shape[0]
    dims = [n_in] + [w.shape[0] for (w, _) in params]

    # Fold omega into the sine-layer weights/biases (tiny resident tensors, scaled once at
    # trace time -- NOT the "pre-scale streamed inputs" anti-pattern).
    folded = []
    for li, (w, b) in enumerate(params):
        if li < n_layers - 1:
            omega = first_omega_0 if li == 0 else hidden_omega_0
            folded.append((w * omega, b * omega))
        else:
            folded.append((w, b))

    # Tile selection: multiple of 128, as large as requested, but keep the grid at >= 2 steps
    # whenever N allows (v7x megacore: the "parallel" axis shards across the 2 TensorCores).
    tile_n = max(128, (tile_n // 128) * 128)
    half = max(128, pl.cdiv(pl.cdiv(n, 2), 128) * 128)
    tile_n = min(tile_n, half)

    # Feature-major layout: samples on the lane axis.
    # TODO(synk): accept/store coordinates feature-major upstream so this transpose (and the
    # pad for ragged N) disappear from the XLA graph entirely.
    x_t = x.T  # (n_in, N)
    n_pad = pl.cdiv(n, tile_n) * tile_n
    if n_pad != n:
        x_t = jnp.pad(x_t, ((0, 0), (0, n_pad - n)))
    grid = (n_pad // tile_n,)

    kernel = functools.partial(_siren_fused_kernel, n_layers=n_layers)

    in_specs = [pl.BlockSpec((n_in, tile_n), lambda i: (0, i))]
    flat_wb = []
    param_bytes = 0
    for (w, b) in folded:
        # Whole (tiny) weight/bias resident across the sample grid (constant index_map).
        in_specs.append(pl.BlockSpec(w.shape, lambda i: (0, 0)))
        in_specs.append(pl.BlockSpec(b.shape, lambda i: (0, 0)))
        flat_wb.extend([w, b])
        param_bytes += (w.size + b.size) * 4

    # Advisory cost estimate so XLA can overlap the custom call with surrounding ops.
    flops = 2 * n * sum(a * b for a, b in zip(dims[:-1], dims[1:]))
    transcendentals = n * sum(dims[1:-1])
    bytes_accessed = 4 * n * (n_in + n_out) + param_bytes
    cost = pl.CostEstimate(flops=flops, transcendentals=transcendentals,
                           bytes_accessed=bytes_accessed)

    # Only raise the scoped-VMEM limit if the estimated working set approaches the smallest
    # default (v5e: 16 MiB). Double-buffered I/O blocks + resident params + ~2 live
    # (widest, tile_n) f32 intermediates.
    widest = max(dims)
    vmem_est = (2 * 2 * (n_in + n_out) * tile_n * 4
                + param_bytes
                + 2 * widest * tile_n * 4)
    vmem_limit = None
    if vmem_est > 12 * 1024 * 1024:
        vmem_limit = min(2 * vmem_est, 100 * 1024 * 1024)

    out_t = pl.pallas_call(
        kernel,
        out_shape=jax.ShapeDtypeStruct((n_out, n_pad), jnp.float32),
        grid_spec=pl.GridSpec(
            grid=grid,
            in_specs=in_specs,
            out_specs=pl.BlockSpec((n_out, tile_n), lambda i: (0, i)),
        ),
        compiler_params=pltpu.CompilerParams(
            dimension_semantics=("parallel",),
            vmem_limit_bytes=vmem_limit,
        ),
        cost_estimate=cost,
    )(x_t, *flat_wb)

    return out_t[:, :n].T  # back to (N, n_out); transpose of (1, N) is free


def init_siren_params(key, n_in, n_hidden, n_out, first_omega_0, hidden_omega_0):
    """Deterministic parameter init matching the PyTorch Siren init distributions.

    Weights are stored torch-style as (out_features, in_features); biases as (out_features, 1)
    (column vectors for the feature-major kernel layout). Biases use the default nn.Linear
    init: U(-1/sqrt(in), 1/sqrt(in)).
    """
    params = []
    dims = [n_in] + list(n_hidden) + [n_out]
    n_layers = len(dims) - 1
    keys = jax.random.split(key, 2 * n_layers)
    for li in range(n_layers):
        fan_in, fan_out = dims[li], dims[li + 1]
        wk, bk = keys[2 * li], keys[2 * li + 1]
        if li == 0:
            bound = 1.0 / fan_in  # first SineLayer
        else:
            # hidden SineLayers AND the final linear use the same bound in the reference
            bound = math.sqrt(6.0 / fan_in) / hidden_omega_0
        w = jax.random.uniform(wk, (fan_out, fan_in), jnp.float32, -bound, bound)
        b_bound = 1.0 / math.sqrt(fan_in)
        b = jax.random.uniform(bk, (fan_out, 1), jnp.float32, -b_bound, b_bound)
        params.append((w, b))
    return params


def siren_forward_ref(x, params, first_omega_0=30.0, hidden_omega_0=30.0):
    """Pure-JAX reference for correctness checking (row-major math, un-folded omega)."""
    n_layers = len(params)
    h = x
    for li, (w, b) in enumerate(params):
        is_last = li == n_layers - 1
        omega = first_omega_0 if li == 0 else hidden_omega_0
        y = h @ w.T + b.reshape(1, -1)
        h = y if is_last else jnp.sin(omega * y)
    return h


if __name__ == "__main__":
    key = jax.random.PRNGKey(0)

    # Small SIREN: 2-D coordinates -> [32, 32] hidden -> 1 output.
    # 2048 samples; the auto-tiler picks tile_n=1024 -> grid of 2 parallel steps
    # (keeps both v7x TensorCores busy, pad is a no-op).
    n_in, n_hidden, n_out = 2, [32, 32], 1
    n_samples = 2048
    first_omega_0, hidden_omega_0 = 30.0, 30.0

    pkey, xkey = jax.random.split(key)
    params = init_siren_params(pkey, n_in, n_hidden, n_out,
                               first_omega_0, hidden_omega_0)
    x = jax.random.uniform(xkey, (n_samples, n_in), jnp.float32, -1.0, 1.0)

    out = siren_forward(x, params, first_omega_0, hidden_omega_0)
    out = jax.block_until_ready(out)

    ref = siren_forward_ref(x, params, first_omega_0, hidden_omega_0)
    assert out.shape == (n_samples, n_out)
    assert jnp.allclose(out, ref, atol=1e-4, rtol=1e-4), "mismatch vs JAX reference"

    print("KERNEL_OK")
</pallas_src>

<mosaic_0001>
module attributes {stable_mosaic.version = 11 : i64} {
  func.func @_siren_fused_kernel(%arg0: i32, %arg1: memref<2x1024xf32, #tpu.memory_space<vmem>>, %arg2: memref<32x2xf32, #tpu.memory_space<vmem>>, %arg3: memref<32x1xf32, #tpu.memory_space<vmem>>, %arg4: memref<32x32xf32, #tpu.memory_space<vmem>>, %arg5: memref<32x1xf32, #tpu.memory_space<vmem>>, %arg6: memref<1x32xf32, #tpu.memory_space<vmem>>, %arg7: memref<1x1xf32, #tpu.memory_space<vmem>>, %arg8: memref<1x1024xf32, #tpu.memory_space<vmem>>) attributes {dimension_semantics = [#tpu.dimension_semantics<parallel>], iteration_bounds = array<i64: 2>, scalar_prefetch = 0 : i64, scratch_operands = 0 : i64, tpu.core_type = #tpu.core_type<tc>, window_params = [{transform_indices = @transform_0, window_bounds = array<i64: 2, 1024>}, {pipeline_mode = #tpu.pipeline_mode<synchronous>, transform_indices = @transform_1, window_bounds = array<i64: 32, 2>}, {pipeline_mode = #tpu.pipeline_mode<synchronous>, transform_indices = @transform_2, window_bounds = array<i64: 32, 1>}, {pipeline_mode = #tpu.pipeline_mode<synchronous>, transform_indices = @transform_3, window_bounds = array<i64: 32, 32>}, {pipeline_mode = #tpu.pipeline_mode<synchronous>, transform_indices = @transform_4, window_bounds = array<i64: 32, 1>}, {pipeline_mode = #tpu.pipeline_mode<synchronous>, transform_indices = @transform_5, window_bounds = array<i64: 1, 32>}, {pipeline_mode = #tpu.pipeline_mode<synchronous>, transform_indices = @transform_6, window_bounds = array<i64: 1, 1>}, {transform_indices = @transform_7, window_bounds = array<i64: 1, 1024>}]} {
    %c0 = arith.constant 0 : index
    %c0_0 = arith.constant 0 : index
    %0 = vector.load %arg1[%c0, %c0_0] : memref<2x1024xf32, #tpu.memory_space<vmem>>, vector<2x1024xf32>
    %c0_1 = arith.constant 0 : index
    %c0_2 = arith.constant 0 : index
    %1 = vector.load %arg2[%c0_1, %c0_2] : memref<32x2xf32, #tpu.memory_space<vmem>>, vector<32x2xf32>
    %c0_3 = arith.constant 0 : index
    %c0_4 = arith.constant 0 : index
    %2 = vector.load %arg3[%c0_3, %c0_4] : memref<32x1xf32, #tpu.memory_space<vmem>>, vector<32x1xf32>
    %3 = vector.extract_strided_slice %1 {offsets = [0, 0], sizes = [32, 1], strides = [1, 1]} : vector<32x2xf32> to vector<32x1xf32>
    %4 = vector.extract_strided_slice %0 {offsets = [0, 0], sizes = [1, 1024], strides = [1, 1]} : vector<2x1024xf32> to vector<1x1024xf32>
    %5 = vector.broadcast %3 : vector<32x1xf32> to vector<32x1024xf32>
    %6 = vector.broadcast %4 : vector<1x1024xf32> to vector<32x1024xf32>
    %7 = arith.mulf %5, %6 : vector<32x1024xf32>
    %8 = vector.broadcast %2 : vector<32x1xf32> to vector<32x1024xf32>
    %9 = arith.addf %8, %7 : vector<32x1024xf32>
    %10 = vector.extract_strided_slice %1 {offsets = [0, 1], sizes = [32, 1], strides = [1, 1]} : vector<32x2xf32> to vector<32x1xf32>
    %11 = vector.extract_strided_slice %0 {offsets = [1, 0], sizes = [1, 1024], strides = [1, 1]} : vector<2x1024xf32> to vector<1x1024xf32>
    %12 = vector.broadcast %10 : vector<32x1xf32> to vector<32x1024xf32>
    %13 = vector.broadcast %11 : vector<1x1024xf32> to vector<32x1024xf32>
    %14 = arith.mulf %12, %13 : vector<32x1024xf32>
    %15 = arith.addf %9, %14 : vector<32x1024xf32>
    %16 = math.sin %15 : vector<32x1024xf32>
    %c0_5 = arith.constant 0 : index
    %c0_6 = arith.constant 0 : index
    %17 = vector.load %arg4[%c0_5, %c0_6] : memref<32x32xf32, #tpu.memory_space<vmem>>, vector<32x32xf32>
    %c0_7 = arith.constant 0 : index
    %c0_8 = arith.constant 0 : index
    %18 = vector.load %arg5[%c0_7, %c0_8] : memref<32x1xf32, #tpu.memory_space<vmem>>, vector<32x1xf32>
    %cst = arith.constant dense<0.000000e+00> : vector<32x1024xf32>
    %19 = tpu.matmul %17, %16, %cst {dimension_numbers = #tpu.dot_dimension_numbers<[1], [0], [0], [1], [0, 0, 1, 1], [], []>} : vector<32x32xf32>, vector<32x1024xf32>, vector<32x1024xf32> -> vector<32x1024xf32>
    %20 = vector.broadcast %18 : vector<32x1xf32> to vector<32x1024xf32>
    %21 = arith.addf %19, %20 : vector<32x1024xf32>
    %22 = math.sin %21 : vector<32x1024xf32>
    %c0_9 = arith.constant 0 : index
    %c0_10 = arith.constant 0 : index
    %23 = vector.load %arg6[%c0_9, %c0_10] : memref<1x32xf32, #tpu.memory_space<vmem>>, vector<1x32xf32>
    %c0_11 = arith.constant 0 : index
    %c0_12 = arith.constant 0 : index
    %24 = vector.load %arg7[%c0_11, %c0_12] : memref<1x1xf32, #tpu.memory_space<vmem>>, vector<1x1xf32>
    %25 = vector.shape_cast %23 : vector<1x32xf32> to vector<32x1xf32>
    %26 = vector.broadcast %25 : vector<32x1xf32> to vector<32x1024xf32>
    %27 = arith.mulf %26, %22 : vector<32x1024xf32>
    %cst_13 = arith.constant dense<0.000000e+00> : vector<1024xf32>
    %28 = vector.multi_reduction <add>, %27, %cst_13 [0] : vector<32x1024xf32> to vector<1024xf32>
    %29 = vector.shape_cast %28 : vector<1024xf32> to vector<1x1024xf32>
    %30 = vector.broadcast %24 : vector<1x1xf32> to vector<1x1024xf32>
    %31 = arith.addf %29, %30 : vector<1x1024xf32>
    %c0_14 = arith.constant 0 : index
    %c0_15 = arith.constant 0 : index
    %32 = vector.load %arg8[%c0_14, %c0_15] : memref<1x1024xf32, #tpu.memory_space<vmem>>, vector<1x1024xf32>
    tpu.vector_store %arg8[%c0_14, %c0_15], %31 {strides = array<i32>} : memref<1x1024xf32, #tpu.memory_space<vmem>>, vector<1x1024xf32>,
    return
  }
  func.func @transform_0(%arg0: i32) -> (i32, i32) {
    %c0_i32 = arith.constant 0 : i32
    %c0_i32_0 = arith.constant 0 : i32
    return %c0_i32, %arg0 : i32, i32
  }
  func.func @transform_1(%arg0: i32) -> (i32, i32) {
    %c0_i32 = arith.constant 0 : i32
    %c0_i32_0 = arith.constant 0 : i32
    %c0_i32_1 = arith.constant 0 : i32
    return %c0_i32, %c0_i32_0 : i32, i32
  }
  func.func @transform_2(%arg0: i32) -> (i32, i32) {
    %c0_i32 = arith.constant 0 : i32
    %c0_i32_0 = arith.constant 0 : i32
    %c0_i32_1 = arith.constant 0 : i32
    return %c0_i32, %c0_i32_0 : i32, i32
  }
  func.func @transform_3(%arg0: i32) -> (i32, i32) {
    %c0_i32 = arith.constant 0 : i32
    %c0_i32_0 = arith.constant 0 : i32
    %c0_i32_1 = arith.constant 0 : i32
    return %c0_i32, %c0_i32_0 : i32, i32
  }
  func.func @transform_4(%arg0: i32) -> (i32, i32) {
    %c0_i32 = arith.constant 0 : i32
    %c0_i32_0 = arith.constant 0 : i32
    %c0_i32_1 = arith.constant 0 : i32
    return %c0_i32, %c0_i32_0 : i32, i32
  }
  func.func @transform_5(%arg0: i32) -> (i32, i32) {
    %c0_i32 = arith.constant 0 : i32
    %c0_i32_0 = arith.constant 0 : i32
    %c0_i32_1 = arith.constant 0 : i32
    return %c0_i32, %c0_i32_0 : i32, i32
  }
  func.func @transform_6(%arg0: i32) -> (i32, i32) {
    %c0_i32 = arith.constant 0 : i32
    %c0_i32_0 = arith.constant 0 : i32
    %c0_i32_1 = arith.constant 0 : i32
    return %c0_i32, %c0_i32_0 : i32, i32
  }
  func.func @transform_7(%arg0: i32) -> (i32, i32) {
    %c0_i32 = arith.constant 0 : i32
    %c0_i32_0 = arith.constant 0 : i32
    return %c0_i32, %arg0 : i32, i32
  }
}

</mosaic_0001>

<llo_original>
// kernel: tpu_custom_call.1
$region0: #{tpu_custom_call.1}
  #allocation0 [shape = 'u32[]', space=smem, size = 0x4, offset = 0x4, fixed_abs, tag = 'smem constant byte address 0x4 - core index']
  #allocation1 [shape = 'u32[144,128]{1,0:T(1,128)}', space=vmem, size = 0x12000, scoped, tag = 'internal scratch']
  #allocation2 [shape = 'f32[1,1]{1,0:T(1,128)S(1)}', space=vmem, size = 0x200, scoped, tag = 'scoped memory for tpu_custom_call.1']
  %s0 = inlined_call_operand.vmem [shape: f32[2,2048], index: 0, kind: input, shape index: {}]
  %s1 = inlined_call_operand.vmem [shape: f32[32,2], index: 1, kind: input, shape index: {}]
  %s2 = inlined_call_operand.vmem [shape: f32[32,1], index: 2, kind: input, shape index: {}]
  %s3 = inlined_call_operand.vmem [shape: f32[32,32], index: 3, kind: input, shape index: {}]
  %s4 = inlined_call_operand.vmem [shape: f32[32,1], index: 4, kind: input, shape index: {}]
  %s5 = inlined_call_operand.vmem [shape: f32[1,32], index: 5, kind: input, shape index: {}]
  %s6 = inlined_call_operand.<no memory space> [shape: f32[1,1], index: 6, kind: input, shape index: {}]
  %s7 = inlined_call_operand.hbm [shape: f32[1,2048], index: 7, kind: output, shape index: {}]
  %s8 = sld [smem:[#allocation0]]
  $region61: #{tpu_custom_call.1} parent=0
    _
  %s10 = ssub.s32 1, %s8
  %s11 = scalar_select 0, %s10, %s8
  %v12 = vstv %s6
  %13 = vst [vmem:[#allocation2] sm:$0x1] %v12
  $region1: #{tpu_custom_call.1} parent=0
    #allocation3 [shape = 'u8[8192]{0}', space=vmem, size = 0x2000, scoped, tag = 'output window, operand 0']
    #allocation4 [shape = 's32[2]{0}', space=sflag, size = 0x8, scoped, tag = 'scoped memory for tpu_custom_call.1']
    %14 = vsyncpa [#allocation4], 0
    %s15 = scalar_lea.sflag [#allocation4], 1
    %16 = vsyncpa %s15, 0
    loop: start=0, step=1, limit=4
    $region2: #{tpu_custom_call.1} parent=1 // loop_pre_header
      _
    $region3: #{tpu_custom_call.1} parent=1 // loop_header
      %s18 = sphi 0, %s22
      %p19 = scmp.ge.s32.totalorder %s18, 4
      %s28 = sphi 0, %s30
      %s31 = sphi 0, %s28
      %s32 = sphi 0, %s31
      %s48 = sphi 0, %s32
      %s52 = sphi 0, %s52
      %s54 = sphi 0, %s52
      %s55 = sphi 0, %s54
      %s69 = sphi 0, %s55
      %s73 = sphi 0, %s73
      %s75 = sphi 0, %s73
      %s76 = sphi 0, %s75
      %s90 = sphi 0, %s76
      %s94 = sphi 0, %s94
      %s96 = sphi 0, %s94
      %s97 = sphi 0, %s96
      %s111 = sphi 0, %s97
      %s115 = sphi 0, %s115
      %s117 = sphi 0, %s115
      %s118 = sphi 0, %s117
      %s132 = sphi 0, %s118
      %s136 = sphi 0, %s136
      %s138 = sphi 0, %s136
      %s139 = sphi 0, %s138
      %s153 = sphi 0, %s139
      %s157 = sphi 0, %s157
      %s159 = sphi 0, %s157
      %s160 = sphi 0, %s159
      %s174 = sphi 0, %s160
      %s180 = sphi 0, %s182
      %s183 = sphi 0, %s180
      %s184 = sphi 0, %s183
      %s200 = sphi 0, %s184
    $region4: #{tpu_custom_call.1} parent=1 // loop_header_branch
      %21 = sbr.rel (%p19) target = $region8
    $region5: #{tpu_custom_call.1} parent=1 // loop_body
      %s23 = ssub.s32 %s18, 1
      %s24 = ssub.s32 %s18, 2
      %s25 = sadd.s32 %s18, 1
      %s26 = ssub.s32 %s18, %s25
      %p27 = scmp.eq.s32.totalorder %s26, 0
      %s29 = sadd.s32 %s28, 1
      %s30 = scalar_select %p27, %s28, %s29
      %p33 = pneg %p27
      %p34 = scmp.eq.s32.totalorder %s18, 1
      %p35 = por %p33, %p34
      %p36 = scmp.ne.s32.totalorder %s28, %s31
      %p37 = scmp.eq.s32.totalorder %s18, 0
      %p38 = por %p36, %p37
      %p39 = scmp.ne.s32.totalorder %s28, %s31
      %p40 = scmp.eq.s32.totalorder %s23, 1
      %p41 = por %p39, %p40
      %p42 = scmp.ne.s32.totalorder %s31, %s32
      %p43 = scmp.eq.s32.totalorder %s23, 0
      %p44 = por %p42, %p43
      %p45 = scmp.ne.s32.totalorder %s31, %s32
      %p46 = scmp.eq.s32.totalorder %s24, 1
      %p47 = por %p45, %p46
      %p49 = scmp.ne.s32.totalorder %s32, %s48
      %p50 = scmp.eq.s32.totalorder %s24, 0
      %p51 = por %p49, %p50
      %s53 = sadd.s32 %s52, 1
      %p56 = scmp.eq.s32.totalorder %s18, 1
      %p57 = scmp.ne.s32.totalorder %s52, %s54
      %p58 = scmp.eq.s32.totalorder %s18, 0
      %p59 = por %p57, %p58
      %p60 = scmp.ne.s32.totalorder %s52, %s54
      %p61 = scmp.eq.s32.totalorder %s23, 1
      %p62 = por %p60, %p61
      %p63 = scmp.ne.s32.totalorder %s54, %s55
      %p64 = scmp.eq.s32.totalorder %s23, 0
      %p65 = por %p63, %p64
      %p66 = scmp.ne.s32.totalorder %s54, %s55
      %p67 = scmp.eq.s32.totalorder %s24, 1
      %p68 = por %p66, %p67
      %p70 = scmp.ne.s32.totalorder %s55, %s69
      %p71 = scmp.eq.s32.totalorder %s24, 0
      %p72 = por %p70, %p71
      %s74 = sadd.s32 %s73, 1
      %p77 = scmp.eq.s32.totalorder %s18, 1
      %p78 = scmp.ne.s32.totalorder %s73, %s75
      %p79 = scmp.eq.s32.totalorder %s18, 0
      %p80 = por %p78, %p79
      %p81 = scmp.ne.s32.totalorder %s73, %s75
      %p82 = scmp.eq.s32.totalorder %s23, 1
      %p83 = por %p81, %p82
      %p84 = scmp.ne.s32.totalorder %s75, %s76
      %p85 = scmp.eq.s32.totalorder %s23, 0
      %p86 = por %p84, %p85
      %p87 = scmp.ne.s32.totalorder %s75, %s76
      %p88 = scmp.eq.s32.totalorder %s24, 1
      %p89 = por %p87, %p88
      %p91 = scmp.ne.s32.totalorder %s76, %s90
      %p92 = scmp.eq.s32.totalorder %s24, 0
      %p93 = por %p91, %p92
      %s95 = sadd.s32 %s94, 1
      %p98 = scmp.eq.s32.totalorder %s18, 1
      %p99 = scmp.ne.s32.totalorder %s94, %s96
      %p100 = scmp.eq.s32.totalorder %s18, 0
      %p101 = por %p99, %p100
      %p102 = scmp.ne.s32.totalorder %s94, %s96
      %p103 = scmp.eq.s32.totalorder %s23, 1
      %p104 = por %p102, %p103
      %p105 = scmp.ne.s32.totalorder %s96, %s97
      %p106 = scmp.eq.s32.totalorder %s23, 0
      %p107 = por %p105, %p106
      %p108 = scmp.ne.s32.totalorder %s96, %s97
      %p109 = scmp.eq.s32.totalorder %s24, 1
      %p110 = por %p108, %p109
      %p112 = scmp.ne.s32.totalorder %s97, %s111
      %p113 = scmp.eq.s32.totalorder %s24, 0
      %p114 = por %p112, %p113
      %s116 = sadd.s32 %s115, 1
      %p119 = scmp.eq.s32.totalorder %s18, 1
      %p120 = scmp.ne.s32.totalorder %s115, %s117
      %p121 = scmp.eq.s32.totalorder %s18, 0
      %p122 = por %p120, %p121
      %p123 = scmp.ne.s32.totalorder %s115, %s117
      %p124 = scmp.eq.s32.totalorder %s23, 1
      %p125 = por %p123, %p124
      %p126 = scmp.ne.s32.totalorder %s117, %s118
      %p127 = scmp.eq.s32.totalorder %s23, 0
      %p128 = por %p126, %p127
      %p129 = scmp.ne.s32.totalorder %s117, %s118
      %p130 = scmp.eq.s32.totalorder %s24, 1
      %p131 = por %p129, %p130
      %p133 = scmp.ne.s32.totalorder %s118, %s132
      %p134 = scmp.eq.s32.totalorder %s24, 0
      %p135 = por %p133, %p134
      %s137 = sadd.s32 %s136, 1
      %p140 = scmp.eq.s32.totalorder %s18, 1
      %p141 = scmp.ne.s32.totalorder %s136, %s138
      %p142 = scmp.eq.s32.totalorder %s18, 0
      %p143 = por %p141, %p142
      %p144 = scmp.ne.s32.totalorder %s136, %s138
      %p145 = scmp.eq.s32.totalorder %s23, 1
      %p146 = por %p144, %p145
      %p147 = scmp.ne.s32.totalorder %s138, %s139
      %p148 = scmp.eq.s32.totalorder %s23, 0
      %p149 = por %p147, %p148
      %p150 = scmp.ne.s32.totalorder %s138, %s139
      %p151 = scmp.eq.s32.totalorder %s24, 1
      %p152 = por %p150, %p151
      %p154 = scmp.ne.s32.totalorder %s139, %s153
      %p155 = scmp.eq.s32.totalorder %s24, 0
      %p156 = por %p154, %p155
      %s158 = sadd.s32 %s157, 1
      %p161 = scmp.eq.s32.totalorder %s18, 1
      %p162 = scmp.ne.s32.totalorder %s157, %s159
      %p163 = scmp.eq.s32.totalorder %s18, 0
      %p164 = por %p162, %p163
      %p165 = scmp.ne.s32.totalorder %s157, %s159
      %p166 = scmp.eq.s32.totalorder %s23, 1
      %p167 = por %p165, %p166
      %p168 = scmp.ne.s32.totalorder %s159, %s160
      %p169 = scmp.eq.s32.totalorder %s23, 0
      %p170 = por %p168, %p169
      %p171 = scmp.ne.s32.totalorder %s159, %s160
      %p172 = scmp.eq.s32.totalorder %s24, 1
      %p173 = por %p171, %p172
      %p175 = scmp.ne.s32.totalorder %s160, %s174
      %p176 = scmp.eq.s32.totalorder %s24, 0
      %p177 = por %p175, %p176
      %s178 = ssub.s32 %s18, %s25
      %p179 = scmp.eq.s32.totalorder %s178, 0
      %s181 = sadd.s32 %s180, 1
      %s182 = scalar_select %p179, %s180, %s181
      %p185 = pneg %p179
      %p186 = scmp.eq.s32.totalorder %s18, 1
      %p187 = por %p185, %p186
      %p188 = scmp.ne.s32.totalorder %s180, %s183
      %p189 = scmp.eq.s32.totalorder %s18, 0
      %p190 = por %p188, %p189
      %p191 = scmp.ne.s32.totalorder %s180, %s183
      %p192 = scmp.eq.s32.totalorder %s23, 1
      %p193 = por %p191, %p192
      %p194 = scmp.ne.s32.totalorder %s183, %s184
      %p195 = scmp.eq.s32.totalorder %s23, 0
      %p196 = por %p194, %p195
      %p197 = scmp.ne.s32.totalorder %s183, %s184
      %p198 = scmp.eq.s32.totalorder %s24, 1
      %p199 = por %p197, %p198
      %p201 = scmp.ne.s32.totalorder %s184, %s200
      %p202 = scmp.eq.s32.totalorder %s24, 0
      %p203 = por %p201, %p202
      %p204 = scmp.le.s32.totalorder 1, %s18
      %p205 = scmp.lt.s32.totalorder %s18, 3
      %p206 = pnand %p204, %p205
      %p207 = pneg %p206
      // Predicated region
      $region9: #{tpu_custom_call.1} parent=5 // pred_check
        _
      $region10: #{tpu_custom_call.1} parent=5 // pred_check_branch
        %209 = sbr.rel (%p206) target = $region12
      $region11: #{tpu_custom_call.1} parent=5 // pred_region
        %s210 = ssub.s32 %s18, 1
        // Predicated region
        $region13: #{tpu_custom_call.1} parent=11 // pred_check
          %p211 = pneg %p65
        $region14: #{tpu_custom_call.1} parent=11 // pred_check_branch
          %213 = sbr.rel (%p211) target = $region16
        $region15: #{tpu_custom_call.1} parent=11 // pred_region
          _
        $region16: #{tpu_custom_call.1} parent=11 // pred_fallthru
          _
        // Predicated region
        $region17: #{tpu_custom_call.1} parent=11 // pred_check
          %p214 = pneg %p86
        $region18: #{tpu_custom_call.1} parent=11 // pred_check_branch
          %216 = sbr.rel (%p214) target = $region20
        $region19: #{tpu_custom_call.1} parent=11 // pred_region
          _
        $region20: #{tpu_custom_call.1} parent=11 // pred_fallthru
          _
        // Predicated region
        $region21: #{tpu_custom_call.1} parent=11 // pred_check
          %p217 = pneg %p107
        $region22: #{tpu_custom_call.1} parent=11 // pred_check_branch
          %219 = sbr.rel (%p217) target = $region24
        $region23: #{tpu_custom_call.1} parent=11 // pred_region
          _
        $region24: #{tpu_custom_call.1} parent=11 // pred_fallthru
          _
        // Predicated region
        $region25: #{tpu_custom_call.1} parent=11 // pred_check
          %p220 = pneg %p128
        $region26: #{tpu_custom_call.1} parent=11 // pred_check_branch
          %222 = sbr.rel (%p220) target = $region28
        $region27: #{tpu_custom_call.1} parent=11 // pred_region
          _
        $region28: #{tpu_custom_call.1} parent=11 // pred_fallthru
          _
        // Predicated region
        $region29: #{tpu_custom_call.1} parent=11 // pred_check
          %p223 = pneg %p149
        $region30: #{tpu_custom_call.1} parent=11 // pred_check_branch
          %225 = sbr.rel (%p223) target = $region32
        $region31: #{tpu_custom_call.1} parent=11 // pred_region
          _
        $region32: #{tpu_custom_call.1} parent=11 // pred_fallthru
          _
        // Predicated region
        $region33: #{tpu_custom_call.1} parent=11 // pred_check
          %p226 = pneg %p170
        $region34: #{tpu_custom_call.1} parent=11 // pred_check_branch
          %228 = sbr.rel (%p226) target = $region36
        $region35: #{tpu_custom_call.1} parent=11 // pred_region
          _
        $region36: #{tpu_custom_call.1} parent=11 // pred_fallthru
          _
      $region12: #{tpu_custom_call.1} parent=5 // pred_fallthru
        _
      %p229 = scmp.lt.s32.totalorder %s18, 2
      // Predicated region
      $region37: #{tpu_custom_call.1} parent=5 // pred_check
        %p230 = pneg %p229
      $region38: #{tpu_custom_call.1} parent=5 // pred_check_branch
        %232 = sbr.rel (%p230) target = $region40
      $region39: #{tpu_custom_call.1} parent=5 // pred_region
        // Predicated region
        $region41: #{tpu_custom_call.1} parent=39 // pred_check
          %p233 = pneg %p38
        $region42: #{tpu_custom_call.1} parent=39 // pred_check_branch
          %235 = sbr.rel (%p233) target = $region44
        $region43: #{tpu_custom_call.1} parent=39 // pred_region
          %s236 = smul.u32 8, %s18
          %p237 = scmp.lt.s32.totalorder %s236, 15
          %s238 = scalar_select %p237, %s236, 15
          %s239 = smul.addr %s238, 2
          %s240 = scalar_lea.vmem %s0, %s239
          %s241 = smul.u32 8, %s18
        $region44: #{tpu_custom_call.1} parent=39 // pred_fallthru
          _
      $region40: #{tpu_custom_call.1} parent=5 // pred_fallthru
        _
      %p242 = scmp.le.s32.totalorder 1, %s18
      %p243 = scmp.lt.s32.totalorder %s18, 3
      %p244 = pnand %p242, %p243
      %p245 = pneg %p244
      // Predicated region
      $region45: #{tpu_custom_call.1} parent=5 // pred_check
        _
      $region46: #{tpu_custom_call.1} parent=5 // pred_check_branch
        %247 = sbr.rel (%p244) target = $region48
      $region47: #{tpu_custom_call.1} parent=5 // pred_region
        %s248 = ssub.s32 %s18, 1
        %s249 = smul.u32 8, %s23
        %p250 = scmp.lt.s32.totalorder %s249, 15
        %s251 = scalar_select %p250, %s249, 15
        %s252 = smul.addr %s251, 2
        %s253 = scalar_lea.vmem %s0, %s252
        %p254 = pneg %p44
        %p255 = pneg %p41
        %p256 = pneg %p65
        %p257 = pneg %p62
        %p258 = pneg %p86
        %p259 = pneg %p83
        %p260 = pneg %p107
        %p261 = pneg %p104
        %p262 = pneg %p128
        %p263 = pneg %p125
        %p264 = pneg %p149
        %p265 = pneg %p146
        %p266 = pneg %p170
        %p267 = pneg %p167
        %p268 = pneg %p196
        %p269 = pneg %p193
        %s270 = sand.u32 %s183, 1
        %s271 = scalar_lea.sflag [#allocation4], %s270
        %s272 = sand.u32 %s183, 1
        %s273 = smul.addr %s272, 8
        %s274 = scalar_lea.vmem [#allocation3], %s273
        %s275 = smul.u32 8, %s23
        %p276 = scmp.lt.s32.totalorder %s275, 15
        %s277 = scalar_select %p276, %s275, 15
        %s278 = smul.addr %s277, 2
        %s279 = scalar_lea.vmem %s0, %s278
        %s280 = smul.u32 8, %s23
        %s281 = smul.u32 8, %s23
        %v282 = vld [vmem:[%s279] sm:$0xff]
        %v283 = vld [vmem:[%s279 + $0x8] sm:$0xff]
        %v284 = vld [vmem:[%s1] sm:$0xff]
        %v285 = vld [vmem:[%s1 + $0x8] sm:$0xff]
        %v286 = vld [vmem:[%s1 + $0x10] sm:$0xff]
        %v287 = vld [vmem:[%s1 + $0x18] sm:$0xff]
        %v288 = vld [vmem:[%s2] sm:$0xff]
        %v289 = vld [vmem:[%s2 + $0x8] sm:$0xff]
        %v290 = vld [vmem:[%s2 + $0x10] sm:$0xff]
        %v291 = vld [vmem:[%s2 + $0x18] sm:$0xff]
        %293 = vset.pattern.permute.xlu0 0
        %294 = vperm.xlu0 %293, %v284
        %v295 = vpop.permute.xlu0 %294
        %298 = vset.pattern.permute.xlu0 0
        %299 = vperm.xlu0 %298, %v285
        %v300 = vpop.permute.xlu0 %299
        %303 = vset.pattern.permute.xlu0 0
        %304 = vperm.xlu0 %303, %v286
        %v305 = vpop.permute.xlu0 %304
        %308 = vset.pattern.permute.xlu0 0
        %309 = vperm.xlu0 %308, %v287
        %v310 = vpop.permute.xlu0 %309
        %v314 = vlaneseq
        %v315 = vshrl.u32 %v314, 7
        %v316 = vsub.s32 0, %v315
        %v317 = vrot.slane %v282, %v316
        %v318 = vlaneseq
        %v319 = vshrl.u32 %v318, 7
        %v320 = vsub.s32 2, %v319
        %v321 = vrot.slane %v282, %v320
        %v322 = vlaneseq
        %v323 = vshrl.u32 %v322, 7
        %v324 = vsub.s32 4, %v323
        %v325 = vrot.slane %v282, %v324
        %v326 = vlaneseq
        %v327 = vshrl.u32 %v326, 7
        %v328 = vsub.s32 6, %v327
        %v329 = vrot.slane %v282, %v328
        %v330 = vlaneseq
        %v331 = vshrl.u32 %v330, 7
        %v332 = vsub.s32 0, %v331
        %v333 = vrot.slane %v283, %v332
        %v334 = vlaneseq
        %v335 = vshrl.u32 %v334, 7
        %v336 = vsub.s32 2, %v335
        %v337 = vrot.slane %v283, %v336
        %v338 = vlaneseq
        %v339 = vshrl.u32 %v338, 7
        %v340 = vsub.s32 4, %v339
        %v341 = vrot.slane %v283, %v340
        %v342 = vlaneseq
        %v343 = vshrl.u32 %v342, 7
        %v344 = vsub.s32 6, %v343
        %v345 = vrot.slane %v283, %v344
        %v354 = vlaneseq
        %v355 = vshrl.u32 %v354, 7
        %v356 = vsub.s32 0, %v355
        %v357 = vrot.slane %v317, %v356
        %v358 = vlaneseq
        %v359 = vshrl.u32 %v358, 7
        %v360 = vsub.s32 0, %v359
        %v361 = vrot.slane %v321, %v360
        %v362 = vlaneseq
        %v363 = vshrl.u32 %v362, 7
        %v364 = vsub.s32 0, %v363
        %v365 = vrot.slane %v325, %v364
        %v366 = vlaneseq
        %v367 = vshrl.u32 %v366, 7
        %v368 = vsub.s32 0, %v367
        %v369 = vrot.slane %v329, %v368
        %v370 = vlaneseq
        %v371 = vshrl.u32 %v370, 7
        %v372 = vsub.s32 0, %v371
        %v373 = vrot.slane %v333, %v372
        %v374 = vlaneseq
        %v375 = vshrl.u32 %v374, 7
        %v376 = vsub.s32 0, %v375
        %v377 = vrot.slane %v337, %v376
        %v378 = vlaneseq
        %v379 = vshrl.u32 %v378, 7
        %v380 = vsub.s32 0, %v379
        %v381 = vrot.slane %v341, %v380
        %v382 = vlaneseq
        %v383 = vshrl.u32 %v382, 7
        %v384 = vsub.s32 0, %v383
        %v385 = vrot.slane %v345, %v384
        %v386 = vmul.f32 %v295, %v357
        %v387 = vmul.f32 %v295, %v361
        %v388 = vmul.f32 %v295, %v365
        %v389 = vmul.f32 %v295, %v369
        %v390 = vmul.f32 %v295, %v373
        %v391 = vmul.f32 %v295, %v377
        %v392 = vmul.f32 %v295, %v381
        %v393 = vmul.f32 %v295, %v385
        %v394 = vmul.f32 %v300, %v357
        %v395 = vmul.f32 %v300, %v361
        %v396 = vmul.f32 %v300, %v365
        %v397 = vmul.f32 %v300, %v369
        %v398 = vmul.f32 %v300, %v373
        %v399 = vmul.f32 %v300, %v377
        %v400 = vmul.f32 %v300, %v381
        %v401 = vmul.f32 %v300, %v385
        %v402 = vmul.f32 %v305, %v357
        %v403 = vmul.f32 %v305, %v361
        %v404 = vmul.f32 %v305, %v365
        %v405 = vmul.f32 %v305, %v369
        %v406 = vmul.f32 %v305, %v373
        %v407 = vmul.f32 %v305, %v377
        %v408 = vmul.f32 %v305, %v381
        %v409 = vmul.f32 %v305, %v385
        %v410 = vmul.f32 %v310, %v357
        %v411 = vmul.f32 %v310, %v361
        %v412 = vmul.f32 %v310, %v365
        %v413 = vmul.f32 %v310, %v369
        %v414 = vmul.f32 %v310, %v373
        %v415 = vmul.f32 %v310, %v377
        %v416 = vmul.f32 %v310, %v381
        %v417 = vmul.f32 %v310, %v385
        %419 = vset.pattern.permute.xlu0 0
        %420 = vperm.xlu0 %419, %v288
        %v421 = vpop.permute.xlu0 %420
        %424 = vset.pattern.permute.xlu0 0
        %425 = vperm.xlu0 %424, %v289
        %v426 = vpop.permute.xlu0 %425
        %429 = vset.pattern.permute.xlu0 0
        %430 = vperm.xlu0 %429, %v290
        %v431 = vpop.permute.xlu0 %430
        %434 = vset.pattern.permute.xlu0 0
        %435 = vperm.xlu0 %434, %v291
        %v436 = vpop.permute.xlu0 %435
        %v438 = vadd.f32 %v421, %v386
        %v439 = vadd.f32 %v421, %v387
        %v440 = vadd.f32 %v421, %v388
        %v441 = vadd.f32 %v421, %v389
        %v442 = vadd.f32 %v421, %v390
        %v443 = vadd.f32 %v421, %v391
        %v444 = vadd.f32 %v421, %v392
        %v445 = vadd.f32 %v421, %v393
        %v446 = vadd.f32 %v426, %v394
        %v447 = vadd.f32 %v426, %v395
        %v448 = vadd.f32 %v426, %v396
        %v449 = vadd.f32 %v426, %v397
        %v450 = vadd.f32 %v426, %v398
        %v451 = vadd.f32 %v426, %v399
        %v452 = vadd.f32 %v426, %v400
        %v453 = vadd.f32 %v426, %v401
        %v454 = vadd.f32 %v431, %v402
        %v455 = vadd.f32 %v431, %v403
        %v456 = vadd.f32 %v431, %v404
        %v457 = vadd.f32 %v431, %v405
        %v458 = vadd.f32 %v431, %v406
        %v459 = vadd.f32 %v431, %v407
        %v460 = vadd.f32 %v431, %v408
        %v461 = vadd.f32 %v431, %v409
        %v462 = vadd.f32 %v436, %v410
        %v463 = vadd.f32 %v436, %v411
        %v464 = vadd.f32 %v436, %v412
        %v465 = vadd.f32 %v436, %v413
        %v466 = vadd.f32 %v436, %v414
        %v467 = vadd.f32 %v436, %v415
        %v468 = vadd.f32 %v436, %v416
        %v469 = vadd.f32 %v436, %v417
        %470 = vset.pattern.permute.xlu0 1
        %471 = vperm.xlu0 %470, %v284
        %v472 = vpop.permute.xlu0 %471
        %474 = vset.pattern.permute.xlu0 1
        %475 = vperm.xlu0 %474, %v285
        %v476 = vpop.permute.xlu0 %475
        %478 = vset.pattern.permute.xlu0 1
        %479 = vperm.xlu0 %478, %v286
        %v480 = vpop.permute.xlu0 %479
        %482 = vset.pattern.permute.xlu0 1
        %483 = vperm.xlu0 %482, %v287
        %v484 = vpop.permute.xlu0 %483
        %v486 = vlaneseq
        %v487 = vshrl.u32 %v486, 7
        %v488 = vsub.s32 1, %v487
        %v489 = vrot.slane %v282, %v488
        %v490 = vlaneseq
        %v491 = vshrl.u32 %v490, 7
        %v492 = vsub.s32 3, %v491
        %v493 = vrot.slane %v282, %v492
        %v494 = vlaneseq
        %v495 = vshrl.u32 %v494, 7
        %v496 = vsub.s32 5, %v495
        %v497 = vrot.slane %v282, %v496
        %v498 = vlaneseq
        %v499 = vshrl.u32 %v498, 7
        %v500 = vsub.s32 7, %v499
        %v501 = vrot.slane %v282, %v500
        %v502 = vlaneseq
        %v503 = vshrl.u32 %v502, 7
        %v504 = vsub.s32 1, %v503
        %v505 = vrot.slane %v283, %v504
        %v506 = vlaneseq
        %v507 = vshrl.u32 %v506, 7
        %v508 = vsub.s32 3, %v507
        %v509 = vrot.slane %v283, %v508
        %v510 = vlaneseq
        %v511 = vshrl.u32 %v510, 7
        %v512 = vsub.s32 5, %v511
        %v513 = vrot.slane %v283, %v512
        %v514 = vlaneseq
        %v515 = vshrl.u32 %v514, 7
        %v516 = vsub.s32 7, %v515
        %v517 = vrot.slane %v283, %v516
        %v526 = vlaneseq
        %v527 = vshrl.u32 %v526, 7
        %v528 = vsub.s32 1, %v527
        %v529 = vrot.slane %v489, %v528
        %v530 = vlaneseq
        %v531 = vshrl.u32 %v530, 7
        %v532 = vsub.s32 1, %v531
        %v533 = vrot.slane %v493, %v532
        %v534 = vlaneseq
        %v535 = vshrl.u32 %v534, 7
        %v536 = vsub.s32 1, %v535
        %v537 = vrot.slane %v497, %v536
        %v538 = vlaneseq
        %v539 = vshrl.u32 %v538, 7
        %v540 = vsub.s32 1, %v539
        %v541 = vrot.slane %v501, %v540
        %v542 = vlaneseq
        %v543 = vshrl.u32 %v542, 7
        %v544 = vsub.s32 1, %v543
        %v545 = vrot.slane %v505, %v544
        %v546 = vlaneseq
        %v547 = vshrl.u32 %v546, 7
        %v548 = vsub.s32 1, %v547
        %v549 = vrot.slane %v509, %v548
        %v550 = vlaneseq
        %v551 = vshrl.u32 %v550, 7
        %v552 = vsub.s32 1, %v551
        %v553 = vrot.slane %v513, %v552
        %v554 = vlaneseq
        %v555 = vshrl.u32 %v554, 7
        %v556 = vsub.s32 1, %v555
        %v557 = vrot.slane %v517, %v556
        %v558 = vmul.f32 %v472, %v529
        %v559 = vmul.f32 %v472, %v533
        %v560 = vmul.f32 %v472, %v537
        %v561 = vmul.f32 %v472, %v541
        %v562 = vmul.f32 %v472, %v545
        %v563 = vmul.f32 %v472, %v549
        %v564 = vmul.f32 %v472, %v553
        %v565 = vmul.f32 %v472, %v557
        %v566 = vmul.f32 %v476, %v529
        %v567 = vmul.f32 %v476, %v533
        %v568 = vmul.f32 %v476, %v537
        %v569 = vmul.f32 %v476, %v541
        %v570 = vmul.f32 %v476, %v545
        %v571 = vmul.f32 %v476, %v549
        %v572 = vmul.f32 %v476, %v553
        %v573 = vmul.f32 %v476, %v557
        %v574 = vmul.f32 %v480, %v529
        %v575 = vmul.f32 %v480, %v533
        %v576 = vmul.f32 %v480, %v537
        %v577 = vmul.f32 %v480, %v541
        %v578 = vmul.f32 %v480, %v545
        %v579 = vmul.f32 %v480, %v549
        %v580 = vmul.f32 %v480, %v553
        %v581 = vmul.f32 %v480, %v557
        %v582 = vmul.f32 %v484, %v529
        %v583 = vmul.f32 %v484, %v533
        %v584 = vmul.f32 %v484, %v537
        %v585 = vmul.f32 %v484, %v541
        %v586 = vmul.f32 %v484, %v545
        %v587 = vmul.f32 %v484, %v549
        %v588 = vmul.f32 %v484, %v553
        %v589 = vmul.f32 %v484, %v557
        %v590 = vadd.f32 %v438, %v558
        %v591 = vadd.f32 %v439, %v559
        %v592 = vadd.f32 %v440, %v560
        %v593 = vadd.f32 %v441, %v561
        %v594 = vadd.f32 %v442, %v562
        %v595 = vadd.f32 %v443, %v563
        %v596 = vadd.f32 %v444, %v564
        %v597 = vadd.f32 %v445, %v565
        %v598 = vadd.f32 %v446, %v566
        %v599 = vadd.f32 %v447, %v567
        %v600 = vadd.f32 %v448, %v568
        %v601 = vadd.f32 %v449, %v569
        %v602 = vadd.f32 %v450, %v570
        %v603 = vadd.f32 %v451, %v571
        %v604 = vadd.f32 %v452, %v572
        %v605 = vadd.f32 %v453, %v573
        %v606 = vadd.f32 %v454, %v574
        %v607 = vadd.f32 %v455, %v575
        %v608 = vadd.f32 %v456, %v576
        %v609 = vadd.f32 %v457, %v577
        %v610 = vadd.f32 %v458, %v578
        %v611 = vadd.f32 %v459, %v579
        %v612 = vadd.f32 %v460, %v580
        %v613 = vadd.f32 %v461, %v581
        %v614 = vadd.f32 %v462, %v582
        %v615 = vadd.f32 %v463, %v583
        %v616 = vadd.f32 %v464, %v584
        %v617 = vadd.f32 %v465, %v585
        %v618 = vadd.f32 %v466, %v586
        %v619 = vadd.f32 %v467, %v587
        %v620 = vadd.f32 %v468, %v588
        %v621 = vadd.f32 %v469, %v589
        %v622 = vand.u32 2147483647, %v590
        %vm623 = vcmp.le.f32.partialorder %v622, 0.7853982
        %vm624 = vcmp.lt.s32.totalorder %v590, 0
        %v625 = vand.u32 %v590, 2139095040
        %v626 = vshrl.u32 %v625, 23
        %v627 = vsub.s32 %v626, 127
        %v628 = vand.u32 2147483647, %v590
        %v629 = vand.u32 %v628, 8388607
        %v630 = vor.u32 %v629, 8388608
        %v631 = vsub.s32 0, %v630
        %v632 = vadd.s32 %v627, 1
        %vm633 = vcmp.gt.s32.totalorder %v632, 0
        %v634 = vsel %vm633, %v632, 0
        %v635 = vshrl.u32 %v634, 5
        %v636 = vand.u32 %v634, 31
        %v637 = vsub.s32 32, %v636
        %v638 = vshrl.u32 683565275, %v637
        %v639 = vshll.u32 683565275, %v636
        %v640 = vshrl.u32 2475754826, %v637
        %v641 = vor.u32 %v639, %v640
        %v642 = vshll.u32 2475754826, %v636
        %v643 = vshrl.u32 2131351028, %v637
        %v644 = vor.u32 %v642, %v643
        %v645 = vshll.u32 2131351028, %v636
        %v646 = vshrl.u32 2102212464, %v637
        %v647 = vor.u32 %v645, %v646
        %v648 = vshll.u32 2102212464, %v636
        %v649 = vshrl.u32 920167782, %v637
        %v650 = vor.u32 %v648, %v649
        %v651 = vshll.u32 920167782, %v636
        %v652 = vshrl.u32 1326507024, %v637
        %v653 = vor.u32 %v651, %v652
        %vm654 = vcmp.lt.s32.totalorder %v635, 1
        %vm655 = vcmp.lt.s32.totalorder %v635, 2
        %vm656 = vcmp.lt.s32.totalorder %v635, 3
        %vm657 = vcmp.lt.s32.totalorder %v635, 4
        %v658 = vsel %vm654, %v638, %v641
        %v659 = vsel %vm657, %v647, 2102212464
        %v660 = vsel %vm656, %v644, %v659
        %v661 = vsel %vm655, %v658, %v660
        %v662 = vsel %vm654, %v641, %v644
        %v663 = vsel %vm657, %v650, 920167782
        %v664 = vsel %vm656, %v647, %v663
        %v665 = vsel %vm655, %v662, %v664
        %v666 = vsel %vm654, %v644, %v647
        %v667 = vsel %vm657, %v653, 1326507024
        %v668 = vsel %vm656, %v650, %v667
        %v669 = vsel %vm655, %v666, %v668
        %v670 = vshll.u32 %v630, 8
        %v671 = vmul.u32.u64.compose %v670, %v669
        %v672 = vextract.low.u32 %v671
        %v673 = vextract.high.u32 %v671
        %v674 = vmul.u32.u64.compose %v670, %v665
        %v675 = vextract.low.u32 %v674
        %v676 = vextract.high.u32 %v674
        %v677 = vmul.u32 %v670, %v661
        %v678 = vadd.s32 %v673, %v675
        %vm679 = vc.u32 %v673, %v675
        %v680 = vadd.s32 %v676, 1
        %v681 = vsel %vm679, %v680, %v676
        %v682 = vadd.s32 %v677, %v681
        %v683 = vadd.s32 %v682, 536870912
        %v684 = vshrl.u32 %v683, 30
        %v685 = vshll.u32 %v684, 30
        %v686 = vsub.s32 %v682, %v685
        %vm687 = vcmp.lt.s32.totalorder %v686, 0
        %v688 = vsub.s32 0, %v686
        %v689 = vsel %vm687, %v688, %v686
        %v690 = vclz %v689
        %v691 = vsub.s32 %v690, 2
        %vm692 = vcmp.gt.s32.totalorder 0, %v691
        %v693 = vsel %vm692, 0, %v691
        %v694 = vsub.s32 32, %v693
        %v695 = vshll.u32 %v686, %v693
        %v696 = vshrl.u32 %v678, %v694
        %v697 = vor.u32 %v695, %v696
        %v698 = vsub.s32 4294967266, %v693
        %v699 = vadd.s32 %v698, 127
        %v700 = vshll.u32 %v699, 23
        %v701 = vor.u32 4788187, %v700
        %v702 = vand.u32 2147483647, %v701
        %v704 = vcvt.s32.f32 %v697
        %v705 = vmul.f32 %v704, %v702
        %v706 = vxor.u32 %v705, 2147483648
        %v707 = vsel %vm624, %v706, %v705
        %v708 = vsub.s32 4, %v684
        %v709 = vsel %vm624, %v708, %v684
        %v710 = vsel %vm623, %v590, %v707
        %v711 = vsel %vm623, 0, %v709
        %v712 = vcosq.f32.pop %v710
        %v713 = vsinq.f32.pop %v710
        %vm714 = vweird.f32 %v590
        %v715 = vadd.s32 %v711, 3
        %v716 = vand.u32 %v715, 3
        %vm717 = vcmp.lt.s32.totalorder %v716, 2
        %vm718 = vcmp.eq.s32.totalorder %v716, 0
        %v719 = vxor.u32 %v713, 2147483648
        %v720 = vsel %vm718, %v712, %v719
        %vm721 = vcmp.eq.s32.totalorder %v716, 2
        %v722 = vxor.u32 %v712, 2147483648
        %v723 = vsel %vm721, %v722, %v713
        %v724 = vsel %vm717, %v720, %v723
        %v725 = vsel %vm714, nan, %v724
        %v726 = vand.u32 2147483647, %v591
        %vm727 = vcmp.le.f32.partialorder %v726, 0.7853982
        %vm728 = vcmp.lt.s32.totalorder %v591, 0
        %v729 = vand.u32 %v591, 2139095040
        %v730 = vshrl.u32 %v729, 23
        %v731 = vsub.s32 %v730, 127
        %v732 = vand.u32 2147483647, %v591
        %v733 = vand.u32 %v732, 8388607
        %v734 = vor.u32 %v733, 8388608
        %v735 = vsub.s32 0, %v734
        %v736 = vadd.s32 %v731, 1
        %vm737 = vcmp.gt.s32.totalorder %v736, 0
        %v738 = vsel %vm737, %v736, 0
        %v739 = vshrl.u32 %v738, 5
        %v740 = vand.u32 %v738, 31
        %v741 = vsub.s32 32, %v740
        %v742 = vshrl.u32 683565275, %v741
        %v743 = vshll.u32 683565275, %v740
        %v744 = vshrl.u32 2475754826, %v741
        %v745 = vor.u32 %v743, %v744
        %v746 = vshll.u32 2475754826, %v740
        %v747 = vshrl.u32 2131351028, %v741
        %v748 = vor.u32 %v746, %v747
        %v749 = vshll.u32 2131351028, %v740
        %v750 = vshrl.u32 2102212464, %v741
        %v751 = vor.u32 %v749, %v750
        %v752 = vshll.u32 2102212464, %v740
        %v753 = vshrl.u32 920167782, %v741
        %v754 = vor.u32 %v752, %v753
        %v755 = vshll.u32 920167782, %v740
        %v756 = vshrl.u32 1326507024, %v741
        %v757 = vor.u32 %v755, %v756
        %vm758 = vcmp.lt.s32.totalorder %v739, 1
        %vm759 = vcmp.lt.s32.totalorder %v739, 2
        %vm760 = vcmp.lt.s32.totalorder %v739, 3
        %vm761 = vcmp.lt.s32.totalorder %v739, 4
        %v762 = vsel %vm758, %v742, %v745
        %v763 = vsel %vm761, %v751, 2102212464
        %v764 = vsel %vm760, %v748, %v763
        %v765 = vsel %vm759, %v762, %v764
        %v766 = vsel %vm758, %v745, %v748
        %v767 = vsel %vm761, %v754, 920167782
        %v768 = vsel %vm760, %v751, %v767
        %v769 = vsel %vm759, %v766, %v768
        %v770 = vsel %vm758, %v748, %v751
        %v771 = vsel %vm761, %v757, 1326507024
        %v772 = vsel %vm760, %v754, %v771
        %v773 = vsel %vm759, %v770, %v772
        %v774 = vshll.u32 %v734, 8
        %v775 = vmul.u32.u64.compose %v774, %v773
        %v776 = vextract.low.u32 %v775
        %v777 = vextract.high.u32 %v775
        %v778 = vmul.u32.u64.compose %v774, %v769
        %v779 = vextract.low.u32 %v778
        %v780 = vextract.high.u32 %v778
        %v781 = vmul.u32 %v774, %v765
        %v782 = vadd.s32 %v777, %v779
        %vm783 = vc.u32 %v777, %v779
        %v784 = vadd.s32 %v780, 1
        %v785 = vsel %vm783, %v784, %v780
        %v786 = vadd.s32 %v781, %v785
        %v787 = vadd.s32 %v786, 536870912
        %v788 = vshrl.u32 %v787, 30
        %v789 = vshll.u32 %v788, 30
        %v790 = vsub.s32 %v786, %v789
        %vm791 = vcmp.lt.s32.totalorder %v790, 0
        %v792 = vsub.s32 0, %v790
        %v793 = vsel %vm791, %v792, %v790
        %v794 = vclz %v793
        %v795 = vsub.s32 %v794, 2
        %vm796 = vcmp.gt.s32.totalorder 0, %v795
        %v797 = vsel %vm796, 0, %v795
        %v798 = vsub.s32 32, %v797
        %v799 = vshll.u32 %v790, %v797
        %v800 = vshrl.u32 %v782, %v798
        %v801 = vor.u32 %v799, %v800
        %v802 = vsub.s32 4294967266, %v797
        %v803 = vadd.s32 %v802, 127
        %v804 = vshll.u32 %v803, 23
        %v805 = vor.u32 4788187, %v804
        %v806 = vand.u32 2147483647, %v805
        %v808 = vcvt.s32.f32 %v801
        %v809 = vmul.f32 %v808, %v806
        %v810 = vxor.u32 %v809, 2147483648
        %v811 = vsel %vm728, %v810, %v809
        %v812 = vsub.s32 4, %v788
        %v813 = vsel %vm728, %v812, %v788
        %v814 = vsel %vm727, %v591, %v811
        %v815 = vsel %vm727, 0, %v813
        %v816 = vcosq.f32.pop %v814
        %v817 = vsinq.f32.pop %v814
        %vm818 = vweird.f32 %v591
        %v819 = vadd.s32 %v815, 3
        %v820 = vand.u32 %v819, 3
        %vm821 = vcmp.lt.s32.totalorder %v820, 2
        %vm822 = vcmp.eq.s32.totalorder %v820, 0
        %v823 = vxor.u32 %v817, 2147483648
        %v824 = vsel %vm822, %v816, %v823
        %vm825 = vcmp.eq.s32.totalorder %v820, 2
        %v826 = vxor.u32 %v816, 2147483648
        %v827 = vsel %vm825, %v826, %v817
        %v828 = vsel %vm821, %v824, %v827
        %v829 = vsel %vm818, nan, %v828
        %v830 = vand.u32 2147483647, %v592
        %vm831 = vcmp.le.f32.partialorder %v830, 0.7853982
        %vm832 = vcmp.lt.s32.totalorder %v592, 0
        %v833 = vand.u32 %v592, 2139095040
        %v834 = vshrl.u32 %v833, 23
        %v835 = vsub.s32 %v834, 127
        %v836 = vand.u32 2147483647, %v592
        %v837 = vand.u32 %v836, 8388607
        %v838 = vor.u32 %v837, 8388608
        %v839 = vsub.s32 0, %v838
        %v840 = vadd.s32 %v835, 1
        %vm841 = vcmp.gt.s32.totalorder %v840, 0
        %v842 = vsel %vm841, %v840, 0
        %v843 = vshrl.u32 %v842, 5
        %v844 = vand.u32 %v842, 31
        %v845 = vsub.s32 32, %v844
        %v846 = vshrl.u32 683565275, %v845
        %v847 = vshll.u32 683565275, %v844
        %v848 = vshrl.u32 2475754826, %v845
        %v849 = vor.u32 %v847, %v848
        %v850 = vshll.u32 2475754826, %v844
        %v851 = vshrl.u32 2131351028, %v845
        %v852 = vor.u32 %v850, %v851
        %v853 = vshll.u32 2131351028, %v844
        %v854 = vshrl.u32 2102212464, %v845
        %v855 = vor.u32 %v853, %v854
        %v856 = vshll.u32 2102212464, %v844
        %v857 = vshrl.u32 920167782, %v845
        %v858 = vor.u32 %v856, %v857
        %v859 = vshll.u32 920167782, %v844
        %v860 = vshrl.u32 1326507024, %v845
        %v861 = vor.u32 %v859, %v860
        %vm862 = vcmp.lt.s32.totalorder %v843, 1
        %vm863 = vcmp.lt.s32.totalorder %v843, 2
        %vm864 = vcmp.lt.s32.totalorder %v843, 3
        %vm865 = vcmp.lt.s32.totalorder %v843, 4
        %v866 = vsel %vm862, %v846, %v849
        %v867 = vsel %vm865, %v855, 2102212464
        %v868 = vsel %vm864, %v852, %v867
        %v869 = vsel %vm863, %v866, %v868
        %v870 = vsel %vm862, %v849, %v852
        %v871 = vsel %vm865, %v858, 920167782
        %v872 = vsel %vm864, %v855, %v871
        %v873 = vsel %vm863, %v870, %v872
        %v874 = vsel %vm862, %v852, %v855
        %v875 = vsel %vm865, %v861, 1326507024
        %v876 = vsel %vm864, %v858, %v875
        %v877 = vsel %vm863, %v874, %v876
        %v878 = vshll.u32 %v838, 8
        %v879 = vmul.u32.u64.compose %v878, %v877
        %v880 = vextract.low.u32 %v879
        %v881 = vextract.high.u32 %v879
        %v882 = vmul.u32.u64.compose %v878, %v873
        %v883 = vextract.low.u32 %v882
        %v884 = vextract.high.u32 %v882
        %v885 = vmul.u32 %v878, %v869
        %v886 = vadd.s32 %v881, %v883
        %vm887 = vc.u32 %v881, %v883
        %v888 = vadd.s32 %v884, 1
        %v889 = vsel %vm887, %v888, %v884
        %v890 = vadd.s32 %v885, %v889
        %v891 = vadd.s32 %v890, 536870912
        %v892 = vshrl.u32 %v891, 30
        %v893 = vshll.u32 %v892, 30
        %v894 = vsub.s32 %v890, %v893
        %vm895 = vcmp.lt.s32.totalorder %v894, 0
        %v896 = vsub.s32 0, %v894
        %v897 = vsel %vm895, %v896, %v894
        %v898 = vclz %v897
        %v899 = vsub.s32 %v898, 2
        %vm900 = vcmp.gt.s32.totalorder 0, %v899
        %v901 = vsel %vm900, 0, %v899
        %v902 = vsub.s32 32, %v901
        %v903 = vshll.u32 %v894, %v901
        %v904 = vshrl.u32 %v886, %v902
        %v905 = vor.u32 %v903, %v904
        %v906 = vsub.s32 4294967266, %v901
        %v907 = vadd.s32 %v906, 127
        %v908 = vshll.u32 %v907, 23
        %v909 = vor.u32 4788187, %v908
        %v910 = vand.u32 2147483647, %v909
        %v912 = vcvt.s32.f32 %v905
        %v913 = vmul.f32 %v912, %v910
        %v914 = vxor.u32 %v913, 2147483648
        %v915 = vsel %vm832, %v914, %v913
        %v916 = vsub.s32 4, %v892
        %v917 = vsel %vm832, %v916, %v892
        %v918 = vsel %vm831, %v592, %v915
        %v919 = vsel %vm831, 0, %v917
        %v920 = vcosq.f32.pop %v918
        %v921 = vsinq.f32.pop %v918
        %vm922 = vweird.f32 %v592
        %v923 = vadd.s32 %v919, 3
        %v924 = vand.u32 %v923, 3
        %vm925 = vcmp.lt.s32.totalorder %v924, 2
        %vm926 = vcmp.eq.s32.totalorder %v924, 0
        %v927 = vxor.u32 %v921, 2147483648
        %v928 = vsel %vm926, %v920, %v927
        %vm929 = vcmp.eq.s32.totalorder %v924, 2
        %v930 = vxor.u32 %v920, 2147483648
        %v931 = vsel %vm929, %v930, %v921
        %v932 = vsel %vm925, %v928, %v931
        %v933 = vsel %vm922, nan, %v932
        %v934 = vand.u32 2147483647, %v593
        %vm935 = vcmp.le.f32.partialorder %v934, 0.7853982
        %vm936 = vcmp.lt.s32.totalorder %v593, 0
        %v937 = vand.u32 %v593, 2139095040
        %v938 = vshrl.u32 %v937, 23
        %v939 = vsub.s32 %v938, 127
        %v940 = vand.u32 2147483647, %v593
        %v941 = vand.u32 %v940, 8388607
        %v942 = vor.u32 %v941, 8388608
        %v943 = vsub.s32 0, %v942
        %v944 = vadd.s32 %v939, 1
        %vm945 = vcmp.gt.s32.totalorder %v944, 0
        %v946 = vsel %vm945, %v944, 0
        %v947 = vshrl.u32 %v946, 5
        %v948 = vand.u32 %v946, 31
        %v949 = vsub.s32 32, %v948
        %v950 = vshrl.u32 683565275, %v949
        %v951 = vshll.u32 683565275, %v948
        %v952 = vshrl.u32 2475754826, %v949
        %v953 = vor.u32 %v951, %v952
        %v954 = vshll.u32 2475754826, %v948
        %v955 = vshrl.u32 2131351028, %v949
        %v956 = vor.u32 %v954, %v955
        %v957 = vshll.u32 2131351028, %v948
        %v958 = vshrl.u32 2102212464, %v949
        %v959 = vor.u32 %v957, %v958
        %v960 = vshll.u32 2102212464, %v948
        %v961 = vshrl.u32 920167782, %v949
        %v962 = vor.u32 %v960, %v961
        %v963 = vshll.u32 920167782, %v948
        %v964 = vshrl.u32 1326507024, %v949
        %v965 = vor.u32 %v963, %v964
        %vm966 = vcmp.lt.s32.totalorder %v947, 1
        %vm967 = vcmp.lt.s32.totalorder %v947, 2
        %vm968 = vcmp.lt.s32.totalorder %v947, 3
        %vm969 = vcmp.lt.s32.totalorder %v947, 4
        %v970 = vsel %vm966, %v950, %v953
        %v971 = vsel %vm969, %v959, 2102212464
        %v972 = vsel %vm968, %v956, %v971
        %v973 = vsel %vm967, %v970, %v972
        %v974 = vsel %vm966, %v953, %v956
        %v975 = vsel %vm969, %v962, 920167782
        %v976 = vsel %vm968, %v959, %v975
        %v977 = vsel %vm967, %v974, %v976
        %v978 = vsel %vm966, %v956, %v959
        %v979 = vsel %vm969, %v965, 1326507024
        %v980 = vsel %vm968, %v962, %v979
        %v981 = vsel %vm967, %v978, %v980
        %v982 = vshll.u32 %v942, 8
        %v983 = vmul.u32.u64.compose %v982, %v981
        %v984 = vextract.low.u32 %v983
        %v985 = vextract.high.u32 %v983
        %v986 = vmul.u32.u64.compose %v982, %v977
        %v987 = vextract.low.u32 %v986
        %v988 = vextract.high.u32 %v986
        %v989 = vmul.u32 %v982, %v973
        %v990 = vadd.s32 %v985, %v987
        %vm991 = vc.u32 %v985, %v987
        %v992 = vadd.s32 %v988, 1
        %v993 = vsel %vm991, %v992, %v988
        %v994 = vadd.s32 %v989, %v993
        %v995 = vadd.s32 %v994, 536870912
        %v996 = vshrl.u32 %v995, 30
        %v997 = vshll.u32 %v996, 30
        %v998 = vsub.s32 %v994, %v997
        %vm999 = vcmp.lt.s32.totalorder %v998, 0
        %v1000 = vsub.s32 0, %v998
        %v1001 = vsel %vm999, %v1000, %v998
        %v1002 = vclz %v1001
        %v1003 = vsub.s32 %v1002, 2
        %vm1004 = vcmp.gt.s32.totalorder 0, %v1003
        %v1005 = vsel %vm1004, 0, %v1003
        %v1006 = vsub.s32 32, %v1005
        %v1007 = vshll.u32 %v998, %v1005
        %v1008 = vshrl.u32 %v990, %v1006
        %v1009 = vor.u32 %v1007, %v1008
        %v1010 = vsub.s32 4294967266, %v1005
        %v1011 = vadd.s32 %v1010, 127
        %v1012 = vshll.u32 %v1011, 23
        %v1013 = vor.u32 4788187, %v1012
        %v1014 = vand.u32 2147483647, %v1013
        %v1016 = vcvt.s32.f32 %v1009
        %v1017 = vmul.f32 %v1016, %v1014
        %v1018 = vxor.u32 %v1017, 2147483648
        %v1019 = vsel %vm936, %v1018, %v1017
        %v1020 = vsub.s32 4, %v996
        %v1021 = vsel %vm936, %v1020, %v996
        %v1022 = vsel %vm935, %v593, %v1019
        %v1023 = vsel %vm935, 0, %v1021
        %v1024 = vcosq.f32.pop %v1022
        %v1025 = vsinq.f32.pop %v1022
        %vm1026 = vweird.f32 %v593
        %v1027 = vadd.s32 %v1023, 3
        %v1028 = vand.u32 %v1027, 3
        %vm1029 = vcmp.lt.s32.totalorder %v1028, 2
        %vm1030 = vcmp.eq.s32.totalorder %v1028, 0
        %v1031 = vxor.u32 %v1025, 2147483648
        %v1032 = vsel %vm1030, %v1024, %v1031
        %vm1033 = vcmp.eq.s32.totalorder %v1028, 2
        %v1034 = vxor.u32 %v1024, 2147483648
        %v1035 = vsel %vm1033, %v1034, %v1025
        %v1036 = vsel %vm1029, %v1032, %v1035
        %v1037 = vsel %vm1026, nan, %v1036
        %v1038 = vand.u32 2147483647, %v594
        %vm1039 = vcmp.le.f32.partialorder %v1038, 0.7853982
        %vm1040 = vcmp.lt.s32.totalorder %v594, 0
        %v1041 = vand.u32 %v594, 2139095040
        %v1042 = vshrl.u32 %v1041, 23
        %v1043 = vsub.s32 %v1042, 127
        %v1044 = vand.u32 2147483647, %v594
        %v1045 = vand.u32 %v1044, 8388607
        %v1046 = vor.u32 %v1045, 8388608
        %v1047 = vsub.s32 0, %v1046
        %v1048 = vadd.s32 %v1043, 1
        %vm1049 = vcmp.gt.s32.totalorder %v1048, 0
        %v1050 = vsel %vm1049, %v1048, 0
        %v1051 = vshrl.u32 %v1050, 5
        %v1052 = vand.u32 %v1050, 31
        %v1053 = vsub.s32 32, %v1052
        %v1054 = vshrl.u32 683565275, %v1053
        %v1055 = vshll.u32 683565275, %v1052
        %v1056 = vshrl.u32 2475754826, %v1053
        %v1057 = vor.u32 %v1055, %v1056
        %v1058 = vshll.u32 2475754826, %v1052
        %v1059 = vshrl.u32 2131351028, %v1053
        %v1060 = vor.u32 %v1058, %v1059
        %v1061 = vshll.u32 2131351028, %v1052
        %v1062 = vshrl.u32 2102212464, %v1053
        %v1063 = vor.u32 %v1061, %v1062
        %v1064 = vshll.u32 2102212464, %v1052
        %v1065 = vshrl.u32 920167782, %v1053
        %v1066 = vor.u32 %v1064, %v1065
        %v1067 = vshll.u32 920167782, %v1052
        %v1068 = vshrl.u32 1326507024, %v1053
        %v1069 = vor.u32 %v1067, %v1068
        %vm1070 = vcmp.lt.s32.totalorder %v1051, 1
        %vm1071 = vcmp.lt.s32.totalorder %v1051, 2
        %vm1072 = vcmp.lt.s32.totalorder %v1051, 3
        %vm1073 = vcmp.lt.s32.totalorder %v1051, 4
        %v1074 = vsel %vm1070, %v1054, %v1057
        %v1075 = vsel %vm1073, %v1063, 2102212464
        %v1076 = vsel %vm1072, %v1060, %v1075
        %v1077 = vsel %vm1071, %v1074, %v1076
        %v1078 = vsel %vm1070, %v1057, %v1060
        %v1079 = vsel %vm1073, %v1066, 920167782
        %v1080 = vsel %vm1072, %v1063, %v1079
        %v1081 = vsel %vm1071, %v1078, %v1080
        %v1082 = vsel %vm1070, %v1060, %v1063
        %v1083 = vsel %vm1073, %v1069, 1326507024
        %v1084 = vsel %vm1072, %v1066, %v1083
        %v1085 = vsel %vm1071, %v1082, %v1084
        %v1086 = vshll.u32 %v1046, 8
        %v1087 = vmul.u32.u64.compose %v1086, %v1085
        %v1088 = vextract.low.u32 %v1087
        %v1089 = vextract.high.u32 %v1087
        %v1090 = vmul.u32.u64.compose %v1086, %v1081
        %v1091 = vextract.low.u32 %v1090
        %v1092 = vextract.high.u32 %v1090
        %v1093 = vmul.u32 %v1086, %v1077
        %v1094 = vadd.s32 %v1089, %v1091
        %vm1095 = vc.u32 %v1089, %v1091
        %v1096 = vadd.s32 %v1092, 1
        %v1097 = vsel %vm1095, %v1096, %v1092
        %v1098 = vadd.s32 %v1093, %v1097
        %v1099 = vadd.s32 %v1098, 536870912
        %v1100 = vshrl.u32 %v1099, 30
        %v1101 = vshll.u32 %v1100, 30
        %v1102 = vsub.s32 %v1098, %v1101
        %vm1103 = vcmp.lt.s32.totalorder %v1102, 0
        %v1104 = vsub.s32 0, %v1102
        %v1105 = vsel %vm1103, %v1104, %v1102
        %v1106 = vclz %v1105
        %v1107 = vsub.s32 %v1106, 2
        %vm1108 = vcmp.gt.s32.totalorder 0, %v1107
        %v1109 = vsel %vm1108, 0, %v1107
        %v1110 = vsub.s32 32, %v1109
        %v1111 = vshll.u32 %v1102, %v1109
        %v1112 = vshrl.u32 %v1094, %v1110
        %v1113 = vor.u32 %v1111, %v1112
        %v1114 = vsub.s32 4294967266, %v1109
        %v1115 = vadd.s32 %v1114, 127
        %v1116 = vshll.u32 %v1115, 23
        %v1117 = vor.u32 4788187, %v1116
        %v1118 = vand.u32 2147483647, %v1117
        %v1120 = vcvt.s32.f32 %v1113
        %v1121 = vmul.f32 %v1120, %v1118
        %v1122 = vxor.u32 %v1121, 2147483648
        %v1123 = vsel %vm1040, %v1122, %v1121
        %v1124 = vsub.s32 4, %v1100
        %v1125 = vsel %vm1040, %v1124, %v1100
        %v1126 = vsel %vm1039, %v594, %v1123
        %v1127 = vsel %vm1039, 0, %v1125
        %v1128 = vcosq.f32.pop %v1126
        %v1129 = vsinq.f32.pop %v1126
        %vm1130 = vweird.f32 %v594
        %v1131 = vadd.s32 %v1127, 3
        %v1132 = vand.u32 %v1131, 3
        %vm1133 = vcmp.lt.s32.totalorder %v1132, 2
        %vm1134 = vcmp.eq.s32.totalorder %v1132, 0
        %v1135 = vxor.u32 %v1129, 2147483648
        %v1136 = vsel %vm1134, %v1128, %v1135
        %vm1137 = vcmp.eq.s32.totalorder %v1132, 2
        %v1138 = vxor.u32 %v1128, 2147483648
        %v1139 = vsel %vm1137, %v1138, %v1129
        %v1140 = vsel %vm1133, %v1136, %v1139
        %v1141 = vsel %vm1130, nan, %v1140
        %v1142 = vand.u32 2147483647, %v595
        %vm1143 = vcmp.le.f32.partialorder %v1142, 0.7853982
        %vm1144 = vcmp.lt.s32.totalorder %v595, 0
        %v1145 = vand.u32 %v595, 2139095040
        %v1146 = vshrl.u32 %v1145, 23
        %v1147 = vsub.s32 %v1146, 127
        %v1148 = vand.u32 2147483647, %v595
        %v1149 = vand.u32 %v1148, 8388607
        %v1150 = vor.u32 %v1149, 8388608
        %v1151 = vsub.s32 0, %v1150
        %v1152 = vadd.s32 %v1147, 1
        %vm1153 = vcmp.gt.s32.totalorder %v1152, 0
        %v1154 = vsel %vm1153, %v1152, 0
        %v1155 = vshrl.u32 %v1154, 5
        %v1156 = vand.u32 %v1154, 31
        %v1157 = vsub.s32 32, %v1156
        %v1158 = vshrl.u32 683565275, %v1157
        %v1159 = vshll.u32 683565275, %v1156
        %v1160 = vshrl.u32 2475754826, %v1157
        %v1161 = vor.u32 %v1159, %v1160
        %v1162 = vshll.u32 2475754826, %v1156
        %v1163 = vshrl.u32 2131351028, %v1157
        %v1164 = vor.u32 %v1162, %v1163
        %v1165 = vshll.u32 2131351028, %v1156
        %v1166 = vshrl.u32 2102212464, %v1157
        %v1167 = vor.u32 %v1165, %v1166
        %v1168 = vshll.u32 2102212464, %v1156
        %v1169 = vshrl.u32 920167782, %v1157
        %v1170 = vor.u32 %v1168, %v1169
        %v1171 = vshll.u32 920167782, %v1156
        %v1172 = vshrl.u32 1326507024, %v1157
        %v1173 = vor.u32 %v1171, %v1172
        %vm1174 = vcmp.lt.s32.totalorder %v1155, 1
        %vm1175 = vcmp.lt.s32.totalorder %v1155, 2
        %vm1176 = vcmp.lt.s32.totalorder %v1155, 3
        %vm1177 = vcmp.lt.s32.totalorder %v1155, 4
        %v1178 = vsel %vm1174, %v1158, %v1161
        %v1179 = vsel %vm1177, %v1167, 2102212464
        %v1180 = vsel %vm1176, %v1164, %v1179
        %v1181 = vsel %vm1175, %v1178, %v1180
        %v1182 = vsel %vm1174, %v1161, %v1164
        %v1183 = vsel %vm1177, %v1170, 920167782
        %v1184 = vsel %vm1176, %v1167, %v1183
        %v1185 = vsel %vm1175, %v1182, %v1184
        %v1186 = vsel %vm1174, %v1164, %v1167
        %v1187 = vsel %vm1177, %v1173, 1326507024
        %v1188 = vsel %vm1176, %v1170, %v1187
        %v1189 = vsel %vm1175, %v1186, %v1188
        %v1190 = vshll.u32 %v1150, 8
        %v1191 = vmul.u32.u64.compose %v1190, %v1189
        %v1192 = vextract.low.u32 %v1191
        %v1193 = vextract.high.u32 %v1191
        %v1194 = vmul.u32.u64.compose %v1190, %v1185
        %v1195 = vextract.low.u32 %v1194
        %v1196 = vextract.high.u32 %v1194
        %v1197 = vmul.u32 %v1190, %v1181
        %v1198 = vadd.s32 %v1193, %v1195
        %vm1199 = vc.u32 %v1193, %v1195
        %v1200 = vadd.s32 %v1196, 1
        %v1201 = vsel %vm1199, %v1200, %v1196
        %v1202 = vadd.s32 %v1197, %v1201
        %v1203 = vadd.s32 %v1202, 536870912
        %v1204 = vshrl.u32 %v1203, 30
        %v1205 = vshll.u32 %v1204, 30
        %v1206 = vsub.s32 %v1202, %v1205
        %vm1207 = vcmp.lt.s32.totalorder %v1206, 0
        %v1208 = vsub.s32 0, %v1206
        %v1209 = vsel %vm1207, %v1208, %v1206
        %v1210 = vclz %v1209
        %v1211 = vsub.s32 %v1210, 2
        %vm1212 = vcmp.gt.s32.totalorder 0, %v1211
        %v1213 = vsel %vm1212, 0, %v1211
        %v1214 = vsub.s32 32, %v1213
        %v1215 = vshll.u32 %v1206, %v1213
        %v1216 = vshrl.u32 %v1198, %v1214
        %v1217 = vor.u32 %v1215, %v1216
        %v1218 = vsub.s32 4294967266, %v1213
        %v1219 = vadd.s32 %v1218, 127
        %v1220 = vshll.u32 %v1219, 23
        %v1221 = vor.u32 4788187, %v1220
        %v1222 = vand.u32 2147483647, %v1221
        %v1224 = vcvt.s32.f32 %v1217
        %v1225 = vmul.f32 %v1224, %v1222
        %v1226 = vxor.u32 %v1225, 2147483648
        %v1227 = vsel %vm1144, %v1226, %v1225
        %v1228 = vsub.s32 4, %v1204
        %v1229 = vsel %vm1144, %v1228, %v1204
        %v1230 = vsel %vm1143, %v595, %v1227
        %v1231 = vsel %vm1143, 0, %v1229
        %v1232 = vcosq.f32.pop %v1230
        %v1233 = vsinq.f32.pop %v1230
        %vm1234 = vweird.f32 %v595
        %v1235 = vadd.s32 %v1231, 3
        %v1236 = vand.u32 %v1235, 3
        %vm1237 = vcmp.lt.s32.totalorder %v1236, 2
        %vm1238 = vcmp.eq.s32.totalorder %v1236, 0
        %v1239 = vxor.u32 %v1233, 2147483648
        %v1240 = vsel %vm1238, %v1232, %v1239
        %vm1241 = vcmp.eq.s32.totalorder %v1236, 2
        %v1242 = vxor.u32 %v1232, 2147483648
        %v1243 = vsel %vm1241, %v1242, %v1233
        %v1244 = vsel %vm1237, %v1240, %v1243
        %v1245 = vsel %vm1234, nan, %v1244
        %v1246 = vand.u32 2147483647, %v596
        %vm1247 = vcmp.le.f32.partialorder %v1246, 0.7853982
        %vm1248 = vcmp.lt.s32.totalorder %v596, 0
        %v1249 = vand.u32 %v596, 2139095040
        %v1250 = vshrl.u32 %v1249, 23
        %v1251 = vsub.s32 %v1250, 127
        %v1252 = vand.u32 2147483647, %v596
        %v1253 = vand.u32 %v1252, 8388607
        %v1254 = vor.u32 %v1253, 8388608
        %v1255 = vsub.s32 0, %v1254
        %v1256 = vadd.s32 %v1251, 1
        %vm1257 = vcmp.gt.s32.totalorder %v1256, 0
        %v1258 = vsel %vm1257, %v1256, 0
        %v1259 = vshrl.u32 %v1258, 5
        %v1260 = vand.u32 %v1258, 31
        %v1261 = vsub.s32 32, %v1260
        %v1262 = vshrl.u32 683565275, %v1261
        %v1263 = vshll.u32 683565275, %v1260
        %v1264 = vshrl.u32 2475754826, %v1261
        %v1265 = vor.u32 %v1263, %v1264
        %v1266 = vshll.u32 2475754826, %v1260
        %v1267 = vshrl.u32 2131351028, %v1261
        %v1268 = vor.u32 %v1266, %v1267
        %v1269 = vshll.u32 2131351028, %v1260
        %v1270 = vshrl.u32 2102212464, %v1261
        %v1271 = vor.u32 %v1269, %v1270
        %v1272 = vshll.u32 2102212464, %v1260
        %v1273 = vshrl.u32 920167782, %v1261
        %v1274 = vor.u32 %v1272, %v1273
        %v1275 = vshll.u32 920167782, %v1260
        %v1276 = vshrl.u32 1326507024, %v1261
        %v1277 = vor.u32 %v1275, %v1276
        %vm1278 = vcmp.lt.s32.totalorder %v1259, 1
        %vm1279 = vcmp.lt.s32.totalorder %v1259, 2
        %vm1280 = vcmp.lt.s32.totalorder %v1259, 3
        %vm1281 = vcmp.lt.s32.totalorder %v1259, 4
        %v1282 = vsel %vm1278, %v1262, %v1265
        %v1283 = vsel %vm1281, %v1271, 2102212464
        %v1284 = vsel %vm1280, %v1268, %v1283
        %v1285 = vsel %vm1279, %v1282, %v1284
        %v1286 = vsel %vm1278, %v1265, %v1268
        %v1287 = vsel %vm1281, %v1274, 920167782
        %v1288 = vsel %vm1280, %v1271, %v1287
        %v1289 = vsel %vm1279, %v1286, %v1288
        %v1290 = vsel %vm1278, %v1268, %v1271
        %v1291 = vsel %vm1281, %v1277, 1326507024
        %v1292 = vsel %vm1280, %v1274, %v1291
        %v1293 = vsel %vm1279, %v1290, %v1292
        %v1294 = vshll.u32 %v1254, 8
        %v1295 = vmul.u32.u64.compose %v1294, %v1293
        %v1296 = vextract.low.u32 %v1295
        %v1297 = vextract.high.u32 %v1295
        %v1298 = vmul.u32.u64.compose %v1294, %v1289
        %v1299 = vextract.low.u32 %v1298
        %v1300 = vextract.high.u32 %v1298
        %v1301 = vmul.u32 %v1294, %v1285
        %v1302 = vadd.s32 %v1297, %v1299
        %vm1303 = vc.u32 %v1297, %v1299
        %v1304 = vadd.s32 %v1300, 1
        %v1305 = vsel %vm1303, %v1304, %v1300
        %v1306 = vadd.s32 %v1301, %v1305
        %v1307 = vadd.s32 %v1306, 536870912
        %v1308 = vshrl.u32 %v1307, 30
        %v1309 = vshll.u32 %v1308, 30
        %v1310 = vsub.s32 %v1306, %v1309
        %vm1311 = vcmp.lt.s32.totalorder %v1310, 0
        %v1312 = vsub.s32 0, %v1310
        %v1313 = vsel %vm1311, %v1312, %v1310
        %v1314 = vclz %v1313
        %v1315 = vsub.s32 %v1314, 2
        %vm1316 = vcmp.gt.s32.totalorder 0, %v1315
        %v1317 = vsel %vm1316, 0, %v1315
        %v1318 = vsub.s32 32, %v1317
        %v1319 = vshll.u32 %v1310, %v1317
        %v1320 = vshrl.u32 %v1302, %v1318
        %v1321 = vor.u32 %v1319, %v1320
        %v1322 = vsub.s32 4294967266, %v1317
        %v1323 = vadd.s32 %v1322, 127
        %v1324 = vshll.u32 %v1323, 23
        %v1325 = vor.u32 4788187, %v1324
        %v1326 = vand.u32 2147483647, %v1325
        %v1328 = vcvt.s32.f32 %v1321
        %v1329 = vmul.f32 %v1328, %v1326
        %v1330 = vxor.u32 %v1329, 2147483648
        %v1331 = vsel %vm1248, %v1330, %v1329
        %v1332 = vsub.s32 4, %v1308
        %v1333 = vsel %vm1248, %v1332, %v1308
        %v1334 = vsel %vm1247, %v596, %v1331
        %v1335 = vsel %vm1247, 0, %v1333
        %v1336 = vcosq.f32.pop %v1334
        %v1337 = vsinq.f32.pop %v1334
        %vm1338 = vweird.f32 %v596
        %v1339 = vadd.s32 %v1335, 3
        %v1340 = vand.u32 %v1339, 3
        %vm1341 = vcmp.lt.s32.totalorder %v1340, 2
        %vm1342 = vcmp.eq.s32.totalorder %v1340, 0
        %v1343 = vxor.u32 %v1337, 2147483648
        %v1344 = vsel %vm1342, %v1336, %v1343
        %vm1345 = vcmp.eq.s32.totalorder %v1340, 2
        %v1346 = vxor.u32 %v1336, 2147483648
        %v1347 = vsel %vm1345, %v1346, %v1337
        %v1348 = vsel %vm1341, %v1344, %v1347
        %v1349 = vsel %vm1338, nan, %v1348
        %v1350 = vand.u32 2147483647, %v597
        %vm1351 = vcmp.le.f32.partialorder %v1350, 0.7853982
        %vm1352 = vcmp.lt.s32.totalorder %v597, 0
        %v1353 = vand.u32 %v597, 2139095040
        %v1354 = vshrl.u32 %v1353, 23
        %v1355 = vsub.s32 %v1354, 127
        %v1356 = vand.u32 2147483647, %v597
        %v1357 = vand.u32 %v1356, 8388607
        %v1358 = vor.u32 %v1357, 8388608
        %v1359 = vsub.s32 0, %v1358
        %v1360 = vadd.s32 %v1355, 1
        %vm1361 = vcmp.gt.s32.totalorder %v1360, 0
        %v1362 = vsel %vm1361, %v1360, 0
        %v1363 = vshrl.u32 %v1362, 5
        %v1364 = vand.u32 %v1362, 31
        %v1365 = vsub.s32 32, %v1364
        %v1366 = vshrl.u32 683565275, %v1365
        %v1367 = vshll.u32 683565275, %v1364
        %v1368 = vshrl.u32 2475754826, %v1365
        %v1369 = vor.u32 %v1367, %v1368
        %v1370 = vshll.u32 2475754826, %v1364
        %v1371 = vshrl.u32 2131351028, %v1365
        %v1372 = vor.u32 %v1370, %v1371
        %v1373 = vshll.u32 2131351028, %v1364
        %v1374 = vshrl.u32 2102212464, %v1365
        %v1375 = vor.u32 %v1373, %v1374
        %v1376 = vshll.u32 2102212464, %v1364
        %v1377 = vshrl.u32 920167782, %v1365
        %v1378 = vor.u32 %v1376, %v1377
        %v1379 = vshll.u32 920167782, %v1364
        %v1380 = vshrl.u32 1326507024, %v1365
        %v1381 = vor.u32 %v1379, %v1380
        %vm1382 = vcmp.lt.s32.totalorder %v1363, 1
        %vm1383 = vcmp.lt.s32.totalorder %v1363, 2
        %vm1384 = vcmp.lt.s32.totalorder %v1363, 3
        %vm1385 = vcmp.lt.s32.totalorder %v1363, 4
        %v1386 = vsel %vm1382, %v1366, %v1369
        %v1387 = vsel %vm1385, %v1375, 2102212464
        %v1388 = vsel %vm1384, %v1372, %v1387
        %v1389 = vsel %vm1383, %v1386, %v1388
        %v1390 = vsel %vm1382, %v1369, %v1372
        %v1391 = vsel %vm1385, %v1378, 920167782
        %v1392 = vsel %vm1384, %v1375, %v1391
        %v1393 = vsel %vm1383, %v1390, %v1392
        %v1394 = vsel %vm1382, %v1372, %v1375
        %v1395 = vsel %vm1385, %v1381, 1326507024
        %v1396 = vsel %vm1384, %v1378, %v1395
        %v1397 = vsel %vm1383, %v1394, %v1396
        %v1398 = vshll.u32 %v1358, 8
        %v1399 = vmul.u32.u64.compose %v1398, %v1397
        %v1400 = vextract.low.u32 %v1399
        %v1401 = vextract.high.u32 %v1399
        %v1402 = vmul.u32.u64.compose %v1398, %v1393
        %v1403 = vextract.low.u32 %v1402
        %v1404 = vextract.high.u32 %v1402
        %v1405 = vmul.u32 %v1398, %v1389
        %v1406 = vadd.s32 %v1401, %v1403
        %vm1407 = vc.u32 %v1401, %v1403
        %v1408 = vadd.s32 %v1404, 1
        %v1409 = vsel %vm1407, %v1408, %v1404
        %v1410 = vadd.s32 %v1405, %v1409
        %v1411 = vadd.s32 %v1410, 536870912
        %v1412 = vshrl.u32 %v1411, 30
        %v1413 = vshll.u32 %v1412, 30
        %v1414 = vsub.s32 %v1410, %v1413
        %vm1415 = vcmp.lt.s32.totalorder %v1414, 0
        %v1416 = vsub.s32 0, %v1414
        %v1417 = vsel %vm1415, %v1416, %v1414
        %v1418 = vclz %v1417
        %v1419 = vsub.s32 %v1418, 2
        %vm1420 = vcmp.gt.s32.totalorder 0, %v1419
        %v1421 = vsel %vm1420, 0, %v1419
        %v1422 = vsub.s32 32, %v1421
        %v1423 = vshll.u32 %v1414, %v1421
        %v1424 = vshrl.u32 %v1406, %v1422
        %v1425 = vor.u32 %v1423, %v1424
        %v1426 = vsub.s32 4294967266, %v1421
        %v1427 = vadd.s32 %v1426, 127
        %v1428 = vshll.u32 %v1427, 23
        %v1429 = vor.u32 4788187, %v1428
        %v1430 = vand.u32 2147483647, %v1429
        %v1432 = vcvt.s32.f32 %v1425
        %v1433 = vmul.f32 %v1432, %v1430
        %v1434 = vxor.u32 %v1433, 2147483648
        %v1435 = vsel %vm1352, %v1434, %v1433
        %v1436 = vsub.s32 4, %v1412
        %v1437 = vsel %vm1352, %v1436, %v1412
        %v1438 = vsel %vm1351, %v597, %v1435
        %v1439 = vsel %vm1351, 0, %v1437
        %v1440 = vcosq.f32.pop %v1438
        %v1441 = vsinq.f32.pop %v1438
        %vm1442 = vweird.f32 %v597
        %v1443 = vadd.s32 %v1439, 3
        %v1444 = vand.u32 %v1443, 3
        %vm1445 = vcmp.lt.s32.totalorder %v1444, 2
        %vm1446 = vcmp.eq.s32.totalorder %v1444, 0
        %v1447 = vxor.u32 %v1441, 2147483648
        %v1448 = vsel %vm1446, %v1440, %v1447
        %vm1449 = vcmp.eq.s32.totalorder %v1444, 2
        %v1450 = vxor.u32 %v1440, 2147483648
        %v1451 = vsel %vm1449, %v1450, %v1441
        %v1452 = vsel %vm1445, %v1448, %v1451
        %v1453 = vsel %vm1442, nan, %v1452
        %v1454 = vand.u32 2147483647, %v598
        %vm1455 = vcmp.le.f32.partialorder %v1454, 0.7853982
        %vm1456 = vcmp.lt.s32.totalorder %v598, 0
        %v1457 = vand.u32 %v598, 2139095040
        %v1458 = vshrl.u32 %v1457, 23
        %v1459 = vsub.s32 %v1458, 127
        %v1460 = vand.u32 2147483647, %v598
        %v1461 = vand.u32 %v1460, 8388607
        %v1462 = vor.u32 %v1461, 8388608
        %v1463 = vsub.s32 0, %v1462
        %v1464 = vadd.s32 %v1459, 1
        %vm1465 = vcmp.gt.s32.totalorder %v1464, 0
        %v1466 = vsel %vm1465, %v1464, 0
        %v1467 = vshrl.u32 %v1466, 5
        %v1468 = vand.u32 %v1466, 31
        %v1469 = vsub.s32 32, %v1468
        %v1470 = vshrl.u32 683565275, %v1469
        %v1471 = vshll.u32 683565275, %v1468
        %v1472 = vshrl.u32 2475754826, %v1469
        %v1473 = vor.u32 %v1471, %v1472
        %v1474 = vshll.u32 2475754826, %v1468
        %v1475 = vshrl.u32 2131351028, %v1469
        %v1476 = vor.u32 %v1474, %v1475
        %v1477 = vshll.u32 2131351028, %v1468
        %v1478 = vshrl.u32 2102212464, %v1469
        %v1479 = vor.u32 %v1477, %v1478
        %v1480 = vshll.u32 2102212464, %v1468
        %v1481 = vshrl.u32 920167782, %v1469
        %v1482 = vor.u32 %v1480, %v1481
        %v1483 = vshll.u32 920167782, %v1468
        %v1484 = vshrl.u32 1326507024, %v1469
        %v1485 = vor.u32 %v1483, %v1484
        %vm1486 = vcmp.lt.s32.totalorder %v1467, 1
        %vm1487 = vcmp.lt.s32.totalorder %v1467, 2
        %vm1488 = vcmp.lt.s32.totalorder %v1467, 3
        %vm1489 = vcmp.lt.s32.totalorder %v1467, 4
        %v1490 = vsel %vm1486, %v1470, %v1473
        %v1491 = vsel %vm1489, %v1479, 2102212464
        %v1492 = vsel %vm1488, %v1476, %v1491
        %v1493 = vsel %vm1487, %v1490, %v1492
        %v1494 = vsel %vm1486, %v1473, %v1476
        %v1495 = vsel %vm1489, %v1482, 920167782
        %v1496 = vsel %vm1488, %v1479, %v1495
        %v1497 = vsel %vm1487, %v1494, %v1496
        %v1498 = vsel %vm1486, %v1476, %v1479
        %v1499 = vsel %vm1489, %v1485, 1326507024
        %v1500 = vsel %vm1488, %v1482, %v1499
        %v1501 = vsel %vm1487, %v1498, %v1500
        %v1502 = vshll.u32 %v1462, 8
        %v1503 = vmul.u32.u64.compose %v1502, %v1501
        %v1504 = vextract.low.u32 %v1503
        %v1505 = vextract.high.u32 %v1503
        %v1506 = vmul.u32.u64.compose %v1502, %v1497
        %v1507 = vextract.low.u32 %v1506
        %v1508 = vextract.high.u32 %v1506
        %v1509 = vmul.u32 %v1502, %v1493
        %v1510 = vadd.s32 %v1505, %v1507
        %vm1511 = vc.u32 %v1505, %v1507
        %v1512 = vadd.s32 %v1508, 1
        %v1513 = vsel %vm1511, %v1512, %v1508
        %v1514 = vadd.s32 %v1509, %v1513
        %v1515 = vadd.s32 %v1514, 536870912
        %v1516 = vshrl.u32 %v1515, 30
        %v1517 = vshll.u32 %v1516, 30
        %v1518 = vsub.s32 %v1514, %v1517
        %vm1519 = vcmp.lt.s32.totalorder %v1518, 0
        %v1520 = vsub.s32 0, %v1518
        %v1521 = vsel %vm1519, %v1520, %v1518
        %v1522 = vclz %v1521
        %v1523 = vsub.s32 %v1522, 2
        %vm1524 = vcmp.gt.s32.totalorder 0, %v1523
        %v1525 = vsel %vm1524, 0, %v1523
        %v1526 = vsub.s32 32, %v1525
        %v1527 = vshll.u32 %v1518, %v1525
        %v1528 = vshrl.u32 %v1510, %v1526
        %v1529 = vor.u32 %v1527, %v1528
        %v1530 = vsub.s32 4294967266, %v1525
        %v1531 = vadd.s32 %v1530, 127
        %v1532 = vshll.u32 %v1531, 23
        %v1533 = vor.u32 4788187, %v1532
        %v1534 = vand.u32 2147483647, %v1533
        %v1536 = vcvt.s32.f32 %v1529
        %v1537 = vmul.f32 %v1536, %v1534
        %v1538 = vxor.u32 %v1537, 2147483648
        %v1539 = vsel %vm1456, %v1538, %v1537
        %v1540 = vsub.s32 4, %v1516
        %v1541 = vsel %vm1456, %v1540, %v1516
        %v1542 = vsel %vm1455, %v598, %v1539
        %v1543 = vsel %vm1455, 0, %v1541
        %v1544 = vcosq.f32.pop %v1542
        %v1545 = vsinq.f32.pop %v1542
        %vm1546 = vweird.f32 %v598
        %v1547 = vadd.s32 %v1543, 3
        %v1548 = vand.u32 %v1547, 3
        %vm1549 = vcmp.lt.s32.totalorder %v1548, 2
        %vm1550 = vcmp.eq.s32.totalorder %v1548, 0
        %v1551 = vxor.u32 %v1545, 2147483648
        %v1552 = vsel %vm1550, %v1544, %v1551
        %vm1553 = vcmp.eq.s32.totalorder %v1548, 2
        %v1554 = vxor.u32 %v1544, 2147483648
        %v1555 = vsel %vm1553, %v1554, %v1545
        %v1556 = vsel %vm1549, %v1552, %v1555
        %v1557 = vsel %vm1546, nan, %v1556
        %v1558 = vand.u32 2147483647, %v599
        %vm1559 = vcmp.le.f32.partialorder %v1558, 0.7853982
        %vm1560 = vcmp.lt.s32.totalorder %v599, 0
        %v1561 = vand.u32 %v599, 2139095040
        %v1562 = vshrl.u32 %v1561, 23
        %v1563 = vsub.s32 %v1562, 127
        %v1564 = vand.u32 2147483647, %v599
        %v1565 = vand.u32 %v1564, 8388607
        %v1566 = vor.u32 %v1565, 8388608
        %v1567 = vsub.s32 0, %v1566
        %v1568 = vadd.s32 %v1563, 1
        %vm1569 = vcmp.gt.s32.totalorder %v1568, 0
        %v1570 = vsel %vm1569, %v1568, 0
        %v1571 = vshrl.u32 %v1570, 5
        %v1572 = vand.u32 %v1570, 31
        %v1573 = vsub.s32 32, %v1572
        %v1574 = vshrl.u32 683565275, %v1573
        %v1575 = vshll.u32 683565275, %v1572
        %v1576 = vshrl.u32 2475754826, %v1573
        %v1577 = vor.u32 %v1575, %v1576
        %v1578 = vshll.u32 2475754826, %v1572
        %v1579 = vshrl.u32 2131351028, %v1573
        %v1580 = vor.u32 %v1578, %v1579
        %v1581 = vshll.u32 2131351028, %v1572
        %v1582 = vshrl.u32 2102212464, %v1573
        %v1583 = vor.u32 %v1581, %v1582
        %v1584 = vshll.u32 2102212464, %v1572
        %v1585 = vshrl.u32 920167782, %v1573
        %v1586 = vor.u32 %v1584, %v1585
        %v1587 = vshll.u32 920167782, %v1572
        %v1588 = vshrl.u32 1326507024, %v1573
        %v1589 = vor.u32 %v1587, %v1588
        %vm1590 = vcmp.lt.s32.totalorder %v1571, 1
        %vm1591 = vcmp.lt.s32.totalorder %v1571, 2
        %vm1592 = vcmp.lt.s32.totalorder %v1571, 3
        %vm1593 = vcmp.lt.s32.totalorder %v1571, 4
        %v1594 = vsel %vm1590, %v1574, %v1577
        %v1595 = vsel %vm1593, %v1583, 2102212464
        %v1596 = vsel %vm1592, %v1580, %v1595
        %v1597 = vsel %vm1591, %v1594, %v1596
        %v1598 = vsel %vm1590, %v1577, %v1580
        %v1599 = vsel %vm1593, %v1586, 920167782
        %v1600 = vsel %vm1592, %v1583, %v1599
        %v1601 = vsel %vm1591, %v1598, %v1600
        %v1602 = vsel %vm1590, %v1580, %v1583
        %v1603 = vsel %vm1593, %v1589, 1326507024
        %v1604 = vsel %vm1592, %v1586, %v1603
        %v1605 = vsel %vm1591, %v1602, %v1604
        %v1606 = vshll.u32 %v1566, 8
        %v1607 = vmul.u32.u64.compose %v1606, %v1605
        %v1608 = vextract.low.u32 %v1607
        %v1609 = vextract.high.u32 %v1607
        %v1610 = vmul.u32.u64.compose %v1606, %v1601
        %v1611 = vextract.low.u32 %v1610
        %v1612 = vextract.high.u32 %v1610
        %v1613 = vmul.u32 %v1606, %v1597
        %v1614 = vadd.s32 %v1609, %v1611
        %vm1615 = vc.u32 %v1609, %v1611
        %v1616 = vadd.s32 %v1612, 1
        %v1617 = vsel %vm1615, %v1616, %v1612
        %v1618 = vadd.s32 %v1613, %v1617
        %v1619 = vadd.s32 %v1618, 536870912
        %v1620 = vshrl.u32 %v1619, 30
        %v1621 = vshll.u32 %v1620, 30
        %v1622 = vsub.s32 %v1618, %v1621
        %vm1623 = vcmp.lt.s32.totalorder %v1622, 0
        %v1624 = vsub.s32 0, %v1622
        %v1625 = vsel %vm1623, %v1624, %v1622
        %v1626 = vclz %v1625
        %v1627 = vsub.s32 %v1626, 2
        %vm1628 = vcmp.gt.s32.totalorder 0, %v1627
        %v1629 = vsel %vm1628, 0, %v1627
        %v1630 = vsub.s32 32, %v1629
        %v1631 = vshll.u32 %v1622, %v1629
        %v1632 = vshrl.u32 %v1614, %v1630
        %v1633 = vor.u32 %v1631, %v1632
        %v1634 = vsub.s32 4294967266, %v1629
        %v1635 = vadd.s32 %v1634, 127
        %v1636 = vshll.u32 %v1635, 23
        %v1637 = vor.u32 4788187, %v1636
        %v1638 = vand.u32 2147483647, %v1637
        %v1640 = vcvt.s32.f32 %v1633
        %v1641 = vmul.f32 %v1640, %v1638
        %v1642 = vxor.u32 %v1641, 2147483648
        %v1643 = vsel %vm1560, %v1642, %v1641
        %v1644 = vsub.s32 4, %v1620
        %v1645 = vsel %vm1560, %v1644, %v1620
        %v1646 = vsel %vm1559, %v599, %v1643
        %v1647 = vsel %vm1559, 0, %v1645
        %v1648 = vcosq.f32.pop %v1646
        %v1649 = vsinq.f32.pop %v1646
        %vm1650 = vweird.f32 %v599
        %v1651 = vadd.s32 %v1647, 3
        %v1652 = vand.u32 %v1651, 3
        %vm1653 = vcmp.lt.s32.totalorder %v1652, 2
        %vm1654 = vcmp.eq.s32.totalorder %v1652, 0
        %v1655 = vxor.u32 %v1649, 2147483648
        %v1656 = vsel %vm1654, %v1648, %v1655
        %vm1657 = vcmp.eq.s32.totalorder %v1652, 2
        %v1658 = vxor.u32 %v1648, 2147483648
        %v1659 = vsel %vm1657, %v1658, %v1649
        %v1660 = vsel %vm1653, %v1656, %v1659
        %v1661 = vsel %vm1650, nan, %v1660
        %v1662 = vand.u32 2147483647, %v600
        %vm1663 = vcmp.le.f32.partialorder %v1662, 0.7853982
        %vm1664 = vcmp.lt.s32.totalorder %v600, 0
        %v1665 = vand.u32 %v600, 2139095040
        %v1666 = vshrl.u32 %v1665, 23
        %v1667 = vsub.s32 %v1666, 127
        %v1668 = vand.u32 2147483647, %v600
        %v1669 = vand.u32 %v1668, 8388607
        %v1670 = vor.u32 %v1669, 8388608
        %v1671 = vsub.s32 0, %v1670
        %v1672 = vadd.s32 %v1667, 1
        %vm1673 = vcmp.gt.s32.totalorder %v1672, 0
        %v1674 = vsel %vm1673, %v1672, 0
        %v1675 = vshrl.u32 %v1674, 5
        %v1676 = vand.u32 %v1674, 31
        %v1677 = vsub.s32 32, %v1676
        %v1678 = vshrl.u32 683565275, %v1677
        %v1679 = vshll.u32 683565275, %v1676
        %v1680 = vshrl.u32 2475754826, %v1677
        %v1681 = vor.u32 %v1679, %v1680
        %v1682 = vshll.u32 2475754826, %v1676
        %v1683 = vshrl.u32 2131351028, %v1677
        %v1684 = vor.u32 %v1682, %v1683
        %v1685 = vshll.u32 2131351028, %v1676
        %v1686 = vshrl.u32 2102212464, %v1677
        %v1687 = vor.u32 %v1685, %v1686
        %v1688 = vshll.u32 2102212464, %v1676
        %v1689 = vshrl.u32 920167782, %v1677
        %v1690 = vor.u32 %v1688, %v1689
        %v1691 = vshll.u32 920167782, %v1676
        %v1692 = vshrl.u32 1326507024, %v1677
        %v1693 = vor.u32 %v1691, %v1692
        %vm1694 = vcmp.lt.s32.totalorder %v1675, 1
        %vm1695 = vcmp.lt.s32.totalorder %v1675, 2
        %vm1696 = vcmp.lt.s32.totalorder %v1675, 3
        %vm1697 = vcmp.lt.s32.totalorder %v1675, 4
        %v1698 = vsel %vm1694, %v1678, %v1681
        %v1699 = vsel %vm1697, %v1687, 2102212464
        %v1700 = vsel %vm1696, %v1684, %v1699
        %v1701 = vsel %vm1695, %v1698, %v1700
        %v1702 = vsel %vm1694, %v1681, %v1684
        %v1703 = vsel %vm1697, %v1690, 920167782
        %v1704 = vsel %vm1696, %v1687, %v1703
        %v1705 = vsel %vm1695, %v1702, %v1704
        %v1706 = vsel %vm1694, %v1684, %v1687
        %v1707 = vsel %vm1697, %v1693, 1326507024
        %v1708 = vsel %vm1696, %v1690, %v1707
        %v1709 = vsel %vm1695, %v1706, %v1708
        %v1710 = vshll.u32 %v1670, 8
        %v1711 = vmul.u32.u64.compose %v1710, %v1709
        %v1712 = vextract.low.u32 %v1711
        %v1713 = vextract.high.u32 %v1711
        %v1714 = vmul.u32.u64.compose %v1710, %v1705
        %v1715 = vextract.low.u32 %v1714
        %v1716 = vextract.high.u32 %v1714
        %v1717 = vmul.u32 %v1710, %v1701
        %v1718 = vadd.s32 %v1713, %v1715
        %vm1719 = vc.u32 %v1713, %v1715
        %v1720 = vadd.s32 %v1716, 1
        %v1721 = vsel %vm1719, %v1720, %v1716
        %v1722 = vadd.s32 %v1717, %v1721
        %v1723 = vadd.s32 %v1722, 536870912
        %v1724 = vshrl.u32 %v1723, 30
        %v1725 = vshll.u32 %v1724, 30
        %v1726 = vsub.s32 %v1722, %v1725
        %vm1727 = vcmp.lt.s32.totalorder %v1726, 0
        %v1728 = vsub.s32 0, %v1726
        %v1729 = vsel %vm1727, %v1728, %v1726
        %v1730 = vclz %v1729
        %v1731 = vsub.s32 %v1730, 2
        %vm1732 = vcmp.gt.s32.totalorder 0, %v1731
        %v1733 = vsel %vm1732, 0, %v1731
        %v1734 = vsub.s32 32, %v1733
        %v1735 = vshll.u32 %v1726, %v1733
        %v1736 = vshrl.u32 %v1718, %v1734
        %v1737 = vor.u32 %v1735, %v1736
        %v1738 = vsub.s32 4294967266, %v1733
        %v1739 = vadd.s32 %v1738, 127
        %v1740 = vshll.u32 %v1739, 23
        %v1741 = vor.u32 4788187, %v1740
        %v1742 = vand.u32 2147483647, %v1741
        %v1744 = vcvt.s32.f32 %v1737
        %v1745 = vmul.f32 %v1744, %v1742
        %v1746 = vxor.u32 %v1745, 2147483648
        %v1747 = vsel %vm1664, %v1746, %v1745
        %v1748 = vsub.s32 4, %v1724
        %v1749 = vsel %vm1664, %v1748, %v1724
        %v1750 = vsel %vm1663, %v600, %v1747
        %v1751 = vsel %vm1663, 0, %v1749
        %v1752 = vcosq.f32.pop %v1750
        %v1753 = vsinq.f32.pop %v1750
        %vm1754 = vweird.f32 %v600
        %v1755 = vadd.s32 %v1751, 3
        %v1756 = vand.u32 %v1755, 3
        %vm1757 = vcmp.lt.s32.totalorder %v1756, 2
        %vm1758 = vcmp.eq.s32.totalorder %v1756, 0
        %v1759 = vxor.u32 %v1753, 2147483648
        %v1760 = vsel %vm1758, %v1752, %v1759
        %vm1761 = vcmp.eq.s32.totalorder %v1756, 2
        %v1762 = vxor.u32 %v1752, 2147483648
        %v1763 = vsel %vm1761, %v1762, %v1753
        %v1764 = vsel %vm1757, %v1760, %v1763
        %v1765 = vsel %vm1754, nan, %v1764
        %v1766 = vand.u32 2147483647, %v601
        %vm1767 = vcmp.le.f32.partialorder %v1766, 0.7853982
        %vm1768 = vcmp.lt.s32.totalorder %v601, 0
        %v1769 = vand.u32 %v601, 2139095040
        %v1770 = vshrl.u32 %v1769, 23
        %v1771 = vsub.s32 %v1770, 127
        %v1772 = vand.u32 2147483647, %v601
        %v1773 = vand.u32 %v1772, 8388607
        %v1774 = vor.u32 %v1773, 8388608
        %v1775 = vsub.s32 0, %v1774
        %v1776 = vadd.s32 %v1771, 1
        %vm1777 = vcmp.gt.s32.totalorder %v1776, 0
        %v1778 = vsel %vm1777, %v1776, 0
        %v1779 = vshrl.u32 %v1778, 5
        %v1780 = vand.u32 %v1778, 31
        %v1781 = vsub.s32 32, %v1780
        %v1782 = vshrl.u32 683565275, %v1781
        %v1783 = vshll.u32 683565275, %v1780
        %v1784 = vshrl.u32 2475754826, %v1781
        %v1785 = vor.u32 %v1783, %v1784
        %v1786 = vshll.u32 2475754826, %v1780
        %v1787 = vshrl.u32 2131351028, %v1781
        %v1788 = vor.u32 %v1786, %v1787
        %v1789 = vshll.u32 2131351028, %v1780
        %v1790 = vshrl.u32 2102212464, %v1781
        %v1791 = vor.u32 %v1789, %v1790
        %v1792 = vshll.u32 2102212464, %v1780
        %v1793 = vshrl.u32 920167782, %v1781
        %v1794 = vor.u32 %v1792, %v1793
        %v1795 = vshll.u32 920167782, %v1780
        %v1796 = vshrl.u32 1326507024, %v1781
        %v1797 = vor.u32 %v1795, %v1796
        %vm1798 = vcmp.lt.s32.totalorder %v1779, 1
        %vm1799 = vcmp.lt.s32.totalorder %v1779, 2
        %vm1800 = vcmp.lt.s32.totalorder %v1779, 3
        %vm1801 = vcmp.lt.s32.totalorder %v1779, 4
        %v1802 = vsel %vm1798, %v1782, %v1785
        %v1803 = vsel %vm1801, %v1791, 2102212464
        %v1804 = vsel %vm1800, %v1788, %v1803
        %v1805 = vsel %vm1799, %v1802, %v1804
        %v1806 = vsel %vm1798, %v1785, %v1788
        %v1807 = vsel %vm1801, %v1794, 920167782
        %v1808 = vsel %vm1800, %v1791, %v1807
        %v1809 = vsel %vm1799, %v1806, %v1808
        %v1810 = vsel %vm1798, %v1788, %v1791
        %v1811 = vsel %vm1801, %v1797, 1326507024
        %v1812 = vsel %vm1800, %v1794, %v1811
        %v1813 = vsel %vm1799, %v1810, %v1812
        %v1814 = vshll.u32 %v1774, 8
        %v1815 = vmul.u32.u64.compose %v1814, %v1813
        %v1816 = vextract.low.u32 %v1815
        %v1817 = vextract.high.u32 %v1815
        %v1818 = vmul.u32.u64.compose %v1814, %v1809
        %v1819 = vextract.low.u32 %v1818
        %v1820 = vextract.high.u32 %v1818
        %v1821 = vmul.u32 %v1814, %v1805
        %v1822 = vadd.s32 %v1817, %v1819
        %vm1823 = vc.u32 %v1817, %v1819
        %v1824 = vadd.s32 %v1820, 1
        %v1825 = vsel %vm1823, %v1824, %v1820
        %v1826 = vadd.s32 %v1821, %v1825
        %v1827 = vadd.s32 %v1826, 536870912
        %v1828 = vshrl.u32 %v1827, 30
        %v1829 = vshll.u32 %v1828, 30
        %v1830 = vsub.s32 %v1826, %v1829
        %vm1831 = vcmp.lt.s32.totalorder %v1830, 0
        %v1832 = vsub.s32 0, %v1830
        %v1833 = vsel %vm1831, %v1832, %v1830
        %v1834 = vclz %v1833
        %v1835 = vsub.s32 %v1834, 2
        %vm1836 = vcmp.gt.s32.totalorder 0, %v1835
        %v1837 = vsel %vm1836, 0, %v1835
        %v1838 = vsub.s32 32, %v1837
        %v1839 = vshll.u32 %v1830, %v1837
        %v1840 = vshrl.u32 %v1822, %v1838
        %v1841 = vor.u32 %v1839, %v1840
        %v1842 = vsub.s32 4294967266, %v1837
        %v1843 = vadd.s32 %v1842, 127
        %v1844 = vshll.u32 %v1843, 23
        %v1845 = vor.u32 4788187, %v1844
        %v1846 = vand.u32 2147483647, %v1845
        %v1848 = vcvt.s32.f32 %v1841
        %v1849 = vmul.f32 %v1848, %v1846
        %v1850 = vxor.u32 %v1849, 2147483648
        %v1851 = vsel %vm1768, %v1850, %v1849
        %v1852 = vsub.s32 4, %v1828
        %v1853 = vsel %vm1768, %v1852, %v1828
        %v1854 = vsel %vm1767, %v601, %v1851
        %v1855 = vsel %vm1767, 0, %v1853
        %v1856 = vcosq.f32.pop %v1854
        %v1857 = vsinq.f32.pop %v1854
        %vm1858 = vweird.f32 %v601
        %v1859 = vadd.s32 %v1855, 3
        %v1860 = vand.u32 %v1859, 3
        %vm1861 = vcmp.lt.s32.totalorder %v1860, 2
        %vm1862 = vcmp.eq.s32.totalorder %v1860, 0
        %v1863 = vxor.u32 %v1857, 2147483648
        %v1864 = vsel %vm1862, %v1856, %v1863
        %vm1865 = vcmp.eq.s32.totalorder %v1860, 2
        %v1866 = vxor.u32 %v1856, 2147483648
        %v1867 = vsel %vm1865, %v1866, %v1857
        %v1868 = vsel %vm1861, %v1864, %v1867
        %v1869 = vsel %vm1858, nan, %v1868
        %v1870 = vand.u32 2147483647, %v602
        %vm1871 = vcmp.le.f32.partialorder %v1870, 0.7853982
        %vm1872 = vcmp.lt.s32.totalorder %v602, 0
        %v1873 = vand.u32 %v602, 2139095040
        %v1874 = vshrl.u32 %v1873, 23
        %v1875 = vsub.s32 %v1874, 127
        %v1876 = vand.u32 2147483647, %v602
        %v1877 = vand.u32 %v1876, 8388607
        %v1878 = vor.u32 %v1877, 8388608
        %v1879 = vsub.s32 0, %v1878
        %v1880 = vadd.s32 %v1875, 1
        %vm1881 = vcmp.gt.s32.totalorder %v1880, 0
        %v1882 = vsel %vm1881, %v1880, 0
        %v1883 = vshrl.u32 %v1882, 5
        %v1884 = vand.u32 %v1882, 31
        %v1885 = vsub.s32 32, %v1884
        %v1886 = vshrl.u32 683565275, %v1885
        %v1887 = vshll.u32 683565275, %v1884
        %v1888 = vshrl.u32 2475754826, %v1885
        %v1889 = vor.u32 %v1887, %v1888
        %v1890 = vshll.u32 2475754826, %v1884
        %v1891 = vshrl.u32 2131351028, %v1885
        %v1892 = vor.u32 %v1890, %v1891
        %v1893 = vshll.u32 2131351028, %v1884
        %v1894 = vshrl.u32 2102212464, %v1885
        %v1895 = vor.u32 %v1893, %v1894
        %v1896 = vshll.u32 2102212464, %v1884
        %v1897 = vshrl.u32 920167782, %v1885
        %v1898 = vor.u32 %v1896, %v1897
        %v1899 = vshll.u32 920167782, %v1884
        %v1900 = vshrl.u32 1326507024, %v1885
        %v1901 = vor.u32 %v1899, %v1900
        %vm1902 = vcmp.lt.s32.totalorder %v1883, 1
        %vm1903 = vcmp.lt.s32.totalorder %v1883, 2
        %vm1904 = vcmp.lt.s32.totalorder %v1883, 3
        %vm1905 = vcmp.lt.s32.totalorder %v1883, 4
        %v1906 = vsel %vm1902, %v1886, %v1889
        %v1907 = vsel %vm1905, %v1895, 2102212464
        %v1908 = vsel %vm1904, %v1892, %v1907
        %v1909 = vsel %vm1903, %v1906, %v1908
        %v1910 = vsel %vm1902, %v1889, %v1892
        %v1911 = vsel %vm1905, %v1898, 920167782
        %v1912 = vsel %vm1904, %v1895, %v1911
        %v1913 = vsel %vm1903, %v1910, %v1912
        %v1914 = vsel %vm1902, %v1892, %v1895
        %v1915 = vsel %vm1905, %v1901, 1326507024
        %v1916 = vsel %vm1904, %v1898, %v1915
        %v1917 = vsel %vm1903, %v1914, %v1916
        %v1918 = vshll.u32 %v1878, 8
        %v1919 = vmul.u32.u64.compose %v1918, %v1917
        %v1920 = vextract.low.u32 %v1919
        %v1921 = vextract.high.u32 %v1919
        %v1922 = vmul.u32.u64.compose %v1918, %v1913
        %v1923 = vextract.low.u32 %v1922
        %v1924 = vextract.high.u32 %v1922
        %v1925 = vmul.u32 %v1918, %v1909
        %v1926 = vadd.s32 %v1921, %v1923
        %vm1927 = vc.u32 %v1921, %v1923
        %v1928 = vadd.s32 %v1924, 1
        %v1929 = vsel %vm1927, %v1928, %v1924
        %v1930 = vadd.s32 %v1925, %v1929
        %v1931 = vadd.s32 %v1930, 536870912
        %v1932 = vshrl.u32 %v1931, 30
        %v1933 = vshll.u32 %v1932, 30
        %v1934 = vsub.s32 %v1930, %v1933
        %vm1935 = vcmp.lt.s32.totalorder %v1934, 0
        %v1936 = vsub.s32 0, %v1934
        %v1937 = vsel %vm1935, %v1936, %v1934
        %v1938 = vclz %v1937
        %v1939 = vsub.s32 %v1938, 2
        %vm1940 = vcmp.gt.s32.totalorder 0, %v1939
        %v1941 = vsel %vm1940, 0, %v1939
        %v1942 = vsub.s32 32, %v1941
        %v1943 = vshll.u32 %v1934, %v1941
        %v1944 = vshrl.u32 %v1926, %v1942
        %v1945 = vor.u32 %v1943, %v1944
        %v1946 = vsub.s32 4294967266, %v1941
        %v1947 = vadd.s32 %v1946, 127
        %v1948 = vshll.u32 %v1947, 23
        %v1949 = vor.u32 4788187, %v1948
        %v1950 = vand.u32 2147483647, %v1949
        %v1952 = vcvt.s32.f32 %v1945
        %v1953 = vmul.f32 %v1952, %v1950
        %v1954 = vxor.u32 %v1953, 2147483648
        %v1955 = vsel %vm1872, %v1954, %v1953
        %v1956 = vsub.s32 4, %v1932
        %v1957 = vsel %vm1872, %v1956, %v1932
        %v1958 = vsel %vm1871, %v602, %v1955
        %v1959 = vsel %vm1871, 0, %v1957
        %v1960 = vcosq.f32.pop %v1958
        %v1961 = vsinq.f32.pop %v1958
        %vm1962 = vweird.f32 %v602
        %v1963 = vadd.s32 %v1959, 3
        %v1964 = vand.u32 %v1963, 3
        %vm1965 = vcmp.lt.s32.totalorder %v1964, 2
        %vm1966 = vcmp.eq.s32.totalorder %v1964, 0
        %v1967 = vxor.u32 %v1961, 2147483648
        %v1968 = vsel %vm1966, %v1960, %v1967
        %vm1969 = vcmp.eq.s32.totalorder %v1964, 2
        %v1970 = vxor.u32 %v1960, 2147483648
        %v1971 = vsel %vm1969, %v1970, %v1961
        %v1972 = vsel %vm1965, %v1968, %v1971
        %v1973 = vsel %vm1962, nan, %v1972
        %v1974 = vand.u32 2147483647, %v603
        %vm1975 = vcmp.le.f32.partialorder %v1974, 0.7853982
        %vm1976 = vcmp.lt.s32.totalorder %v603, 0
        %v1977 = vand.u32 %v603, 2139095040
        %v1978 = vshrl.u32 %v1977, 23
        %v1979 = vsub.s32 %v1978, 127
        %v1980 = vand.u32 2147483647, %v603
        %v1981 = vand.u32 %v1980, 8388607
        %v1982 = vor.u32 %v1981, 8388608
        %v1983 = vsub.s32 0, %v1982
        %v1984 = vadd.s32 %v1979, 1
        %vm1985 = vcmp.gt.s32.totalorder %v1984, 0
        %v1986 = vsel %vm1985, %v1984, 0
        %v1987 = vshrl.u32 %v1986, 5
        %v1988 = vand.u32 %v1986, 31
        %v1989 = vsub.s32 32, %v1988
        %v1990 = vshrl.u32 683565275, %v1989
        %v1991 = vshll.u32 683565275, %v1988
        %v1992 = vshrl.u32 2475754826, %v1989
        %v1993 = vor.u32 %v1991, %v1992
        %v1994 = vshll.u32 2475754826, %v1988
        %v1995 = vshrl.u32 2131351028, %v1989
        %v1996 = vor.u32 %v1994, %v1995
        %v1997 = vshll.u32 2131351028, %v1988
        %v1998 = vshrl.u32 2102212464, %v1989
        %v1999 = vor.u32 %v1997, %v1998
        %v2000 = vshll.u32 2102212464, %v1988
        %v2001 = vshrl.u32 920167782, %v1989
        %v2002 = vor.u32 %v2000, %v2001
        %v2003 = vshll.u32 920167782, %v1988
        %v2004 = vshrl.u32 1326507024, %v1989
        %v2005 = vor.u32 %v2003, %v2004
        %vm2006 = vcmp.lt.s32.totalorder %v1987, 1
        %vm2007 = vcmp.lt.s32.totalorder %v1987, 2
        %vm2008 = vcmp.lt.s32.totalorder %v1987, 3
        %vm2009 = vcmp.lt.s32.totalorder %v1987, 4
        %v2010 = vsel %vm2006, %v1990, %v1993
        %v2011 = vsel %vm2009, %v1999, 2102212464
        %v2012 = vsel %vm2008, %v1996, %v2011
        %v2013 = vsel %vm2007, %v2010, %v2012
        %v2014 = vsel %vm2006, %v1993, %v1996
        %v2015 = vsel %vm2009, %v2002, 920167782
        %v2016 = vsel %vm2008, %v1999, %v2015
        %v2017 = vsel %vm2007, %v2014, %v2016
        %v2018 = vsel %vm2006, %v1996, %v1999
        %v2019 = vsel %vm2009, %v2005, 1326507024
        %v2020 = vsel %vm2008, %v2002, %v2019
        %v2021 = vsel %vm2007, %v2018, %v2020
        %v2022 = vshll.u32 %v1982, 8
        %v2023 = vmul.u32.u64.compose %v2022, %v2021
        %v2024 = vextract.low.u32 %v2023
        %v2025 = vextract.high.u32 %v2023
        %v2026 = vmul.u32.u64.compose %v2022, %v2017
        %v2027 = vextract.low.u32 %v2026
        %v2028 = vextract.high.u32 %v2026
        %v2029 = vmul.u32 %v2022, %v2013
        %v2030 = vadd.s32 %v2025, %v2027
        %vm2031 = vc.u32 %v2025, %v2027
        %v2032 = vadd.s32 %v2028, 1
        %v2033 = vsel %vm2031, %v2032, %v2028
        %v2034 = vadd.s32 %v2029, %v2033
        %v2035 = vadd.s32 %v2034, 536870912
        %v2036 = vshrl.u32 %v2035, 30
        %v2037 = vshll.u32 %v2036, 30
        %v2038 = vsub.s32 %v2034, %v2037
        %vm2039 = vcmp.lt.s32.totalorder %v2038, 0
        %v2040 = vsub.s32 0, %v2038
        %v2041 = vsel %vm2039, %v2040, %v2038
        %v2042 = vclz %v2041
        %v2043 = vsub.s32 %v2042, 2
        %vm2044 = vcmp.gt.s32.totalorder 0, %v2043
        %v2045 = vsel %vm2044, 0, %v2043
        %v2046 = vsub.s32 32, %v2045
        %v2047 = vshll.u32 %v2038, %v2045
        %v2048 = vshrl.u32 %v2030, %v2046
        %v2049 = vor.u32 %v2047, %v2048
        %v2050 = vsub.s32 4294967266, %v2045
        %v2051 = vadd.s32 %v2050, 127
        %v2052 = vshll.u32 %v2051, 23
        %v2053 = vor.u32 4788187, %v2052
        %v2054 = vand.u32 2147483647, %v2053
        %v2056 = vcvt.s32.f32 %v2049
        %v2057 = vmul.f32 %v2056, %v2054
        %v2058 = vxor.u32 %v2057, 2147483648
        %v2059 = vsel %vm1976, %v2058, %v2057
        %v2060 = vsub.s32 4, %v2036
        %v2061 = vsel %vm1976, %v2060, %v2036
        %v2062 = vsel %vm1975, %v603, %v2059
        %v2063 = vsel %vm1975, 0, %v2061
        %v2064 = vcosq.f32.pop %v2062
        %v2065 = vsinq.f32.pop %v2062
        %vm2066 = vweird.f32 %v603
        %v2067 = vadd.s32 %v2063, 3
        %v2068 = vand.u32 %v2067, 3
        %vm2069 = vcmp.lt.s32.totalorder %v2068, 2
        %vm2070 = vcmp.eq.s32.totalorder %v2068, 0
        %v2071 = vxor.u32 %v2065, 2147483648
        %v2072 = vsel %vm2070, %v2064, %v2071
        %vm2073 = vcmp.eq.s32.totalorder %v2068, 2
        %v2074 = vxor.u32 %v2064, 2147483648
        %v2075 = vsel %vm2073, %v2074, %v2065
        %v2076 = vsel %vm2069, %v2072, %v2075
        %v2077 = vsel %vm2066, nan, %v2076
        %v2078 = vand.u32 2147483647, %v604
        %vm2079 = vcmp.le.f32.partialorder %v2078, 0.7853982
        %vm2080 = vcmp.lt.s32.totalorder %v604, 0
        %v2081 = vand.u32 %v604, 2139095040
        %v2082 = vshrl.u32 %v2081, 23
        %v2083 = vsub.s32 %v2082, 127
        %v2084 = vand.u32 2147483647, %v604
        %v2085 = vand.u32 %v2084, 8388607
        %v2086 = vor.u32 %v2085, 8388608
        %v2087 = vsub.s32 0, %v2086
        %v2088 = vadd.s32 %v2083, 1
        %vm2089 = vcmp.gt.s32.totalorder %v2088, 0
        %v2090 = vsel %vm2089, %v2088, 0
        %v2091 = vshrl.u32 %v2090, 5
        %v2092 = vand.u32 %v2090, 31
        %v2093 = vsub.s32 32, %v2092
        %v2094 = vshrl.u32 683565275, %v2093
        %v2095 = vshll.u32 683565275, %v2092
        %v2096 = vshrl.u32 2475754826, %v2093
        %v2097 = vor.u32 %v2095, %v2096
        %v2098 = vshll.u32 2475754826, %v2092
        %v2099 = vshrl.u32 2131351028, %v2093
        %v2100 = vor.u32 %v2098, %v2099
        %v2101 = vshll.u32 2131351028, %v2092
        %v2102 = vshrl.u32 2102212464, %v2093
        %v2103 = vor.u32 %v2101, %v2102
        %v2104 = vshll.u32 2102212464, %v2092
        %v2105 = vshrl.u32 920167782, %v2093
        %v2106 = vor.u32 %v2104, %v2105
        %v2107 = vshll.u32 920167782, %v2092
        %v2108 = vshrl.u32 1326507024, %v2093
        %v2109 = vor.u32 %v2107, %v2108
        %vm2110 = vcmp.lt.s32.totalorder %v2091, 1
        %vm2111 = vcmp.lt.s32.totalorder %v2091, 2
        %vm2112 = vcmp.lt.s32.totalorder %v2091, 3
        %vm2113 = vcmp.lt.s32.totalorder %v2091, 4
        %v2114 = vsel %vm2110, %v2094, %v2097
        %v2115 = vsel %vm2113, %v2103, 2102212464
        %v2116 = vsel %vm2112, %v2100, %v2115
        %v2117 = vsel %vm2111, %v2114, %v2116
        %v2118 = vsel %vm2110, %v2097, %v2100
        %v2119 = vsel %vm2113, %v2106, 920167782
        %v2120 = vsel %vm2112, %v2103, %v2119
        %v2121 = vsel %vm2111, %v2118, %v2120
        %v2122 = vsel %vm2110, %v2100, %v2103
        %v2123 = vsel %vm2113, %v2109, 1326507024
        %v2124 = vsel %vm2112, %v2106, %v2123
        %v2125 = vsel %vm2111, %v2122, %v2124
        %v2126 = vshll.u32 %v2086, 8
        %v2127 = vmul.u32.u64.compose %v2126, %v2125
        %v2128 = vextract.low.u32 %v2127
        %v2129 = vextract.high.u32 %v2127
        %v2130 = vmul.u32.u64.compose %v2126, %v2121
        %v2131 = vextract.low.u32 %v2130
        %v2132 = vextract.high.u32 %v2130
        %v2133 = vmul.u32 %v2126, %v2117
        %v2134 = vadd.s32 %v2129, %v2131
        %vm2135 = vc.u32 %v2129, %v2131
        %v2136 = vadd.s32 %v2132, 1
        %v2137 = vsel %vm2135, %v2136, %v2132
        %v2138 = vadd.s32 %v2133, %v2137
        %v2139 = vadd.s32 %v2138, 536870912
        %v2140 = vshrl.u32 %v2139, 30
        %v2141 = vshll.u32 %v2140, 30
        %v2142 = vsub.s32 %v2138, %v2141
        %vm2143 = vcmp.lt.s32.totalorder %v2142, 0
        %v2144 = vsub.s32 0, %v2142
        %v2145 = vsel %vm2143, %v2144, %v2142
        %v2146 = vclz %v2145
        %v2147 = vsub.s32 %v2146, 2
        %vm2148 = vcmp.gt.s32.totalorder 0, %v2147
        %v2149 = vsel %vm2148, 0, %v2147
        %v2150 = vsub.s32 32, %v2149
        %v2151 = vshll.u32 %v2142, %v2149
        %v2152 = vshrl.u32 %v2134, %v2150
        %v2153 = vor.u32 %v2151, %v2152
        %v2154 = vsub.s32 4294967266, %v2149
        %v2155 = vadd.s32 %v2154, 127
        %v2156 = vshll.u32 %v2155, 23
        %v2157 = vor.u32 4788187, %v2156
        %v2158 = vand.u32 2147483647, %v2157
        %v2160 = vcvt.s32.f32 %v2153
        %v2161 = vmul.f32 %v2160, %v2158
        %v2162 = vxor.u32 %v2161, 2147483648
        %v2163 = vsel %vm2080, %v2162, %v2161
        %v2164 = vsub.s32 4, %v2140
        %v2165 = vsel %vm2080, %v2164, %v2140
        %v2166 = vsel %vm2079, %v604, %v2163
        %v2167 = vsel %vm2079, 0, %v2165
        %v2168 = vcosq.f32.pop %v2166
        %v2169 = vsinq.f32.pop %v2166
        %vm2170 = vweird.f32 %v604
        %v2171 = vadd.s32 %v2167, 3
        %v2172 = vand.u32 %v2171, 3
        %vm2173 = vcmp.lt.s32.totalorder %v2172, 2
        %vm2174 = vcmp.eq.s32.totalorder %v2172, 0
        %v2175 = vxor.u32 %v2169, 2147483648
        %v2176 = vsel %vm2174, %v2168, %v2175
        %vm2177 = vcmp.eq.s32.totalorder %v2172, 2
        %v2178 = vxor.u32 %v2168, 2147483648
        %v2179 = vsel %vm2177, %v2178, %v2169
        %v2180 = vsel %vm2173, %v2176, %v2179
        %v2181 = vsel %vm2170, nan, %v2180
        %v2182 = vand.u32 2147483647, %v605
        %vm2183 = vcmp.le.f32.partialorder %v2182, 0.7853982
        %vm2184 = vcmp.lt.s32.totalorder %v605, 0
        %v2185 = vand.u32 %v605, 2139095040
        %v2186 = vshrl.u32 %v2185, 23
        %v2187 = vsub.s32 %v2186, 127
        %v2188 = vand.u32 2147483647, %v605
        %v2189 = vand.u32 %v2188, 8388607
        %v2190 = vor.u32 %v2189, 8388608
        %v2191 = vsub.s32 0, %v2190
        %v2192 = vadd.s32 %v2187, 1
        %vm2193 = vcmp.gt.s32.totalorder %v2192, 0
        %v2194 = vsel %vm2193, %v2192, 0
        %v2195 = vshrl.u32 %v2194, 5
        %v2196 = vand.u32 %v2194, 31
        %v2197 = vsub.s32 32, %v2196
        %v2198 = vshrl.u32 683565275, %v2197
        %v2199 = vshll.u32 683565275, %v2196
        %v2200 = vshrl.u32 2475754826, %v2197
        %v2201 = vor.u32 %v2199, %v2200
        %v2202 = vshll.u32 2475754826, %v2196
        %v2203 = vshrl.u32 2131351028, %v2197
        %v2204 = vor.u32 %v2202, %v2203
        %v2205 = vshll.u32 2131351028, %v2196
        %v2206 = vshrl.u32 2102212464, %v2197
        %v2207 = vor.u32 %v2205, %v2206
        %v2208 = vshll.u32 2102212464, %v2196
        %v2209 = vshrl.u32 920167782, %v2197
        %v2210 = vor.u32 %v2208, %v2209
        %v2211 = vshll.u32 920167782, %v2196
        %v2212 = vshrl.u32 1326507024, %v2197
        %v2213 = vor.u32 %v2211, %v2212
        %vm2214 = vcmp.lt.s32.totalorder %v2195, 1
        %vm2215 = vcmp.lt.s32.totalorder %v2195, 2
        %vm2216 = vcmp.lt.s32.totalorder %v2195, 3
        %vm2217 = vcmp.lt.s32.totalorder %v2195, 4
        %v2218 = vsel %vm2214, %v2198, %v2201
        %v2219 = vsel %vm2217, %v2207, 2102212464
        %v2220 = vsel %vm2216, %v2204, %v2219
        %v2221 = vsel %vm2215, %v2218, %v2220
        %v2222 = vsel %vm2214, %v2201, %v2204
        %v2223 = vsel %vm2217, %v2210, 920167782
        %v2224 = vsel %vm2216, %v2207, %v2223
        %v2225 = vsel %vm2215, %v2222, %v2224
        %v2226 = vsel %vm2214, %v2204, %v2207
        %v2227 = vsel %vm2217, %v2213, 1326507024
        %v2228 = vsel %vm2216, %v2210, %v2227
        %v2229 = vsel %vm2215, %v2226, %v2228
        %v2230 = vshll.u32 %v2190, 8
        %v2231 = vmul.u32.u64.compose %v2230, %v2229
        %v2232 = vextract.low.u32 %v2231
        %v2233 = vextract.high.u32 %v2231
        %v2234 = vmul.u32.u64.compose %v2230, %v2225
        %v2235 = vextract.low.u32 %v2234
        %v2236 = vextract.high.u32 %v2234
        %v2237 = vmul.u32 %v2230, %v2221
        %v2238 = vadd.s32 %v2233, %v2235
        %vm2239 = vc.u32 %v2233, %v2235
        %v2240 = vadd.s32 %v2236, 1
        %v2241 = vsel %vm2239, %v2240, %v2236
        %v2242 = vadd.s32 %v2237, %v2241
        %v2243 = vadd.s32 %v2242, 536870912
        %v2244 = vshrl.u32 %v2243, 30
        %v2245 = vshll.u32 %v2244, 30
        %v2246 = vsub.s32 %v2242, %v2245
        %vm2247 = vcmp.lt.s32.totalorder %v2246, 0
        %v2248 = vsub.s32 0, %v2246
        %v2249 = vsel %vm2247, %v2248, %v2246
        %v2250 = vclz %v2249
        %v2251 = vsub.s32 %v2250, 2
        %vm2252 = vcmp.gt.s32.totalorder 0, %v2251
        %v2253 = vsel %vm2252, 0, %v2251
        %v2254 = vsub.s32 32, %v2253
        %v2255 = vshll.u32 %v2246, %v2253
        %v2256 = vshrl.u32 %v2238, %v2254
        %v2257 = vor.u32 %v2255, %v2256
        %v2258 = vsub.s32 4294967266, %v2253
        %v2259 = vadd.s32 %v2258, 127
        %v2260 = vshll.u32 %v2259, 23
        %v2261 = vor.u32 4788187, %v2260
        %v2262 = vand.u32 2147483647, %v2261
        %v2264 = vcvt.s32.f32 %v2257
        %v2265 = vmul.f32 %v2264, %v2262
        %v2266 = vxor.u32 %v2265, 2147483648
        %v2267 = vsel %vm2184, %v2266, %v2265
        %v2268 = vsub.s32 4, %v2244
        %v2269 = vsel %vm2184, %v2268, %v2244
        %v2270 = vsel %vm2183, %v605, %v2267
        %v2271 = vsel %vm2183, 0, %v2269
        %v2272 = vcosq.f32.pop %v2270
        %v2273 = vsinq.f32.pop %v2270
        %vm2274 = vweird.f32 %v605
        %v2275 = vadd.s32 %v2271, 3
        %v2276 = vand.u32 %v2275, 3
        %vm2277 = vcmp.lt.s32.totalorder %v2276, 2
        %vm2278 = vcmp.eq.s32.totalorder %v2276, 0
        %v2279 = vxor.u32 %v2273, 2147483648
        %v2280 = vsel %vm2278, %v2272, %v2279
        %vm2281 = vcmp.eq.s32.totalorder %v2276, 2
        %v2282 = vxor.u32 %v2272, 2147483648
        %v2283 = vsel %vm2281, %v2282, %v2273
        %v2284 = vsel %vm2277, %v2280, %v2283
        %v2285 = vsel %vm2274, nan, %v2284
        %v2286 = vand.u32 2147483647, %v606
        %vm2287 = vcmp.le.f32.partialorder %v2286, 0.7853982
        %vm2288 = vcmp.lt.s32.totalorder %v606, 0
        %v2289 = vand.u32 %v606, 2139095040
        %v2290 = vshrl.u32 %v2289, 23
        %v2291 = vsub.s32 %v2290, 127
        %v2292 = vand.u32 2147483647, %v606
        %v2293 = vand.u32 %v2292, 8388607
        %v2294 = vor.u32 %v2293, 8388608
        %v2295 = vsub.s32 0, %v2294
        %v2296 = vadd.s32 %v2291, 1
        %vm2297 = vcmp.gt.s32.totalorder %v2296, 0
        %v2298 = vsel %vm2297, %v2296, 0
        %v2299 = vshrl.u32 %v2298, 5
        %v2300 = vand.u32 %v2298, 31
        %v2301 = vsub.s32 32, %v2300
        %v2302 = vshrl.u32 683565275, %v2301
        %v2303 = vshll.u32 683565275, %v2300
        %v2304 = vshrl.u32 2475754826, %v2301
        %v2305 = vor.u32 %v2303, %v2304
        %v2306 = vshll.u32 2475754826, %v2300
        %v2307 = vshrl.u32 2131351028, %v2301
        %v2308 = vor.u32 %v2306, %v2307
        %v2309 = vshll.u32 2131351028, %v2300
        %v2310 = vshrl.u32 2102212464, %v2301
        %v2311 = vor.u32 %v2309, %v2310
        %v2312 = vshll.u32 2102212464, %v2300
        %v2313 = vshrl.u32 920167782, %v2301
        %v2314 = vor.u32 %v2312, %v2313
        %v2315 = vshll.u32 920167782, %v2300
        %v2316 = vshrl.u32 1326507024, %v2301
        %v2317 = vor.u32 %v2315, %v2316
        %vm2318 = vcmp.lt.s32.totalorder %v2299, 1
        %vm2319 = vcmp.lt.s32.totalorder %v2299, 2
        %vm2320 = vcmp.lt.s32.totalorder %v2299, 3
        %vm2321 = vcmp.lt.s32.totalorder %v2299, 4
        %v2322 = vsel %vm2318, %v2302, %v2305
        %v2323 = vsel %vm2321, %v2311, 2102212464
        %v2324 = vsel %vm2320, %v2308, %v2323
        %v2325 = vsel %vm2319, %v2322, %v2324
        %v2326 = vsel %vm2318, %v2305, %v2308
        %v2327 = vsel %vm2321, %v2314, 920167782
        %v2328 = vsel %vm2320, %v2311, %v2327
        %v2329 = vsel %vm2319, %v2326, %v2328
        %v2330 = vsel %vm2318, %v2308, %v2311
        %v2331 = vsel %vm2321, %v2317, 1326507024
        %v2332 = vsel %vm2320, %v2314, %v2331
        %v2333 = vsel %vm2319, %v2330, %v2332
        %v2334 = vshll.u32 %v2294, 8
        %v2335 = vmul.u32.u64.compose %v2334, %v2333
        %v2336 = vextract.low.u32 %v2335
        %v2337 = vextract.high.u32 %v2335
        %v2338 = vmul.u32.u64.compose %v2334, %v2329
        %v2339 = vextract.low.u32 %v2338
        %v2340 = vextract.high.u32 %v2338
        %v2341 = vmul.u32 %v2334, %v2325
        %v2342 = vadd.s32 %v2337, %v2339
        %vm2343 = vc.u32 %v2337, %v2339
        %v2344 = vadd.s32 %v2340, 1
        %v2345 = vsel %vm2343, %v2344, %v2340
        %v2346 = vadd.s32 %v2341, %v2345
        %v2347 = vadd.s32 %v2346, 536870912
        %v2348 = vshrl.u32 %v2347, 30
        %v2349 = vshll.u32 %v2348, 30
        %v2350 = vsub.s32 %v2346, %v2349
        %vm2351 = vcmp.lt.s32.totalorder %v2350, 0
        %v2352 = vsub.s32 0, %v2350
        %v2353 = vsel %vm2351, %v2352, %v2350
        %v2354 = vclz %v2353
        %v2355 = vsub.s32 %v2354, 2
        %vm2356 = vcmp.gt.s32.totalorder 0, %v2355
        %v2357 = vsel %vm2356, 0, %v2355
        %v2358 = vsub.s32 32, %v2357
        %v2359 = vshll.u32 %v2350, %v2357
        %v2360 = vshrl.u32 %v2342, %v2358
        %v2361 = vor.u32 %v2359, %v2360
        %v2362 = vsub.s32 4294967266, %v2357
        %v2363 = vadd.s32 %v2362, 127
        %v2364 = vshll.u32 %v2363, 23
        %v2365 = vor.u32 4788187, %v2364
        %v2366 = vand.u32 2147483647, %v2365
        %v2368 = vcvt.s32.f32 %v2361
        %v2369 = vmul.f32 %v2368, %v2366
        %v2370 = vxor.u32 %v2369, 2147483648
        %v2371 = vsel %vm2288, %v2370, %v2369
        %v2372 = vsub.s32 4, %v2348
        %v2373 = vsel %vm2288, %v2372, %v2348
        %v2374 = vsel %vm2287, %v606, %v2371
        %v2375 = vsel %vm2287, 0, %v2373
        %v2376 = vcosq.f32.pop %v2374
        %v2377 = vsinq.f32.pop %v2374
        %vm2378 = vweird.f32 %v606
        %v2379 = vadd.s32 %v2375, 3
        %v2380 = vand.u32 %v2379, 3
        %vm2381 = vcmp.lt.s32.totalorder %v2380, 2
        %vm2382 = vcmp.eq.s32.totalorder %v2380, 0
        %v2383 = vxor.u32 %v2377, 2147483648
        %v2384 = vsel %vm2382, %v2376, %v2383
        %vm2385 = vcmp.eq.s32.totalorder %v2380, 2
        %v2386 = vxor.u32 %v2376, 2147483648
        %v2387 = vsel %vm2385, %v2386, %v2377
        %v2388 = vsel %vm2381, %v2384, %v2387
        %v2389 = vsel %vm2378, nan, %v2388
        %v2390 = vand.u32 2147483647, %v607
        %vm2391 = vcmp.le.f32.partialorder %v2390, 0.7853982
        %vm2392 = vcmp.lt.s32.totalorder %v607, 0
        %v2393 = vand.u32 %v607, 2139095040
        %v2394 = vshrl.u32 %v2393, 23
        %v2395 = vsub.s32 %v2394, 127
        %v2396 = vand.u32 2147483647, %v607
        %v2397 = vand.u32 %v2396, 8388607
        %v2398 = vor.u32 %v2397, 8388608
        %v2399 = vsub.s32 0, %v2398
        %v2400 = vadd.s32 %v2395, 1
        %vm2401 = vcmp.gt.s32.totalorder %v2400, 0
        %v2402 = vsel %vm2401, %v2400, 0
        %v2403 = vshrl.u32 %v2402, 5
        %v2404 = vand.u32 %v2402, 31
        %v2405 = vsub.s32 32, %v2404
        %v2406 = vshrl.u32 683565275, %v2405
        %v2407 = vshll.u32 683565275, %v2404
        %v2408 = vshrl.u32 2475754826, %v2405
        %v2409 = vor.u32 %v2407, %v2408
        %v2410 = vshll.u32 2475754826, %v2404
        %v2411 = vshrl.u32 2131351028, %v2405
        %v2412 = vor.u32 %v2410, %v2411
        %v2413 = vshll.u32 2131351028, %v2404
        %v2414 = vshrl.u32 2102212464, %v2405
        %v2415 = vor.u32 %v2413, %v2414
        %v2416 = vshll.u32 2102212464, %v2404
        %v2417 = vshrl.u32 920167782, %v2405
        %v2418 = vor.u32 %v2416, %v2417
        %v2419 = vshll.u32 920167782, %v2404
        %v2420 = vshrl.u32 1326507024, %v2405
        %v2421 = vor.u32 %v2419, %v2420
        %vm2422 = vcmp.lt.s32.totalorder %v2403, 1
        %vm2423 = vcmp.lt.s32.totalorder %v2403, 2
        %vm2424 = vcmp.lt.s32.totalorder %v2403, 3
        %vm2425 = vcmp.lt.s32.totalorder %v2403, 4
        %v2426 = vsel %vm2422, %v2406, %v2409
        %v2427 = vsel %vm2425, %v2415, 2102212464
        %v2428 = vsel %vm2424, %v2412, %v2427
        %v2429 = vsel %vm2423, %v2426, %v2428
        %v2430 = vsel %vm2422, %v2409, %v2412
        %v2431 = vsel %vm2425, %v2418, 920167782
        %v2432 = vsel %vm2424, %v2415, %v2431
        %v2433 = vsel %vm2423, %v2430, %v2432
        %v2434 = vsel %vm2422, %v2412, %v2415
        %v2435 = vsel %vm2425, %v2421, 1326507024
        %v2436 = vsel %vm2424, %v2418, %v2435
        %v2437 = vsel %vm2423, %v2434, %v2436
        %v2438 = vshll.u32 %v2398, 8
        %v2439 = vmul.u32.u64.compose %v2438, %v2437
        %v2440 = vextract.low.u32 %v2439
        %v2441 = vextract.high.u32 %v2439
        %v2442 = vmul.u32.u64.compose %v2438, %v2433
        %v2443 = vextract.low.u32 %v2442
        %v2444 = vextract.high.u32 %v2442
        %v2445 = vmul.u32 %v2438, %v2429
        %v2446 = vadd.s32 %v2441, %v2443
        %vm2447 = vc.u32 %v2441, %v2443
        %v2448 = vadd.s32 %v2444, 1
        %v2449 = vsel %vm2447, %v2448, %v2444
        %v2450 = vadd.s32 %v2445, %v2449
        %v2451 = vadd.s32 %v2450, 536870912
        %v2452 = vshrl.u32 %v2451, 30
        %v2453 = vshll.u32 %v2452, 30
        %v2454 = vsub.s32 %v2450, %v2453
        %vm2455 = vcmp.lt.s32.totalorder %v2454, 0
        %v2456 = vsub.s32 0, %v2454
        %v2457 = vsel %vm2455, %v2456, %v2454
        %v2458 = vclz %v2457
        %v2459 = vsub.s32 %v2458, 2
        %vm2460 = vcmp.gt.s32.totalorder 0, %v2459
        %v2461 = vsel %vm2460, 0, %v2459
        %v2462 = vsub.s32 32, %v2461
        %v2463 = vshll.u32 %v2454, %v2461
        %v2464 = vshrl.u32 %v2446, %v2462
        %v2465 = vor.u32 %v2463, %v2464
        %v2466 = vsub.s32 4294967266, %v2461
        %v2467 = vadd.s32 %v2466, 127
        %v2468 = vshll.u32 %v2467, 23
        %v2469 = vor.u32 4788187, %v2468
        %v2470 = vand.u32 2147483647, %v2469
        %v2472 = vcvt.s32.f32 %v2465
        %v2473 = vmul.f32 %v2472, %v2470
        %v2474 = vxor.u32 %v2473, 2147483648
        %v2475 = vsel %vm2392, %v2474, %v2473
        %v2476 = vsub.s32 4, %v2452
        %v2477 = vsel %vm2392, %v2476, %v2452
        %v2478 = vsel %vm2391, %v607, %v2475
        %v2479 = vsel %vm2391, 0, %v2477
        %v2480 = vcosq.f32.pop %v2478
        %v2481 = vsinq.f32.pop %v2478
        %vm2482 = vweird.f32 %v607
        %v2483 = vadd.s32 %v2479, 3
        %v2484 = vand.u32 %v2483, 3
        %vm2485 = vcmp.lt.s32.totalorder %v2484, 2
        %vm2486 = vcmp.eq.s32.totalorder %v2484, 0
        %v2487 = vxor.u32 %v2481, 2147483648
        %v2488 = vsel %vm2486, %v2480, %v2487
        %vm2489 = vcmp.eq.s32.totalorder %v2484, 2
        %v2490 = vxor.u32 %v2480, 2147483648
        %v2491 = vsel %vm2489, %v2490, %v2481
        %v2492 = vsel %vm2485, %v2488, %v2491
        %v2493 = vsel %vm2482, nan, %v2492
        %v2494 = vand.u32 2147483647, %v608
        %vm2495 = vcmp.le.f32.partialorder %v2494, 0.7853982
        %vm2496 = vcmp.lt.s32.totalorder %v608, 0
        %v2497 = vand.u32 %v608, 2139095040
        %v2498 = vshrl.u32 %v2497, 23
        %v2499 = vsub.s32 %v2498, 127
        %v2500 = vand.u32 2147483647, %v608
        %v2501 = vand.u32 %v2500, 8388607
        %v2502 = vor.u32 %v2501, 8388608
        %v2503 = vsub.s32 0, %v2502
        %v2504 = vadd.s32 %v2499, 1
        %vm2505 = vcmp.gt.s32.totalorder %v2504, 0
        %v2506 = vsel %vm2505, %v2504, 0
        %v2507 = vshrl.u32 %v2506, 5
        %v2508 = vand.u32 %v2506, 31
        %v2509 = vsub.s32 32, %v2508
        %v2510 = vshrl.u32 683565275, %v2509
        %v2511 = vshll.u32 683565275, %v2508
        %v2512 = vshrl.u32 2475754826, %v2509
        %v2513 = vor.u32 %v2511, %v2512
        %v2514 = vshll.u32 2475754826, %v2508
        %v2515 = vshrl.u32 2131351028, %v2509
        %v2516 = vor.u32 %v2514, %v2515
        %v2517 = vshll.u32 2131351028, %v2508
        %v2518 = vshrl.u32 2102212464, %v2509
        %v2519 = vor.u32 %v2517, %v2518
        %v2520 = vshll.u32 2102212464, %v2508
        %v2521 = vshrl.u32 920167782, %v2509
        %v2522 = vor.u32 %v2520, %v2521
        %v2523 = vshll.u32 920167782, %v2508
        %v2524 = vshrl.u32 1326507024, %v2509
        %v2525 = vor.u32 %v2523, %v2524
        %vm2526 = vcmp.lt.s32.totalorder %v2507, 1
        %vm2527 = vcmp.lt.s32.totalorder %v2507, 2
        %vm2528 = vcmp.lt.s32.totalorder %v2507, 3
        %vm2529 = vcmp.lt.s32.totalorder %v2507, 4
        %v2530 = vsel %vm2526, %v2510, %v2513
        %v2531 = vsel %vm2529, %v2519, 2102212464
        %v2532 = vsel %vm2528, %v2516, %v2531
        %v2533 = vsel %vm2527, %v2530, %v2532
        %v2534 = vsel %vm2526, %v2513, %v2516
        %v2535 = vsel %vm2529, %v2522, 920167782
        %v2536 = vsel %vm2528, %v2519, %v2535
        %v2537 = vsel %vm2527, %v2534, %v2536
        %v2538 = vsel %vm2526, %v2516, %v2519
        %v2539 = vsel %vm2529, %v2525, 1326507024
        %v2540 = vsel %vm2528, %v2522, %v2539
        %v2541 = vsel %vm2527, %v2538, %v2540
        %v2542 = vshll.u32 %v2502, 8
        %v2543 = vmul.u32.u64.compose %v2542, %v2541
        %v2544 = vextract.low.u32 %v2543
        %v2545 = vextract.high.u32 %v2543
        %v2546 = vmul.u32.u64.compose %v2542, %v2537
        %v2547 = vextract.low.u32 %v2546
        %v2548 = vextract.high.u32 %v2546
        %v2549 = vmul.u32 %v2542, %v2533
        %v2550 = vadd.s32 %v2545, %v2547
        %vm2551 = vc.u32 %v2545, %v2547
        %v2552 = vadd.s32 %v2548, 1
        %v2553 = vsel %vm2551, %v2552, %v2548
        %v2554 = vadd.s32 %v2549, %v2553
        %v2555 = vadd.s32 %v2554, 536870912
        %v2556 = vshrl.u32 %v2555, 30
        %v2557 = vshll.u32 %v2556, 30
        %v2558 = vsub.s32 %v2554, %v2557
        %vm2559 = vcmp.lt.s32.totalorder %v2558, 0
        %v2560 = vsub.s32 0, %v2558
        %v2561 = vsel %vm2559, %v2560, %v2558
        %v2562 = vclz %v2561
        %v2563 = vsub.s32 %v2562, 2
        %vm2564 = vcmp.gt.s32.totalorder 0, %v2563
        %v2565 = vsel %vm2564, 0, %v2563
        %v2566 = vsub.s32 32, %v2565
        %v2567 = vshll.u32 %v2558, %v2565
        %v2568 = vshrl.u32 %v2550, %v2566
        %v2569 = vor.u32 %v2567, %v2568
        %v2570 = vsub.s32 4294967266, %v2565
        %v2571 = vadd.s32 %v2570, 127
        %v2572 = vshll.u32 %v2571, 23
        %v2573 = vor.u32 4788187, %v2572
        %v2574 = vand.u32 2147483647, %v2573
        %v2576 = vcvt.s32.f32 %v2569
        %v2577 = vmul.f32 %v2576, %v2574
        %v2578 = vxor.u32 %v2577, 2147483648
        %v2579 = vsel %vm2496, %v2578, %v2577
        %v2580 = vsub.s32 4, %v2556
        %v2581 = vsel %vm2496, %v2580, %v2556
        %v2582 = vsel %vm2495, %v608, %v2579
        %v2583 = vsel %vm2495, 0, %v2581
        %v2584 = vcosq.f32.pop %v2582
        %v2585 = vsinq.f32.pop %v2582
        %vm2586 = vweird.f32 %v608
        %v2587 = vadd.s32 %v2583, 3
        %v2588 = vand.u32 %v2587, 3
        %vm2589 = vcmp.lt.s32.totalorder %v2588, 2
        %vm2590 = vcmp.eq.s32.totalorder %v2588, 0
        %v2591 = vxor.u32 %v2585, 2147483648
        %v2592 = vsel %vm2590, %v2584, %v2591
        %vm2593 = vcmp.eq.s32.totalorder %v2588, 2
        %v2594 = vxor.u32 %v2584, 2147483648
        %v2595 = vsel %vm2593, %v2594, %v2585
        %v2596 = vsel %vm2589, %v2592, %v2595
        %v2597 = vsel %vm2586, nan, %v2596
        %v2598 = vand.u32 2147483647, %v609
        %vm2599 = vcmp.le.f32.partialorder %v2598, 0.7853982
        %vm2600 = vcmp.lt.s32.totalorder %v609, 0
        %v2601 = vand.u32 %v609, 2139095040
        %v2602 = vshrl.u32 %v2601, 23
        %v2603 = vsub.s32 %v2602, 127
        %v2604 = vand.u32 2147483647, %v609
        %v2605 = vand.u32 %v2604, 8388607
        %v2606 = vor.u32 %v2605, 8388608
        %v2607 = vsub.s32 0, %v2606
        %v2608 = vadd.s32 %v2603, 1
        %vm2609 = vcmp.gt.s32.totalorder %v2608, 0
        %v2610 = vsel %vm2609, %v2608, 0
        %v2611 = vshrl.u32 %v2610, 5
        %v2612 = vand.u32 %v2610, 31
        %v2613 = vsub.s32 32, %v2612
        %v2614 = vshrl.u32 683565275, %v2613
        %v2615 = vshll.u32 683565275, %v2612
        %v2616 = vshrl.u32 2475754826, %v2613
        %v2617 = vor.u32 %v2615, %v2616
        %v2618 = vshll.u32 2475754826, %v2612
        %v2619 = vshrl.u32 2131351028, %v2613
        %v2620 = vor.u32 %v2618, %v2619
        %v2621 = vshll.u32 2131351028, %v2612
        %v2622 = vshrl.u32 2102212464, %v2613
        %v2623 = vor.u32 %v2621, %v2622
        %v2624 = vshll.u32 2102212464, %v2612
        %v2625 = vshrl.u32 920167782, %v2613
        %v2626 = vor.u32 %v2624, %v2625
        %v2627 = vshll.u32 920167782, %v2612
        %v2628 = vshrl.u32 1326507024, %v2613
        %v2629 = vor.u32 %v2627, %v2628
        %vm2630 = vcmp.lt.s32.totalorder %v2611, 1
        %vm2631 = vcmp.lt.s32.totalorder %v2611, 2
        %vm2632 = vcmp.lt.s32.totalorder %v2611, 3
        %vm2633 = vcmp.lt.s32.totalorder %v2611, 4
        %v2634 = vsel %vm2630, %v2614, %v2617
        %v2635 = vsel %vm2633, %v2623, 2102212464
        %v2636 = vsel %vm2632, %v2620, %v2635
        %v2637 = vsel %vm2631, %v2634, %v2636
        %v2638 = vsel %vm2630, %v2617, %v2620
        %v2639 = vsel %vm2633, %v2626, 920167782
        %v2640 = vsel %vm2632, %v2623, %v2639
        %v2641 = vsel %vm2631, %v2638, %v2640
        %v2642 = vsel %vm2630, %v2620, %v2623
        %v2643 = vsel %vm2633, %v2629, 1326507024
        %v2644 = vsel %vm2632, %v2626, %v2643
        %v2645 = vsel %vm2631, %v2642, %v2644
        %v2646 = vshll.u32 %v2606, 8
        %v2647 = vmul.u32.u64.compose %v2646, %v2645
        %v2648 = vextract.low.u32 %v2647
        %v2649 = vextract.high.u32 %v2647
        %v2650 = vmul.u32.u64.compose %v2646, %v2641
        %v2651 = vextract.low.u32 %v2650
        %v2652 = vextract.high.u32 %v2650
        %v2653 = vmul.u32 %v2646, %v2637
        %v2654 = vadd.s32 %v2649, %v2651
        %vm2655 = vc.u32 %v2649, %v2651
        %v2656 = vadd.s32 %v2652, 1
        %v2657 = vsel %vm2655, %v2656, %v2652
        %v2658 = vadd.s32 %v2653, %v2657
        %v2659 = vadd.s32 %v2658, 536870912
        %v2660 = vshrl.u32 %v2659, 30
        %v2661 = vshll.u32 %v2660, 30
        %v2662 = vsub.s32 %v2658, %v2661
        %vm2663 = vcmp.lt.s32.totalorder %v2662, 0
        %v2664 = vsub.s32 0, %v2662
        %v2665 = vsel %vm2663, %v2664, %v2662
        %v2666 = vclz %v2665
        %v2667 = vsub.s32 %v2666, 2
        %vm2668 = vcmp.gt.s32.totalorder 0, %v2667
        %v2669 = vsel %vm2668, 0, %v2667
        %v2670 = vsub.s32 32, %v2669
        %v2671 = vshll.u32 %v2662, %v2669
        %v2672 = vshrl.u32 %v2654, %v2670
        %v2673 = vor.u32 %v2671, %v2672
        %v2674 = vsub.s32 4294967266, %v2669
        %v2675 = vadd.s32 %v2674, 127
        %v2676 = vshll.u32 %v2675, 23
        %v2677 = vor.u32 4788187, %v2676
        %v2678 = vand.u32 2147483647, %v2677
        %v2680 = vcvt.s32.f32 %v2673
        %v2681 = vmul.f32 %v2680, %v2678
        %v2682 = vxor.u32 %v2681, 2147483648
        %v2683 = vsel %vm2600, %v2682, %v2681
        %v2684 = vsub.s32 4, %v2660
        %v2685 = vsel %vm2600, %v2684, %v2660
        %v2686 = vsel %vm2599, %v609, %v2683
        %v2687 = vsel %vm2599, 0, %v2685
        %v2688 = vcosq.f32.pop %v2686
        %v2689 = vsinq.f32.pop %v2686
        %vm2690 = vweird.f32 %v609
        %v2691 = vadd.s32 %v2687, 3
        %v2692 = vand.u32 %v2691, 3
        %vm2693 = vcmp.lt.s32.totalorder %v2692, 2
        %vm2694 = vcmp.eq.s32.totalorder %v2692, 0
        %v2695 = vxor.u32 %v2689, 2147483648
        %v2696 = vsel %vm2694, %v2688, %v2695
        %vm2697 = vcmp.eq.s32.totalorder %v2692, 2
        %v2698 = vxor.u32 %v2688, 2147483648
        %v2699 = vsel %vm2697, %v2698, %v2689
        %v2700 = vsel %vm2693, %v2696, %v2699
        %v2701 = vsel %vm2690, nan, %v2700
        %v2702 = vand.u32 2147483647, %v610
        %vm2703 = vcmp.le.f32.partialorder %v2702, 0.7853982
        %vm2704 = vcmp.lt.s32.totalorder %v610, 0
        %v2705 = vand.u32 %v610, 2139095040
        %v2706 = vshrl.u32 %v2705, 23
        %v2707 = vsub.s32 %v2706, 127
        %v2708 = vand.u32 2147483647, %v610
        %v2709 = vand.u32 %v2708, 8388607
        %v2710 = vor.u32 %v2709, 8388608
        %v2711 = vsub.s32 0, %v2710
        %v2712 = vadd.s32 %v2707, 1
        %vm2713 = vcmp.gt.s32.totalorder %v2712, 0
        %v2714 = vsel %vm2713, %v2712, 0
        %v2715 = vshrl.u32 %v2714, 5
        %v2716 = vand.u32 %v2714, 31
        %v2717 = vsub.s32 32, %v2716
        %v2718 = vshrl.u32 683565275, %v2717
        %v2719 = vshll.u32 683565275, %v2716
        %v2720 = vshrl.u32 2475754826, %v2717
        %v2721 = vor.u32 %v2719, %v2720
        %v2722 = vshll.u32 2475754826, %v2716
        %v2723 = vshrl.u32 2131351028, %v2717
        %v2724 = vor.u32 %v2722, %v2723
        %v2725 = vshll.u32 2131351028, %v2716
        %v2726 = vshrl.u32 2102212464, %v2717
        %v2727 = vor.u32 %v2725, %v2726
        %v2728 = vshll.u32 2102212464, %v2716
        %v2729 = vshrl.u32 920167782, %v2717
        %v2730 = vor.u32 %v2728, %v2729
        %v2731 = vshll.u32 920167782, %v2716
        %v2732 = vshrl.u32 1326507024, %v2717
        %v2733 = vor.u32 %v2731, %v2732
        %vm2734 = vcmp.lt.s32.totalorder %v2715, 1
        %vm2735 = vcmp.lt.s32.totalorder %v2715, 2
        %vm2736 = vcmp.lt.s32.totalorder %v2715, 3
        %vm2737 = vcmp.lt.s32.totalorder %v2715, 4
        %v2738 = vsel %vm2734, %v2718, %v2721
        %v2739 = vsel %vm2737, %v2727, 2102212464
        %v2740 = vsel %vm2736, %v2724, %v2739
        %v2741 = vsel %vm2735, %v2738, %v2740
        %v2742 = vsel %vm2734, %v2721, %v2724
        %v2743 = vsel %vm2737, %v2730, 920167782
        %v2744 = vsel %vm2736, %v2727, %v2743
        %v2745 = vsel %vm2735, %v2742, %v2744
        %v2746 = vsel %vm2734, %v2724, %v2727
        %v2747 = vsel %vm2737, %v2733, 1326507024
        %v2748 = vsel %vm2736, %v2730, %v2747
        %v2749 = vsel %vm2735, %v2746, %v2748
        %v2750 = vshll.u32 %v2710, 8
        %v2751 = vmul.u32.u64.compose %v2750, %v2749
        %v2752 = vextract.low.u32 %v2751
        %v2753 = vextract.high.u32 %v2751
        %v2754 = vmul.u32.u64.compose %v2750, %v2745
        %v2755 = vextract.low.u32 %v2754
        %v2756 = vextract.high.u32 %v2754
        %v2757 = vmul.u32 %v2750, %v2741
        %v2758 = vadd.s32 %v2753, %v2755
        %vm2759 = vc.u32 %v2753, %v2755
        %v2760 = vadd.s32 %v2756, 1
        %v2761 = vsel %vm2759, %v2760, %v2756
        %v2762 = vadd.s32 %v2757, %v2761
        %v2763 = vadd.s32 %v2762, 536870912
        %v2764 = vshrl.u32 %v2763, 30
        %v2765 = vshll.u32 %v2764, 30
        %v2766 = vsub.s32 %v2762, %v2765
        %vm2767 = vcmp.lt.s32.totalorder %v2766, 0
        %v2768 = vsub.s32 0, %v2766
        %v2769 = vsel %vm2767, %v2768, %v2766
        %v2770 = vclz %v2769
        %v2771 = vsub.s32 %v2770, 2
        %vm2772 = vcmp.gt.s32.totalorder 0, %v2771
        %v2773 = vsel %vm2772, 0, %v2771
        %v2774 = vsub.s32 32, %v2773
        %v2775 = vshll.u32 %v2766, %v2773
        %v2776 = vshrl.u32 %v2758, %v2774
        %v2777 = vor.u32 %v2775, %v2776
        %v2778 = vsub.s32 4294967266, %v2773
        %v2779 = vadd.s32 %v2778, 127
        %v2780 = vshll.u32 %v2779, 23
        %v2781 = vor.u32 4788187, %v2780
        %v2782 = vand.u32 2147483647, %v2781
        %v2784 = vcvt.s32.f32 %v2777
        %v2785 = vmul.f32 %v2784, %v2782
        %v2786 = vxor.u32 %v2785, 2147483648
        %v2787 = vsel %vm2704, %v2786, %v2785
        %v2788 = vsub.s32 4, %v2764
        %v2789 = vsel %vm2704, %v2788, %v2764
        %v2790 = vsel %vm2703, %v610, %v2787
        %v2791 = vsel %vm2703, 0, %v2789
        %v2792 = vcosq.f32.pop %v2790
        %v2793 = vsinq.f32.pop %v2790
        %vm2794 = vweird.f32 %v610
        %v2795 = vadd.s32 %v2791, 3
        %v2796 = vand.u32 %v2795, 3
        %vm2797 = vcmp.lt.s32.totalorder %v2796, 2
        %vm2798 = vcmp.eq.s32.totalorder %v2796, 0
        %v2799 = vxor.u32 %v2793, 2147483648
        %v2800 = vsel %vm2798, %v2792, %v2799
        %vm2801 = vcmp.eq.s32.totalorder %v2796, 2
        %v2802 = vxor.u32 %v2792, 2147483648
        %v2803 = vsel %vm2801, %v2802, %v2793
        %v2804 = vsel %vm2797, %v2800, %v2803
        %v2805 = vsel %vm2794, nan, %v2804
        %v2806 = vand.u32 2147483647, %v611
        %vm2807 = vcmp.le.f32.partialorder %v2806, 0.7853982
        %vm2808 = vcmp.lt.s32.totalorder %v611, 0
        %v2809 = vand.u32 %v611, 2139095040
        %v2810 = vshrl.u32 %v2809, 23
        %v2811 = vsub.s32 %v2810, 127
        %v2812 = vand.u32 2147483647, %v611
        %v2813 = vand.u32 %v2812, 8388607
        %v2814 = vor.u32 %v2813, 8388608
        %v2815 = vsub.s32 0, %v2814
        %v2816 = vadd.s32 %v2811, 1
        %vm2817 = vcmp.gt.s32.totalorder %v2816, 0
        %v2818 = vsel %vm2817, %v2816, 0
        %v2819 = vshrl.u32 %v2818, 5
        %v2820 = vand.u32 %v2818, 31
        %v2821 = vsub.s32 32, %v2820
        %v2822 = vshrl.u32 683565275, %v2821
        %v2823 = vshll.u32 683565275, %v2820
        %v2824 = vshrl.u32 2475754826, %v2821
        %v2825 = vor.u32 %v2823, %v2824
        %v2826 = vshll.u32 2475754826, %v2820
        %v2827 = vshrl.u32 2131351028, %v2821
        %v2828 = vor.u32 %v2826, %v2827
        %v2829 = vshll.u32 2131351028, %v2820
        %v2830 = vshrl.u32 2102212464, %v2821
        %v2831 = vor.u32 %v2829, %v2830
        %v2832 = vshll.u32 2102212464, %v2820
        %v2833 = vshrl.u32 920167782, %v2821
        %v2834 = vor.u32 %v2832, %v2833
        %v2835 = vshll.u32 920167782, %v2820
        %v2836 = vshrl.u32 1326507024, %v2821
        %v2837 = vor.u32 %v2835, %v2836
        %vm2838 = vcmp.lt.s32.totalorder %v2819, 1
        %vm2839 = vcmp.lt.s32.totalorder %v2819, 2
        %vm2840 = vcmp.lt.s32.totalorder %v2819, 3
        %vm2841 = vcmp.lt.s32.totalorder %v2819, 4
        %v2842 = vsel %vm2838, %v2822, %v2825
        %v2843 = vsel %vm2841, %v2831, 2102212464
        %v2844 = vsel %vm2840, %v2828, %v2843
        %v2845 = vsel %vm2839, %v2842, %v2844
        %v2846 = vsel %vm2838, %v2825, %v2828
        %v2847 = vsel %vm2841, %v2834, 920167782
        %v2848 = vsel %vm2840, %v2831, %v2847
        %v2849 = vsel %vm2839, %v2846, %v2848
        %v2850 = vsel %vm2838, %v2828, %v2831
        %v2851 = vsel %vm2841, %v2837, 1326507024
        %v2852 = vsel %vm2840, %v2834, %v2851
        %v2853 = vsel %vm2839, %v2850, %v2852
        %v2854 = vshll.u32 %v2814, 8
        %v2855 = vmul.u32.u64.compose %v2854, %v2853
        %v2856 = vextract.low.u32 %v2855
        %v2857 = vextract.high.u32 %v2855
        %v2858 = vmul.u32.u64.compose %v2854, %v2849
        %v2859 = vextract.low.u32 %v2858
        %v2860 = vextract.high.u32 %v2858
        %v2861 = vmul.u32 %v2854, %v2845
        %v2862 = vadd.s32 %v2857, %v2859
        %vm2863 = vc.u32 %v2857, %v2859
        %v2864 = vadd.s32 %v2860, 1
        %v2865 = vsel %vm2863, %v2864, %v2860
        %v2866 = vadd.s32 %v2861, %v2865
        %v2867 = vadd.s32 %v2866, 536870912
        %v2868 = vshrl.u32 %v2867, 30
        %v2869 = vshll.u32 %v2868, 30
        %v2870 = vsub.s32 %v2866, %v2869
        %vm2871 = vcmp.lt.s32.totalorder %v2870, 0
        %v2872 = vsub.s32 0, %v2870
        %v2873 = vsel %vm2871, %v2872, %v2870
        %v2874 = vclz %v2873
        %v2875 = vsub.s32 %v2874, 2
        %vm2876 = vcmp.gt.s32.totalorder 0, %v2875
        %v2877 = vsel %vm2876, 0, %v2875
        %v2878 = vsub.s32 32, %v2877
        %v2879 = vshll.u32 %v2870, %v2877
        %v2880 = vshrl.u32 %v2862, %v2878
        %v2881 = vor.u32 %v2879, %v2880
        %v2882 = vsub.s32 4294967266, %v2877
        %v2883 = vadd.s32 %v2882, 127
        %v2884 = vshll.u32 %v2883, 23
        %v2885 = vor.u32 4788187, %v2884
        %v2886 = vand.u32 2147483647, %v2885
        %v2888 = vcvt.s32.f32 %v2881
        %v2889 = vmul.f32 %v2888, %v2886
        %v2890 = vxor.u32 %v2889, 2147483648
        %v2891 = vsel %vm2808, %v2890, %v2889
        %v2892 = vsub.s32 4, %v2868
        %v2893 = vsel %vm2808, %v2892, %v2868
        %v2894 = vsel %vm2807, %v611, %v2891
        %v2895 = vsel %vm2807, 0, %v2893
        %v2896 = vcosq.f32.pop %v2894
        %v2897 = vsinq.f32.pop %v2894
        %vm2898 = vweird.f32 %v611
        %v2899 = vadd.s32 %v2895, 3
        %v2900 = vand.u32 %v2899, 3
        %vm2901 = vcmp.lt.s32.totalorder %v2900, 2
        %vm2902 = vcmp.eq.s32.totalorder %v2900, 0
        %v2903 = vxor.u32 %v2897, 2147483648
        %v2904 = vsel %vm2902, %v2896, %v2903
        %vm2905 = vcmp.eq.s32.totalorder %v2900, 2
        %v2906 = vxor.u32 %v2896, 2147483648
        %v2907 = vsel %vm2905, %v2906, %v2897
        %v2908 = vsel %vm2901, %v2904, %v2907
        %v2909 = vsel %vm2898, nan, %v2908
        %v2910 = vand.u32 2147483647, %v612
        %vm2911 = vcmp.le.f32.partialorder %v2910, 0.7853982
        %vm2912 = vcmp.lt.s32.totalorder %v612, 0
        %v2913 = vand.u32 %v612, 2139095040
        %v2914 = vshrl.u32 %v2913, 23
        %v2915 = vsub.s32 %v2914, 127
        %v2916 = vand.u32 2147483647, %v612
        %v2917 = vand.u32 %v2916, 8388607
        %v2918 = vor.u32 %v2917, 8388608
        %v2919 = vsub.s32 0, %v2918
        %v2920 = vadd.s32 %v2915, 1
        %vm2921 = vcmp.gt.s32.totalorder %v2920, 0
        %v2922 = vsel %vm2921, %v2920, 0
        %v2923 = vshrl.u32 %v2922, 5
        %v2924 = vand.u32 %v2922, 31
        %v2925 = vsub.s32 32, %v2924
        %v2926 = vshrl.u32 683565275, %v2925
        %v2927 = vshll.u32 683565275, %v2924
        %v2928 = vshrl.u32 2475754826, %v2925
        %v2929 = vor.u32 %v2927, %v2928
        %v2930 = vshll.u32 2475754826, %v2924
        %v2931 = vshrl.u32 2131351028, %v2925
        %v2932 = vor.u32 %v2930, %v2931
        %v2933 = vshll.u32 2131351028, %v2924
        %v2934 = vshrl.u32 2102212464, %v2925
        %v2935 = vor.u32 %v2933, %v2934
        %v2936 = vshll.u32 2102212464, %v2924
        %v2937 = vshrl.u32 920167782, %v2925
        %v2938 = vor.u32 %v2936, %v2937
        %v2939 = vshll.u32 920167782, %v2924
        %v2940 = vshrl.u32 1326507024, %v2925
        %v2941 = vor.u32 %v2939, %v2940
        %vm2942 = vcmp.lt.s32.totalorder %v2923, 1
        %vm2943 = vcmp.lt.s32.totalorder %v2923, 2
        %vm2944 = vcmp.lt.s32.totalorder %v2923, 3
        %vm2945 = vcmp.lt.s32.totalorder %v2923, 4
        %v2946 = vsel %vm2942, %v2926, %v2929
        %v2947 = vsel %vm2945, %v2935, 2102212464
        %v2948 = vsel %vm2944, %v2932, %v2947
        %v2949 = vsel %vm2943, %v2946, %v2948
        %v2950 = vsel %vm2942, %v2929, %v2932
        %v2951 = vsel %vm2945, %v2938, 920167782
        %v2952 = vsel %vm2944, %v2935, %v2951
        %v2953 = vsel %vm2943, %v2950, %v2952
        %v2954 = vsel %vm2942, %v2932, %v2935
        %v2955 = vsel %vm2945, %v2941, 1326507024
        %v2956 = vsel %vm2944, %v2938, %v2955
        %v2957 = vsel %vm2943, %v2954, %v2956
        %v2958 = vshll.u32 %v2918, 8
        %v2959 = vmul.u32.u64.compose %v2958, %v2957
        %v2960 = vextract.low.u32 %v2959
        %v2961 = vextract.high.u32 %v2959
        %v2962 = vmul.u32.u64.compose %v2958, %v2953
        %v2963 = vextract.low.u32 %v2962
        %v2964 = vextract.high.u32 %v2962
        %v2965 = vmul.u32 %v2958, %v2949
        %v2966 = vadd.s32 %v2961, %v2963
        %vm2967 = vc.u32 %v2961, %v2963
        %v2968 = vadd.s32 %v2964, 1
        %v2969 = vsel %vm2967, %v2968, %v2964
        %v2970 = vadd.s32 %v2965, %v2969
        %v2971 = vadd.s32 %v2970, 536870912
        %v2972 = vshrl.u32 %v2971, 30
        %v2973 = vshll.u32 %v2972, 30
        %v2974 = vsub.s32 %v2970, %v2973
        %vm2975 = vcmp.lt.s32.totalorder %v2974, 0
        %v2976 = vsub.s32 0, %v2974
        %v2977 = vsel %vm2975, %v2976, %v2974
        %v2978 = vclz %v2977
        %v2979 = vsub.s32 %v2978, 2
        %vm2980 = vcmp.gt.s32.totalorder 0, %v2979
        %v2981 = vsel %vm2980, 0, %v2979
        %v2982 = vsub.s32 32, %v2981
        %v2983 = vshll.u32 %v2974, %v2981
        %v2984 = vshrl.u32 %v2966, %v2982
        %v2985 = vor.u32 %v2983, %v2984
        %v2986 = vsub.s32 4294967266, %v2981
        %v2987 = vadd.s32 %v2986, 127
        %v2988 = vshll.u32 %v2987, 23
        %v2989 = vor.u32 4788187, %v2988
        %v2990 = vand.u32 2147483647, %v2989
        %v2992 = vcvt.s32.f32 %v2985
        %v2993 = vmul.f32 %v2992, %v2990
        %v2994 = vxor.u32 %v2993, 2147483648
        %v2995 = vsel %vm2912, %v2994, %v2993
        %v2996 = vsub.s32 4, %v2972
        %v2997 = vsel %vm2912, %v2996, %v2972
        %v2998 = vsel %vm2911, %v612, %v2995
        %v2999 = vsel %vm2911, 0, %v2997
        %v3000 = vcosq.f32.pop %v2998
        %v3001 = vsinq.f32.pop %v2998
        %vm3002 = vweird.f32 %v612
        %v3003 = vadd.s32 %v2999, 3
        %v3004 = vand.u32 %v3003, 3
        %vm3005 = vcmp.lt.s32.totalorder %v3004, 2
        %vm3006 = vcmp.eq.s32.totalorder %v3004, 0
        %v3007 = vxor.u32 %v3001, 2147483648
        %v3008 = vsel %vm3006, %v3000, %v3007
        %vm3009 = vcmp.eq.s32.totalorder %v3004, 2
        %v3010 = vxor.u32 %v3000, 2147483648
        %v3011 = vsel %vm3009, %v3010, %v3001
        %v3012 = vsel %vm3005, %v3008, %v3011
        %v3013 = vsel %vm3002, nan, %v3012
        %v3014 = vand.u32 2147483647, %v613
        %vm3015 = vcmp.le.f32.partialorder %v3014, 0.7853982
        %vm3016 = vcmp.lt.s32.totalorder %v613, 0
        %v3017 = vand.u32 %v613, 2139095040
        %v3018 = vshrl.u32 %v3017, 23
        %v3019 = vsub.s32 %v3018, 127
        %v3020 = vand.u32 2147483647, %v613
        %v3021 = vand.u32 %v3020, 8388607
        %v3022 = vor.u32 %v3021, 8388608
        %v3023 = vsub.s32 0, %v3022
        %v3024 = vadd.s32 %v3019, 1
        %vm3025 = vcmp.gt.s32.totalorder %v3024, 0
        %v3026 = vsel %vm3025, %v3024, 0
        %v3027 = vshrl.u32 %v3026, 5
        %v3028 = vand.u32 %v3026, 31
        %v3029 = vsub.s32 32, %v3028
        %v3030 = vshrl.u32 683565275, %v3029
        %v3031 = vshll.u32 683565275, %v3028
        %v3032 = vshrl.u32 2475754826, %v3029
        %v3033 = vor.u32 %v3031, %v3032
        %v3034 = vshll.u32 2475754826, %v3028
        %v3035 = vshrl.u32 2131351028, %v3029
        %v3036 = vor.u32 %v3034, %v3035
        %v3037 = vshll.u32 2131351028, %v3028
        %v3038 = vshrl.u32 2102212464, %v3029
        %v3039 = vor.u32 %v3037, %v3038
        %v3040 = vshll.u32 2102212464, %v3028
        %v3041 = vshrl.u32 920167782, %v3029
        %v3042 = vor.u32 %v3040, %v3041
        %v3043 = vshll.u32 920167782, %v3028
        %v3044 = vshrl.u32 1326507024, %v3029
        %v3045 = vor.u32 %v3043, %v3044
        %vm3046 = vcmp.lt.s32.totalorder %v3027, 1
        %vm3047 = vcmp.lt.s32.totalorder %v3027, 2
        %vm3048 = vcmp.lt.s32.totalorder %v3027, 3
        %vm3049 = vcmp.lt.s32.totalorder %v3027, 4
        %v3050 = vsel %vm3046, %v3030, %v3033
        %v3051 = vsel %vm3049, %v3039, 2102212464
        %v3052 = vsel %vm3048, %v3036, %v3051
        %v3053 = vsel %vm3047, %v3050, %v3052
        %v3054 = vsel %vm3046, %v3033, %v3036
        %v3055 = vsel %vm3049, %v3042, 920167782
        %v3056 = vsel %vm3048, %v3039, %v3055
        %v3057 = vsel %vm3047, %v3054, %v3056
        %v3058 = vsel %vm3046, %v3036, %v3039
        %v3059 = vsel %vm3049, %v3045, 1326507024
        %v3060 = vsel %vm3048, %v3042, %v3059
        %v3061 = vsel %vm3047, %v3058, %v3060
        %v3062 = vshll.u32 %v3022, 8
        %v3063 = vmul.u32.u64.compose %v3062, %v3061
        %v3064 = vextract.low.u32 %v3063
        %v3065 = vextract.high.u32 %v3063
        %v3066 = vmul.u32.u64.compose %v3062, %v3057
        %v3067 = vextract.low.u32 %v3066
        %v3068 = vextract.high.u32 %v3066
        %v3069 = vmul.u32 %v3062, %v3053
        %v3070 = vadd.s32 %v3065, %v3067
        %vm3071 = vc.u32 %v3065, %v3067
        %v3072 = vadd.s32 %v3068, 1
        %v3073 = vsel %vm3071, %v3072, %v3068
        %v3074 = vadd.s32 %v3069, %v3073
        %v3075 = vadd.s32 %v3074, 536870912
        %v3076 = vshrl.u32 %v3075, 30
        %v3077 = vshll.u32 %v3076, 30
        %v3078 = vsub.s32 %v3074, %v3077
        %vm3079 = vcmp.lt.s32.totalorder %v3078, 0
        %v3080 = vsub.s32 0, %v3078
        %v3081 = vsel %vm3079, %v3080, %v3078
        %v3082 = vclz %v3081
        %v3083 = vsub.s32 %v3082, 2
        %vm3084 = vcmp.gt.s32.totalorder 0, %v3083
        %v3085 = vsel %vm3084, 0, %v3083
        %v3086 = vsub.s32 32, %v3085
        %v3087 = vshll.u32 %v3078, %v3085
        %v3088 = vshrl.u32 %v3070, %v3086
        %v3089 = vor.u32 %v3087, %v3088
        %v3090 = vsub.s32 4294967266, %v3085
        %v3091 = vadd.s32 %v3090, 127
        %v3092 = vshll.u32 %v3091, 23
        %v3093 = vor.u32 4788187, %v3092
        %v3094 = vand.u32 2147483647, %v3093
        %v3096 = vcvt.s32.f32 %v3089
        %v3097 = vmul.f32 %v3096, %v3094
        %v3098 = vxor.u32 %v3097, 2147483648
        %v3099 = vsel %vm3016, %v3098, %v3097
        %v3100 = vsub.s32 4, %v3076
        %v3101 = vsel %vm3016, %v3100, %v3076
        %v3102 = vsel %vm3015, %v613, %v3099
        %v3103 = vsel %vm3015, 0, %v3101
        %v3104 = vcosq.f32.pop %v3102
        %v3105 = vsinq.f32.pop %v3102
        %vm3106 = vweird.f32 %v613
        %v3107 = vadd.s32 %v3103, 3
        %v3108 = vand.u32 %v3107, 3
        %vm3109 = vcmp.lt.s32.totalorder %v3108, 2
        %vm3110 = vcmp.eq.s32.totalorder %v3108, 0
        %v3111 = vxor.u32 %v3105, 2147483648
        %v3112 = vsel %vm3110, %v3104, %v3111
        %vm3113 = vcmp.eq.s32.totalorder %v3108, 2
        %v3114 = vxor.u32 %v3104, 2147483648
        %v3115 = vsel %vm3113, %v3114, %v3105
        %v3116 = vsel %vm3109, %v3112, %v3115
        %v3117 = vsel %vm3106, nan, %v3116
        %v3118 = vand.u32 2147483647, %v614
        %vm3119 = vcmp.le.f32.partialorder %v3118, 0.7853982
        %vm3120 = vcmp.lt.s32.totalorder %v614, 0
        %v3121 = vand.u32 %v614, 2139095040
        %v3122 = vshrl.u32 %v3121, 23
        %v3123 = vsub.s32 %v3122, 127
        %v3124 = vand.u32 2147483647, %v614
        %v3125 = vand.u32 %v3124, 8388607
        %v3126 = vor.u32 %v3125, 8388608
        %v3127 = vsub.s32 0, %v3126
        %v3128 = vadd.s32 %v3123, 1
        %vm3129 = vcmp.gt.s32.totalorder %v3128, 0
        %v3130 = vsel %vm3129, %v3128, 0
        %v3131 = vshrl.u32 %v3130, 5
        %v3132 = vand.u32 %v3130, 31
        %v3133 = vsub.s32 32, %v3132
        %v3134 = vshrl.u32 683565275, %v3133
        %v3135 = vshll.u32 683565275, %v3132
        %v3136 = vshrl.u32 2475754826, %v3133
        %v3137 = vor.u32 %v3135, %v3136
        %v3138 = vshll.u32 2475754826, %v3132
        %v3139 = vshrl.u32 2131351028, %v3133
        %v3140 = vor.u32 %v3138, %v3139
        %v3141 = vshll.u32 2131351028, %v3132
        %v3142 = vshrl.u32 2102212464, %v3133
        %v3143 = vor.u32 %v3141, %v3142
        %v3144 = vshll.u32 2102212464, %v3132
        %v3145 = vshrl.u32 920167782, %v3133
        %v3146 = vor.u32 %v3144, %v3145
        %v3147 = vshll.u32 920167782, %v3132
        %v3148 = vshrl.u32 1326507024, %v3133
        %v3149 = vor.u32 %v3147, %v3148
        %vm3150 = vcmp.lt.s32.totalorder %v3131, 1
        %vm3151 = vcmp.lt.s32.totalorder %v3131, 2
        %vm3152 = vcmp.lt.s32.totalorder %v3131, 3
        %vm3153 = vcmp.lt.s32.totalorder %v3131, 4
        %v3154 = vsel %vm3150, %v3134, %v3137
        %v3155 = vsel %vm3153, %v3143, 2102212464
        %v3156 = vsel %vm3152, %v3140, %v3155
        %v3157 = vsel %vm3151, %v3154, %v3156
        %v3158 = vsel %vm3150, %v3137, %v3140
        %v3159 = vsel %vm3153, %v3146, 920167782
        %v3160 = vsel %vm3152, %v3143, %v3159
        %v3161 = vsel %vm3151, %v3158, %v3160
        %v3162 = vsel %vm3150, %v3140, %v3143
        %v3163 = vsel %vm3153, %v3149, 1326507024
        %v3164 = vsel %vm3152, %v3146, %v3163
        %v3165 = vsel %vm3151, %v3162, %v3164
        %v3166 = vshll.u32 %v3126, 8
        %v3167 = vmul.u32.u64.compose %v3166, %v3165
        %v3168 = vextract.low.u32 %v3167
        %v3169 = vextract.high.u32 %v3167
        %v3170 = vmul.u32.u64.compose %v3166, %v3161
        %v3171 = vextract.low.u32 %v3170
        %v3172 = vextract.high.u32 %v3170
        %v3173 = vmul.u32 %v3166, %v3157
        %v3174 = vadd.s32 %v3169, %v3171
        %vm3175 = vc.u32 %v3169, %v3171
        %v3176 = vadd.s32 %v3172, 1
        %v3177 = vsel %vm3175, %v3176, %v3172
        %v3178 = vadd.s32 %v3173, %v3177
        %v3179 = vadd.s32 %v3178, 536870912
        %v3180 = vshrl.u32 %v3179, 30
        %v3181 = vshll.u32 %v3180, 30
        %v3182 = vsub.s32 %v3178, %v3181
        %vm3183 = vcmp.lt.s32.totalorder %v3182, 0
        %v3184 = vsub.s32 0, %v3182
        %v3185 = vsel %vm3183, %v3184, %v3182
        %v3186 = vclz %v3185
        %v3187 = vsub.s32 %v3186, 2
        %vm3188 = vcmp.gt.s32.totalorder 0, %v3187
        %v3189 = vsel %vm3188, 0, %v3187
        %v3190 = vsub.s32 32, %v3189
        %v3191 = vshll.u32 %v3182, %v3189
        %v3192 = vshrl.u32 %v3174, %v3190
        %v3193 = vor.u32 %v3191, %v3192
        %v3194 = vsub.s32 4294967266, %v3189
        %v3195 = vadd.s32 %v3194, 127
        %v3196 = vshll.u32 %v3195, 23
        %v3197 = vor.u32 4788187, %v3196
        %v3198 = vand.u32 2147483647, %v3197
        %v3200 = vcvt.s32.f32 %v3193
        %v3201 = vmul.f32 %v3200, %v3198
        %v3202 = vxor.u32 %v3201, 2147483648
        %v3203 = vsel %vm3120, %v3202, %v3201
        %v3204 = vsub.s32 4, %v3180
        %v3205 = vsel %vm3120, %v3204, %v3180
        %v3206 = vsel %vm3119, %v614, %v3203
        %v3207 = vsel %vm3119, 0, %v3205
        %v3208 = vcosq.f32.pop %v3206
        %v3209 = vsinq.f32.pop %v3206
        %vm3210 = vweird.f32 %v614
        %v3211 = vadd.s32 %v3207, 3
        %v3212 = vand.u32 %v3211, 3
        %vm3213 = vcmp.lt.s32.totalorder %v3212, 2
        %vm3214 = vcmp.eq.s32.totalorder %v3212, 0
        %v3215 = vxor.u32 %v3209, 2147483648
        %v3216 = vsel %vm3214, %v3208, %v3215
        %vm3217 = vcmp.eq.s32.totalorder %v3212, 2
        %v3218 = vxor.u32 %v3208, 2147483648
        %v3219 = vsel %vm3217, %v3218, %v3209
        %v3220 = vsel %vm3213, %v3216, %v3219
        %v3221 = vsel %vm3210, nan, %v3220
        %v3222 = vand.u32 2147483647, %v615
        %vm3223 = vcmp.le.f32.partialorder %v3222, 0.7853982
        %vm3224 = vcmp.lt.s32.totalorder %v615, 0
        %v3225 = vand.u32 %v615, 2139095040
        %v3226 = vshrl.u32 %v3225, 23
        %v3227 = vsub.s32 %v3226, 127
        %v3228 = vand.u32 2147483647, %v615
        %v3229 = vand.u32 %v3228, 8388607
        %v3230 = vor.u32 %v3229, 8388608
        %v3231 = vsub.s32 0, %v3230
        %v3232 = vadd.s32 %v3227, 1
        %vm3233 = vcmp.gt.s32.totalorder %v3232, 0
        %v3234 = vsel %vm3233, %v3232, 0
        %v3235 = vshrl.u32 %v3234, 5
        %v3236 = vand.u32 %v3234, 31
        %v3237 = vsub.s32 32, %v3236
        %v3238 = vshrl.u32 683565275, %v3237
        %v3239 = vshll.u32 683565275, %v3236
        %v3240 = vshrl.u32 2475754826, %v3237
        %v3241 = vor.u32 %v3239, %v3240
        %v3242 = vshll.u32 2475754826, %v3236
        %v3243 = vshrl.u32 2131351028, %v3237
        %v3244 = vor.u32 %v3242, %v3243
        %v3245 = vshll.u32 2131351028, %v3236
        %v3246 = vshrl.u32 2102212464, %v3237
        %v3247 = vor.u32 %v3245, %v3246
        %v3248 = vshll.u32 2102212464, %v3236
        %v3249 = vshrl.u32 920167782, %v3237
        %v3250 = vor.u32 %v3248, %v3249
        %v3251 = vshll.u32 920167782, %v3236
        %v3252 = vshrl.u32 1326507024, %v3237
        %v3253 = vor.u32 %v3251, %v3252
        %vm3254 = vcmp.lt.s32.totalorder %v3235, 1
        %vm3255 = vcmp.lt.s32.totalorder %v3235, 2
        %vm3256 = vcmp.lt.s32.totalorder %v3235, 3
        %vm3257 = vcmp.lt.s32.totalorder %v3235, 4
        %v3258 = vsel %vm3254, %v3238, %v3241
        %v3259 = vsel %vm3257, %v3247, 2102212464
        %v3260 = vsel %vm3256, %v3244, %v3259
        %v3261 = vsel %vm3255, %v3258, %v3260
        %v3262 = vsel %vm3254, %v3241, %v3244
        %v3263 = vsel %vm3257, %v3250, 920167782
        %v3264 = vsel %vm3256, %v3247, %v3263
        %v3265 = vsel %vm3255, %v3262, %v3264
        %v3266 = vsel %vm3254, %v3244, %v3247
        %v3267 = vsel %vm3257, %v3253, 1326507024
        %v3268 = vsel %vm3256, %v3250, %v3267
        %v3269 = vsel %vm3255, %v3266, %v3268
        %v3270 = vshll.u32 %v3230, 8
        %v3271 = vmul.u32.u64.compose %v3270, %v3269
        %v3272 = vextract.low.u32 %v3271
        %v3273 = vextract.high.u32 %v3271
        %v3274 = vmul.u32.u64.compose %v3270, %v3265
        %v3275 = vextract.low.u32 %v3274
        %v3276 = vextract.high.u32 %v3274
        %v3277 = vmul.u32 %v3270, %v3261
        %v3278 = vadd.s32 %v3273, %v3275
        %vm3279 = vc.u32 %v3273, %v3275
        %v3280 = vadd.s32 %v3276, 1
        %v3281 = vsel %vm3279, %v3280, %v3276
        %v3282 = vadd.s32 %v3277, %v3281
        %v3283 = vadd.s32 %v3282, 536870912
        %v3284 = vshrl.u32 %v3283, 30
        %v3285 = vshll.u32 %v3284, 30
        %v3286 = vsub.s32 %v3282, %v3285
        %vm3287 = vcmp.lt.s32.totalorder %v3286, 0
        %v3288 = vsub.s32 0, %v3286
        %v3289 = vsel %vm3287, %v3288, %v3286
        %v3290 = vclz %v3289
        %v3291 = vsub.s32 %v3290, 2
        %vm3292 = vcmp.gt.s32.totalorder 0, %v3291
        %v3293 = vsel %vm3292, 0, %v3291
        %v3294 = vsub.s32 32, %v3293
        %v3295 = vshll.u32 %v3286, %v3293
        %v3296 = vshrl.u32 %v3278, %v3294
        %v3297 = vor.u32 %v3295, %v3296
        %v3298 = vsub.s32 4294967266, %v3293
        %v3299 = vadd.s32 %v3298, 127
        %v3300 = vshll.u32 %v3299, 23
        %v3301 = vor.u32 4788187, %v3300
        %v3302 = vand.u32 2147483647, %v3301
        %v3304 = vcvt.s32.f32 %v3297
        %v3305 = vmul.f32 %v3304, %v3302
        %v3306 = vxor.u32 %v3305, 2147483648
        %v3307 = vsel %vm3224, %v3306, %v3305
        %v3308 = vsub.s32 4, %v3284
        %v3309 = vsel %vm3224, %v3308, %v3284
        %v3310 = vsel %vm3223, %v615, %v3307
        %v3311 = vsel %vm3223, 0, %v3309
        %v3312 = vcosq.f32.pop %v3310
        %v3313 = vsinq.f32.pop %v3310
        %vm3314 = vweird.f32 %v615
        %v3315 = vadd.s32 %v3311, 3
        %v3316 = vand.u32 %v3315, 3
        %vm3317 = vcmp.lt.s32.totalorder %v3316, 2
        %vm3318 = vcmp.eq.s32.totalorder %v3316, 0
        %v3319 = vxor.u32 %v3313, 2147483648
        %v3320 = vsel %vm3318, %v3312, %v3319
        %vm3321 = vcmp.eq.s32.totalorder %v3316, 2
        %v3322 = vxor.u32 %v3312, 2147483648
        %v3323 = vsel %vm3321, %v3322, %v3313
        %v3324 = vsel %vm3317, %v3320, %v3323
        %v3325 = vsel %vm3314, nan, %v3324
        %v3326 = vand.u32 2147483647, %v616
        %vm3327 = vcmp.le.f32.partialorder %v3326, 0.7853982
        %vm3328 = vcmp.lt.s32.totalorder %v616, 0
        %v3329 = vand.u32 %v616, 2139095040
        %v3330 = vshrl.u32 %v3329, 23
        %v3331 = vsub.s32 %v3330, 127
        %v3332 = vand.u32 2147483647, %v616
        %v3333 = vand.u32 %v3332, 8388607
        %v3334 = vor.u32 %v3333, 8388608
        %v3335 = vsub.s32 0, %v3334
        %v3336 = vadd.s32 %v3331, 1
        %vm3337 = vcmp.gt.s32.totalorder %v3336, 0
        %v3338 = vsel %vm3337, %v3336, 0
        %v3339 = vshrl.u32 %v3338, 5
        %v3340 = vand.u32 %v3338, 31
        %v3341 = vsub.s32 32, %v3340
        %v3342 = vshrl.u32 683565275, %v3341
        %v3343 = vshll.u32 683565275, %v3340
        %v3344 = vshrl.u32 2475754826, %v3341
        %v3345 = vor.u32 %v3343, %v3344
        %v3346 = vshll.u32 2475754826, %v3340
        %v3347 = vshrl.u32 2131351028, %v3341
        %v3348 = vor.u32 %v3346, %v3347
        %v3349 = vshll.u32 2131351028, %v3340
        %v3350 = vshrl.u32 2102212464, %v3341
        %v3351 = vor.u32 %v3349, %v3350
        %v3352 = vshll.u32 2102212464, %v3340
        %v3353 = vshrl.u32 920167782, %v3341
        %v3354 = vor.u32 %v3352, %v3353
        %v3355 = vshll.u32 920167782, %v3340
        %v3356 = vshrl.u32 1326507024, %v3341
        %v3357 = vor.u32 %v3355, %v3356
        %vm3358 = vcmp.lt.s32.totalorder %v3339, 1
        %vm3359 = vcmp.lt.s32.totalorder %v3339, 2
        %vm3360 = vcmp.lt.s32.totalorder %v3339, 3
        %vm3361 = vcmp.lt.s32.totalorder %v3339, 4
        %v3362 = vsel %vm3358, %v3342, %v3345
        %v3363 = vsel %vm3361, %v3351, 2102212464
        %v3364 = vsel %vm3360, %v3348, %v3363
        %v3365 = vsel %vm3359, %v3362, %v3364
        %v3366 = vsel %vm3358, %v3345, %v3348
        %v3367 = vsel %vm3361, %v3354, 920167782
        %v3368 = vsel %vm3360, %v3351, %v3367
        %v3369 = vsel %vm3359, %v3366, %v3368
        %v3370 = vsel %vm3358, %v3348, %v3351
        %v3371 = vsel %vm3361, %v3357, 1326507024
        %v3372 = vsel %vm3360, %v3354, %v3371
        %v3373 = vsel %vm3359, %v3370, %v3372
        %v3374 = vshll.u32 %v3334, 8
        %v3375 = vmul.u32.u64.compose %v3374, %v3373
        %v3376 = vextract.low.u32 %v3375
        %v3377 = vextract.high.u32 %v3375
        %v3378 = vmul.u32.u64.compose %v3374, %v3369
        %v3379 = vextract.low.u32 %v3378
        %v3380 = vextract.high.u32 %v3378
        %v3381 = vmul.u32 %v3374, %v3365
        %v3382 = vadd.s32 %v3377, %v3379
        %vm3383 = vc.u32 %v3377, %v3379
        %v3384 = vadd.s32 %v3380, 1
        %v3385 = vsel %vm3383, %v3384, %v3380
        %v3386 = vadd.s32 %v3381, %v3385
        %v3387 = vadd.s32 %v3386, 536870912
        %v3388 = vshrl.u32 %v3387, 30
        %v3389 = vshll.u32 %v3388, 30
        %v3390 = vsub.s32 %v3386, %v3389
        %vm3391 = vcmp.lt.s32.totalorder %v3390, 0
        %v3392 = vsub.s32 0, %v3390
        %v3393 = vsel %vm3391, %v3392, %v3390
        %v3394 = vclz %v3393
        %v3395 = vsub.s32 %v3394, 2
        %vm3396 = vcmp.gt.s32.totalorder 0, %v3395
        %v3397 = vsel %vm3396, 0, %v3395
        %v3398 = vsub.s32 32, %v3397
        %v3399 = vshll.u32 %v3390, %v3397
        %v3400 = vshrl.u32 %v3382, %v3398
        %v3401 = vor.u32 %v3399, %v3400
        %v3402 = vsub.s32 4294967266, %v3397
        %v3403 = vadd.s32 %v3402, 127
        %v3404 = vshll.u32 %v3403, 23
        %v3405 = vor.u32 4788187, %v3404
        %v3406 = vand.u32 2147483647, %v3405
        %v3408 = vcvt.s32.f32 %v3401
        %v3409 = vmul.f32 %v3408, %v3406
        %v3410 = vxor.u32 %v3409, 2147483648
        %v3411 = vsel %vm3328, %v3410, %v3409
        %v3412 = vsub.s32 4, %v3388
        %v3413 = vsel %vm3328, %v3412, %v3388
        %v3414 = vsel %vm3327, %v616, %v3411
        %v3415 = vsel %vm3327, 0, %v3413
        %v3416 = vcosq.f32.pop %v3414
        %v3417 = vsinq.f32.pop %v3414
        %vm3418 = vweird.f32 %v616
        %v3419 = vadd.s32 %v3415, 3
        %v3420 = vand.u32 %v3419, 3
        %vm3421 = vcmp.lt.s32.totalorder %v3420, 2
        %vm3422 = vcmp.eq.s32.totalorder %v3420, 0
        %v3423 = vxor.u32 %v3417, 2147483648
        %v3424 = vsel %vm3422, %v3416, %v3423
        %vm3425 = vcmp.eq.s32.totalorder %v3420, 2
        %v3426 = vxor.u32 %v3416, 2147483648
        %v3427 = vsel %vm3425, %v3426, %v3417
        %v3428 = vsel %vm3421, %v3424, %v3427
        %v3429 = vsel %vm3418, nan, %v3428
        %v3430 = vand.u32 2147483647, %v617
        %vm3431 = vcmp.le.f32.partialorder %v3430, 0.7853982
        %vm3432 = vcmp.lt.s32.totalorder %v617, 0
        %v3433 = vand.u32 %v617, 2139095040
        %v3434 = vshrl.u32 %v3433, 23
        %v3435 = vsub.s32 %v3434, 127
        %v3436 = vand.u32 2147483647, %v617
        %v3437 = vand.u32 %v3436, 8388607
        %v3438 = vor.u32 %v3437, 8388608
        %v3439 = vsub.s32 0, %v3438
        %v3440 = vadd.s32 %v3435, 1
        %vm3441 = vcmp.gt.s32.totalorder %v3440, 0
        %v3442 = vsel %vm3441, %v3440, 0
        %v3443 = vshrl.u32 %v3442, 5
        %v3444 = vand.u32 %v3442, 31
        %v3445 = vsub.s32 32, %v3444
        %v3446 = vshrl.u32 683565275, %v3445
        %v3447 = vshll.u32 683565275, %v3444
        %v3448 = vshrl.u32 2475754826, %v3445
        %v3449 = vor.u32 %v3447, %v3448
        %v3450 = vshll.u32 2475754826, %v3444
        %v3451 = vshrl.u32 2131351028, %v3445
        %v3452 = vor.u32 %v3450, %v3451
        %v3453 = vshll.u32 2131351028, %v3444
        %v3454 = vshrl.u32 2102212464, %v3445
        %v3455 = vor.u32 %v3453, %v3454
        %v3456 = vshll.u32 2102212464, %v3444
        %v3457 = vshrl.u32 920167782, %v3445
        %v3458 = vor.u32 %v3456, %v3457
        %v3459 = vshll.u32 920167782, %v3444
        %v3460 = vshrl.u32 1326507024, %v3445
        %v3461 = vor.u32 %v3459, %v3460
        %vm3462 = vcmp.lt.s32.totalorder %v3443, 1
        %vm3463 = vcmp.lt.s32.totalorder %v3443, 2
        %vm3464 = vcmp.lt.s32.totalorder %v3443, 3
        %vm3465 = vcmp.lt.s32.totalorder %v3443, 4
        %v3466 = vsel %vm3462, %v3446, %v3449
        %v3467 = vsel %vm3465, %v3455, 2102212464
        %v3468 = vsel %vm3464, %v3452, %v3467
        %v3469 = vsel %vm3463, %v3466, %v3468
        %v3470 = vsel %vm3462, %v3449, %v3452
        %v3471 = vsel %vm3465, %v3458, 920167782
        %v3472 = vsel %vm3464, %v3455, %v3471
        %v3473 = vsel %vm3463, %v3470, %v3472
        %v3474 = vsel %vm3462, %v3452, %v3455
        %v3475 = vsel %vm3465, %v3461, 1326507024
        %v3476 = vsel %vm3464, %v3458, %v3475
        %v3477 = vsel %vm3463, %v3474, %v3476
        %v3478 = vshll.u32 %v3438, 8
        %v3479 = vmul.u32.u64.compose %v3478, %v3477
        %v3480 = vextract.low.u32 %v3479
        %v3481 = vextract.high.u32 %v3479
        %v3482 = vmul.u32.u64.compose %v3478, %v3473
        %v3483 = vextract.low.u32 %v3482
        %v3484 = vextract.high.u32 %v3482
        %v3485 = vmul.u32 %v3478, %v3469
        %v3486 = vadd.s32 %v3481, %v3483
        %vm3487 = vc.u32 %v3481, %v3483
        %v3488 = vadd.s32 %v3484, 1
        %v3489 = vsel %vm3487, %v3488, %v3484
        %v3490 = vadd.s32 %v3485, %v3489
        %v3491 = vadd.s32 %v3490, 536870912
        %v3492 = vshrl.u32 %v3491, 30
        %v3493 = vshll.u32 %v3492, 30
        %v3494 = vsub.s32 %v3490, %v3493
        %vm3495 = vcmp.lt.s32.totalorder %v3494, 0
        %v3496 = vsub.s32 0, %v3494
        %v3497 = vsel %vm3495, %v3496, %v3494
        %v3498 = vclz %v3497
        %v3499 = vsub.s32 %v3498, 2
        %vm3500 = vcmp.gt.s32.totalorder 0, %v3499
        %v3501 = vsel %vm3500, 0, %v3499
        %v3502 = vsub.s32 32, %v3501
        %v3503 = vshll.u32 %v3494, %v3501
        %v3504 = vshrl.u32 %v3486, %v3502
        %v3505 = vor.u32 %v3503, %v3504
        %v3506 = vsub.s32 4294967266, %v3501
        %v3507 = vadd.s32 %v3506, 127
        %v3508 = vshll.u32 %v3507, 23
        %v3509 = vor.u32 4788187, %v3508
        %v3510 = vand.u32 2147483647, %v3509
        %v3512 = vcvt.s32.f32 %v3505
        %v3513 = vmul.f32 %v3512, %v3510
        %v3514 = vxor.u32 %v3513, 2147483648
        %v3515 = vsel %vm3432, %v3514, %v3513
        %v3516 = vsub.s32 4, %v3492
        %v3517 = vsel %vm3432, %v3516, %v3492
        %v3518 = vsel %vm3431, %v617, %v3515
        %v3519 = vsel %vm3431, 0, %v3517
        %v3520 = vcosq.f32.pop %v3518
        %v3521 = vsinq.f32.pop %v3518
        %vm3522 = vweird.f32 %v617
        %v3523 = vadd.s32 %v3519, 3
        %v3524 = vand.u32 %v3523, 3
        %vm3525 = vcmp.lt.s32.totalorder %v3524, 2
        %vm3526 = vcmp.eq.s32.totalorder %v3524, 0
        %v3527 = vxor.u32 %v3521, 2147483648
        %v3528 = vsel %vm3526, %v3520, %v3527
        %vm3529 = vcmp.eq.s32.totalorder %v3524, 2
        %v3530 = vxor.u32 %v3520, 2147483648
        %v3531 = vsel %vm3529, %v3530, %v3521
        %v3532 = vsel %vm3525, %v3528, %v3531
        %v3533 = vsel %vm3522, nan, %v3532
        %v3534 = vand.u32 2147483647, %v618
        %vm3535 = vcmp.le.f32.partialorder %v3534, 0.7853982
        %vm3536 = vcmp.lt.s32.totalorder %v618, 0
        %v3537 = vand.u32 %v618, 2139095040
        %v3538 = vshrl.u32 %v3537, 23
        %v3539 = vsub.s32 %v3538, 127
        %v3540 = vand.u32 2147483647, %v618
        %v3541 = vand.u32 %v3540, 8388607
        %v3542 = vor.u32 %v3541, 8388608
        %v3543 = vsub.s32 0, %v3542
        %v3544 = vadd.s32 %v3539, 1
        %vm3545 = vcmp.gt.s32.totalorder %v3544, 0
        %v3546 = vsel %vm3545, %v3544, 0
        %v3547 = vshrl.u32 %v3546, 5
        %v3548 = vand.u32 %v3546, 31
        %v3549 = vsub.s32 32, %v3548
        %v3550 = vshrl.u32 683565275, %v3549
        %v3551 = vshll.u32 683565275, %v3548
        %v3552 = vshrl.u32 2475754826, %v3549
        %v3553 = vor.u32 %v3551, %v3552
        %v3554 = vshll.u32 2475754826, %v3548
        %v3555 = vshrl.u32 2131351028, %v3549
        %v3556 = vor.u32 %v3554, %v3555
        %v3557 = vshll.u32 2131351028, %v3548
        %v3558 = vshrl.u32 2102212464, %v3549
        %v3559 = vor.u32 %v3557, %v3558
        %v3560 = vshll.u32 2102212464, %v3548
        %v3561 = vshrl.u32 920167782, %v3549
        %v3562 = vor.u32 %v3560, %v3561
        %v3563 = vshll.u32 920167782, %v3548
        %v3564 = vshrl.u32 1326507024, %v3549
        %v3565 = vor.u32 %v3563, %v3564
        %vm3566 = vcmp.lt.s32.totalorder %v3547, 1
        %vm3567 = vcmp.lt.s32.totalorder %v3547, 2
        %vm3568 = vcmp.lt.s32.totalorder %v3547, 3
        %vm3569 = vcmp.lt.s32.totalorder %v3547, 4
        %v3570 = vsel %vm3566, %v3550, %v3553
        %v3571 = vsel %vm3569, %v3559, 2102212464
        %v3572 = vsel %vm3568, %v3556, %v3571
        %v3573 = vsel %vm3567, %v3570, %v3572
        %v3574 = vsel %vm3566, %v3553, %v3556
        %v3575 = vsel %vm3569, %v3562, 920167782
        %v3576 = vsel %vm3568, %v3559, %v3575
        %v3577 = vsel %vm3567, %v3574, %v3576
        %v3578 = vsel %vm3566, %v3556, %v3559
        %v3579 = vsel %vm3569, %v3565, 1326507024
        %v3580 = vsel %vm3568, %v3562, %v3579
        %v3581 = vsel %vm3567, %v3578, %v3580
        %v3582 = vshll.u32 %v3542, 8
        %v3583 = vmul.u32.u64.compose %v3582, %v3581
        %v3584 = vextract.low.u32 %v3583
        %v3585 = vextract.high.u32 %v3583
        %v3586 = vmul.u32.u64.compose %v3582, %v3577
        %v3587 = vextract.low.u32 %v3586
        %v3588 = vextract.high.u32 %v3586
        %v3589 = vmul.u32 %v3582, %v3573
        %v3590 = vadd.s32 %v3585, %v3587
        %vm3591 = vc.u32 %v3585, %v3587
        %v3592 = vadd.s32 %v3588, 1
        %v3593 = vsel %vm3591, %v3592, %v3588
        %v3594 = vadd.s32 %v3589, %v3593
        %v3595 = vadd.s32 %v3594, 536870912
        %v3596 = vshrl.u32 %v3595, 30
        %v3597 = vshll.u32 %v3596, 30
        %v3598 = vsub.s32 %v3594, %v3597
        %vm3599 = vcmp.lt.s32.totalorder %v3598, 0
        %v3600 = vsub.s32 0, %v3598
        %v3601 = vsel %vm3599, %v3600, %v3598
        %v3602 = vclz %v3601
        %v3603 = vsub.s32 %v3602, 2
        %vm3604 = vcmp.gt.s32.totalorder 0, %v3603
        %v3605 = vsel %vm3604, 0, %v3603
        %v3606 = vsub.s32 32, %v3605
        %v3607 = vshll.u32 %v3598, %v3605
        %v3608 = vshrl.u32 %v3590, %v3606
        %v3609 = vor.u32 %v3607, %v3608
        %v3610 = vsub.s32 4294967266, %v3605
        %v3611 = vadd.s32 %v3610, 127
        %v3612 = vshll.u32 %v3611, 23
        %v3613 = vor.u32 4788187, %v3612
        %v3614 = vand.u32 2147483647, %v3613
        %v3616 = vcvt.s32.f32 %v3609
        %v3617 = vmul.f32 %v3616, %v3614
        %v3618 = vxor.u32 %v3617, 2147483648
        %v3619 = vsel %vm3536, %v3618, %v3617
        %v3620 = vsub.s32 4, %v3596
        %v3621 = vsel %vm3536, %v3620, %v3596
        %v3622 = vsel %vm3535, %v618, %v3619
        %v3623 = vsel %vm3535, 0, %v3621
        %v3624 = vcosq.f32.pop %v3622
        %v3625 = vsinq.f32.pop %v3622
        %vm3626 = vweird.f32 %v618
        %v3627 = vadd.s32 %v3623, 3
        %v3628 = vand.u32 %v3627, 3
        %vm3629 = vcmp.lt.s32.totalorder %v3628, 2
        %vm3630 = vcmp.eq.s32.totalorder %v3628, 0
        %v3631 = vxor.u32 %v3625, 2147483648
        %v3632 = vsel %vm3630, %v3624, %v3631
        %vm3633 = vcmp.eq.s32.totalorder %v3628, 2
        %v3634 = vxor.u32 %v3624, 2147483648
        %v3635 = vsel %vm3633, %v3634, %v3625
        %v3636 = vsel %vm3629, %v3632, %v3635
        %v3637 = vsel %vm3626, nan, %v3636
        %v3638 = vand.u32 2147483647, %v619
        %vm3639 = vcmp.le.f32.partialorder %v3638, 0.7853982
        %vm3640 = vcmp.lt.s32.totalorder %v619, 0
        %v3641 = vand.u32 %v619, 2139095040
        %v3642 = vshrl.u32 %v3641, 23
        %v3643 = vsub.s32 %v3642, 127
        %v3644 = vand.u32 2147483647, %v619
        %v3645 = vand.u32 %v3644, 8388607
        %v3646 = vor.u32 %v3645, 8388608
        %v3647 = vsub.s32 0, %v3646
        %v3648 = vadd.s32 %v3643, 1
        %vm3649 = vcmp.gt.s32.totalorder %v3648, 0
        %v3650 = vsel %vm3649, %v3648, 0
        %v3651 = vshrl.u32 %v3650, 5
        %v3652 = vand.u32 %v3650, 31
        %v3653 = vsub.s32 32, %v3652
        %v3654 = vshrl.u32 683565275, %v3653
        %v3655 = vshll.u32 683565275, %v3652
        %v3656 = vshrl.u32 2475754826, %v3653
        %v3657 = vor.u32 %v3655, %v3656
        %v3658 = vshll.u32 2475754826, %v3652
        %v3659 = vshrl.u32 2131351028, %v3653
        %v3660 = vor.u32 %v3658, %v3659
        %v3661 = vshll.u32 2131351028, %v3652
        %v3662 = vshrl.u32 2102212464, %v3653
        %v3663 = vor.u32 %v3661, %v3662
        %v3664 = vshll.u32 2102212464, %v3652
        %v3665 = vshrl.u32 920167782, %v3653
        %v3666 = vor.u32 %v3664, %v3665
        %v3667 = vshll.u32 920167782, %v3652
        %v3668 = vshrl.u32 1326507024, %v3653
        %v3669 = vor.u32 %v3667, %v3668
        %vm3670 = vcmp.lt.s32.totalorder %v3651, 1
        %vm3671 = vcmp.lt.s32.totalorder %v3651, 2
        %vm3672 = vcmp.lt.s32.totalorder %v3651, 3
        %vm3673 = vcmp.lt.s32.totalorder %v3651, 4
        %v3674 = vsel %vm3670, %v3654, %v3657
        %v3675 = vsel %vm3673, %v3663, 2102212464
        %v3676 = vsel %vm3672, %v3660, %v3675
        %v3677 = vsel %vm3671, %v3674, %v3676
        %v3678 = vsel %vm3670, %v3657, %v3660
        %v3679 = vsel %vm3673, %v3666, 920167782
        %v3680 = vsel %vm3672, %v3663, %v3679
        %v3681 = vsel %vm3671, %v3678, %v3680
        %v3682 = vsel %vm3670, %v3660, %v3663
        %v3683 = vsel %vm3673, %v3669, 1326507024
        %v3684 = vsel %vm3672, %v3666, %v3683
        %v3685 = vsel %vm3671, %v3682, %v3684
        %v3686 = vshll.u32 %v3646, 8
        %v3687 = vmul.u32.u64.compose %v3686, %v3685
        %v3688 = vextract.low.u32 %v3687
        %v3689 = vextract.high.u32 %v3687
        %v3690 = vmul.u32.u64.compose %v3686, %v3681
        %v3691 = vextract.low.u32 %v3690
        %v3692 = vextract.high.u32 %v3690
        %v3693 = vmul.u32 %v3686, %v3677
        %v3694 = vadd.s32 %v3689, %v3691
        %vm3695 = vc.u32 %v3689, %v3691
        %v3696 = vadd.s32 %v3692, 1
        %v3697 = vsel %vm3695, %v3696, %v3692
        %v3698 = vadd.s32 %v3693, %v3697
        %v3699 = vadd.s32 %v3698, 536870912
        %v3700 = vshrl.u32 %v3699, 30
        %v3701 = vshll.u32 %v3700, 30
        %v3702 = vsub.s32 %v3698, %v3701
        %vm3703 = vcmp.lt.s32.totalorder %v3702, 0
        %v3704 = vsub.s32 0, %v3702
        %v3705 = vsel %vm3703, %v3704, %v3702
        %v3706 = vclz %v3705
        %v3707 = vsub.s32 %v3706, 2
        %vm3708 = vcmp.gt.s32.totalorder 0, %v3707
        %v3709 = vsel %vm3708, 0, %v3707
        %v3710 = vsub.s32 32, %v3709
        %v3711 = vshll.u32 %v3702, %v3709
        %v3712 = vshrl.u32 %v3694, %v3710
        %v3713 = vor.u32 %v3711, %v3712
        %v3714 = vsub.s32 4294967266, %v3709
        %v3715 = vadd.s32 %v3714, 127
        %v3716 = vshll.u32 %v3715, 23
        %v3717 = vor.u32 4788187, %v3716
        %v3718 = vand.u32 2147483647, %v3717
        %v3720 = vcvt.s32.f32 %v3713
        %v3721 = vmul.f32 %v3720, %v3718
        %v3722 = vxor.u32 %v3721, 2147483648
        %v3723 = vsel %vm3640, %v3722, %v3721
        %v3724 = vsub.s32 4, %v3700
        %v3725 = vsel %vm3640, %v3724, %v3700
        %v3726 = vsel %vm3639, %v619, %v3723
        %v3727 = vsel %vm3639, 0, %v3725
        %v3728 = vcosq.f32.pop %v3726
        %v3729 = vsinq.f32.pop %v3726
        %vm3730 = vweird.f32 %v619
        %v3731 = vadd.s32 %v3727, 3
        %v3732 = vand.u32 %v3731, 3
        %vm3733 = vcmp.lt.s32.totalorder %v3732, 2
        %vm3734 = vcmp.eq.s32.totalorder %v3732, 0
        %v3735 = vxor.u32 %v3729, 2147483648
        %v3736 = vsel %vm3734, %v3728, %v3735
        %vm3737 = vcmp.eq.s32.totalorder %v3732, 2
        %v3738 = vxor.u32 %v3728, 2147483648
        %v3739 = vsel %vm3737, %v3738, %v3729
        %v3740 = vsel %vm3733, %v3736, %v3739
        %v3741 = vsel %vm3730, nan, %v3740
        %v3742 = vand.u32 2147483647, %v620
        %vm3743 = vcmp.le.f32.partialorder %v3742, 0.7853982
        %vm3744 = vcmp.lt.s32.totalorder %v620, 0
        %v3745 = vand.u32 %v620, 2139095040
        %v3746 = vshrl.u32 %v3745, 23
        %v3747 = vsub.s32 %v3746, 127
        %v3748 = vand.u32 2147483647, %v620
        %v3749 = vand.u32 %v3748, 8388607
        %v3750 = vor.u32 %v3749, 8388608
        %v3751 = vsub.s32 0, %v3750
        %v3752 = vadd.s32 %v3747, 1
        %vm3753 = vcmp.gt.s32.totalorder %v3752, 0
        %v3754 = vsel %vm3753, %v3752, 0
        %v3755 = vshrl.u32 %v3754, 5
        %v3756 = vand.u32 %v3754, 31
        %v3757 = vsub.s32 32, %v3756
        %v3758 = vshrl.u32 683565275, %v3757
        %v3759 = vshll.u32 683565275, %v3756
        %v3760 = vshrl.u32 2475754826, %v3757
        %v3761 = vor.u32 %v3759, %v3760
        %v3762 = vshll.u32 2475754826, %v3756
        %v3763 = vshrl.u32 2131351028, %v3757
        %v3764 = vor.u32 %v3762, %v3763
        %v3765 = vshll.u32 2131351028, %v3756
        %v3766 = vshrl.u32 2102212464, %v3757
        %v3767 = vor.u32 %v3765, %v3766
        %v3768 = vshll.u32 2102212464, %v3756
        %v3769 = vshrl.u32 920167782, %v3757
        %v3770 = vor.u32 %v3768, %v3769
        %v3771 = vshll.u32 920167782, %v3756
        %v3772 = vshrl.u32 1326507024, %v3757
        %v3773 = vor.u32 %v3771, %v3772
        %vm3774 = vcmp.lt.s32.totalorder %v3755, 1
        %vm3775 = vcmp.lt.s32.totalorder %v3755, 2
        %vm3776 = vcmp.lt.s32.totalorder %v3755, 3
        %vm3777 = vcmp.lt.s32.totalorder %v3755, 4
        %v3778 = vsel %vm3774, %v3758, %v3761
        %v3779 = vsel %vm3777, %v3767, 2102212464
        %v3780 = vsel %vm3776, %v3764, %v3779
        %v3781 = vsel %vm3775, %v3778, %v3780
        %v3782 = vsel %vm3774, %v3761, %v3764
        %v3783 = vsel %vm3777, %v3770, 920167782
        %v3784 = vsel %vm3776, %v3767, %v3783
        %v3785 = vsel %vm3775, %v3782, %v3784
        %v3786 = vsel %vm3774, %v3764, %v3767
        %v3787 = vsel %vm3777, %v3773, 1326507024
        %v3788 = vsel %vm3776, %v3770, %v3787
        %v3789 = vsel %vm3775, %v3786, %v3788
        %v3790 = vshll.u32 %v3750, 8
        %v3791 = vmul.u32.u64.compose %v3790, %v3789
        %v3792 = vextract.low.u32 %v3791
        %v3793 = vextract.high.u32 %v3791
        %v3794 = vmul.u32.u64.compose %v3790, %v3785
        %v3795 = vextract.low.u32 %v3794
        %v3796 = vextract.high.u32 %v3794
        %v3797 = vmul.u32 %v3790, %v3781
        %v3798 = vadd.s32 %v3793, %v3795
        %vm3799 = vc.u32 %v3793, %v3795
        %v3800 = vadd.s32 %v3796, 1
        %v3801 = vsel %vm3799, %v3800, %v3796
        %v3802 = vadd.s32 %v3797, %v3801
        %v3803 = vadd.s32 %v3802, 536870912
        %v3804 = vshrl.u32 %v3803, 30
        %v3805 = vshll.u32 %v3804, 30
        %v3806 = vsub.s32 %v3802, %v3805
        %vm3807 = vcmp.lt.s32.totalorder %v3806, 0
        %v3808 = vsub.s32 0, %v3806
        %v3809 = vsel %vm3807, %v3808, %v3806
        %v3810 = vclz %v3809
        %v3811 = vsub.s32 %v3810, 2
        %vm3812 = vcmp.gt.s32.totalorder 0, %v3811
        %v3813 = vsel %vm3812, 0, %v3811
        %v3814 = vsub.s32 32, %v3813
        %v3815 = vshll.u32 %v3806, %v3813
        %v3816 = vshrl.u32 %v3798, %v3814
        %v3817 = vor.u32 %v3815, %v3816
        %v3818 = vsub.s32 4294967266, %v3813
        %v3819 = vadd.s32 %v3818, 127
        %v3820 = vshll.u32 %v3819, 23
        %v3821 = vor.u32 4788187, %v3820
        %v3822 = vand.u32 2147483647, %v3821
        %v3824 = vcvt.s32.f32 %v3817
        %v3825 = vmul.f32 %v3824, %v3822
        %v3826 = vxor.u32 %v3825, 2147483648
        %v3827 = vsel %vm3744, %v3826, %v3825
        %v3828 = vsub.s32 4, %v3804
        %v3829 = vsel %vm3744, %v3828, %v3804
        %v3830 = vsel %vm3743, %v620, %v3827
        %v3831 = vsel %vm3743, 0, %v3829
        %v3832 = vcosq.f32.pop %v3830
        %v3833 = vsinq.f32.pop %v3830
        %vm3834 = vweird.f32 %v620
        %v3835 = vadd.s32 %v3831, 3
        %v3836 = vand.u32 %v3835, 3
        %vm3837 = vcmp.lt.s32.totalorder %v3836, 2
        %vm3838 = vcmp.eq.s32.totalorder %v3836, 0
        %v3839 = vxor.u32 %v3833, 2147483648
        %v3840 = vsel %vm3838, %v3832, %v3839
        %vm3841 = vcmp.eq.s32.totalorder %v3836, 2
        %v3842 = vxor.u32 %v3832, 2147483648
        %v3843 = vsel %vm3841, %v3842, %v3833
        %v3844 = vsel %vm3837, %v3840, %v3843
        %v3845 = vsel %vm3834, nan, %v3844
        %v3846 = vand.u32 2147483647, %v621
        %vm3847 = vcmp.le.f32.partialorder %v3846, 0.7853982
        %vm3848 = vcmp.lt.s32.totalorder %v621, 0
        %v3849 = vand.u32 %v621, 2139095040
        %v3850 = vshrl.u32 %v3849, 23
        %v3851 = vsub.s32 %v3850, 127
        %v3852 = vand.u32 2147483647, %v621
        %v3853 = vand.u32 %v3852, 8388607
        %v3854 = vor.u32 %v3853, 8388608
        %v3855 = vsub.s32 0, %v3854
        %v3856 = vadd.s32 %v3851, 1
        %vm3857 = vcmp.gt.s32.totalorder %v3856, 0
        %v3858 = vsel %vm3857, %v3856, 0
        %v3859 = vshrl.u32 %v3858, 5
        %v3860 = vand.u32 %v3858, 31
        %v3861 = vsub.s32 32, %v3860
        %v3862 = vshrl.u32 683565275, %v3861
        %v3863 = vshll.u32 683565275, %v3860
        %v3864 = vshrl.u32 2475754826, %v3861
        %v3865 = vor.u32 %v3863, %v3864
        %v3866 = vshll.u32 2475754826, %v3860
        %v3867 = vshrl.u32 2131351028, %v3861
        %v3868 = vor.u32 %v3866, %v3867
        %v3869 = vshll.u32 2131351028, %v3860
        %v3870 = vshrl.u32 2102212464, %v3861
        %v3871 = vor.u32 %v3869, %v3870
        %v3872 = vshll.u32 2102212464, %v3860
        %v3873 = vshrl.u32 920167782, %v3861
        %v3874 = vor.u32 %v3872, %v3873
        %v3875 = vshll.u32 920167782, %v3860
        %v3876 = vshrl.u32 1326507024, %v3861
        %v3877 = vor.u32 %v3875, %v3876
        %vm3878 = vcmp.lt.s32.totalorder %v3859, 1
        %vm3879 = vcmp.lt.s32.totalorder %v3859, 2
        %vm3880 = vcmp.lt.s32.totalorder %v3859, 3
        %vm3881 = vcmp.lt.s32.totalorder %v3859, 4
        %v3882 = vsel %vm3878, %v3862, %v3865
        %v3883 = vsel %vm3881, %v3871, 2102212464
        %v3884 = vsel %vm3880, %v3868, %v3883
        %v3885 = vsel %vm3879, %v3882, %v3884
        %v3886 = vsel %vm3878, %v3865, %v3868
        %v3887 = vsel %vm3881, %v3874, 920167782
        %v3888 = vsel %vm3880, %v3871, %v3887
        %v3889 = vsel %vm3879, %v3886, %v3888
        %v3890 = vsel %vm3878, %v3868, %v3871
        %v3891 = vsel %vm3881, %v3877, 1326507024
        %v3892 = vsel %vm3880, %v3874, %v3891
        %v3893 = vsel %vm3879, %v3890, %v3892
        %v3894 = vshll.u32 %v3854, 8
        %v3895 = vmul.u32.u64.compose %v3894, %v3893
        %v3896 = vextract.low.u32 %v3895
        %v3897 = vextract.high.u32 %v3895
        %v3898 = vmul.u32.u64.compose %v3894, %v3889
        %v3899 = vextract.low.u32 %v3898
        %v3900 = vextract.high.u32 %v3898
        %v3901 = vmul.u32 %v3894, %v3885
        %v3902 = vadd.s32 %v3897, %v3899
        %vm3903 = vc.u32 %v3897, %v3899
        %v3904 = vadd.s32 %v3900, 1
        %v3905 = vsel %vm3903, %v3904, %v3900
        %v3906 = vadd.s32 %v3901, %v3905
        %v3907 = vadd.s32 %v3906, 536870912
        %v3908 = vshrl.u32 %v3907, 30
        %v3909 = vshll.u32 %v3908, 30
        %v3910 = vsub.s32 %v3906, %v3909
        %vm3911 = vcmp.lt.s32.totalorder %v3910, 0
        %v3912 = vsub.s32 0, %v3910
        %v3913 = vsel %vm3911, %v3912, %v3910
        %v3914 = vclz %v3913
        %v3915 = vsub.s32 %v3914, 2
        %vm3916 = vcmp.gt.s32.totalorder 0, %v3915
        %v3917 = vsel %vm3916, 0, %v3915
        %v3918 = vsub.s32 32, %v3917
        %v3919 = vshll.u32 %v3910, %v3917
        %v3920 = vshrl.u32 %v3902, %v3918
        %v3921 = vor.u32 %v3919, %v3920
        %v3922 = vsub.s32 4294967266, %v3917
        %v3923 = vadd.s32 %v3922, 127
        %v3924 = vshll.u32 %v3923, 23
        %v3925 = vor.u32 4788187, %v3924
        %v3926 = vand.u32 2147483647, %v3925
        %v3928 = vcvt.s32.f32 %v3921
        %v3929 = vmul.f32 %v3928, %v3926
        %v3930 = vxor.u32 %v3929, 2147483648
        %v3931 = vsel %vm3848, %v3930, %v3929
        %v3932 = vsub.s32 4, %v3908
        %v3933 = vsel %vm3848, %v3932, %v3908
        %v3934 = vsel %vm3847, %v621, %v3931
        %v3935 = vsel %vm3847, 0, %v3933
        %v3936 = vcosq.f32.pop %v3934
        %v3937 = vsinq.f32.pop %v3934
        %vm3938 = vweird.f32 %v621
        %v3939 = vadd.s32 %v3935, 3
        %v3940 = vand.u32 %v3939, 3
        %vm3941 = vcmp.lt.s32.totalorder %v3940, 2
        %vm3942 = vcmp.eq.s32.totalorder %v3940, 0
        %v3943 = vxor.u32 %v3937, 2147483648
        %v3944 = vsel %vm3942, %v3936, %v3943
        %vm3945 = vcmp.eq.s32.totalorder %v3940, 2
        %v3946 = vxor.u32 %v3936, 2147483648
        %v3947 = vsel %vm3945, %v3946, %v3937
        %v3948 = vsel %vm3941, %v3944, %v3947
        %v3949 = vsel %vm3938, nan, %v3948
        %v3950 = vld [vmem:[%s3] sm:$0xff]
        %v3951 = vld [vmem:[%s3 + $0x8] sm:$0xff]
        %v3952 = vld [vmem:[%s3 + $0x10] sm:$0xff]
        %v3953 = vld [vmem:[%s3 + $0x18] sm:$0xff]
        %v3954 = vld [vmem:[%s4] sm:$0xff]
        %v3955 = vld [vmem:[%s4 + $0x8] sm:$0xff]
        %v3956 = vld [vmem:[%s4 + $0x10] sm:$0xff]
        %v3957 = vld [vmem:[%s4 + $0x18] sm:$0xff]
        %3959 = vset.pattern.permute.xlu0 0
        %3960 = vperm.xlu0 %3959, %v3954
        %v3961 = vpop.permute.xlu0 %3960
        %3964 = vset.pattern.permute.xlu0 0
        %3965 = vperm.xlu0 %3964, %v3955
        %v3966 = vpop.permute.xlu0 %3965
        %3969 = vset.pattern.permute.xlu0 0
        %3970 = vperm.xlu0 %3969, %v3956
        %v3971 = vpop.permute.xlu0 %3970
        %3974 = vset.pattern.permute.xlu0 0
        %3975 = vperm.xlu0 %3974, %v3957
        %v3976 = vpop.permute.xlu0 %3975
        %vm3978 = vcmask 261120
        %v3980 = vsel %vm3978, %v3950, 0
        %v3983 = vsel %vm3978, %v3951, 0
        %v3986 = vsel %vm3978, %v3952, 0
        %v3989 = vsel %vm3978, %v3953, 0
        %3991 = vmatprep.subr.mxu0 %v829
        %3992 = vmatpush1.msra.mxu0 %v725
        %3993 = vmatprep.subr.mxu0 %v1661
        %3994 = vmatpush1.msra.mxu0 %v1557
        %3995 = vmatprep.subr.mxu0 %v2493
        %3996 = vmatpush1.msra.mxu0 %v2389
        %3997 = vmatprep.subr.mxu0 %v3325
        %3998 = vmatpush1.msra.mxu0 %v3221
        %3999 = vmatprep.subr.mxu0 0.0
        %4000 = vmatpush1.msra.mxu0 0.0
        %4001 = vmatprep.subr.mxu0 0.0
        %4002 = vmatpush1.msra.mxu0 0.0
        %4003 = vmatprep.subr.mxu0 0.0
        %4004 = vmatpush1.msra.mxu0 0.0
        %4005 = vmatprep.subr.mxu0 0.0
        %4006 = vmatpush1.msra.mxu0 0.0
        %4007 = vmatprep.subr.mxu0 0.0
        %4008 = vmatpush1.msra.mxu0 0.0
        %4009 = vmatprep.subr.mxu0 0.0
        %4010 = vmatpush1.msra.mxu0 0.0
        %4011 = vmatprep.subr.mxu0 0.0
        %4012 = vmatpush1.msra.mxu0 0.0
        %4013 = vmatprep.subr.mxu0 0.0
        %4014 = vmatpush1.msra.mxu0 0.0
        %4015 = vmatprep.subr.mxu0 0.0
        %4016 = vmatpush1.msra.mxu0 0.0
        %4017 = vmatprep.subr.mxu0 0.0
        %4018 = vmatpush1.msra.mxu0 0.0
        %4019 = vmatprep.subr.mxu0 0.0
        %4020 = vmatpush1.msra.mxu0 0.0
        %4021 = vmatprep.subr.mxu0 0.0
        %4022 = vmatpush1.msra.mxu0 0.0
        %4023 = vmatprep.subr.mxu0 0.0
        %4024 = vmatpush1.msra.mxu0 0.0
        %4025 = vmatprep.subr.mxu0 0.0
        %4026 = vmatpush1.msra.mxu0 0.0
        %4027 = vmatprep.subr.mxu0 0.0
        %4028 = vmatpush1.msra.mxu0 0.0
        %4029 = vmatprep.subr.mxu0 0.0
        %4030 = vmatpush1.msra.mxu0 0.0
        %4031 = vmatprep.subr.mxu0 0.0
        %4032 = vmatpush1.msra.mxu0 0.0
        %4033 = vmatprep.subr.mxu0 0.0
        %4034 = vmatpush1.msra.mxu0 0.0
        %4035 = vmatprep.subr.mxu0 0.0
        %4036 = vmatpush1.msra.mxu0 0.0
        %4037 = vmatprep.subr.mxu0 0.0
        %4038 = vmatpush1.msra.mxu0 0.0
        %4039 = vmatprep.subr.mxu0 0.0
        %4040 = vmatpush1.msra.mxu0 0.0
        %4041 = vmatprep.subr.mxu0 0.0
        %4042 = vmatpush1.msra.mxu0 0.0
        %4043 = vmatprep.subr.mxu0 0.0
        %4044 = vmatpush1.msra.mxu0 0.0
        %4045 = vmatprep.subr.mxu0 0.0
        %4046 = vmatpush1.msra.mxu0 0.0
        %4047 = vmatprep.subr.mxu0 0.0
        %4048 = vmatpush1.msra.mxu0 0.0
        %4049 = vmatprep.subr.mxu0 0.0
        %4050 = vmatpush1.msra.mxu0 0.0
        %4051 = vmatprep.subr.mxu0 0.0
        %4052 = vmatpush1.msra.mxu0 0.0
        %4053 = vmatprep.subr.mxu0 0.0
        %4054 = vmatpush1.msra.mxu0 0.0
        %4055 = vmatprep.mubr.f32.mxu0 0.0
        %4056 = vmatmul.mubr.f32.gmra.mrb[0].mxu0 %v3980
        %v4057 = vpop.f32.mrb[0].mxu0
        %v4058 = vadd.f32 %v3961, %v4057
        %v4059 = vpop.f32.mrb[0].mxu0
        %v4060 = vadd.f32 %v3961, %v4059
        %4061 = vmatprep.mubr.f32.mxu0 0.0
        %4062 = vmatmul.mubr.f32.gmra.mrb[0].mxu0 %v3983
        %v4063 = vpop.f32.mrb[0].mxu0
        %v4064 = vadd.f32 %v3966, %v4063
        %v4065 = vpop.f32.mrb[0].mxu0
        %v4066 = vadd.f32 %v3966, %v4065
        %4067 = vmatprep.mubr.f32.mxu0 0.0
        %4068 = vmatmul.mubr.f32.gmra.mrb[0].mxu0 %v3986
        %v4069 = vpop.f32.mrb[0].mxu0
        %v4070 = vadd.f32 %v3971, %v4069
        %v4071 = vpop.f32.mrb[0].mxu0
        %v4072 = vadd.f32 %v3971, %v4071
        %4073 = vmatprep.mubr.f32.mxu0 0.0
        %4074 = vmatmul.mubr.f32.gmra.mrb[0].mxu0 %v3989
        %v4075 = vpop.f32.mrb[0].mxu0
        %v4076 = vadd.f32 %v3976, %v4075
        %v4077 = vpop.f32.mrb[0].mxu0
        %v4078 = vadd.f32 %v3976, %v4077
        %4079 = vdwg.mxu0
        %4080 = vmatprep.subr.mxu0 %v1037
        %4081 = vmatpush1.msra.mxu0 %v933
        %4082 = vmatprep.subr.mxu0 %v1869
        %4083 = vmatpush1.msra.mxu0 %v1765
        %4084 = vmatprep.subr.mxu0 %v2701
        %4085 = vmatpush1.msra.mxu0 %v2597
        %4086 = vmatprep.subr.mxu0 %v3533
        %4087 = vmatpush1.msra.mxu0 %v3429
        %4088 = vmatprep.subr.mxu0 0.0
        %4089 = vmatpush1.msra.mxu0 0.0
        %4090 = vmatprep.subr.mxu0 0.0
        %4091 = vmatpush1.msra.mxu0 0.0
        %4092 = vmatprep.subr.mxu0 0.0
        %4093 = vmatpush1.msra.mxu0 0.0
        %4094 = vmatprep.subr.mxu0 0.0
        %4095 = vmatpush1.msra.mxu0 0.0
        %4096 = vmatprep.subr.mxu0 0.0
        %4097 = vmatpush1.msra.mxu0 0.0
        %4098 = vmatprep.subr.mxu0 0.0
        %4099 = vmatpush1.msra.mxu0 0.0
        %4100 = vmatprep.subr.mxu0 0.0
        %4101 = vmatpush1.msra.mxu0 0.0
        %4102 = vmatprep.subr.mxu0 0.0
        %4103 = vmatpush1.msra.mxu0 0.0
        %4104 = vmatprep.subr.mxu0 0.0
        %4105 = vmatpush1.msra.mxu0 0.0
        %4106 = vmatprep.subr.mxu0 0.0
        %4107 = vmatpush1.msra.mxu0 0.0
        %4108 = vmatprep.subr.mxu0 0.0
        %4109 = vmatpush1.msra.mxu0 0.0
        %4110 = vmatprep.subr.mxu0 0.0
        %4111 = vmatpush1.msra.mxu0 0.0
        %4112 = vmatprep.subr.mxu0 0.0
        %4113 = vmatpush1.msra.mxu0 0.0
        %4114 = vmatprep.subr.mxu0 0.0
        %4115 = vmatpush1.msra.mxu0 0.0
        %4116 = vmatprep.subr.mxu0 0.0
        %4117 = vmatpush1.msra.mxu0 0.0
        %4118 = vmatprep.subr.mxu0 0.0
        %4119 = vmatpush1.msra.mxu0 0.0
        %4120 = vmatprep.subr.mxu0 0.0
        %4121 = vmatpush1.msra.mxu0 0.0
        %4122 = vmatprep.subr.mxu0 0.0
        %4123 = vmatpush1.msra.mxu0 0.0
        %4124 = vmatprep.subr.mxu0 0.0
        %4125 = vmatpush1.msra.mxu0 0.0
        %4126 = vmatprep.subr.mxu0 0.0
        %4127 = vmatpush1.msra.mxu0 0.0
        %4128 = vmatprep.subr.mxu0 0.0
        %4129 = vmatpush1.msra.mxu0 0.0
        %4130 = vmatprep.subr.mxu0 0.0
        %4131 = vmatpush1.msra.mxu0 0.0
        %4132 = vmatprep.subr.mxu0 0.0
        %4133 = vmatpush1.msra.mxu0 0.0
        %4134 = vmatprep.subr.mxu0 0.0
        %4135 = vmatpush1.msra.mxu0 0.0
        %4136 = vmatprep.subr.mxu0 0.0
        %4137 = vmatpush1.msra.mxu0 0.0
        %4138 = vmatprep.subr.mxu0 0.0
        %4139 = vmatpush1.msra.mxu0 0.0
        %4140 = vmatprep.subr.mxu0 0.0
        %4141 = vmatpush1.msra.mxu0 0.0
        %4142 = vmatprep.subr.mxu0 0.0
        %4143 = vmatpush1.msra.mxu0 0.0
        %4144 = vmatprep.mubr.f32.mxu0 0.0
        %4145 = vmatmul.mubr.f32.gmra.mrb[0].mxu0 %v3980
        %v4146 = vpop.f32.mrb[0].mxu0
        %v4147 = vadd.f32 %v3961, %v4146
        %v4148 = vpop.f32.mrb[0].mxu0
        %v4149 = vadd.f32 %v3961, %v4148
        %4150 = vmatprep.mubr.f32.mxu0 0.0
        %4151 = vmatmul.mubr.f32.gmra.mrb[0].mxu0 %v3983
        %v4152 = vpop.f32.mrb[0].mxu0
        %v4153 = vadd.f32 %v3966, %v4152
        %v4154 = vpop.f32.mrb[0].mxu0
        %v4155 = vadd.f32 %v3966, %v4154
        %4156 = vmatprep.mubr.f32.mxu0 0.0
        %4157 = vmatmul.mubr.f32.gmra.mrb[0].mxu0 %v3986
        %v4158 = vpop.f32.mrb[0].mxu0
        %v4159 = vadd.f32 %v3971, %v4158
        %v4160 = vpop.f32.mrb[0].mxu0
        %v4161 = vadd.f32 %v3971, %v4160
        %4162 = vmatprep.mubr.f32.mxu0 0.0
        %4163 = vmatmul.mubr.f32.gmra.mrb[0].mxu0 %v3989
        %v4164 = vpop.f32.mrb[0].mxu0
        %v4165 = vadd.f32 %v3976, %v4164
        %v4166 = vpop.f32.mrb[0].mxu0
        %v4167 = vadd.f32 %v3976, %v4166
        %4168 = vdwg.mxu0
        %4169 = vmatprep.subr.mxu0 %v1245
        %4170 = vmatpush1.msra.mxu0 %v1141
        %4171 = vmatprep.subr.mxu0 %v2077
        %4172 = vmatpush1.msra.mxu0 %v1973
        %4173 = vmatprep.subr.mxu0 %v2909
        %4174 = vmatpush1.msra.mxu0 %v2805
        %4175 = vmatprep.subr.mxu0 %v3741
        %4176 = vmatpush1.msra.mxu0 %v3637
        %4177 = vmatprep.subr.mxu0 0.0
        %4178 = vmatpush1.msra.mxu0 0.0
        %4179 = vmatprep.subr.mxu0 0.0
        %4180 = vmatpush1.msra.mxu0 0.0
        %4181 = vmatprep.subr.mxu0 0.0
        %4182 = vmatpush1.msra.mxu0 0.0
        %4183 = vmatprep.subr.mxu0 0.0
        %4184 = vmatpush1.msra.mxu0 0.0
        %4185 = vmatprep.subr.mxu0 0.0
        %4186 = vmatpush1.msra.mxu0 0.0
        %4187 = vmatprep.subr.mxu0 0.0
        %4188 = vmatpush1.msra.mxu0 0.0
        %4189 = vmatprep.subr.mxu0 0.0
        %4190 = vmatpush1.msra.mxu0 0.0
        %4191 = vmatprep.subr.mxu0 0.0
        %4192 = vmatpush1.msra.mxu0 0.0
        %4193 = vmatprep.subr.mxu0 0.0
        %4194 = vmatpush1.msra.mxu0 0.0
        %4195 = vmatprep.subr.mxu0 0.0
        %4196 = vmatpush1.msra.mxu0 0.0
        %4197 = vmatprep.subr.mxu0 0.0
        %4198 = vmatpush1.msra.mxu0 0.0
        %4199 = vmatprep.subr.mxu0 0.0
        %4200 = vmatpush1.msra.mxu0 0.0
        %4201 = vmatprep.subr.mxu0 0.0
        %4202 = vmatpush1.msra.mxu0 0.0
        %4203 = vmatprep.subr.mxu0 0.0
        %4204 = vmatpush1.msra.mxu0 0.0
        %4205 = vmatprep.subr.mxu0 0.0
        %4206 = vmatpush1.msra.mxu0 0.0
        %4207 = vmatprep.subr.mxu0 0.0
        %4208 = vmatpush1.msra.mxu0 0.0
        %4209 = vmatprep.subr.mxu0 0.0
        %4210 = vmatpush1.msra.mxu0 0.0
        %4211 = vmatprep.subr.mxu0 0.0
        %4212 = vmatpush1.msra.mxu0 0.0
        %4213 = vmatprep.subr.mxu0 0.0
        %4214 = vmatpush1.msra.mxu0 0.0
        %4215 = vmatprep.subr.mxu0 0.0
        %4216 = vmatpush1.msra.mxu0 0.0
        %4217 = vmatprep.subr.mxu0 0.0
        %4218 = vmatpush1.msra.mxu0 0.0
        %4219 = vmatprep.subr.mxu0 0.0
        %4220 = vmatpush1.msra.mxu0 0.0
        %4221 = vmatprep.subr.mxu0 0.0
        %4222 = vmatpush1.msra.mxu0 0.0
        %4223 = vmatprep.subr.mxu0 0.0
        %4224 = vmatpush1.msra.mxu0 0.0
        %4225 = vmatprep.subr.mxu0 0.0
        %4226 = vmatpush1.msra.mxu0 0.0
        %4227 = vmatprep.subr.mxu0 0.0
        %4228 = vmatpush1.msra.mxu0 0.0
        %4229 = vmatprep.subr.mxu0 0.0
        %4230 = vmatpush1.msra.mxu0 0.0
        %4231 = vmatprep.subr.mxu0 0.0
        %4232 = vmatpush1.msra.mxu0 0.0
        %4233 = vmatprep.mubr.f32.mxu0 0.0
        %4234 = vmatmul.mubr.f32.gmra.mrb[0].mxu0 %v3980
        %v4235 = vpop.f32.mrb[0].mxu0
        %v4236 = vadd.f32 %v3961, %v4235
        %v4237 = vpop.f32.mrb[0].mxu0
        %v4238 = vadd.f32 %v3961, %v4237
        %4239 = vmatprep.mubr.f32.mxu0 0.0
        %4240 = vmatmul.mubr.f32.gmra.mrb[0].mxu0 %v3983
        %v4241 = vpop.f32.mrb[0].mxu0
        %v4242 = vadd.f32 %v3966, %v4241
        %v4243 = vpop.f32.mrb[0].mxu0
        %v4244 = vadd.f32 %v3966, %v4243
        %4245 = vmatprep.mubr.f32.mxu0 0.0
        %4246 = vmatmul.mubr.f32.gmra.mrb[0].mxu0 %v3986
        %v4247 = vpop.f32.mrb[0].mxu0
        %v4248 = vadd.f32 %v3971, %v4247
        %v4249 = vpop.f32.mrb[0].mxu0
        %v4250 = vadd.f32 %v3971, %v4249
        %4251 = vmatprep.mubr.f32.mxu0 0.0
        %4252 = vmatmul.mubr.f32.gmra.mrb[0].mxu0 %v3989
        %v4253 = vpop.f32.mrb[0].mxu0
        %v4254 = vadd.f32 %v3976, %v4253
        %v4255 = vpop.f32.mrb[0].mxu0
        %v4256 = vadd.f32 %v3976, %v4255
        %4257 = vdwg.mxu0
        %4258 = vmatprep.subr.mxu0 %v1453
        %4259 = vmatpush1.msra.mxu0 %v1349
        %4260 = vmatprep.subr.mxu0 %v2285
        %4261 = vmatpush1.msra.mxu0 %v2181
        %4262 = vmatprep.subr.mxu0 %v3117
        %4263 = vmatpush1.msra.mxu0 %v3013
        %4264 = vmatprep.subr.mxu0 %v3949
        %4265 = vmatpush1.msra.mxu0 %v3845
        %4266 = vmatprep.subr.mxu0 0.0
        %4267 = vmatpush1.msra.mxu0 0.0
        %4268 = vmatprep.subr.mxu0 0.0
        %4269 = vmatpush1.msra.mxu0 0.0
        %4270 = vmatprep.subr.mxu0 0.0
        %4271 = vmatpush1.msra.mxu0 0.0
        %4272 = vmatprep.subr.mxu0 0.0
        %4273 = vmatpush1.msra.mxu0 0.0
        %4274 = vmatprep.subr.mxu0 0.0
        %4275 = vmatpush1.msra.mxu0 0.0
        %4276 = vmatprep.subr.mxu0 0.0
        %4277 = vmatpush1.msra.mxu0 0.0
        %4278 = vmatprep.subr.mxu0 0.0
        %4279 = vmatpush1.msra.mxu0 0.0
        %4280 = vmatprep.subr.mxu0 0.0
        %4281 = vmatpush1.msra.mxu0 0.0
        %4282 = vmatprep.subr.mxu0 0.0
        %4283 = vmatpush1.msra.mxu0 0.0
        %4284 = vmatprep.subr.mxu0 0.0
        %4285 = vmatpush1.msra.mxu0 0.0
        %4286 = vmatprep.subr.mxu0 0.0
        %4287 = vmatpush1.msra.mxu0 0.0
        %4288 = vmatprep.subr.mxu0 0.0
        %4289 = vmatpush1.msra.mxu0 0.0
        %4290 = vmatprep.subr.mxu0 0.0
        %4291 = vmatpush1.msra.mxu0 0.0
        %4292 = vmatprep.subr.mxu0 0.0
        %4293 = vmatpush1.msra.mxu0 0.0
        %4294 = vmatprep.subr.mxu0 0.0
        %4295 = vmatpush1.msra.mxu0 0.0
        %4296 = vmatprep.subr.mxu0 0.0
        %4297 = vmatpush1.msra.mxu0 0.0
        %4298 = vmatprep.subr.mxu0 0.0
        %4299 = vmatpush1.msra.mxu0 0.0
        %4300 = vmatprep.subr.mxu0 0.0
        %4301 = vmatpush1.msra.mxu0 0.0
        %4302 = vmatprep.subr.mxu0 0.0
        %4303 = vmatpush1.msra.mxu0 0.0
        %4304 = vmatprep.subr.mxu0 0.0
        %4305 = vmatpush1.msra.mxu0 0.0
        %4306 = vmatprep.subr.mxu0 0.0
        %4307 = vmatpush1.msra.mxu0 0.0
        %4308 = vmatprep.subr.mxu0 0.0
        %4309 = vmatpush1.msra.mxu0 0.0
        %4310 = vmatprep.subr.mxu0 0.0
        %4311 = vmatpush1.msra.mxu0 0.0
        %4312 = vmatprep.subr.mxu0 0.0
        %4313 = vmatpush1.msra.mxu0 0.0
        %4314 = vmatprep.subr.mxu0 0.0
        %4315 = vmatpush1.msra.mxu0 0.0
        %4316 = vmatprep.subr.mxu0 0.0
        %4317 = vmatpush1.msra.mxu0 0.0
        %4318 = vmatprep.subr.mxu0 0.0
        %4319 = vmatpush1.msra.mxu0 0.0
        %4320 = vmatprep.subr.mxu0 0.0
        %4321 = vmatpush1.msra.mxu0 0.0
        %4322 = vmatprep.mubr.f32.mxu0 0.0
        %4323 = vmatmul.mubr.f32.gmra.mrb[0].mxu0 %v3980
        %v4324 = vpop.f32.mrb[0].mxu0
        %v4325 = vadd.f32 %v3961, %v4324
        %v4326 = vpop.f32.mrb[0].mxu0
        %v4327 = vadd.f32 %v3961, %v4326
        %4328 = vmatprep.mubr.f32.mxu0 0.0
        %4329 = vmatmul.mubr.f32.gmra.mrb[0].mxu0 %v3983
        %v4330 = vpop.f32.mrb[0].mxu0
        %v4331 = vadd.f32 %v3966, %v4330
        %v4332 = vpop.f32.mrb[0].mxu0
        %v4333 = vadd.f32 %v3966, %v4332
        %4334 = vmatprep.mubr.f32.mxu0 0.0
        %4335 = vmatmul.mubr.f32.gmra.mrb[0].mxu0 %v3986
        %v4336 = vpop.f32.mrb[0].mxu0
        %v4337 = vadd.f32 %v3971, %v4336
        %v4338 = vpop.f32.mrb[0].mxu0
        %v4339 = vadd.f32 %v3971, %v4338
        %4340 = vmatprep.mubr.f32.mxu0 0.0
        %4341 = vmatmul.mubr.f32.gmra.mrb[0].mxu0 %v3989
        %v4342 = vpop.f32.mrb[0].mxu0
        %v4343 = vadd.f32 %v3976, %v4342
        %v4344 = vpop.f32.mrb[0].mxu0
        %v4345 = vadd.f32 %v3976, %v4344
        %4346 = vdwg.mxu0
        %v4347 = vand.u32 2147483647, %v4058
        %vm4348 = vcmp.le.f32.partialorder %v4347, 0.7853982
        %vm4349 = vcmp.lt.s32.totalorder %v4058, 0
        %v4350 = vand.u32 %v4058, 2139095040
        %v4351 = vshrl.u32 %v4350, 23
        %v4352 = vsub.s32 %v4351, 127
        %v4353 = vand.u32 2147483647, %v4058
        %v4354 = vand.u32 %v4353, 8388607
        %v4355 = vor.u32 %v4354, 8388608
        %v4356 = vsub.s32 0, %v4355
        %v4357 = vadd.s32 %v4352, 1
        %vm4358 = vcmp.gt.s32.totalorder %v4357, 0
        %v4359 = vsel %vm4358, %v4357, 0
        %v4360 = vshrl.u32 %v4359, 5
        %v4361 = vand.u32 %v4359, 31
        %v4362 = vsub.s32 32, %v4361
        %v4363 = vshrl.u32 683565275, %v4362
        %v4364 = vshll.u32 683565275, %v4361
        %v4365 = vshrl.u32 2475754826, %v4362
        %v4366 = vor.u32 %v4364, %v4365
        %v4367 = vshll.u32 2475754826, %v4361
        %v4368 = vshrl.u32 2131351028, %v4362
        %v4369 = vor.u32 %v4367, %v4368
        %v4370 = vshll.u32 2131351028, %v4361
        %v4371 = vshrl.u32 2102212464, %v4362
        %v4372 = vor.u32 %v4370, %v4371
        %v4373 = vshll.u32 2102212464, %v4361
        %v4374 = vshrl.u32 920167782, %v4362
        %v4375 = vor.u32 %v4373, %v4374
        %v4376 = vshll.u32 920167782, %v4361
        %v4377 = vshrl.u32 1326507024, %v4362
        %v4378 = vor.u32 %v4376, %v4377
        %vm4379 = vcmp.lt.s32.totalorder %v4360, 1
        %vm4380 = vcmp.lt.s32.totalorder %v4360, 2
        %vm4381 = vcmp.lt.s32.totalorder %v4360, 3
        %vm4382 = vcmp.lt.s32.totalorder %v4360, 4
        %v4383 = vsel %vm4379, %v4363, %v4366
        %v4384 = vsel %vm4382, %v4372, 2102212464
        %v4385 = vsel %vm4381, %v4369, %v4384
        %v4386 = vsel %vm4380, %v4383, %v4385
        %v4387 = vsel %vm4379, %v4366, %v4369
        %v4388 = vsel %vm4382, %v4375, 920167782
        %v4389 = vsel %vm4381, %v4372, %v4388
        %v4390 = vsel %vm4380, %v4387, %v4389
        %v4391 = vsel %vm4379, %v4369, %v4372
        %v4392 = vsel %vm4382, %v4378, 1326507024
        %v4393 = vsel %vm4381, %v4375, %v4392
        %v4394 = vsel %vm4380, %v4391, %v4393
        %v4395 = vshll.u32 %v4355, 8
        %v4396 = vmul.u32.u64.compose %v4395, %v4394
        %v4397 = vextract.low.u32 %v4396
        %v4398 = vextract.high.u32 %v4396
        %v4399 = vmul.u32.u64.compose %v4395, %v4390
        %v4400 = vextract.low.u32 %v4399
        %v4401 = vextract.high.u32 %v4399
        %v4402 = vmul.u32 %v4395, %v4386
        %v4403 = vadd.s32 %v4398, %v4400
        %vm4404 = vc.u32 %v4398, %v4400
        %v4405 = vadd.s32 %v4401, 1
        %v4406 = vsel %vm4404, %v4405, %v4401
        %v4407 = vadd.s32 %v4402, %v4406
        %v4408 = vadd.s32 %v4407, 536870912
        %v4409 = vshrl.u32 %v4408, 30
        %v4410 = vshll.u32 %v4409, 30
        %v4411 = vsub.s32 %v4407, %v4410
        %vm4412 = vcmp.lt.s32.totalorder %v4411, 0
        %v4413 = vsub.s32 0, %v4411
        %v4414 = vsel %vm4412, %v4413, %v4411
        %v4415 = vclz %v4414
        %v4416 = vsub.s32 %v4415, 2
        %vm4417 = vcmp.gt.s32.totalorder 0, %v4416
        %v4418 = vsel %vm4417, 0, %v4416
        %v4419 = vsub.s32 32, %v4418
        %v4420 = vshll.u32 %v4411, %v4418
        %v4421 = vshrl.u32 %v4403, %v4419
        %v4422 = vor.u32 %v4420, %v4421
        %v4423 = vsub.s32 4294967266, %v4418
        %v4424 = vadd.s32 %v4423, 127
        %v4425 = vshll.u32 %v4424, 23
        %v4426 = vor.u32 4788187, %v4425
        %v4427 = vand.u32 2147483647, %v4426
        %v4429 = vcvt.s32.f32 %v4422
        %v4430 = vmul.f32 %v4429, %v4427
        %v4431 = vxor.u32 %v4430, 2147483648
        %v4432 = vsel %vm4349, %v4431, %v4430
        %v4433 = vsub.s32 4, %v4409
        %v4434 = vsel %vm4349, %v4433, %v4409
        %v4435 = vsel %vm4348, %v4058, %v4432
        %v4436 = vsel %vm4348, 0, %v4434
        %v4437 = vcosq.f32.pop %v4435
        %v4438 = vsinq.f32.pop %v4435
        %vm4439 = vweird.f32 %v4058
        %v4440 = vadd.s32 %v4436, 3
        %v4441 = vand.u32 %v4440, 3
        %vm4442 = vcmp.lt.s32.totalorder %v4441, 2
        %vm4443 = vcmp.eq.s32.totalorder %v4441, 0
        %v4444 = vxor.u32 %v4438, 2147483648
        %v4445 = vsel %vm4443, %v4437, %v4444
        %vm4446 = vcmp.eq.s32.totalorder %v4441, 2
        %v4447 = vxor.u32 %v4437, 2147483648
        %v4448 = vsel %vm4446, %v4447, %v4438
        %v4449 = vsel %vm4442, %v4445, %v4448
        %v4450 = vsel %vm4439, nan, %v4449
        %v4451 = vand.u32 2147483647, %v4060
        %vm4452 = vcmp.le.f32.partialorder %v4451, 0.7853982
        %vm4453 = vcmp.lt.s32.totalorder %v4060, 0
        %v4454 = vand.u32 %v4060, 2139095040
        %v4455 = vshrl.u32 %v4454, 23
        %v4456 = vsub.s32 %v4455, 127
        %v4457 = vand.u32 2147483647, %v4060
        %v4458 = vand.u32 %v4457, 8388607
        %v4459 = vor.u32 %v4458, 8388608
        %v4460 = vsub.s32 0, %v4459
        %v4461 = vadd.s32 %v4456, 1
        %vm4462 = vcmp.gt.s32.totalorder %v4461, 0
        %v4463 = vsel %vm4462, %v4461, 0
        %v4464 = vshrl.u32 %v4463, 5
        %v4465 = vand.u32 %v4463, 31
        %v4466 = vsub.s32 32, %v4465
        %v4467 = vshrl.u32 683565275, %v4466
        %v4468 = vshll.u32 683565275, %v4465
        %v4469 = vshrl.u32 2475754826, %v4466
        %v4470 = vor.u32 %v4468, %v4469
        %v4471 = vshll.u32 2475754826, %v4465
        %v4472 = vshrl.u32 2131351028, %v4466
        %v4473 = vor.u32 %v4471, %v4472
        %v4474 = vshll.u32 2131351028, %v4465
        %v4475 = vshrl.u32 2102212464, %v4466
        %v4476 = vor.u32 %v4474, %v4475
        %v4477 = vshll.u32 2102212464, %v4465
        %v4478 = vshrl.u32 920167782, %v4466
        %v4479 = vor.u32 %v4477, %v4478
        %v4480 = vshll.u32 920167782, %v4465
        %v4481 = vshrl.u32 1326507024, %v4466
        %v4482 = vor.u32 %v4480, %v4481
        %vm4483 = vcmp.lt.s32.totalorder %v4464, 1
        %vm4484 = vcmp.lt.s32.totalorder %v4464, 2
        %vm4485 = vcmp.lt.s32.totalorder %v4464, 3
        %vm4486 = vcmp.lt.s32.totalorder %v4464, 4
        %v4487 = vsel %vm4483, %v4467, %v4470
        %v4488 = vsel %vm4486, %v4476, 2102212464
        %v4489 = vsel %vm4485, %v4473, %v4488
        %v4490 = vsel %vm4484, %v4487, %v4489
        %v4491 = vsel %vm4483, %v4470, %v4473
        %v4492 = vsel %vm4486, %v4479, 920167782
        %v4493 = vsel %vm4485, %v4476, %v4492
        %v4494 = vsel %vm4484, %v4491, %v4493
        %v4495 = vsel %vm4483, %v4473, %v4476
        %v4496 = vsel %vm4486, %v4482, 1326507024
        %v4497 = vsel %vm4485, %v4479, %v4496
        %v4498 = vsel %vm4484, %v4495, %v4497
        %v4499 = vshll.u32 %v4459, 8
        %v4500 = vmul.u32.u64.compose %v4499, %v4498
        %v4501 = vextract.low.u32 %v4500
        %v4502 = vextract.high.u32 %v4500
        %v4503 = vmul.u32.u64.compose %v4499, %v4494
        %v4504 = vextract.low.u32 %v4503
        %v4505 = vextract.high.u32 %v4503
        %v4506 = vmul.u32 %v4499, %v4490
        %v4507 = vadd.s32 %v4502, %v4504
        %vm4508 = vc.u32 %v4502, %v4504
        %v4509 = vadd.s32 %v4505, 1
        %v4510 = vsel %vm4508, %v4509, %v4505
        %v4511 = vadd.s32 %v4506, %v4510
        %v4512 = vadd.s32 %v4511, 536870912
        %v4513 = vshrl.u32 %v4512, 30
        %v4514 = vshll.u32 %v4513, 30
        %v4515 = vsub.s32 %v4511, %v4514
        %vm4516 = vcmp.lt.s32.totalorder %v4515, 0
        %v4517 = vsub.s32 0, %v4515
        %v4518 = vsel %vm4516, %v4517, %v4515
        %v4519 = vclz %v4518
        %v4520 = vsub.s32 %v4519, 2
        %vm4521 = vcmp.gt.s32.totalorder 0, %v4520
        %v4522 = vsel %vm4521, 0, %v4520
        %v4523 = vsub.s32 32, %v4522
        %v4524 = vshll.u32 %v4515, %v4522
        %v4525 = vshrl.u32 %v4507, %v4523
        %v4526 = vor.u32 %v4524, %v4525
        %v4527 = vsub.s32 4294967266, %v4522
        %v4528 = vadd.s32 %v4527, 127
        %v4529 = vshll.u32 %v4528, 23
        %v4530 = vor.u32 4788187, %v4529
        %v4531 = vand.u32 2147483647, %v4530
        %v4533 = vcvt.s32.f32 %v4526
        %v4534 = vmul.f32 %v4533, %v4531
        %v4535 = vxor.u32 %v4534, 2147483648
        %v4536 = vsel %vm4453, %v4535, %v4534
        %v4537 = vsub.s32 4, %v4513
        %v4538 = vsel %vm4453, %v4537, %v4513
        %v4539 = vsel %vm4452, %v4060, %v4536
        %v4540 = vsel %vm4452, 0, %v4538
        %v4541 = vcosq.f32.pop %v4539
        %v4542 = vsinq.f32.pop %v4539
        %vm4543 = vweird.f32 %v4060
        %v4544 = vadd.s32 %v4540, 3
        %v4545 = vand.u32 %v4544, 3
        %vm4546 = vcmp.lt.s32.totalorder %v4545, 2
        %vm4547 = vcmp.eq.s32.totalorder %v4545, 0
        %v4548 = vxor.u32 %v4542, 2147483648
        %v4549 = vsel %vm4547, %v4541, %v4548
        %vm4550 = vcmp.eq.s32.totalorder %v4545, 2
        %v4551 = vxor.u32 %v4541, 2147483648
        %v4552 = vsel %vm4550, %v4551, %v4542
        %v4553 = vsel %vm4546, %v4549, %v4552
        %v4554 = vsel %vm4543, nan, %v4553
        %v4555 = vand.u32 2147483647, %v4147
        %vm4556 = vcmp.le.f32.partialorder %v4555, 0.7853982
        %vm4557 = vcmp.lt.s32.totalorder %v4147, 0
        %v4558 = vand.u32 %v4147, 2139095040
        %v4559 = vshrl.u32 %v4558, 23
        %v4560 = vsub.s32 %v4559, 127
        %v4561 = vand.u32 2147483647, %v4147
        %v4562 = vand.u32 %v4561, 8388607
        %v4563 = vor.u32 %v4562, 8388608
        %v4564 = vsub.s32 0, %v4563
        %v4565 = vadd.s32 %v4560, 1
        %vm4566 = vcmp.gt.s32.totalorder %v4565, 0
        %v4567 = vsel %vm4566, %v4565, 0
        %v4568 = vshrl.u32 %v4567, 5
        %v4569 = vand.u32 %v4567, 31
        %v4570 = vsub.s32 32, %v4569
        %v4571 = vshrl.u32 683565275, %v4570
        %v4572 = vshll.u32 683565275, %v4569
        %v4573 = vshrl.u32 2475754826, %v4570
        %v4574 = vor.u32 %v4572, %v4573
        %v4575 = vshll.u32 2475754826, %v4569
        %v4576 = vshrl.u32 2131351028, %v4570
        %v4577 = vor.u32 %v4575, %v4576
        %v4578 = vshll.u32 2131351028, %v4569
        %v4579 = vshrl.u32 2102212464, %v4570
        %v4580 = vor.u32 %v4578, %v4579
        %v4581 = vshll.u32 2102212464, %v4569
        %v4582 = vshrl.u32 920167782, %v4570
        %v4583 = vor.u32 %v4581, %v4582
        %v4584 = vshll.u32 920167782, %v4569
        %v4585 = vshrl.u32 1326507024, %v4570
        %v4586 = vor.u32 %v4584, %v4585
        %vm4587 = vcmp.lt.s32.totalorder %v4568, 1
        %vm4588 = vcmp.lt.s32.totalorder %v4568, 2
        %vm4589 = vcmp.lt.s32.totalorder %v4568, 3
        %vm4590 = vcmp.lt.s32.totalorder %v4568, 4
        %v4591 = vsel %vm4587, %v4571, %v4574
        %v4592 = vsel %vm4590, %v4580, 2102212464
        %v4593 = vsel %vm4589, %v4577, %v4592
        %v4594 = vsel %vm4588, %v4591, %v4593
        %v4595 = vsel %vm4587, %v4574, %v4577
        %v4596 = vsel %vm4590, %v4583, 920167782
        %v4597 = vsel %vm4589, %v4580, %v4596
        %v4598 = vsel %vm4588, %v4595, %v4597
        %v4599 = vsel %vm4587, %v4577, %v4580
        %v4600 = vsel %vm4590, %v4586, 1326507024
        %v4601 = vsel %vm4589, %v4583, %v4600
        %v4602 = vsel %vm4588, %v4599, %v4601
        %v4603 = vshll.u32 %v4563, 8
        %v4604 = vmul.u32.u64.compose %v4603, %v4602
        %v4605 = vextract.low.u32 %v4604
        %v4606 = vextract.high.u32 %v4604
        %v4607 = vmul.u32.u64.compose %v4603, %v4598
        %v4608 = vextract.low.u32 %v4607
        %v4609 = vextract.high.u32 %v4607
        %v4610 = vmul.u32 %v4603, %v4594
        %v4611 = vadd.s32 %v4606, %v4608
        %vm4612 = vc.u32 %v4606, %v4608
        %v4613 = vadd.s32 %v4609, 1
        %v4614 = vsel %vm4612, %v4613, %v4609
        %v4615 = vadd.s32 %v4610, %v4614
        %v4616 = vadd.s32 %v4615, 536870912
        %v4617 = vshrl.u32 %v4616, 30
        %v4618 = vshll.u32 %v4617, 30
        %v4619 = vsub.s32 %v4615, %v4618
        %vm4620 = vcmp.lt.s32.totalorder %v4619, 0
        %v4621 = vsub.s32 0, %v4619
        %v4622 = vsel %vm4620, %v4621, %v4619
        %v4623 = vclz %v4622
        %v4624 = vsub.s32 %v4623, 2
        %vm4625 = vcmp.gt.s32.totalorder 0, %v4624
        %v4626 = vsel %vm4625, 0, %v4624
        %v4627 = vsub.s32 32, %v4626
        %v4628 = vshll.u32 %v4619, %v4626
        %v4629 = vshrl.u32 %v4611, %v4627
        %v4630 = vor.u32 %v4628, %v4629
        %v4631 = vsub.s32 4294967266, %v4626
        %v4632 = vadd.s32 %v4631, 127
        %v4633 = vshll.u32 %v4632, 23
        %v4634 = vor.u32 4788187, %v4633
        %v4635 = vand.u32 2147483647, %v4634
        %v4637 = vcvt.s32.f32 %v4630
        %v4638 = vmul.f32 %v4637, %v4635
        %v4639 = vxor.u32 %v4638, 2147483648
        %v4640 = vsel %vm4557, %v4639, %v4638
        %v4641 = vsub.s32 4, %v4617
        %v4642 = vsel %vm4557, %v4641, %v4617
        %v4643 = vsel %vm4556, %v4147, %v4640
        %v4644 = vsel %vm4556, 0, %v4642
        %v4645 = vcosq.f32.pop %v4643
        %v4646 = vsinq.f32.pop %v4643
        %vm4647 = vweird.f32 %v4147
        %v4648 = vadd.s32 %v4644, 3
        %v4649 = vand.u32 %v4648, 3
        %vm4650 = vcmp.lt.s32.totalorder %v4649, 2
        %vm4651 = vcmp.eq.s32.totalorder %v4649, 0
        %v4652 = vxor.u32 %v4646, 2147483648
        %v4653 = vsel %vm4651, %v4645, %v4652
        %vm4654 = vcmp.eq.s32.totalorder %v4649, 2
        %v4655 = vxor.u32 %v4645, 2147483648
        %v4656 = vsel %vm4654, %v4655, %v4646
        %v4657 = vsel %vm4650, %v4653, %v4656
        %v4658 = vsel %vm4647, nan, %v4657
        %v4659 = vand.u32 2147483647, %v4149
        %vm4660 = vcmp.le.f32.partialorder %v4659, 0.7853982
        %vm4661 = vcmp.lt.s32.totalorder %v4149, 0
        %v4662 = vand.u32 %v4149, 2139095040
        %v4663 = vshrl.u32 %v4662, 23
        %v4664 = vsub.s32 %v4663, 127
        %v4665 = vand.u32 2147483647, %v4149
        %v4666 = vand.u32 %v4665, 8388607
        %v4667 = vor.u32 %v4666, 8388608
        %v4668 = vsub.s32 0, %v4667
        %v4669 = vadd.s32 %v4664, 1
        %vm4670 = vcmp.gt.s32.totalorder %v4669, 0
        %v4671 = vsel %vm4670, %v4669, 0
        %v4672 = vshrl.u32 %v4671, 5
        %v4673 = vand.u32 %v4671, 31
        %v4674 = vsub.s32 32, %v4673
        %v4675 = vshrl.u32 683565275, %v4674
        %v4676 = vshll.u32 683565275, %v4673
        %v4677 = vshrl.u32 2475754826, %v4674
        %v4678 = vor.u32 %v4676, %v4677
        %v4679 = vshll.u32 2475754826, %v4673
        %v4680 = vshrl.u32 2131351028, %v4674
        %v4681 = vor.u32 %v4679, %v4680
        %v4682 = vshll.u32 2131351028, %v4673
        %v4683 = vshrl.u32 2102212464, %v4674
        %v4684 = vor.u32 %v4682, %v4683
        %v4685 = vshll.u32 2102212464, %v4673
        %v4686 = vshrl.u32 920167782, %v4674
        %v4687 = vor.u32 %v4685, %v4686
        %v4688 = vshll.u32 920167782, %v4673
        %v4689 = vshrl.u32 1326507024, %v4674
        %v4690 = vor.u32 %v4688, %v4689
        %vm4691 = vcmp.lt.s32.totalorder %v4672, 1
        %vm4692 = vcmp.lt.s32.totalorder %v4672, 2
        %vm4693 = vcmp.lt.s32.totalorder %v4672, 3
        %vm4694 = vcmp.lt.s32.totalorder %v4672, 4
        %v4695 = vsel %vm4691, %v4675, %v4678
        %v4696 = vsel %vm4694, %v4684, 2102212464
        %v4697 = vsel %vm4693, %v4681, %v4696
        %v4698 = vsel %vm4692, %v4695, %v4697
        %v4699 = vsel %vm4691, %v4678, %v4681
        %v4700 = vsel %vm4694, %v4687, 920167782
        %v4701 = vsel %vm4693, %v4684, %v4700
        %v4702 = vsel %vm4692, %v4699, %v4701
        %v4703 = vsel %vm4691, %v4681, %v4684
        %v4704 = vsel %vm4694, %v4690, 1326507024
        %v4705 = vsel %vm4693, %v4687, %v4704
        %v4706 = vsel %vm4692, %v4703, %v4705
        %v4707 = vshll.u32 %v4667, 8
        %v4708 = vmul.u32.u64.compose %v4707, %v4706
        %v4709 = vextract.low.u32 %v4708
        %v4710 = vextract.high.u32 %v4708
        %v4711 = vmul.u32.u64.compose %v4707, %v4702
        %v4712 = vextract.low.u32 %v4711
        %v4713 = vextract.high.u32 %v4711
        %v4714 = vmul.u32 %v4707, %v4698
        %v4715 = vadd.s32 %v4710, %v4712
        %vm4716 = vc.u32 %v4710, %v4712
        %v4717 = vadd.s32 %v4713, 1
        %v4718 = vsel %vm4716, %v4717, %v4713
        %v4719 = vadd.s32 %v4714, %v4718
        %v4720 = vadd.s32 %v4719, 536870912
        %v4721 = vshrl.u32 %v4720, 30
        %v4722 = vshll.u32 %v4721, 30
        %v4723 = vsub.s32 %v4719, %v4722
        %vm4724 = vcmp.lt.s32.totalorder %v4723, 0
        %v4725 = vsub.s32 0, %v4723
        %v4726 = vsel %vm4724, %v4725, %v4723
        %v4727 = vclz %v4726
        %v4728 = vsub.s32 %v4727, 2
        %vm4729 = vcmp.gt.s32.totalorder 0, %v4728
        %v4730 = vsel %vm4729, 0, %v4728
        %v4731 = vsub.s32 32, %v4730
        %v4732 = vshll.u32 %v4723, %v4730
        %v4733 = vshrl.u32 %v4715, %v4731
        %v4734 = vor.u32 %v4732, %v4733
        %v4735 = vsub.s32 4294967266, %v4730
        %v4736 = vadd.s32 %v4735, 127
        %v4737 = vshll.u32 %v4736, 23
        %v4738 = vor.u32 4788187, %v4737
        %v4739 = vand.u32 2147483647, %v4738
        %v4741 = vcvt.s32.f32 %v4734
        %v4742 = vmul.f32 %v4741, %v4739
        %v4743 = vxor.u32 %v4742, 2147483648
        %v4744 = vsel %vm4661, %v4743, %v4742
        %v4745 = vsub.s32 4, %v4721
        %v4746 = vsel %vm4661, %v4745, %v4721
        %v4747 = vsel %vm4660, %v4149, %v4744
        %v4748 = vsel %vm4660, 0, %v4746
        %v4749 = vcosq.f32.pop %v4747
        %v4750 = vsinq.f32.pop %v4747
        %vm4751 = vweird.f32 %v4149
        %v4752 = vadd.s32 %v4748, 3
        %v4753 = vand.u32 %v4752, 3
        %vm4754 = vcmp.lt.s32.totalorder %v4753, 2
        %vm4755 = vcmp.eq.s32.totalorder %v4753, 0
        %v4756 = vxor.u32 %v4750, 2147483648
        %v4757 = vsel %vm4755, %v4749, %v4756
        %vm4758 = vcmp.eq.s32.totalorder %v4753, 2
        %v4759 = vxor.u32 %v4749, 2147483648
        %v4760 = vsel %vm4758, %v4759, %v4750
        %v4761 = vsel %vm4754, %v4757, %v4760
        %v4762 = vsel %vm4751, nan, %v4761
        %v4763 = vand.u32 2147483647, %v4236
        %vm4764 = vcmp.le.f32.partialorder %v4763, 0.7853982
        %vm4765 = vcmp.lt.s32.totalorder %v4236, 0
        %v4766 = vand.u32 %v4236, 2139095040
        %v4767 = vshrl.u32 %v4766, 23
        %v4768 = vsub.s32 %v4767, 127
        %v4769 = vand.u32 2147483647, %v4236
        %v4770 = vand.u32 %v4769, 8388607
        %v4771 = vor.u32 %v4770, 8388608
        %v4772 = vsub.s32 0, %v4771
        %v4773 = vadd.s32 %v4768, 1
        %vm4774 = vcmp.gt.s32.totalorder %v4773, 0
        %v4775 = vsel %vm4774, %v4773, 0
        %v4776 = vshrl.u32 %v4775, 5
        %v4777 = vand.u32 %v4775, 31
        %v4778 = vsub.s32 32, %v4777
        %v4779 = vshrl.u32 683565275, %v4778
        %v4780 = vshll.u32 683565275, %v4777
        %v4781 = vshrl.u32 2475754826, %v4778
        %v4782 = vor.u32 %v4780, %v4781
        %v4783 = vshll.u32 2475754826, %v4777
        %v4784 = vshrl.u32 2131351028, %v4778
        %v4785 = vor.u32 %v4783, %v4784
        %v4786 = vshll.u32 2131351028, %v4777
        %v4787 = vshrl.u32 2102212464, %v4778
        %v4788 = vor.u32 %v4786, %v4787
        %v4789 = vshll.u32 2102212464, %v4777
        %v4790 = vshrl.u32 920167782, %v4778
        %v4791 = vor.u32 %v4789, %v4790
        %v4792 = vshll.u32 920167782, %v4777
        %v4793 = vshrl.u32 1326507024, %v4778
        %v4794 = vor.u32 %v4792, %v4793
        %vm4795 = vcmp.lt.s32.totalorder %v4776, 1
        %vm4796 = vcmp.lt.s32.totalorder %v4776, 2
        %vm4797 = vcmp.lt.s32.totalorder %v4776, 3
        %vm4798 = vcmp.lt.s32.totalorder %v4776, 4
        %v4799 = vsel %vm4795, %v4779, %v4782
        %v4800 = vsel %vm4798, %v4788, 2102212464
        %v4801 = vsel %vm4797, %v4785, %v4800
        %v4802 = vsel %vm4796, %v4799, %v4801
        %v4803 = vsel %vm4795, %v4782, %v4785
        %v4804 = vsel %vm4798, %v4791, 920167782
        %v4805 = vsel %vm4797, %v4788, %v4804
        %v4806 = vsel %vm4796, %v4803, %v4805
        %v4807 = vsel %vm4795, %v4785, %v4788
        %v4808 = vsel %vm4798, %v4794, 1326507024
        %v4809 = vsel %vm4797, %v4791, %v4808
        %v4810 = vsel %vm4796, %v4807, %v4809
        %v4811 = vshll.u32 %v4771, 8
        %v4812 = vmul.u32.u64.compose %v4811, %v4810
        %v4813 = vextract.low.u32 %v4812
        %v4814 = vextract.high.u32 %v4812
        %v4815 = vmul.u32.u64.compose %v4811, %v4806
        %v4816 = vextract.low.u32 %v4815
        %v4817 = vextract.high.u32 %v4815
        %v4818 = vmul.u32 %v4811, %v4802
        %v4819 = vadd.s32 %v4814, %v4816
        %vm4820 = vc.u32 %v4814, %v4816
        %v4821 = vadd.s32 %v4817, 1
        %v4822 = vsel %vm4820, %v4821, %v4817
        %v4823 = vadd.s32 %v4818, %v4822
        %v4824 = vadd.s32 %v4823, 536870912
        %v4825 = vshrl.u32 %v4824, 30
        %v4826 = vshll.u32 %v4825, 30
        %v4827 = vsub.s32 %v4823, %v4826
        %vm4828 = vcmp.lt.s32.totalorder %v4827, 0
        %v4829 = vsub.s32 0, %v4827
        %v4830 = vsel %vm4828, %v4829, %v4827
        %v4831 = vclz %v4830
        %v4832 = vsub.s32 %v4831, 2
        %vm4833 = vcmp.gt.s32.totalorder 0, %v4832
        %v4834 = vsel %vm4833, 0, %v4832
        %v4835 = vsub.s32 32, %v4834
        %v4836 = vshll.u32 %v4827, %v4834
        %v4837 = vshrl.u32 %v4819, %v4835
        %v4838 = vor.u32 %v4836, %v4837
        %v4839 = vsub.s32 4294967266, %v4834
        %v4840 = vadd.s32 %v4839, 127
        %v4841 = vshll.u32 %v4840, 23
        %v4842 = vor.u32 4788187, %v4841
        %v4843 = vand.u32 2147483647, %v4842
        %v4845 = vcvt.s32.f32 %v4838
        %v4846 = vmul.f32 %v4845, %v4843
        %v4847 = vxor.u32 %v4846, 2147483648
        %v4848 = vsel %vm4765, %v4847, %v4846
        %v4849 = vsub.s32 4, %v4825
        %v4850 = vsel %vm4765, %v4849, %v4825
        %v4851 = vsel %vm4764, %v4236, %v4848
        %v4852 = vsel %vm4764, 0, %v4850
        %v4853 = vcosq.f32.pop %v4851
        %v4854 = vsinq.f32.pop %v4851
        %vm4855 = vweird.f32 %v4236
        %v4856 = vadd.s32 %v4852, 3
        %v4857 = vand.u32 %v4856, 3
        %vm4858 = vcmp.lt.s32.totalorder %v4857, 2
        %vm4859 = vcmp.eq.s32.totalorder %v4857, 0
        %v4860 = vxor.u32 %v4854, 2147483648
        %v4861 = vsel %vm4859, %v4853, %v4860
        %vm4862 = vcmp.eq.s32.totalorder %v4857, 2
        %v4863 = vxor.u32 %v4853, 2147483648
        %v4864 = vsel %vm4862, %v4863, %v4854
        %v4865 = vsel %vm4858, %v4861, %v4864
        %v4866 = vsel %vm4855, nan, %v4865
        %v4867 = vand.u32 2147483647, %v4238
        %vm4868 = vcmp.le.f32.partialorder %v4867, 0.7853982
        %vm4869 = vcmp.lt.s32.totalorder %v4238, 0
        %v4870 = vand.u32 %v4238, 2139095040
        %v4871 = vshrl.u32 %v4870, 23
        %v4872 = vsub.s32 %v4871, 127
        %v4873 = vand.u32 2147483647, %v4238
        %v4874 = vand.u32 %v4873, 8388607
        %v4875 = vor.u32 %v4874, 8388608
        %v4876 = vsub.s32 0, %v4875
        %v4877 = vadd.s32 %v4872, 1
        %vm4878 = vcmp.gt.s32.totalorder %v4877, 0
        %v4879 = vsel %vm4878, %v4877, 0
        %v4880 = vshrl.u32 %v4879, 5
        %v4881 = vand.u32 %v4879, 31
        %v4882 = vsub.s32 32, %v4881
        %v4883 = vshrl.u32 683565275, %v4882
        %v4884 = vshll.u32 683565275, %v4881
        %v4885 = vshrl.u32 2475754826, %v4882
        %v4886 = vor.u32 %v4884, %v4885
        %v4887 = vshll.u32 2475754826, %v4881
        %v4888 = vshrl.u32 2131351028, %v4882
        %v4889 = vor.u32 %v4887, %v4888
        %v4890 = vshll.u32 2131351028, %v4881
        %v4891 = vshrl.u32 2102212464, %v4882
        %v4892 = vor.u32 %v4890, %v4891
        %v4893 = vshll.u32 2102212464, %v4881
        %v4894 = vshrl.u32 920167782, %v4882
        %v4895 = vor.u32 %v4893, %v4894
        %v4896 = vshll.u32 920167782, %v4881
        %v4897 = vshrl.u32 1326507024, %v4882
        %v4898 = vor.u32 %v4896, %v4897
        %vm4899 = vcmp.lt.s32.totalorder %v4880, 1
        %vm4900 = vcmp.lt.s32.totalorder %v4880, 2
        %vm4901 = vcmp.lt.s32.totalorder %v4880, 3
        %vm4902 = vcmp.lt.s32.totalorder %v4880, 4
        %v4903 = vsel %vm4899, %v4883, %v4886
        %v4904 = vsel %vm4902, %v4892, 2102212464
        %v4905 = vsel %vm4901, %v4889, %v4904
        %v4906 = vsel %vm4900, %v4903, %v4905
        %v4907 = vsel %vm4899, %v4886, %v4889
        %v4908 = vsel %vm4902, %v4895, 920167782
        %v4909 = vsel %vm4901, %v4892, %v4908
        %v4910 = vsel %vm4900, %v4907, %v4909
        %v4911 = vsel %vm4899, %v4889, %v4892
        %v4912 = vsel %vm4902, %v4898, 1326507024
        %v4913 = vsel %vm4901, %v4895, %v4912
        %v4914 = vsel %vm4900, %v4911, %v4913
        %v4915 = vshll.u32 %v4875, 8
        %v4916 = vmul.u32.u64.compose %v4915, %v4914
        %v4917 = vextract.low.u32 %v4916
        %v4918 = vextract.high.u32 %v4916
        %v4919 = vmul.u32.u64.compose %v4915, %v4910
        %v4920 = vextract.low.u32 %v4919
        %v4921 = vextract.high.u32 %v4919
        %v4922 = vmul.u32 %v4915, %v4906
        %v4923 = vadd.s32 %v4918, %v4920
        %vm4924 = vc.u32 %v4918, %v4920
        %v4925 = vadd.s32 %v4921, 1
        %v4926 = vsel %vm4924, %v4925, %v4921
        %v4927 = vadd.s32 %v4922, %v4926
        %v4928 = vadd.s32 %v4927, 536870912
        %v4929 = vshrl.u32 %v4928, 30
        %v4930 = vshll.u32 %v4929, 30
        %v4931 = vsub.s32 %v4927, %v4930
        %vm4932 = vcmp.lt.s32.totalorder %v4931, 0
        %v4933 = vsub.s32 0, %v4931
        %v4934 = vsel %vm4932, %v4933, %v4931
        %v4935 = vclz %v4934
        %v4936 = vsub.s32 %v4935, 2
        %vm4937 = vcmp.gt.s32.totalorder 0, %v4936
        %v4938 = vsel %vm4937, 0, %v4936
        %v4939 = vsub.s32 32, %v4938
        %v4940 = vshll.u32 %v4931, %v4938
        %v4941 = vshrl.u32 %v4923, %v4939
        %v4942 = vor.u32 %v4940, %v4941
        %v4943 = vsub.s32 4294967266, %v4938
        %v4944 = vadd.s32 %v4943, 127
        %v4945 = vshll.u32 %v4944, 23
        %v4946 = vor.u32 4788187, %v4945
        %v4947 = vand.u32 2147483647, %v4946
        %v4949 = vcvt.s32.f32 %v4942
        %v4950 = vmul.f32 %v4949, %v4947
        %v4951 = vxor.u32 %v4950, 2147483648
        %v4952 = vsel %vm4869, %v4951, %v4950
        %v4953 = vsub.s32 4, %v4929
        %v4954 = vsel %vm4869, %v4953, %v4929
        %v4955 = vsel %vm4868, %v4238, %v4952
        %v4956 = vsel %vm4868, 0, %v4954
        %v4957 = vcosq.f32.pop %v4955
        %v4958 = vsinq.f32.pop %v4955
        %vm4959 = vweird.f32 %v4238
        %v4960 = vadd.s32 %v4956, 3
        %v4961 = vand.u32 %v4960, 3
        %vm4962 = vcmp.lt.s32.totalorder %v4961, 2
        %vm4963 = vcmp.eq.s32.totalorder %v4961, 0
        %v4964 = vxor.u32 %v4958, 2147483648
        %v4965 = vsel %vm4963, %v4957, %v4964
        %vm4966 = vcmp.eq.s32.totalorder %v4961, 2
        %v4967 = vxor.u32 %v4957, 2147483648
        %v4968 = vsel %vm4966, %v4967, %v4958
        %v4969 = vsel %vm4962, %v4965, %v4968
        %v4970 = vsel %vm4959, nan, %v4969
        %v4971 = vand.u32 2147483647, %v4325
        %vm4972 = vcmp.le.f32.partialorder %v4971, 0.7853982
        %vm4973 = vcmp.lt.s32.totalorder %v4325, 0
        %v4974 = vand.u32 %v4325, 2139095040
        %v4975 = vshrl.u32 %v4974, 23
        %v4976 = vsub.s32 %v4975, 127
        %v4977 = vand.u32 2147483647, %v4325
        %v4978 = vand.u32 %v4977, 8388607
        %v4979 = vor.u32 %v4978, 8388608
        %v4980 = vsub.s32 0, %v4979
        %v4981 = vadd.s32 %v4976, 1
        %vm4982 = vcmp.gt.s32.totalorder %v4981, 0
        %v4983 = vsel %vm4982, %v4981, 0
        %v4984 = vshrl.u32 %v4983, 5
        %v4985 = vand.u32 %v4983, 31
        %v4986 = vsub.s32 32, %v4985
        %v4987 = vshrl.u32 683565275, %v4986
        %v4988 = vshll.u32 683565275, %v4985
        %v4989 = vshrl.u32 2475754826, %v4986
        %v4990 = vor.u32 %v4988, %v4989
        %v4991 = vshll.u32 2475754826, %v4985
        %v4992 = vshrl.u32 2131351028, %v4986
        %v4993 = vor.u32 %v4991, %v4992
        %v4994 = vshll.u32 2131351028, %v4985
        %v4995 = vshrl.u32 2102212464, %v4986
        %v4996 = vor.u32 %v4994, %v4995
        %v4997 = vshll.u32 2102212464, %v4985
        %v4998 = vshrl.u32 920167782, %v4986
        %v4999 = vor.u32 %v4997, %v4998
        %v5000 = vshll.u32 920167782, %v4985
        %v5001 = vshrl.u32 1326507024, %v4986
        %v5002 = vor.u32 %v5000, %v5001
        %vm5003 = vcmp.lt.s32.totalorder %v4984, 1
        %vm5004 = vcmp.lt.s32.totalorder %v4984, 2
        %vm5005 = vcmp.lt.s32.totalorder %v4984, 3
        %vm5006 = vcmp.lt.s32.totalorder %v4984, 4
        %v5007 = vsel %vm5003, %v4987, %v4990
        %v5008 = vsel %vm5006, %v4996, 2102212464
        %v5009 = vsel %vm5005, %v4993, %v5008
        %v5010 = vsel %vm5004, %v5007, %v5009
        %v5011 = vsel %vm5003, %v4990, %v4993
        %v5012 = vsel %vm5006, %v4999, 920167782
        %v5013 = vsel %vm5005, %v4996, %v5012
        %v5014 = vsel %vm5004, %v5011, %v5013
        %v5015 = vsel %vm5003, %v4993, %v4996
        %v5016 = vsel %vm5006, %v5002, 1326507024
        %v5017 = vsel %vm5005, %v4999, %v5016
        %v5018 = vsel %vm5004, %v5015, %v5017
        %v5019 = vshll.u32 %v4979, 8
        %v5020 = vmul.u32.u64.compose %v5019, %v5018
        %v5021 = vextract.low.u32 %v5020
        %v5022 = vextract.high.u32 %v5020
        %v5023 = vmul.u32.u64.compose %v5019, %v5014
        %v5024 = vextract.low.u32 %v5023
        %v5025 = vextract.high.u32 %v5023
        %v5026 = vmul.u32 %v5019, %v5010
        %v5027 = vadd.s32 %v5022, %v5024
        %vm5028 = vc.u32 %v5022, %v5024
        %v5029 = vadd.s32 %v5025, 1
        %v5030 = vsel %vm5028, %v5029, %v5025
        %v5031 = vadd.s32 %v5026, %v5030
        %v5032 = vadd.s32 %v5031, 536870912
        %v5033 = vshrl.u32 %v5032, 30
        %v5034 = vshll.u32 %v5033, 30
        %v5035 = vsub.s32 %v5031, %v5034
        %vm5036 = vcmp.lt.s32.totalorder %v5035, 0
        %v5037 = vsub.s32 0, %v5035
        %v5038 = vsel %vm5036, %v5037, %v5035
        %v5039 = vclz %v5038
        %v5040 = vsub.s32 %v5039, 2
        %vm5041 = vcmp.gt.s32.totalorder 0, %v5040
        %v5042 = vsel %vm5041, 0, %v5040
        %v5043 = vsub.s32 32, %v5042
        %v5044 = vshll.u32 %v5035, %v5042
        %v5045 = vshrl.u32 %v5027, %v5043
        %v5046 = vor.u32 %v5044, %v5045
        %v5047 = vsub.s32 4294967266, %v5042
        %v5048 = vadd.s32 %v5047, 127
        %v5049 = vshll.u32 %v5048, 23
        %v5050 = vor.u32 4788187, %v5049
        %v5051 = vand.u32 2147483647, %v5050
        %v5053 = vcvt.s32.f32 %v5046
        %v5054 = vmul.f32 %v5053, %v5051
        %v5055 = vxor.u32 %v5054, 2147483648
        %v5056 = vsel %vm4973, %v5055, %v5054
        %v5057 = vsub.s32 4, %v5033
        %v5058 = vsel %vm4973, %v5057, %v5033
        %v5059 = vsel %vm4972, %v4325, %v5056
        %v5060 = vsel %vm4972, 0, %v5058
        %v5061 = vcosq.f32.pop %v5059
        %v5062 = vsinq.f32.pop %v5059
        %vm5063 = vweird.f32 %v4325
        %v5064 = vadd.s32 %v5060, 3
        %v5065 = vand.u32 %v5064, 3
        %vm5066 = vcmp.lt.s32.totalorder %v5065, 2
        %vm5067 = vcmp.eq.s32.totalorder %v5065, 0
        %v5068 = vxor.u32 %v5062, 2147483648
        %v5069 = vsel %vm5067, %v5061, %v5068
        %vm5070 = vcmp.eq.s32.totalorder %v5065, 2
        %v5071 = vxor.u32 %v5061, 2147483648
        %v5072 = vsel %vm5070, %v5071, %v5062
        %v5073 = vsel %vm5066, %v5069, %v5072
        %v5074 = vsel %vm5063, nan, %v5073
        %v5075 = vand.u32 2147483647, %v4327
        %vm5076 = vcmp.le.f32.partialorder %v5075, 0.7853982
        %vm5077 = vcmp.lt.s32.totalorder %v4327, 0
        %v5078 = vand.u32 %v4327, 2139095040
        %v5079 = vshrl.u32 %v5078, 23
        %v5080 = vsub.s32 %v5079, 127
        %v5081 = vand.u32 2147483647, %v4327
        %v5082 = vand.u32 %v5081, 8388607
        %v5083 = vor.u32 %v5082, 8388608
        %v5084 = vsub.s32 0, %v5083
        %v5085 = vadd.s32 %v5080, 1
        %vm5086 = vcmp.gt.s32.totalorder %v5085, 0
        %v5087 = vsel %vm5086, %v5085, 0
        %v5088 = vshrl.u32 %v5087, 5
        %v5089 = vand.u32 %v5087, 31
        %v5090 = vsub.s32 32, %v5089
        %v5091 = vshrl.u32 683565275, %v5090
        %v5092 = vshll.u32 683565275, %v5089
        %v5093 = vshrl.u32 2475754826, %v5090
        %v5094 = vor.u32 %v5092, %v5093
        %v5095 = vshll.u32 2475754826, %v5089
        %v5096 = vshrl.u32 2131351028, %v5090
        %v5097 = vor.u32 %v5095, %v5096
        %v5098 = vshll.u32 2131351028, %v5089
        %v5099 = vshrl.u32 2102212464, %v5090
        %v5100 = vor.u32 %v5098, %v5099
        %v5101 = vshll.u32 2102212464, %v5089
        %v5102 = vshrl.u32 920167782, %v5090
        %v5103 = vor.u32 %v5101, %v5102
        %v5104 = vshll.u32 920167782, %v5089
        %v5105 = vshrl.u32 1326507024, %v5090
        %v5106 = vor.u32 %v5104, %v5105
        %vm5107 = vcmp.lt.s32.totalorder %v5088, 1
        %vm5108 = vcmp.lt.s32.totalorder %v5088, 2
        %vm5109 = vcmp.lt.s32.totalorder %v5088, 3
        %vm5110 = vcmp.lt.s32.totalorder %v5088, 4
        %v5111 = vsel %vm5107, %v5091, %v5094
        %v5112 = vsel %vm5110, %v5100, 2102212464
        %v5113 = vsel %vm5109, %v5097, %v5112
        %v5114 = vsel %vm5108, %v5111, %v5113
        %v5115 = vsel %vm5107, %v5094, %v5097
        %v5116 = vsel %vm5110, %v5103, 920167782
        %v5117 = vsel %vm5109, %v5100, %v5116
        %v5118 = vsel %vm5108, %v5115, %v5117
        %v5119 = vsel %vm5107, %v5097, %v5100
        %v5120 = vsel %vm5110, %v5106, 1326507024
        %v5121 = vsel %vm5109, %v5103, %v5120
        %v5122 = vsel %vm5108, %v5119, %v5121
        %v5123 = vshll.u32 %v5083, 8
        %v5124 = vmul.u32.u64.compose %v5123, %v5122
        %v5125 = vextract.low.u32 %v5124
        %v5126 = vextract.high.u32 %v5124
        %v5127 = vmul.u32.u64.compose %v5123, %v5118
        %v5128 = vextract.low.u32 %v5127
        %v5129 = vextract.high.u32 %v5127
        %v5130 = vmul.u32 %v5123, %v5114
        %v5131 = vadd.s32 %v5126, %v5128
        %vm5132 = vc.u32 %v5126, %v5128
        %v5133 = vadd.s32 %v5129, 1
        %v5134 = vsel %vm5132, %v5133, %v5129
        %v5135 = vadd.s32 %v5130, %v5134
        %v5136 = vadd.s32 %v5135, 536870912
        %v5137 = vshrl.u32 %v5136, 30
        %v5138 = vshll.u32 %v5137, 30
        %v5139 = vsub.s32 %v5135, %v5138
        %vm5140 = vcmp.lt.s32.totalorder %v5139, 0
        %v5141 = vsub.s32 0, %v5139
        %v5142 = vsel %vm5140, %v5141, %v5139
        %v5143 = vclz %v5142
        %v5144 = vsub.s32 %v5143, 2
        %vm5145 = vcmp.gt.s32.totalorder 0, %v5144
        %v5146 = vsel %vm5145, 0, %v5144
        %v5147 = vsub.s32 32, %v5146
        %v5148 = vshll.u32 %v5139, %v5146
        %v5149 = vshrl.u32 %v5131, %v5147
        %v5150 = vor.u32 %v5148, %v5149
        %v5151 = vsub.s32 4294967266, %v5146
        %v5152 = vadd.s32 %v5151, 127
        %v5153 = vshll.u32 %v5152, 23
        %v5154 = vor.u32 4788187, %v5153
        %v5155 = vand.u32 2147483647, %v5154
        %v5157 = vcvt.s32.f32 %v5150
        %v5158 = vmul.f32 %v5157, %v5155
        %v5159 = vxor.u32 %v5158, 2147483648
        %v5160 = vsel %vm5077, %v5159, %v5158
        %v5161 = vsub.s32 4, %v5137
        %v5162 = vsel %vm5077, %v5161, %v5137
        %v5163 = vsel %vm5076, %v4327, %v5160
        %v5164 = vsel %vm5076, 0, %v5162
        %v5165 = vcosq.f32.pop %v5163
        %v5166 = vsinq.f32.pop %v5163
        %vm5167 = vweird.f32 %v4327
        %v5168 = vadd.s32 %v5164, 3
        %v5169 = vand.u32 %v5168, 3
        %vm5170 = vcmp.lt.s32.totalorder %v5169, 2
        %vm5171 = vcmp.eq.s32.totalorder %v5169, 0
        %v5172 = vxor.u32 %v5166, 2147483648
        %v5173 = vsel %vm5171, %v5165, %v5172
        %vm5174 = vcmp.eq.s32.totalorder %v5169, 2
        %v5175 = vxor.u32 %v5165, 2147483648
        %v5176 = vsel %vm5174, %v5175, %v5166
        %v5177 = vsel %vm5170, %v5173, %v5176
        %v5178 = vsel %vm5167, nan, %v5177
        %v5179 = vand.u32 2147483647, %v4064
        %vm5180 = vcmp.le.f32.partialorder %v5179, 0.7853982
        %vm5181 = vcmp.lt.s32.totalorder %v4064, 0
        %v5182 = vand.u32 %v4064, 2139095040
        %v5183 = vshrl.u32 %v5182, 23
        %v5184 = vsub.s32 %v5183, 127
        %v5185 = vand.u32 2147483647, %v4064
        %v5186 = vand.u32 %v5185, 8388607
        %v5187 = vor.u32 %v5186, 8388608
        %v5188 = vsub.s32 0, %v5187
        %v5189 = vadd.s32 %v5184, 1
        %vm5190 = vcmp.gt.s32.totalorder %v5189, 0
        %v5191 = vsel %vm5190, %v5189, 0
        %v5192 = vshrl.u32 %v5191, 5
        %v5193 = vand.u32 %v5191, 31
        %v5194 = vsub.s32 32, %v5193
        %v5195 = vshrl.u32 683565275, %v5194
        %v5196 = vshll.u32 683565275, %v5193
        %v5197 = vshrl.u32 2475754826, %v5194
        %v5198 = vor.u32 %v5196, %v5197
        %v5199 = vshll.u32 2475754826, %v5193
        %v5200 = vshrl.u32 2131351028, %v5194
        %v5201 = vor.u32 %v5199, %v5200
        %v5202 = vshll.u32 2131351028, %v5193
        %v5203 = vshrl.u32 2102212464, %v5194
        %v5204 = vor.u32 %v5202, %v5203
        %v5205 = vshll.u32 2102212464, %v5193
        %v5206 = vshrl.u32 920167782, %v5194
        %v5207 = vor.u32 %v5205, %v5206
        %v5208 = vshll.u32 920167782, %v5193
        %v5209 = vshrl.u32 1326507024, %v5194
        %v5210 = vor.u32 %v5208, %v5209
        %vm5211 = vcmp.lt.s32.totalorder %v5192, 1
        %vm5212 = vcmp.lt.s32.totalorder %v5192, 2
        %vm5213 = vcmp.lt.s32.totalorder %v5192, 3
        %vm5214 = vcmp.lt.s32.totalorder %v5192, 4
        %v5215 = vsel %vm5211, %v5195, %v5198
        %v5216 = vsel %vm5214, %v5204, 2102212464
        %v5217 = vsel %vm5213, %v5201, %v5216
        %v5218 = vsel %vm5212, %v5215, %v5217
        %v5219 = vsel %vm5211, %v5198, %v5201
        %v5220 = vsel %vm5214, %v5207, 920167782
        %v5221 = vsel %vm5213, %v5204, %v5220
        %v5222 = vsel %vm5212, %v5219, %v5221
        %v5223 = vsel %vm5211, %v5201, %v5204
        %v5224 = vsel %vm5214, %v5210, 1326507024
        %v5225 = vsel %vm5213, %v5207, %v5224
        %v5226 = vsel %vm5212, %v5223, %v5225
        %v5227 = vshll.u32 %v5187, 8
        %v5228 = vmul.u32.u64.compose %v5227, %v5226
        %v5229 = vextract.low.u32 %v5228
        %v5230 = vextract.high.u32 %v5228
        %v5231 = vmul.u32.u64.compose %v5227, %v5222
        %v5232 = vextract.low.u32 %v5231
        %v5233 = vextract.high.u32 %v5231
        %v5234 = vmul.u32 %v5227, %v5218
        %v5235 = vadd.s32 %v5230, %v5232
        %vm5236 = vc.u32 %v5230, %v5232
        %v5237 = vadd.s32 %v5233, 1
        %v5238 = vsel %vm5236, %v5237, %v5233
        %v5239 = vadd.s32 %v5234, %v5238
        %v5240 = vadd.s32 %v5239, 536870912
        %v5241 = vshrl.u32 %v5240, 30
        %v5242 = vshll.u32 %v5241, 30
        %v5243 = vsub.s32 %v5239, %v5242
        %vm5244 = vcmp.lt.s32.totalorder %v5243, 0
        %v5245 = vsub.s32 0, %v5243
        %v5246 = vsel %vm5244, %v5245, %v5243
        %v5247 = vclz %v5246
        %v5248 = vsub.s32 %v5247, 2
        %vm5249 = vcmp.gt.s32.totalorder 0, %v5248
        %v5250 = vsel %vm5249, 0, %v5248
        %v5251 = vsub.s32 32, %v5250
        %v5252 = vshll.u32 %v5243, %v5250
        %v5253 = vshrl.u32 %v5235, %v5251
        %v5254 = vor.u32 %v5252, %v5253
        %v5255 = vsub.s32 4294967266, %v5250
        %v5256 = vadd.s32 %v5255, 127
        %v5257 = vshll.u32 %v5256, 23
        %v5258 = vor.u32 4788187, %v5257
        %v5259 = vand.u32 2147483647, %v5258
        %v5261 = vcvt.s32.f32 %v5254
        %v5262 = vmul.f32 %v5261, %v5259
        %v5263 = vxor.u32 %v5262, 2147483648
        %v5264 = vsel %vm5181, %v5263, %v5262
        %v5265 = vsub.s32 4, %v5241
        %v5266 = vsel %vm5181, %v5265, %v5241
        %v5267 = vsel %vm5180, %v4064, %v5264
        %v5268 = vsel %vm5180, 0, %v5266
        %v5269 = vcosq.f32.pop %v5267
        %v5270 = vsinq.f32.pop %v5267
        %vm5271 = vweird.f32 %v4064
        %v5272 = vadd.s32 %v5268, 3
        %v5273 = vand.u32 %v5272, 3
        %vm5274 = vcmp.lt.s32.totalorder %v5273, 2
        %vm5275 = vcmp.eq.s32.totalorder %v5273, 0
        %v5276 = vxor.u32 %v5270, 2147483648
        %v5277 = vsel %vm5275, %v5269, %v5276
        %vm5278 = vcmp.eq.s32.totalorder %v5273, 2
        %v5279 = vxor.u32 %v5269, 2147483648
        %v5280 = vsel %vm5278, %v5279, %v5270
        %v5281 = vsel %vm5274, %v5277, %v5280
        %v5282 = vsel %vm5271, nan, %v5281
        %v5283 = vand.u32 2147483647, %v4066
        %vm5284 = vcmp.le.f32.partialorder %v5283, 0.7853982
        %vm5285 = vcmp.lt.s32.totalorder %v4066, 0
        %v5286 = vand.u32 %v4066, 2139095040
        %v5287 = vshrl.u32 %v5286, 23
        %v5288 = vsub.s32 %v5287, 127
        %v5289 = vand.u32 2147483647, %v4066
        %v5290 = vand.u32 %v5289, 8388607
        %v5291 = vor.u32 %v5290, 8388608
        %v5292 = vsub.s32 0, %v5291
        %v5293 = vadd.s32 %v5288, 1
        %vm5294 = vcmp.gt.s32.totalorder %v5293, 0
        %v5295 = vsel %vm5294, %v5293, 0
        %v5296 = vshrl.u32 %v5295, 5
        %v5297 = vand.u32 %v5295, 31
        %v5298 = vsub.s32 32, %v5297
        %v5299 = vshrl.u32 683565275, %v5298
        %v5300 = vshll.u32 683565275, %v5297
        %v5301 = vshrl.u32 2475754826, %v5298
        %v5302 = vor.u32 %v5300, %v5301
        %v5303 = vshll.u32 2475754826, %v5297
        %v5304 = vshrl.u32 2131351028, %v5298
        %v5305 = vor.u32 %v5303, %v5304
        %v5306 = vshll.u32 2131351028, %v5297
        %v5307 = vshrl.u32 2102212464, %v5298
        %v5308 = vor.u32 %v5306, %v5307
        %v5309 = vshll.u32 2102212464, %v5297
        %v5310 = vshrl.u32 920167782, %v5298
        %v5311 = vor.u32 %v5309, %v5310
        %v5312 = vshll.u32 920167782, %v5297
        %v5313 = vshrl.u32 1326507024, %v5298
        %v5314 = vor.u32 %v5312, %v5313
        %vm5315 = vcmp.lt.s32.totalorder %v5296, 1
        %vm5316 = vcmp.lt.s32.totalorder %v5296, 2
        %vm5317 = vcmp.lt.s32.totalorder %v5296, 3
        %vm5318 = vcmp.lt.s32.totalorder %v5296, 4
        %v5319 = vsel %vm5315, %v5299, %v5302
        %v5320 = vsel %vm5318, %v5308, 2102212464
        %v5321 = vsel %vm5317, %v5305, %v5320
        %v5322 = vsel %vm5316, %v5319, %v5321
        %v5323 = vsel %vm5315, %v5302, %v5305
        %v5324 = vsel %vm5318, %v5311, 920167782
        %v5325 = vsel %vm5317, %v5308, %v5324
        %v5326 = vsel %vm5316, %v5323, %v5325
        %v5327 = vsel %vm5315, %v5305, %v5308
        %v5328 = vsel %vm5318, %v5314, 1326507024
        %v5329 = vsel %vm5317, %v5311, %v5328
        %v5330 = vsel %vm5316, %v5327, %v5329
        %v5331 = vshll.u32 %v5291, 8
        %v5332 = vmul.u32.u64.compose %v5331, %v5330
        %v5333 = vextract.low.u32 %v5332
        %v5334 = vextract.high.u32 %v5332
        %v5335 = vmul.u32.u64.compose %v5331, %v5326
        %v5336 = vextract.low.u32 %v5335
        %v5337 = vextract.high.u32 %v5335
        %v5338 = vmul.u32 %v5331, %v5322
        %v5339 = vadd.s32 %v5334, %v5336
        %vm5340 = vc.u32 %v5334, %v5336
        %v5341 = vadd.s32 %v5337, 1
        %v5342 = vsel %vm5340, %v5341, %v5337
        %v5343 = vadd.s32 %v5338, %v5342
        %v5344 = vadd.s32 %v5343, 536870912
        %v5345 = vshrl.u32 %v5344, 30
        %v5346 = vshll.u32 %v5345, 30
        %v5347 = vsub.s32 %v5343, %v5346
        %vm5348 = vcmp.lt.s32.totalorder %v5347, 0
        %v5349 = vsub.s32 0, %v5347
        %v5350 = vsel %vm5348, %v5349, %v5347
        %v5351 = vclz %v5350
        %v5352 = vsub.s32 %v5351, 2
        %vm5353 = vcmp.gt.s32.totalorder 0, %v5352
        %v5354 = vsel %vm5353, 0, %v5352
        %v5355 = vsub.s32 32, %v5354
        %v5356 = vshll.u32 %v5347, %v5354
        %v5357 = vshrl.u32 %v5339, %v5355
        %v5358 = vor.u32 %v5356, %v5357
        %v5359 = vsub.s32 4294967266, %v5354
        %v5360 = vadd.s32 %v5359, 127
        %v5361 = vshll.u32 %v5360, 23
        %v5362 = vor.u32 4788187, %v5361
        %v5363 = vand.u32 2147483647, %v5362
        %v5365 = vcvt.s32.f32 %v5358
        %v5366 = vmul.f32 %v5365, %v5363
        %v5367 = vxor.u32 %v5366, 2147483648
        %v5368 = vsel %vm5285, %v5367, %v5366
        %v5369 = vsub.s32 4, %v5345
        %v5370 = vsel %vm5285, %v5369, %v5345
        %v5371 = vsel %vm5284, %v4066, %v5368
        %v5372 = vsel %vm5284, 0, %v5370
        %v5373 = vcosq.f32.pop %v5371
        %v5374 = vsinq.f32.pop %v5371
        %vm5375 = vweird.f32 %v4066
        %v5376 = vadd.s32 %v5372, 3
        %v5377 = vand.u32 %v5376, 3
        %vm5378 = vcmp.lt.s32.totalorder %v5377, 2
        %vm5379 = vcmp.eq.s32.totalorder %v5377, 0
        %v5380 = vxor.u32 %v5374, 2147483648
        %v5381 = vsel %vm5379, %v5373, %v5380
        %vm5382 = vcmp.eq.s32.totalorder %v5377, 2
        %v5383 = vxor.u32 %v5373, 2147483648
        %v5384 = vsel %vm5382, %v5383, %v5374
        %v5385 = vsel %vm5378, %v5381, %v5384
        %v5386 = vsel %vm5375, nan, %v5385
        %v5387 = vand.u32 2147483647, %v4153
        %vm5388 = vcmp.le.f32.partialorder %v5387, 0.7853982
        %vm5389 = vcmp.lt.s32.totalorder %v4153, 0
        %v5390 = vand.u32 %v4153, 2139095040
        %v5391 = vshrl.u32 %v5390, 23
        %v5392 = vsub.s32 %v5391, 127
        %v5393 = vand.u32 2147483647, %v4153
        %v5394 = vand.u32 %v5393, 8388607
        %v5395 = vor.u32 %v5394, 8388608
        %v5396 = vsub.s32 0, %v5395
        %v5397 = vadd.s32 %v5392, 1
        %vm5398 = vcmp.gt.s32.totalorder %v5397, 0
        %v5399 = vsel %vm5398, %v5397, 0
        %v5400 = vshrl.u32 %v5399, 5
        %v5401 = vand.u32 %v5399, 31
        %v5402 = vsub.s32 32, %v5401
        %v5403 = vshrl.u32 683565275, %v5402
        %v5404 = vshll.u32 683565275, %v5401
        %v5405 = vshrl.u32 2475754826, %v5402
        %v5406 = vor.u32 %v5404, %v5405
        %v5407 = vshll.u32 2475754826, %v5401
        %v5408 = vshrl.u32 2131351028, %v5402
        %v5409 = vor.u32 %v5407, %v5408
        %v5410 = vshll.u32 2131351028, %v5401
        %v5411 = vshrl.u32 2102212464, %v5402
        %v5412 = vor.u32 %v5410, %v5411
        %v5413 = vshll.u32 2102212464, %v5401
        %v5414 = vshrl.u32 920167782, %v5402
        %v5415 = vor.u32 %v5413, %v5414
        %v5416 = vshll.u32 920167782, %v5401
        %v5417 = vshrl.u32 1326507024, %v5402
        %v5418 = vor.u32 %v5416, %v5417
        %vm5419 = vcmp.lt.s32.totalorder %v5400, 1
        %vm5420 = vcmp.lt.s32.totalorder %v5400, 2
        %vm5421 = vcmp.lt.s32.totalorder %v5400, 3
        %vm5422 = vcmp.lt.s32.totalorder %v5400, 4
        %v5423 = vsel %vm5419, %v5403, %v5406
        %v5424 = vsel %vm5422, %v5412, 2102212464
        %v5425 = vsel %vm5421, %v5409, %v5424
        %v5426 = vsel %vm5420, %v5423, %v5425
        %v5427 = vsel %vm5419, %v5406, %v5409
        %v5428 = vsel %vm5422, %v5415, 920167782
        %v5429 = vsel %vm5421, %v5412, %v5428
        %v5430 = vsel %vm5420, %v5427, %v5429
        %v5431 = vsel %vm5419, %v5409, %v5412
        %v5432 = vsel %vm5422, %v5418, 1326507024
        %v5433 = vsel %vm5421, %v5415, %v5432
        %v5434 = vsel %vm5420, %v5431, %v5433
        %v5435 = vshll.u32 %v5395, 8
        %v5436 = vmul.u32.u64.compose %v5435, %v5434
        %v5437 = vextract.low.u32 %v5436
        %v5438 = vextract.high.u32 %v5436
        %v5439 = vmul.u32.u64.compose %v5435, %v5430
        %v5440 = vextract.low.u32 %v5439
        %v5441 = vextract.high.u32 %v5439
        %v5442 = vmul.u32 %v5435, %v5426
        %v5443 = vadd.s32 %v5438, %v5440
        %vm5444 = vc.u32 %v5438, %v5440
        %v5445 = vadd.s32 %v5441, 1
        %v5446 = vsel %vm5444, %v5445, %v5441
        %v5447 = vadd.s32 %v5442, %v5446
        %v5448 = vadd.s32 %v5447, 536870912
        %v5449 = vshrl.u32 %v5448, 30
        %v5450 = vshll.u32 %v5449, 30
        %v5451 = vsub.s32 %v5447, %v5450
        %vm5452 = vcmp.lt.s32.totalorder %v5451, 0
        %v5453 = vsub.s32 0, %v5451
        %v5454 = vsel %vm5452, %v5453, %v5451
        %v5455 = vclz %v5454
        %v5456 = vsub.s32 %v5455, 2
        %vm5457 = vcmp.gt.s32.totalorder 0, %v5456
        %v5458 = vsel %vm5457, 0, %v5456
        %v5459 = vsub.s32 32, %v5458
        %v5460 = vshll.u32 %v5451, %v5458
        %v5461 = vshrl.u32 %v5443, %v5459
        %v5462 = vor.u32 %v5460, %v5461
        %v5463 = vsub.s32 4294967266, %v5458
        %v5464 = vadd.s32 %v5463, 127
        %v5465 = vshll.u32 %v5464, 23
        %v5466 = vor.u32 4788187, %v5465
        %v5467 = vand.u32 2147483647, %v5466
        %v5469 = vcvt.s32.f32 %v5462
        %v5470 = vmul.f32 %v5469, %v5467
        %v5471 = vxor.u32 %v5470, 2147483648
        %v5472 = vsel %vm5389, %v5471, %v5470
        %v5473 = vsub.s32 4, %v5449
        %v5474 = vsel %vm5389, %v5473, %v5449
        %v5475 = vsel %vm5388, %v4153, %v5472
        %v5476 = vsel %vm5388, 0, %v5474
        %v5477 = vcosq.f32.pop %v5475
        %v5478 = vsinq.f32.pop %v5475
        %vm5479 = vweird.f32 %v4153
        %v5480 = vadd.s32 %v5476, 3
        %v5481 = vand.u32 %v5480, 3
        %vm5482 = vcmp.lt.s32.totalorder %v5481, 2
        %vm5483 = vcmp.eq.s32.totalorder %v5481, 0
        %v5484 = vxor.u32 %v5478, 2147483648
        %v5485 = vsel %vm5483, %v5477, %v5484
        %vm5486 = vcmp.eq.s32.totalorder %v5481, 2
        %v5487 = vxor.u32 %v5477, 2147483648
        %v5488 = vsel %vm5486, %v5487, %v5478
        %v5489 = vsel %vm5482, %v5485, %v5488
        %v5490 = vsel %vm5479, nan, %v5489
        %v5491 = vand.u32 2147483647, %v4155
        %vm5492 = vcmp.le.f32.partialorder %v5491, 0.7853982
        %vm5493 = vcmp.lt.s32.totalorder %v4155, 0
        %v5494 = vand.u32 %v4155, 2139095040
        %v5495 = vshrl.u32 %v5494, 23
        %v5496 = vsub.s32 %v5495, 127
        %v5497 = vand.u32 2147483647, %v4155
        %v5498 = vand.u32 %v5497, 8388607
        %v5499 = vor.u32 %v5498, 8388608
        %v5500 = vsub.s32 0, %v5499
        %v5501 = vadd.s32 %v5496, 1
        %vm5502 = vcmp.gt.s32.totalorder %v5501, 0
        %v5503 = vsel %vm5502, %v5501, 0
        %v5504 = vshrl.u32 %v5503, 5
        %v5505 = vand.u32 %v5503, 31
        %v5506 = vsub.s32 32, %v5505
        %v5507 = vshrl.u32 683565275, %v5506
        %v5508 = vshll.u32 683565275, %v5505
        %v5509 = vshrl.u32 2475754826, %v5506
        %v5510 = vor.u32 %v5508, %v5509
        %v5511 = vshll.u32 2475754826, %v5505
        %v5512 = vshrl.u32 2131351028, %v5506
        %v5513 = vor.u32 %v5511, %v5512
        %v5514 = vshll.u32 2131351028, %v5505
        %v5515 = vshrl.u32 2102212464, %v5506
        %v5516 = vor.u32 %v5514, %v5515
        %v5517 = vshll.u32 2102212464, %v5505
        %v5518 = vshrl.u32 920167782, %v5506
        %v5519 = vor.u32 %v5517, %v5518
        %v5520 = vshll.u32 920167782, %v5505
        %v5521 = vshrl.u32 1326507024, %v5506
        %v5522 = vor.u32 %v5520, %v5521
        %vm5523 = vcmp.lt.s32.totalorder %v5504, 1
        %vm5524 = vcmp.lt.s32.totalorder %v5504, 2
        %vm5525 = vcmp.lt.s32.totalorder %v5504, 3
        %vm5526 = vcmp.lt.s32.totalorder %v5504, 4
        %v5527 = vsel %vm5523, %v5507, %v5510
        %v5528 = vsel %vm5526, %v5516, 2102212464
        %v5529 = vsel %vm5525, %v5513, %v5528
        %v5530 = vsel %vm5524, %v5527, %v5529
        %v5531 = vsel %vm5523, %v5510, %v5513
        %v5532 = vsel %vm5526, %v5519, 920167782
        %v5533 = vsel %vm5525, %v5516, %v5532
        %v5534 = vsel %vm5524, %v5531, %v5533
        %v5535 = vsel %vm5523, %v5513, %v5516
        %v5536 = vsel %vm5526, %v5522, 1326507024
        %v5537 = vsel %vm5525, %v5519, %v5536
        %v5538 = vsel %vm5524, %v5535, %v5537
        %v5539 = vshll.u32 %v5499, 8
        %v5540 = vmul.u32.u64.compose %v5539, %v5538
        %v5541 = vextract.low.u32 %v5540
        %v5542 = vextract.high.u32 %v5540
        %v5543 = vmul.u32.u64.compose %v5539, %v5534
        %v5544 = vextract.low.u32 %v5543
        %v5545 = vextract.high.u32 %v5543
        %v5546 = vmul.u32 %v5539, %v5530
        %v5547 = vadd.s32 %v5542, %v5544
        %vm5548 = vc.u32 %v5542, %v5544
        %v5549 = vadd.s32 %v5545, 1
        %v5550 = vsel %vm5548, %v5549, %v5545
        %v5551 = vadd.s32 %v5546, %v5550
        %v5552 = vadd.s32 %v5551, 536870912
        %v5553 = vshrl.u32 %v5552, 30
        %v5554 = vshll.u32 %v5553, 30
        %v5555 = vsub.s32 %v5551, %v5554
        %vm5556 = vcmp.lt.s32.totalorder %v5555, 0
        %v5557 = vsub.s32 0, %v5555
        %v5558 = vsel %vm5556, %v5557, %v5555
        %v5559 = vclz %v5558
        %v5560 = vsub.s32 %v5559, 2
        %vm5561 = vcmp.gt.s32.totalorder 0, %v5560
        %v5562 = vsel %vm5561, 0, %v5560
        %v5563 = vsub.s32 32, %v5562
        %v5564 = vshll.u32 %v5555, %v5562
        %v5565 = vshrl.u32 %v5547, %v5563
        %v5566 = vor.u32 %v5564, %v5565
        %v5567 = vsub.s32 4294967266, %v5562
        %v5568 = vadd.s32 %v5567, 127
        %v5569 = vshll.u32 %v5568, 23
        %v5570 = vor.u32 4788187, %v5569
        %v5571 = vand.u32 2147483647, %v5570
        %v5573 = vcvt.s32.f32 %v5566
        %v5574 = vmul.f32 %v5573, %v5571
        %v5575 = vxor.u32 %v5574, 2147483648
        %v5576 = vsel %vm5493, %v5575, %v5574
        %v5577 = vsub.s32 4, %v5553
        %v5578 = vsel %vm5493, %v5577, %v5553
        %v5579 = vsel %vm5492, %v4155, %v5576
        %v5580 = vsel %vm5492, 0, %v5578
        %v5581 = vcosq.f32.pop %v5579
        %v5582 = vsinq.f32.pop %v5579
        %vm5583 = vweird.f32 %v4155
        %v5584 = vadd.s32 %v5580, 3
        %v5585 = vand.u32 %v5584, 3
        %vm5586 = vcmp.lt.s32.totalorder %v5585, 2
        %vm5587 = vcmp.eq.s32.totalorder %v5585, 0
        %v5588 = vxor.u32 %v5582, 2147483648
        %v5589 = vsel %vm5587, %v5581, %v5588
        %vm5590 = vcmp.eq.s32.totalorder %v5585, 2
        %v5591 = vxor.u32 %v5581, 2147483648
        %v5592 = vsel %vm5590, %v5591, %v5582
        %v5593 = vsel %vm5586, %v5589, %v5592
        %v5594 = vsel %vm5583, nan, %v5593
        %v5595 = vand.u32 2147483647, %v4242
        %vm5596 = vcmp.le.f32.partialorder %v5595, 0.7853982
        %vm5597 = vcmp.lt.s32.totalorder %v4242, 0
        %v5598 = vand.u32 %v4242, 2139095040
        %v5599 = vshrl.u32 %v5598, 23
        %v5600 = vsub.s32 %v5599, 127
        %v5601 = vand.u32 2147483647, %v4242
        %v5602 = vand.u32 %v5601, 8388607
        %v5603 = vor.u32 %v5602, 8388608
        %v5604 = vsub.s32 0, %v5603
        %v5605 = vadd.s32 %v5600, 1
        %vm5606 = vcmp.gt.s32.totalorder %v5605, 0
        %v5607 = vsel %vm5606, %v5605, 0
        %v5608 = vshrl.u32 %v5607, 5
        %v5609 = vand.u32 %v5607, 31
        %v5610 = vsub.s32 32, %v5609
        %v5611 = vshrl.u32 683565275, %v5610
        %v5612 = vshll.u32 683565275, %v5609
        %v5613 = vshrl.u32 2475754826, %v5610
        %v5614 = vor.u32 %v5612, %v5613
        %v5615 = vshll.u32 2475754826, %v5609
        %v5616 = vshrl.u32 2131351028, %v5610
        %v5617 = vor.u32 %v5615, %v5616
        %v5618 = vshll.u32 2131351028, %v5609
        %v5619 = vshrl.u32 2102212464, %v5610
        %v5620 = vor.u32 %v5618, %v5619
        %v5621 = vshll.u32 2102212464, %v5609
        %v5622 = vshrl.u32 920167782, %v5610
        %v5623 = vor.u32 %v5621, %v5622
        %v5624 = vshll.u32 920167782, %v5609
        %v5625 = vshrl.u32 1326507024, %v5610
        %v5626 = vor.u32 %v5624, %v5625
        %vm5627 = vcmp.lt.s32.totalorder %v5608, 1
        %vm5628 = vcmp.lt.s32.totalorder %v5608, 2
        %vm5629 = vcmp.lt.s32.totalorder %v5608, 3
        %vm5630 = vcmp.lt.s32.totalorder %v5608, 4
        %v5631 = vsel %vm5627, %v5611, %v5614
        %v5632 = vsel %vm5630, %v5620, 2102212464
        %v5633 = vsel %vm5629, %v5617, %v5632
        %v5634 = vsel %vm5628, %v5631, %v5633
        %v5635 = vsel %vm5627, %v5614, %v5617
        %v5636 = vsel %vm5630, %v5623, 920167782
        %v5637 = vsel %vm5629, %v5620, %v5636
        %v5638 = vsel %vm5628, %v5635, %v5637
        %v5639 = vsel %vm5627, %v5617, %v5620
        %v5640 = vsel %vm5630, %v5626, 1326507024
        %v5641 = vsel %vm5629, %v5623, %v5640
        %v5642 = vsel %vm5628, %v5639, %v5641
        %v5643 = vshll.u32 %v5603, 8
        %v5644 = vmul.u32.u64.compose %v5643, %v5642
        %v5645 = vextract.low.u32 %v5644
        %v5646 = vextract.high.u32 %v5644
        %v5647 = vmul.u32.u64.compose %v5643, %v5638
        %v5648 = vextract.low.u32 %v5647
        %v5649 = vextract.high.u32 %v5647
        %v5650 = vmul.u32 %v5643, %v5634
        %v5651 = vadd.s32 %v5646, %v5648
        %vm5652 = vc.u32 %v5646, %v5648
        %v5653 = vadd.s32 %v5649, 1
        %v5654 = vsel %vm5652, %v5653, %v5649
        %v5655 = vadd.s32 %v5650, %v5654
        %v5656 = vadd.s32 %v5655, 536870912
        %v5657 = vshrl.u32 %v5656, 30
        %v5658 = vshll.u32 %v5657, 30
        %v5659 = vsub.s32 %v5655, %v5658
        %vm5660 = vcmp.lt.s32.totalorder %v5659, 0
        %v5661 = vsub.s32 0, %v5659
        %v5662 = vsel %vm5660, %v5661, %v5659
        %v5663 = vclz %v5662
        %v5664 = vsub.s32 %v5663, 2
        %vm5665 = vcmp.gt.s32.totalorder 0, %v5664
        %v5666 = vsel %vm5665, 0, %v5664
        %v5667 = vsub.s32 32, %v5666
        %v5668 = vshll.u32 %v5659, %v5666
        %v5669 = vshrl.u32 %v5651, %v5667
        %v5670 = vor.u32 %v5668, %v5669
        %v5671 = vsub.s32 4294967266, %v5666
        %v5672 = vadd.s32 %v5671, 127
        %v5673 = vshll.u32 %v5672, 23
        %v5674 = vor.u32 4788187, %v5673
        %v5675 = vand.u32 2147483647, %v5674
        %v5677 = vcvt.s32.f32 %v5670
        %v5678 = vmul.f32 %v5677, %v5675
        %v5679 = vxor.u32 %v5678, 2147483648
        %v5680 = vsel %vm5597, %v5679, %v5678
        %v5681 = vsub.s32 4, %v5657
        %v5682 = vsel %vm5597, %v5681, %v5657
        %v5683 = vsel %vm5596, %v4242, %v5680
        %v5684 = vsel %vm5596, 0, %v5682
        %v5685 = vcosq.f32.pop %v5683
        %v5686 = vsinq.f32.pop %v5683
        %vm5687 = vweird.f32 %v4242
        %v5688 = vadd.s32 %v5684, 3
        %v5689 = vand.u32 %v5688, 3
        %vm5690 = vcmp.lt.s32.totalorder %v5689, 2
        %vm5691 = vcmp.eq.s32.totalorder %v5689, 0
        %v5692 = vxor.u32 %v5686, 2147483648
        %v5693 = vsel %vm5691, %v5685, %v5692
        %vm5694 = vcmp.eq.s32.totalorder %v5689, 2
        %v5695 = vxor.u32 %v5685, 2147483648
        %v5696 = vsel %vm5694, %v5695, %v5686
        %v5697 = vsel %vm5690, %v5693, %v5696
        %v5698 = vsel %vm5687, nan, %v5697
        %v5699 = vand.u32 2147483647, %v4244
        %vm5700 = vcmp.le.f32.partialorder %v5699, 0.7853982
        %vm5701 = vcmp.lt.s32.totalorder %v4244, 0
        %v5702 = vand.u32 %v4244, 2139095040
        %v5703 = vshrl.u32 %v5702, 23
        %v5704 = vsub.s32 %v5703, 127
        %v5705 = vand.u32 2147483647, %v4244
        %v5706 = vand.u32 %v5705, 8388607
        %v5707 = vor.u32 %v5706, 8388608
        %v5708 = vsub.s32 0, %v5707
        %v5709 = vadd.s32 %v5704, 1
        %vm5710 = vcmp.gt.s32.totalorder %v5709, 0
        %v5711 = vsel %vm5710, %v5709, 0
        %v5712 = vshrl.u32 %v5711, 5
        %v5713 = vand.u32 %v5711, 31
        %v5714 = vsub.s32 32, %v5713
        %v5715 = vshrl.u32 683565275, %v5714
        %v5716 = vshll.u32 683565275, %v5713
        %v5717 = vshrl.u32 2475754826, %v5714
        %v5718 = vor.u32 %v5716, %v5717
        %v5719 = vshll.u32 2475754826, %v5713
        %v5720 = vshrl.u32 2131351028, %v5714
        %v5721 = vor.u32 %v5719, %v5720
        %v5722 = vshll.u32 2131351028, %v5713
        %v5723 = vshrl.u32 2102212464, %v5714
        %v5724 = vor.u32 %v5722, %v5723
        %v5725 = vshll.u32 2102212464, %v5713
        %v5726 = vshrl.u32 920167782, %v5714
        %v5727 = vor.u32 %v5725, %v5726
        %v5728 = vshll.u32 920167782, %v5713
        %v5729 = vshrl.u32 1326507024, %v5714
        %v5730 = vor.u32 %v5728, %v5729
        %vm5731 = vcmp.lt.s32.totalorder %v5712, 1
        %vm5732 = vcmp.lt.s32.totalorder %v5712, 2
        %vm5733 = vcmp.lt.s32.totalorder %v5712, 3
        %vm5734 = vcmp.lt.s32.totalorder %v5712, 4
        %v5735 = vsel %vm5731, %v5715, %v5718
        %v5736 = vsel %vm5734, %v5724, 2102212464
        %v5737 = vsel %vm5733, %v5721, %v5736
        %v5738 = vsel %vm5732, %v5735, %v5737
        %v5739 = vsel %vm5731, %v5718, %v5721
        %v5740 = vsel %vm5734, %v5727, 920167782
        %v5741 = vsel %vm5733, %v5724, %v5740
        %v5742 = vsel %vm5732, %v5739, %v5741
        %v5743 = vsel %vm5731, %v5721, %v5724
        %v5744 = vsel %vm5734, %v5730, 1326507024
        %v5745 = vsel %vm5733, %v5727, %v5744
        %v5746 = vsel %vm5732, %v5743, %v5745
        %v5747 = vshll.u32 %v5707, 8
        %v5748 = vmul.u32.u64.compose %v5747, %v5746
        %v5749 = vextract.low.u32 %v5748
        %v5750 = vextract.high.u32 %v5748
        %v5751 = vmul.u32.u64.compose %v5747, %v5742
        %v5752 = vextract.low.u32 %v5751
        %v5753 = vextract.high.u32 %v5751
        %v5754 = vmul.u32 %v5747, %v5738
        %v5755 = vadd.s32 %v5750, %v5752
        %vm5756 = vc.u32 %v5750, %v5752
        %v5757 = vadd.s32 %v5753, 1
        %v5758 = vsel %vm5756, %v5757, %v5753
        %v5759 = vadd.s32 %v5754, %v5758
        %v5760 = vadd.s32 %v5759, 536870912
        %v5761 = vshrl.u32 %v5760, 30
        %v5762 = vshll.u32 %v5761, 30
        %v5763 = vsub.s32 %v5759, %v5762
        %vm5764 = vcmp.lt.s32.totalorder %v5763, 0
        %v5765 = vsub.s32 0, %v5763
        %v5766 = vsel %vm5764, %v5765, %v5763
        %v5767 = vclz %v5766
        %v5768 = vsub.s32 %v5767, 2
        %vm5769 = vcmp.gt.s32.totalorder 0, %v5768
        %v5770 = vsel %vm5769, 0, %v5768
        %v5771 = vsub.s32 32, %v5770
        %v5772 = vshll.u32 %v5763, %v5770
        %v5773 = vshrl.u32 %v5755, %v5771
        %v5774 = vor.u32 %v5772, %v5773
        %v5775 = vsub.s32 4294967266, %v5770
        %v5776 = vadd.s32 %v5775, 127
        %v5777 = vshll.u32 %v5776, 23
        %v5778 = vor.u32 4788187, %v5777
        %v5779 = vand.u32 2147483647, %v5778
        %v5781 = vcvt.s32.f32 %v5774
        %v5782 = vmul.f32 %v5781, %v5779
        %v5783 = vxor.u32 %v5782, 2147483648
        %v5784 = vsel %vm5701, %v5783, %v5782
        %v5785 = vsub.s32 4, %v5761
        %v5786 = vsel %vm5701, %v5785, %v5761
        %v5787 = vsel %vm5700, %v4244, %v5784
        %v5788 = vsel %vm5700, 0, %v5786
        %v5789 = vcosq.f32.pop %v5787
        %v5790 = vsinq.f32.pop %v5787
        %vm5791 = vweird.f32 %v4244
        %v5792 = vadd.s32 %v5788, 3
        %v5793 = vand.u32 %v5792, 3
        %vm5794 = vcmp.lt.s32.totalorder %v5793, 2
        %vm5795 = vcmp.eq.s32.totalorder %v5793, 0
        %v5796 = vxor.u32 %v5790, 2147483648
        %v5797 = vsel %vm5795, %v5789, %v5796
        %vm5798 = vcmp.eq.s32.totalorder %v5793, 2
        %v5799 = vxor.u32 %v5789, 2147483648
        %v5800 = vsel %vm5798, %v5799, %v5790
        %v5801 = vsel %vm5794, %v5797, %v5800
        %v5802 = vsel %vm5791, nan, %v5801
        %v5803 = vand.u32 2147483647, %v4331
        %vm5804 = vcmp.le.f32.partialorder %v5803, 0.7853982
        %vm5805 = vcmp.lt.s32.totalorder %v4331, 0
        %v5806 = vand.u32 %v4331, 2139095040
        %v5807 = vshrl.u32 %v5806, 23
        %v5808 = vsub.s32 %v5807, 127
        %v5809 = vand.u32 2147483647, %v4331
        %v5810 = vand.u32 %v5809, 8388607
        %v5811 = vor.u32 %v5810, 8388608
        %v5812 = vsub.s32 0, %v5811
        %v5813 = vadd.s32 %v5808, 1
        %vm5814 = vcmp.gt.s32.totalorder %v5813, 0
        %v5815 = vsel %vm5814, %v5813, 0
        %v5816 = vshrl.u32 %v5815, 5
        %v5817 = vand.u32 %v5815, 31
        %v5818 = vsub.s32 32, %v5817
        %v5819 = vshrl.u32 683565275, %v5818
        %v5820 = vshll.u32 683565275, %v5817
        %v5821 = vshrl.u32 2475754826, %v5818
        %v5822 = vor.u32 %v5820, %v5821
        %v5823 = vshll.u32 2475754826, %v5817
        %v5824 = vshrl.u32 2131351028, %v5818
        %v5825 = vor.u32 %v5823, %v5824
        %v5826 = vshll.u32 2131351028, %v5817
        %v5827 = vshrl.u32 2102212464, %v5818
        %v5828 = vor.u32 %v5826, %v5827
        %v5829 = vshll.u32 2102212464, %v5817
        %v5830 = vshrl.u32 920167782, %v5818
        %v5831 = vor.u32 %v5829, %v5830
        %v5832 = vshll.u32 920167782, %v5817
        %v5833 = vshrl.u32 1326507024, %v5818
        %v5834 = vor.u32 %v5832, %v5833
        %vm5835 = vcmp.lt.s32.totalorder %v5816, 1
        %vm5836 = vcmp.lt.s32.totalorder %v5816, 2
        %vm5837 = vcmp.lt.s32.totalorder %v5816, 3
        %vm5838 = vcmp.lt.s32.totalorder %v5816, 4
        %v5839 = vsel %vm5835, %v5819, %v5822
        %v5840 = vsel %vm5838, %v5828, 2102212464
        %v5841 = vsel %vm5837, %v5825, %v5840
        %v5842 = vsel %vm5836, %v5839, %v5841
        %v5843 = vsel %vm5835, %v5822, %v5825
        %v5844 = vsel %vm5838, %v5831, 920167782
        %v5845 = vsel %vm5837, %v5828, %v5844
        %v5846 = vsel %vm5836, %v5843, %v5845
        %v5847 = vsel %vm5835, %v5825, %v5828
        %v5848 = vsel %vm5838, %v5834, 1326507024
        %v5849 = vsel %vm5837, %v5831, %v5848
        %v5850 = vsel %vm5836, %v5847, %v5849
        %v5851 = vshll.u32 %v5811, 8
        %v5852 = vmul.u32.u64.compose %v5851, %v5850
        %v5853 = vextract.low.u32 %v5852
        %v5854 = vextract.high.u32 %v5852
        %v5855 = vmul.u32.u64.compose %v5851, %v5846
        %v5856 = vextract.low.u32 %v5855
        %v5857 = vextract.high.u32 %v5855
        %v5858 = vmul.u32 %v5851, %v5842
        %v5859 = vadd.s32 %v5854, %v5856
        %vm5860 = vc.u32 %v5854, %v5856
        %v5861 = vadd.s32 %v5857, 1
        %v5862 = vsel %vm5860, %v5861, %v5857
        %v5863 = vadd.s32 %v5858, %v5862
        %v5864 = vadd.s32 %v5863, 536870912
        %v5865 = vshrl.u32 %v5864, 30
        %v5866 = vshll.u32 %v5865, 30
        %v5867 = vsub.s32 %v5863, %v5866
        %vm5868 = vcmp.lt.s32.totalorder %v5867, 0
        %v5869 = vsub.s32 0, %v5867
        %v5870 = vsel %vm5868, %v5869, %v5867
        %v5871 = vclz %v5870
        %v5872 = vsub.s32 %v5871, 2
        %vm5873 = vcmp.gt.s32.totalorder 0, %v5872
        %v5874 = vsel %vm5873, 0, %v5872
        %v5875 = vsub.s32 32, %v5874
        %v5876 = vshll.u32 %v5867, %v5874
        %v5877 = vshrl.u32 %v5859, %v5875
        %v5878 = vor.u32 %v5876, %v5877
        %v5879 = vsub.s32 4294967266, %v5874
        %v5880 = vadd.s32 %v5879, 127
        %v5881 = vshll.u32 %v5880, 23
        %v5882 = vor.u32 4788187, %v5881
        %v5883 = vand.u32 2147483647, %v5882
        %v5885 = vcvt.s32.f32 %v5878
        %v5886 = vmul.f32 %v5885, %v5883
        %v5887 = vxor.u32 %v5886, 2147483648
        %v5888 = vsel %vm5805, %v5887, %v5886
        %v5889 = vsub.s32 4, %v5865
        %v5890 = vsel %vm5805, %v5889, %v5865
        %v5891 = vsel %vm5804, %v4331, %v5888
        %v5892 = vsel %vm5804, 0, %v5890
        %v5893 = vcosq.f32.pop %v5891
        %v5894 = vsinq.f32.pop %v5891
        %vm5895 = vweird.f32 %v4331
        %v5896 = vadd.s32 %v5892, 3
        %v5897 = vand.u32 %v5896, 3
        %vm5898 = vcmp.lt.s32.totalorder %v5897, 2
        %vm5899 = vcmp.eq.s32.totalorder %v5897, 0
        %v5900 = vxor.u32 %v5894, 2147483648
        %v5901 = vsel %vm5899, %v5893, %v5900
        %vm5902 = vcmp.eq.s32.totalorder %v5897, 2
        %v5903 = vxor.u32 %v5893, 2147483648
        %v5904 = vsel %vm5902, %v5903, %v5894
        %v5905 = vsel %vm5898, %v5901, %v5904
        %v5906 = vsel %vm5895, nan, %v5905
        %v5907 = vand.u32 2147483647, %v4333
        %vm5908 = vcmp.le.f32.partialorder %v5907, 0.7853982
        %vm5909 = vcmp.lt.s32.totalorder %v4333, 0
        %v5910 = vand.u32 %v4333, 2139095040
        %v5911 = vshrl.u32 %v5910, 23
        %v5912 = vsub.s32 %v5911, 127
        %v5913 = vand.u32 2147483647, %v4333
        %v5914 = vand.u32 %v5913, 8388607
        %v5915 = vor.u32 %v5914, 8388608
        %v5916 = vsub.s32 0, %v5915
        %v5917 = vadd.s32 %v5912, 1
        %vm5918 = vcmp.gt.s32.totalorder %v5917, 0
        %v5919 = vsel %vm5918, %v5917, 0
        %v5920 = vshrl.u32 %v5919, 5
        %v5921 = vand.u32 %v5919, 31
        %v5922 = vsub.s32 32, %v5921
        %v5923 = vshrl.u32 683565275, %v5922
        %v5924 = vshll.u32 683565275, %v5921
        %v5925 = vshrl.u32 2475754826, %v5922
        %v5926 = vor.u32 %v5924, %v5925
        %v5927 = vshll.u32 2475754826, %v5921
        %v5928 = vshrl.u32 2131351028, %v5922
        %v5929 = vor.u32 %v5927, %v5928
        %v5930 = vshll.u32 2131351028, %v5921
        %v5931 = vshrl.u32 2102212464, %v5922
        %v5932 = vor.u32 %v5930, %v5931
        %v5933 = vshll.u32 2102212464, %v5921
        %v5934 = vshrl.u32 920167782, %v5922
        %v5935 = vor.u32 %v5933, %v5934
        %v5936 = vshll.u32 920167782, %v5921
        %v5937 = vshrl.u32 1326507024, %v5922
        %v5938 = vor.u32 %v5936, %v5937
        %vm5939 = vcmp.lt.s32.totalorder %v5920, 1
        %vm5940 = vcmp.lt.s32.totalorder %v5920, 2
        %vm5941 = vcmp.lt.s32.totalorder %v5920, 3
        %vm5942 = vcmp.lt.s32.totalorder %v5920, 4
        %v5943 = vsel %vm5939, %v5923, %v5926
        %v5944 = vsel %vm5942, %v5932, 2102212464
        %v5945 = vsel %vm5941, %v5929, %v5944
        %v5946 = vsel %vm5940, %v5943, %v5945
        %v5947 = vsel %vm5939, %v5926, %v5929
        %v5948 = vsel %vm5942, %v5935, 920167782
        %v5949 = vsel %vm5941, %v5932, %v5948
        %v5950 = vsel %vm5940, %v5947, %v5949
        %v5951 = vsel %vm5939, %v5929, %v5932
        %v5952 = vsel %vm5942, %v5938, 1326507024
        %v5953 = vsel %vm5941, %v5935, %v5952
        %v5954 = vsel %vm5940, %v5951, %v5953
        %v5955 = vshll.u32 %v5915, 8
        %v5956 = vmul.u32.u64.compose %v5955, %v5954
        %v5957 = vextract.low.u32 %v5956
        %v5958 = vextract.high.u32 %v5956
        %v5959 = vmul.u32.u64.compose %v5955, %v5950
        %v5960 = vextract.low.u32 %v5959
        %v5961 = vextract.high.u32 %v5959
        %v5962 = vmul.u32 %v5955, %v5946
        %v5963 = vadd.s32 %v5958, %v5960
        %vm5964 = vc.u32 %v5958, %v5960
        %v5965 = vadd.s32 %v5961, 1
        %v5966 = vsel %vm5964, %v5965, %v5961
        %v5967 = vadd.s32 %v5962, %v5966
        %v5968 = vadd.s32 %v5967, 536870912
        %v5969 = vshrl.u32 %v5968, 30
        %v5970 = vshll.u32 %v5969, 30
        %v5971 = vsub.s32 %v5967, %v5970
        %vm5972 = vcmp.lt.s32.totalorder %v5971, 0
        %v5973 = vsub.s32 0, %v5971
        %v5974 = vsel %vm5972, %v5973, %v5971
        %v5975 = vclz %v5974
        %v5976 = vsub.s32 %v5975, 2
        %vm5977 = vcmp.gt.s32.totalorder 0, %v5976
        %v5978 = vsel %vm5977, 0, %v5976
        %v5979 = vsub.s32 32, %v5978
        %v5980 = vshll.u32 %v5971, %v5978
        %v5981 = vshrl.u32 %v5963, %v5979
        %v5982 = vor.u32 %v5980, %v5981
        %v5983 = vsub.s32 4294967266, %v5978
        %v5984 = vadd.s32 %v5983, 127
        %v5985 = vshll.u32 %v5984, 23
        %v5986 = vor.u32 4788187, %v5985
        %v5987 = vand.u32 2147483647, %v5986
        %v5989 = vcvt.s32.f32 %v5982
        %v5990 = vmul.f32 %v5989, %v5987
        %v5991 = vxor.u32 %v5990, 2147483648
        %v5992 = vsel %vm5909, %v5991, %v5990
        %v5993 = vsub.s32 4, %v5969
        %v5994 = vsel %vm5909, %v5993, %v5969
        %v5995 = vsel %vm5908, %v4333, %v5992
        %v5996 = vsel %vm5908, 0, %v5994
        %v5997 = vcosq.f32.pop %v5995
        %v5998 = vsinq.f32.pop %v5995
        %vm5999 = vweird.f32 %v4333
        %v6000 = vadd.s32 %v5996, 3
        %v6001 = vand.u32 %v6000, 3
        %vm6002 = vcmp.lt.s32.totalorder %v6001, 2
        %vm6003 = vcmp.eq.s32.totalorder %v6001, 0
        %v6004 = vxor.u32 %v5998, 2147483648
        %v6005 = vsel %vm6003, %v5997, %v6004
        %vm6006 = vcmp.eq.s32.totalorder %v6001, 2
        %v6007 = vxor.u32 %v5997, 2147483648
        %v6008 = vsel %vm6006, %v6007, %v5998
        %v6009 = vsel %vm6002, %v6005, %v6008
        %v6010 = vsel %vm5999, nan, %v6009
        %v6011 = vand.u32 2147483647, %v4070
        %vm6012 = vcmp.le.f32.partialorder %v6011, 0.7853982
        %vm6013 = vcmp.lt.s32.totalorder %v4070, 0
        %v6014 = vand.u32 %v4070, 2139095040
        %v6015 = vshrl.u32 %v6014, 23
        %v6016 = vsub.s32 %v6015, 127
        %v6017 = vand.u32 2147483647, %v4070
        %v6018 = vand.u32 %v6017, 8388607
        %v6019 = vor.u32 %v6018, 8388608
        %v6020 = vsub.s32 0, %v6019
        %v6021 = vadd.s32 %v6016, 1
        %vm6022 = vcmp.gt.s32.totalorder %v6021, 0
        %v6023 = vsel %vm6022, %v6021, 0
        %v6024 = vshrl.u32 %v6023, 5
        %v6025 = vand.u32 %v6023, 31
        %v6026 = vsub.s32 32, %v6025
        %v6027 = vshrl.u32 683565275, %v6026
        %v6028 = vshll.u32 683565275, %v6025
        %v6029 = vshrl.u32 2475754826, %v6026
        %v6030 = vor.u32 %v6028, %v6029
        %v6031 = vshll.u32 2475754826, %v6025
        %v6032 = vshrl.u32 2131351028, %v6026
        %v6033 = vor.u32 %v6031, %v6032
        %v6034 = vshll.u32 2131351028, %v6025
        %v6035 = vshrl.u32 2102212464, %v6026
        %v6036 = vor.u32 %v6034, %v6035
        %v6037 = vshll.u32 2102212464, %v6025
        %v6038 = vshrl.u32 920167782, %v6026
        %v6039 = vor.u32 %v6037, %v6038
        %v6040 = vshll.u32 920167782, %v6025
        %v6041 = vshrl.u32 1326507024, %v6026
        %v6042 = vor.u32 %v6040, %v6041
        %vm6043 = vcmp.lt.s32.totalorder %v6024, 1
        %vm6044 = vcmp.lt.s32.totalorder %v6024, 2
        %vm6045 = vcmp.lt.s32.totalorder %v6024, 3
        %vm6046 = vcmp.lt.s32.totalorder %v6024, 4
        %v6047 = vsel %vm6043, %v6027, %v6030
        %v6048 = vsel %vm6046, %v6036, 2102212464
        %v6049 = vsel %vm6045, %v6033, %v6048
        %v6050 = vsel %vm6044, %v6047, %v6049
        %v6051 = vsel %vm6043, %v6030, %v6033
        %v6052 = vsel %vm6046, %v6039, 920167782
        %v6053 = vsel %vm6045, %v6036, %v6052
        %v6054 = vsel %vm6044, %v6051, %v6053
        %v6055 = vsel %vm6043, %v6033, %v6036
        %v6056 = vsel %vm6046, %v6042, 1326507024
        %v6057 = vsel %vm6045, %v6039, %v6056
        %v6058 = vsel %vm6044, %v6055, %v6057
        %v6059 = vshll.u32 %v6019, 8
        %v6060 = vmul.u32.u64.compose %v6059, %v6058
        %v6061 = vextract.low.u32 %v6060
        %v6062 = vextract.high.u32 %v6060
        %v6063 = vmul.u32.u64.compose %v6059, %v6054
        %v6064 = vextract.low.u32 %v6063
        %v6065 = vextract.high.u32 %v6063
        %v6066 = vmul.u32 %v6059, %v6050
        %v6067 = vadd.s32 %v6062, %v6064
        %vm6068 = vc.u32 %v6062, %v6064
        %v6069 = vadd.s32 %v6065, 1
        %v6070 = vsel %vm6068, %v6069, %v6065
        %v6071 = vadd.s32 %v6066, %v6070
        %v6072 = vadd.s32 %v6071, 536870912
        %v6073 = vshrl.u32 %v6072, 30
        %v6074 = vshll.u32 %v6073, 30
        %v6075 = vsub.s32 %v6071, %v6074
        %vm6076 = vcmp.lt.s32.totalorder %v6075, 0
        %v6077 = vsub.s32 0, %v6075
        %v6078 = vsel %vm6076, %v6077, %v6075
        %v6079 = vclz %v6078
        %v6080 = vsub.s32 %v6079, 2
        %vm6081 = vcmp.gt.s32.totalorder 0, %v6080
        %v6082 = vsel %vm6081, 0, %v6080
        %v6083 = vsub.s32 32, %v6082
        %v6084 = vshll.u32 %v6075, %v6082
        %v6085 = vshrl.u32 %v6067, %v6083
        %v6086 = vor.u32 %v6084, %v6085
        %v6087 = vsub.s32 4294967266, %v6082
        %v6088 = vadd.s32 %v6087, 127
        %v6089 = vshll.u32 %v6088, 23
        %v6090 = vor.u32 4788187, %v6089
        %v6091 = vand.u32 2147483647, %v6090
        %v6093 = vcvt.s32.f32 %v6086
        %v6094 = vmul.f32 %v6093, %v6091
        %v6095 = vxor.u32 %v6094, 2147483648
        %v6096 = vsel %vm6013, %v6095, %v6094
        %v6097 = vsub.s32 4, %v6073
        %v6098 = vsel %vm6013, %v6097, %v6073
        %v6099 = vsel %vm6012, %v4070, %v6096
        %v6100 = vsel %vm6012, 0, %v6098
        %v6101 = vcosq.f32.pop %v6099
        %v6102 = vsinq.f32.pop %v6099
        %vm6103 = vweird.f32 %v4070
        %v6104 = vadd.s32 %v6100, 3
        %v6105 = vand.u32 %v6104, 3
        %vm6106 = vcmp.lt.s32.totalorder %v6105, 2
        %vm6107 = vcmp.eq.s32.totalorder %v6105, 0
        %v6108 = vxor.u32 %v6102, 2147483648
        %v6109 = vsel %vm6107, %v6101, %v6108
        %vm6110 = vcmp.eq.s32.totalorder %v6105, 2
        %v6111 = vxor.u32 %v6101, 2147483648
        %v6112 = vsel %vm6110, %v6111, %v6102
        %v6113 = vsel %vm6106, %v6109, %v6112
        %v6114 = vsel %vm6103, nan, %v6113
        %v6115 = vand.u32 2147483647, %v4072
        %vm6116 = vcmp.le.f32.partialorder %v6115, 0.7853982
        %vm6117 = vcmp.lt.s32.totalorder %v4072, 0
        %v6118 = vand.u32 %v4072, 2139095040
        %v6119 = vshrl.u32 %v6118, 23
        %v6120 = vsub.s32 %v6119, 127
        %v6121 = vand.u32 2147483647, %v4072
        %v6122 = vand.u32 %v6121, 8388607
        %v6123 = vor.u32 %v6122, 8388608
        %v6124 = vsub.s32 0, %v6123
        %v6125 = vadd.s32 %v6120, 1
        %vm6126 = vcmp.gt.s32.totalorder %v6125, 0
        %v6127 = vsel %vm6126, %v6125, 0
        %v6128 = vshrl.u32 %v6127, 5
        %v6129 = vand.u32 %v6127, 31
        %v6130 = vsub.s32 32, %v6129
        %v6131 = vshrl.u32 683565275, %v6130
        %v6132 = vshll.u32 683565275, %v6129
        %v6133 = vshrl.u32 2475754826, %v6130
        %v6134 = vor.u32 %v6132, %v6133
        %v6135 = vshll.u32 2475754826, %v6129
        %v6136 = vshrl.u32 2131351028, %v6130
        %v6137 = vor.u32 %v6135, %v6136
        %v6138 = vshll.u32 2131351028, %v6129
        %v6139 = vshrl.u32 2102212464, %v6130
        %v6140 = vor.u32 %v6138, %v6139
        %v6141 = vshll.u32 2102212464, %v6129
        %v6142 = vshrl.u32 920167782, %v6130
        %v6143 = vor.u32 %v6141, %v6142
        %v6144 = vshll.u32 920167782, %v6129
        %v6145 = vshrl.u32 1326507024, %v6130
        %v6146 = vor.u32 %v6144, %v6145
        %vm6147 = vcmp.lt.s32.totalorder %v6128, 1
        %vm6148 = vcmp.lt.s32.totalorder %v6128, 2
        %vm6149 = vcmp.lt.s32.totalorder %v6128, 3
        %vm6150 = vcmp.lt.s32.totalorder %v6128, 4
        %v6151 = vsel %vm6147, %v6131, %v6134
        %v6152 = vsel %vm6150, %v6140, 2102212464
        %v6153 = vsel %vm6149, %v6137, %v6152
        %v6154 = vsel %vm6148, %v6151, %v6153
        %v6155 = vsel %vm6147, %v6134, %v6137
        %v6156 = vsel %vm6150, %v6143, 920167782
        %v6157 = vsel %vm6149, %v6140, %v6156
        %v6158 = vsel %vm6148, %v6155, %v6157
        %v6159 = vsel %vm6147, %v6137, %v6140
        %v6160 = vsel %vm6150, %v6146, 1326507024
        %v6161 = vsel %vm6149, %v6143, %v6160
        %v6162 = vsel %vm6148, %v6159, %v6161
        %v6163 = vshll.u32 %v6123, 8
        %v6164 = vmul.u32.u64.compose %v6163, %v6162
        %v6165 = vextract.low.u32 %v6164
        %v6166 = vextract.high.u32 %v6164
        %v6167 = vmul.u32.u64.compose %v6163, %v6158
        %v6168 = vextract.low.u32 %v6167
        %v6169 = vextract.high.u32 %v6167
        %v6170 = vmul.u32 %v6163, %v6154
        %v6171 = vadd.s32 %v6166, %v6168
        %vm6172 = vc.u32 %v6166, %v6168
        %v6173 = vadd.s32 %v6169, 1
        %v6174 = vsel %vm6172, %v6173, %v6169
        %v6175 = vadd.s32 %v6170, %v6174
        %v6176 = vadd.s32 %v6175, 536870912
        %v6177 = vshrl.u32 %v6176, 30
        %v6178 = vshll.u32 %v6177, 30
        %v6179 = vsub.s32 %v6175, %v6178
        %vm6180 = vcmp.lt.s32.totalorder %v6179, 0
        %v6181 = vsub.s32 0, %v6179
        %v6182 = vsel %vm6180, %v6181, %v6179
        %v6183 = vclz %v6182
        %v6184 = vsub.s32 %v6183, 2
        %vm6185 = vcmp.gt.s32.totalorder 0, %v6184
        %v6186 = vsel %vm6185, 0, %v6184
        %v6187 = vsub.s32 32, %v6186
        %v6188 = vshll.u32 %v6179, %v6186
        %v6189 = vshrl.u32 %v6171, %v6187
        %v6190 = vor.u32 %v6188, %v6189
        %v6191 = vsub.s32 4294967266, %v6186
        %v6192 = vadd.s32 %v6191, 127
        %v6193 = vshll.u32 %v6192, 23
        %v6194 = vor.u32 4788187, %v6193
        %v6195 = vand.u32 2147483647, %v6194
        %v6197 = vcvt.s32.f32 %v6190
        %v6198 = vmul.f32 %v6197, %v6195
        %v6199 = vxor.u32 %v6198, 2147483648
        %v6200 = vsel %vm6117, %v6199, %v6198
        %v6201 = vsub.s32 4, %v6177
        %v6202 = vsel %vm6117, %v6201, %v6177
        %v6203 = vsel %vm6116, %v4072, %v6200
        %v6204 = vsel %vm6116, 0, %v6202
        %v6205 = vcosq.f32.pop %v6203
        %v6206 = vsinq.f32.pop %v6203
        %vm6207 = vweird.f32 %v4072
        %v6208 = vadd.s32 %v6204, 3
        %v6209 = vand.u32 %v6208, 3
        %vm6210 = vcmp.lt.s32.totalorder %v6209, 2
        %vm6211 = vcmp.eq.s32.totalorder %v6209, 0
        %v6212 = vxor.u32 %v6206, 2147483648
        %v6213 = vsel %vm6211, %v6205, %v6212
        %vm6214 = vcmp.eq.s32.totalorder %v6209, 2
        %v6215 = vxor.u32 %v6205, 2147483648
        %v6216 = vsel %vm6214, %v6215, %v6206
        %v6217 = vsel %vm6210, %v6213, %v6216
        %v6218 = vsel %vm6207, nan, %v6217
        %v6219 = vand.u32 2147483647, %v4159
        %vm6220 = vcmp.le.f32.partialorder %v6219, 0.7853982
        %vm6221 = vcmp.lt.s32.totalorder %v4159, 0
        %v6222 = vand.u32 %v4159, 2139095040
        %v6223 = vshrl.u32 %v6222, 23
        %v6224 = vsub.s32 %v6223, 127
        %v6225 = vand.u32 2147483647, %v4159
        %v6226 = vand.u32 %v6225, 8388607
        %v6227 = vor.u32 %v6226, 8388608
        %v6228 = vsub.s32 0, %v6227
        %v6229 = vadd.s32 %v6224, 1
        %vm6230 = vcmp.gt.s32.totalorder %v6229, 0
        %v6231 = vsel %vm6230, %v6229, 0
        %v6232 = vshrl.u32 %v6231, 5
        %v6233 = vand.u32 %v6231, 31
        %v6234 = vsub.s32 32, %v6233
        %v6235 = vshrl.u32 683565275, %v6234
        %v6236 = vshll.u32 683565275, %v6233
        %v6237 = vshrl.u32 2475754826, %v6234
        %v6238 = vor.u32 %v6236, %v6237
        %v6239 = vshll.u32 2475754826, %v6233
        %v6240 = vshrl.u32 2131351028, %v6234
        %v6241 = vor.u32 %v6239, %v6240
        %v6242 = vshll.u32 2131351028, %v6233
        %v6243 = vshrl.u32 2102212464, %v6234
        %v6244 = vor.u32 %v6242, %v6243
        %v6245 = vshll.u32 2102212464, %v6233
        %v6246 = vshrl.u32 920167782, %v6234
        %v6247 = vor.u32 %v6245, %v6246
        %v6248 = vshll.u32 920167782, %v6233
        %v6249 = vshrl.u32 1326507024, %v6234
        %v6250 = vor.u32 %v6248, %v6249
        %vm6251 = vcmp.lt.s32.totalorder %v6232, 1
        %vm6252 = vcmp.lt.s32.totalorder %v6232, 2
        %vm6253 = vcmp.lt.s32.totalorder %v6232, 3
        %vm6254 = vcmp.lt.s32.totalorder %v6232, 4
        %v6255 = vsel %vm6251, %v6235, %v6238
        %v6256 = vsel %vm6254, %v6244, 2102212464
        %v6257 = vsel %vm6253, %v6241, %v6256
        %v6258 = vsel %vm6252, %v6255, %v6257
        %v6259 = vsel %vm6251, %v6238, %v6241
        %v6260 = vsel %vm6254, %v6247, 920167782
        %v6261 = vsel %vm6253, %v6244, %v6260
        %v6262 = vsel %vm6252, %v6259, %v6261
        %v6263 = vsel %vm6251, %v6241, %v6244
        %v6264 = vsel %vm6254, %v6250, 1326507024
        %v6265 = vsel %vm6253, %v6247, %v6264
        %v6266 = vsel %vm6252, %v6263, %v6265
        %v6267 = vshll.u32 %v6227, 8
        %v6268 = vmul.u32.u64.compose %v6267, %v6266
        %v6269 = vextract.low.u32 %v6268
        %v6270 = vextract.high.u32 %v6268
        %v6271 = vmul.u32.u64.compose %v6267, %v6262
        %v6272 = vextract.low.u32 %v6271
        %v6273 = vextract.high.u32 %v6271
        %v6274 = vmul.u32 %v6267, %v6258
        %v6275 = vadd.s32 %v6270, %v6272
        %vm6276 = vc.u32 %v6270, %v6272
        %v6277 = vadd.s32 %v6273, 1
        %v6278 = vsel %vm6276, %v6277, %v6273
        %v6279 = vadd.s32 %v6274, %v6278
        %v6280 = vadd.s32 %v6279, 536870912
        %v6281 = vshrl.u32 %v6280, 30
        %v6282 = vshll.u32 %v6281, 30
        %v6283 = vsub.s32 %v6279, %v6282
        %vm6284 = vcmp.lt.s32.totalorder %v6283, 0
        %v6285 = vsub.s32 0, %v6283
        %v6286 = vsel %vm6284, %v6285, %v6283
        %v6287 = vclz %v6286
        %v6288 = vsub.s32 %v6287, 2
        %vm6289 = vcmp.gt.s32.totalorder 0, %v6288
        %v6290 = vsel %vm6289, 0, %v6288
        %v6291 = vsub.s32 32, %v6290
        %v6292 = vshll.u32 %v6283, %v6290
        %v6293 = vshrl.u32 %v6275, %v6291
        %v6294 = vor.u32 %v6292, %v6293
        %v6295 = vsub.s32 4294967266, %v6290
        %v6296 = vadd.s32 %v6295, 127
        %v6297 = vshll.u32 %v6296, 23
        %v6298 = vor.u32 4788187, %v6297
        %v6299 = vand.u32 2147483647, %v6298
        %v6301 = vcvt.s32.f32 %v6294
        %v6302 = vmul.f32 %v6301, %v6299
        %v6303 = vxor.u32 %v6302, 2147483648
        %v6304 = vsel %vm6221, %v6303, %v6302
        %v6305 = vsub.s32 4, %v6281
        %v6306 = vsel %vm6221, %v6305, %v6281
        %v6307 = vsel %vm6220, %v4159, %v6304
        %v6308 = vsel %vm6220, 0, %v6306
        %v6309 = vcosq.f32.pop %v6307
        %v6310 = vsinq.f32.pop %v6307
        %vm6311 = vweird.f32 %v4159
        %v6312 = vadd.s32 %v6308, 3
        %v6313 = vand.u32 %v6312, 3
        %vm6314 = vcmp.lt.s32.totalorder %v6313, 2
        %vm6315 = vcmp.eq.s32.totalorder %v6313, 0
        %v6316 = vxor.u32 %v6310, 2147483648
        %v6317 = vsel %vm6315, %v6309, %v6316
        %vm6318 = vcmp.eq.s32.totalorder %v6313, 2
        %v6319 = vxor.u32 %v6309, 2147483648
        %v6320 = vsel %vm6318, %v6319, %v6310
        %v6321 = vsel %vm6314, %v6317, %v6320
        %v6322 = vsel %vm6311, nan, %v6321
        %v6323 = vand.u32 2147483647, %v4161
        %vm6324 = vcmp.le.f32.partialorder %v6323, 0.7853982
        %vm6325 = vcmp.lt.s32.totalorder %v4161, 0
        %v6326 = vand.u32 %v4161, 2139095040
        %v6327 = vshrl.u32 %v6326, 23
        %v6328 = vsub.s32 %v6327, 127
        %v6329 = vand.u32 2147483647, %v4161
        %v6330 = vand.u32 %v6329, 8388607
        %v6331 = vor.u32 %v6330, 8388608
        %v6332 = vsub.s32 0, %v6331
        %v6333 = vadd.s32 %v6328, 1
        %vm6334 = vcmp.gt.s32.totalorder %v6333, 0
        %v6335 = vsel %vm6334, %v6333, 0
        %v6336 = vshrl.u32 %v6335, 5
        %v6337 = vand.u32 %v6335, 31
        %v6338 = vsub.s32 32, %v6337
        %v6339 = vshrl.u32 683565275, %v6338
        %v6340 = vshll.u32 683565275, %v6337
        %v6341 = vshrl.u32 2475754826, %v6338
        %v6342 = vor.u32 %v6340, %v6341
        %v6343 = vshll.u32 2475754826, %v6337
        %v6344 = vshrl.u32 2131351028, %v6338
        %v6345 = vor.u32 %v6343, %v6344
        %v6346 = vshll.u32 2131351028, %v6337
        %v6347 = vshrl.u32 2102212464, %v6338
        %v6348 = vor.u32 %v6346, %v6347
        %v6349 = vshll.u32 2102212464, %v6337
        %v6350 = vshrl.u32 920167782, %v6338
        %v6351 = vor.u32 %v6349, %v6350
        %v6352 = vshll.u32 920167782, %v6337
        %v6353 = vshrl.u32 1326507024, %v6338
        %v6354 = vor.u32 %v6352, %v6353
        %vm6355 = vcmp.lt.s32.totalorder %v6336, 1
        %vm6356 = vcmp.lt.s32.totalorder %v6336, 2
        %vm6357 = vcmp.lt.s32.totalorder %v6336, 3
        %vm6358 = vcmp.lt.s32.totalorder %v6336, 4
        %v6359 = vsel %vm6355, %v6339, %v6342
        %v6360 = vsel %vm6358, %v6348, 2102212464
        %v6361 = vsel %vm6357, %v6345, %v6360
        %v6362 = vsel %vm6356, %v6359, %v6361
        %v6363 = vsel %vm6355, %v6342, %v6345
        %v6364 = vsel %vm6358, %v6351, 920167782
        %v6365 = vsel %vm6357, %v6348, %v6364
        %v6366 = vsel %vm6356, %v6363, %v6365
        %v6367 = vsel %vm6355, %v6345, %v6348
        %v6368 = vsel %vm6358, %v6354, 1326507024
        %v6369 = vsel %vm6357, %v6351, %v6368
        %v6370 = vsel %vm6356, %v6367, %v6369
        %v6371 = vshll.u32 %v6331, 8
        %v6372 = vmul.u32.u64.compose %v6371, %v6370
        %v6373 = vextract.low.u32 %v6372
        %v6374 = vextract.high.u32 %v6372
        %v6375 = vmul.u32.u64.compose %v6371, %v6366
        %v6376 = vextract.low.u32 %v6375
        %v6377 = vextract.high.u32 %v6375
        %v6378 = vmul.u32 %v6371, %v6362
        %v6379 = vadd.s32 %v6374, %v6376
        %vm6380 = vc.u32 %v6374, %v6376
        %v6381 = vadd.s32 %v6377, 1
        %v6382 = vsel %vm6380, %v6381, %v6377
        %v6383 = vadd.s32 %v6378, %v6382
        %v6384 = vadd.s32 %v6383, 536870912
        %v6385 = vshrl.u32 %v6384, 30
        %v6386 = vshll.u32 %v6385, 30
        %v6387 = vsub.s32 %v6383, %v6386
        %vm6388 = vcmp.lt.s32.totalorder %v6387, 0
        %v6389 = vsub.s32 0, %v6387
        %v6390 = vsel %vm6388, %v6389, %v6387
        %v6391 = vclz %v6390
        %v6392 = vsub.s32 %v6391, 2
        %vm6393 = vcmp.gt.s32.totalorder 0, %v6392
        %v6394 = vsel %vm6393, 0, %v6392
        %v6395 = vsub.s32 32, %v6394
        %v6396 = vshll.u32 %v6387, %v6394
        %v6397 = vshrl.u32 %v6379, %v6395
        %v6398 = vor.u32 %v6396, %v6397
        %v6399 = vsub.s32 4294967266, %v6394
        %v6400 = vadd.s32 %v6399, 127
        %v6401 = vshll.u32 %v6400, 23
        %v6402 = vor.u32 4788187, %v6401
        %v6403 = vand.u32 2147483647, %v6402
        %v6405 = vcvt.s32.f32 %v6398
        %v6406 = vmul.f32 %v6405, %v6403
        %v6407 = vxor.u32 %v6406, 2147483648
        %v6408 = vsel %vm6325, %v6407, %v6406
        %v6409 = vsub.s32 4, %v6385
        %v6410 = vsel %vm6325, %v6409, %v6385
        %v6411 = vsel %vm6324, %v4161, %v6408
        %v6412 = vsel %vm6324, 0, %v6410
        %v6413 = vcosq.f32.pop %v6411
        %v6414 = vsinq.f32.pop %v6411
        %vm6415 = vweird.f32 %v4161
        %v6416 = vadd.s32 %v6412, 3
        %v6417 = vand.u32 %v6416, 3
        %vm6418 = vcmp.lt.s32.totalorder %v6417, 2
        %vm6419 = vcmp.eq.s32.totalorder %v6417, 0
        %v6420 = vxor.u32 %v6414, 2147483648
        %v6421 = vsel %vm6419, %v6413, %v6420
        %vm6422 = vcmp.eq.s32.totalorder %v6417, 2
        %v6423 = vxor.u32 %v6413, 2147483648
        %v6424 = vsel %vm6422, %v6423, %v6414
        %v6425 = vsel %vm6418, %v6421, %v6424
        %v6426 = vsel %vm6415, nan, %v6425
        %v6427 = vand.u32 2147483647, %v4248
        %vm6428 = vcmp.le.f32.partialorder %v6427, 0.7853982
        %vm6429 = vcmp.lt.s32.totalorder %v4248, 0
        %v6430 = vand.u32 %v4248, 2139095040
        %v6431 = vshrl.u32 %v6430, 23
        %v6432 = vsub.s32 %v6431, 127
        %v6433 = vand.u32 2147483647, %v4248
        %v6434 = vand.u32 %v6433, 8388607
        %v6435 = vor.u32 %v6434, 8388608
        %v6436 = vsub.s32 0, %v6435
        %v6437 = vadd.s32 %v6432, 1
        %vm6438 = vcmp.gt.s32.totalorder %v6437, 0
        %v6439 = vsel %vm6438, %v6437, 0
        %v6440 = vshrl.u32 %v6439, 5
        %v6441 = vand.u32 %v6439, 31
        %v6442 = vsub.s32 32, %v6441
        %v6443 = vshrl.u32 683565275, %v6442
        %v6444 = vshll.u32 683565275, %v6441
        %v6445 = vshrl.u32 2475754826, %v6442
        %v6446 = vor.u32 %v6444, %v6445
        %v6447 = vshll.u32 2475754826, %v6441
        %v6448 = vshrl.u32 2131351028, %v6442
        %v6449 = vor.u32 %v6447, %v6448
        %v6450 = vshll.u32 2131351028, %v6441
        %v6451 = vshrl.u32 2102212464, %v6442
        %v6452 = vor.u32 %v6450, %v6451
        %v6453 = vshll.u32 2102212464, %v6441
        %v6454 = vshrl.u32 920167782, %v6442
        %v6455 = vor.u32 %v6453, %v6454
        %v6456 = vshll.u32 920167782, %v6441
        %v6457 = vshrl.u32 1326507024, %v6442
        %v6458 = vor.u32 %v6456, %v6457
        %vm6459 = vcmp.lt.s32.totalorder %v6440, 1
        %vm6460 = vcmp.lt.s32.totalorder %v6440, 2
        %vm6461 = vcmp.lt.s32.totalorder %v6440, 3
        %vm6462 = vcmp.lt.s32.totalorder %v6440, 4
        %v6463 = vsel %vm6459, %v6443, %v6446
        %v6464 = vsel %vm6462, %v6452, 2102212464
        %v6465 = vsel %vm6461, %v6449, %v6464
        %v6466 = vsel %vm6460, %v6463, %v6465
        %v6467 = vsel %vm6459, %v6446, %v6449
        %v6468 = vsel %vm6462, %v6455, 920167782
        %v6469 = vsel %vm6461, %v6452, %v6468
        %v6470 = vsel %vm6460, %v6467, %v6469
        %v6471 = vsel %vm6459, %v6449, %v6452
        %v6472 = vsel %vm6462, %v6458, 1326507024
        %v6473 = vsel %vm6461, %v6455, %v6472
        %v6474 = vsel %vm6460, %v6471, %v6473
        %v6475 = vshll.u32 %v6435, 8
        %v6476 = vmul.u32.u64.compose %v6475, %v6474
        %v6477 = vextract.low.u32 %v6476
        %v6478 = vextract.high.u32 %v6476
        %v6479 = vmul.u32.u64.compose %v6475, %v6470
        %v6480 = vextract.low.u32 %v6479
        %v6481 = vextract.high.u32 %v6479
        %v6482 = vmul.u32 %v6475, %v6466
        %v6483 = vadd.s32 %v6478, %v6480
        %vm6484 = vc.u32 %v6478, %v6480
        %v6485 = vadd.s32 %v6481, 1
        %v6486 = vsel %vm6484, %v6485, %v6481
        %v6487 = vadd.s32 %v6482, %v6486
        %v6488 = vadd.s32 %v6487, 536870912
        %v6489 = vshrl.u32 %v6488, 30
        %v6490 = vshll.u32 %v6489, 30
        %v6491 = vsub.s32 %v6487, %v6490
        %vm6492 = vcmp.lt.s32.totalorder %v6491, 0
        %v6493 = vsub.s32 0, %v6491
        %v6494 = vsel %vm6492, %v6493, %v6491
        %v6495 = vclz %v6494
        %v6496 = vsub.s32 %v6495, 2
        %vm6497 = vcmp.gt.s32.totalorder 0, %v6496
        %v6498 = vsel %vm6497, 0, %v6496
        %v6499 = vsub.s32 32, %v6498
        %v6500 = vshll.u32 %v6491, %v6498
        %v6501 = vshrl.u32 %v6483, %v6499
        %v6502 = vor.u32 %v6500, %v6501
        %v6503 = vsub.s32 4294967266, %v6498
        %v6504 = vadd.s32 %v6503, 127
        %v6505 = vshll.u32 %v6504, 23
        %v6506 = vor.u32 4788187, %v6505
        %v6507 = vand.u32 2147483647, %v6506
        %v6509 = vcvt.s32.f32 %v6502
        %v6510 = vmul.f32 %v6509, %v6507
        %v6511 = vxor.u32 %v6510, 2147483648
        %v6512 = vsel %vm6429, %v6511, %v6510
        %v6513 = vsub.s32 4, %v6489
        %v6514 = vsel %vm6429, %v6513, %v6489
        %v6515 = vsel %vm6428, %v4248, %v6512
        %v6516 = vsel %vm6428, 0, %v6514
        %v6517 = vcosq.f32.pop %v6515
        %v6518 = vsinq.f32.pop %v6515
        %vm6519 = vweird.f32 %v4248
        %v6520 = vadd.s32 %v6516, 3
        %v6521 = vand.u32 %v6520, 3
        %vm6522 = vcmp.lt.s32.totalorder %v6521, 2
        %vm6523 = vcmp.eq.s32.totalorder %v6521, 0
        %v6524 = vxor.u32 %v6518, 2147483648
        %v6525 = vsel %vm6523, %v6517, %v6524
        %vm6526 = vcmp.eq.s32.totalorder %v6521, 2
        %v6527 = vxor.u32 %v6517, 2147483648
        %v6528 = vsel %vm6526, %v6527, %v6518
        %v6529 = vsel %vm6522, %v6525, %v6528
        %v6530 = vsel %vm6519, nan, %v6529
        %v6531 = vand.u32 2147483647, %v4250
        %vm6532 = vcmp.le.f32.partialorder %v6531, 0.7853982
        %vm6533 = vcmp.lt.s32.totalorder %v4250, 0
        %v6534 = vand.u32 %v4250, 2139095040
        %v6535 = vshrl.u32 %v6534, 23
        %v6536 = vsub.s32 %v6535, 127
        %v6537 = vand.u32 2147483647, %v4250
        %v6538 = vand.u32 %v6537, 8388607
        %v6539 = vor.u32 %v6538, 8388608
        %v6540 = vsub.s32 0, %v6539
        %v6541 = vadd.s32 %v6536, 1
        %vm6542 = vcmp.gt.s32.totalorder %v6541, 0
        %v6543 = vsel %vm6542, %v6541, 0
        %v6544 = vshrl.u32 %v6543, 5
        %v6545 = vand.u32 %v6543, 31
        %v6546 = vsub.s32 32, %v6545
        %v6547 = vshrl.u32 683565275, %v6546
        %v6548 = vshll.u32 683565275, %v6545
        %v6549 = vshrl.u32 2475754826, %v6546
        %v6550 = vor.u32 %v6548, %v6549
        %v6551 = vshll.u32 2475754826, %v6545
        %v6552 = vshrl.u32 2131351028, %v6546
        %v6553 = vor.u32 %v6551, %v6552
        %v6554 = vshll.u32 2131351028, %v6545
        %v6555 = vshrl.u32 2102212464, %v6546
        %v6556 = vor.u32 %v6554, %v6555
        %v6557 = vshll.u32 2102212464, %v6545
        %v6558 = vshrl.u32 920167782, %v6546
        %v6559 = vor.u32 %v6557, %v6558
        %v6560 = vshll.u32 920167782, %v6545
        %v6561 = vshrl.u32 1326507024, %v6546
        %v6562 = vor.u32 %v6560, %v6561
        %vm6563 = vcmp.lt.s32.totalorder %v6544, 1
        %vm6564 = vcmp.lt.s32.totalorder %v6544, 2
        %vm6565 = vcmp.lt.s32.totalorder %v6544, 3
        %vm6566 = vcmp.lt.s32.totalorder %v6544, 4
        %v6567 = vsel %vm6563, %v6547, %v6550
        %v6568 = vsel %vm6566, %v6556, 2102212464
        %v6569 = vsel %vm6565, %v6553, %v6568
        %v6570 = vsel %vm6564, %v6567, %v6569
        %v6571 = vsel %vm6563, %v6550, %v6553
        %v6572 = vsel %vm6566, %v6559, 920167782
        %v6573 = vsel %vm6565, %v6556, %v6572
        %v6574 = vsel %vm6564, %v6571, %v6573
        %v6575 = vsel %vm6563, %v6553, %v6556
        %v6576 = vsel %vm6566, %v6562, 1326507024
        %v6577 = vsel %vm6565, %v6559, %v6576
        %v6578 = vsel %vm6564, %v6575, %v6577
        %v6579 = vshll.u32 %v6539, 8
        %v6580 = vmul.u32.u64.compose %v6579, %v6578
        %v6581 = vextract.low.u32 %v6580
        %v6582 = vextract.high.u32 %v6580
        %v6583 = vmul.u32.u64.compose %v6579, %v6574
        %v6584 = vextract.low.u32 %v6583
        %v6585 = vextract.high.u32 %v6583
        %v6586 = vmul.u32 %v6579, %v6570
        %v6587 = vadd.s32 %v6582, %v6584
        %vm6588 = vc.u32 %v6582, %v6584
        %v6589 = vadd.s32 %v6585, 1
        %v6590 = vsel %vm6588, %v6589, %v6585
        %v6591 = vadd.s32 %v6586, %v6590
        %v6592 = vadd.s32 %v6591, 536870912
        %v6593 = vshrl.u32 %v6592, 30
        %v6594 = vshll.u32 %v6593, 30
        %v6595 = vsub.s32 %v6591, %v6594
        %vm6596 = vcmp.lt.s32.totalorder %v6595, 0
        %v6597 = vsub.s32 0, %v6595
        %v6598 = vsel %vm6596, %v6597, %v6595
        %v6599 = vclz %v6598
        %v6600 = vsub.s32 %v6599, 2
        %vm6601 = vcmp.gt.s32.totalorder 0, %v6600
        %v6602 = vsel %vm6601, 0, %v6600
        %v6603 = vsub.s32 32, %v6602
        %v6604 = vshll.u32 %v6595, %v6602
        %v6605 = vshrl.u32 %v6587, %v6603
        %v6606 = vor.u32 %v6604, %v6605
        %v6607 = vsub.s32 4294967266, %v6602
        %v6608 = vadd.s32 %v6607, 127
        %v6609 = vshll.u32 %v6608, 23
        %v6610 = vor.u32 4788187, %v6609
        %v6611 = vand.u32 2147483647, %v6610
        %v6613 = vcvt.s32.f32 %v6606
        %v6614 = vmul.f32 %v6613, %v6611
        %v6615 = vxor.u32 %v6614, 2147483648
        %v6616 = vsel %vm6533, %v6615, %v6614
        %v6617 = vsub.s32 4, %v6593
        %v6618 = vsel %vm6533, %v6617, %v6593
        %v6619 = vsel %vm6532, %v4250, %v6616
        %v6620 = vsel %vm6532, 0, %v6618
        %v6621 = vcosq.f32.pop %v6619
        %v6622 = vsinq.f32.pop %v6619
        %vm6623 = vweird.f32 %v4250
        %v6624 = vadd.s32 %v6620, 3
        %v6625 = vand.u32 %v6624, 3
        %vm6626 = vcmp.lt.s32.totalorder %v6625, 2
        %vm6627 = vcmp.eq.s32.totalorder %v6625, 0
        %v6628 = vxor.u32 %v6622, 2147483648
        %v6629 = vsel %vm6627, %v6621, %v6628
        %vm6630 = vcmp.eq.s32.totalorder %v6625, 2
        %v6631 = vxor.u32 %v6621, 2147483648
        %v6632 = vsel %vm6630, %v6631, %v6622
        %v6633 = vsel %vm6626, %v6629, %v6632
        %v6634 = vsel %vm6623, nan, %v6633
        %v6635 = vand.u32 2147483647, %v4337
        %vm6636 = vcmp.le.f32.partialorder %v6635, 0.7853982
        %vm6637 = vcmp.lt.s32.totalorder %v4337, 0
        %v6638 = vand.u32 %v4337, 2139095040
        %v6639 = vshrl.u32 %v6638, 23
        %v6640 = vsub.s32 %v6639, 127
        %v6641 = vand.u32 2147483647, %v4337
        %v6642 = vand.u32 %v6641, 8388607
        %v6643 = vor.u32 %v6642, 8388608
        %v6644 = vsub.s32 0, %v6643
        %v6645 = vadd.s32 %v6640, 1
        %vm6646 = vcmp.gt.s32.totalorder %v6645, 0
        %v6647 = vsel %vm6646, %v6645, 0
        %v6648 = vshrl.u32 %v6647, 5
        %v6649 = vand.u32 %v6647, 31
        %v6650 = vsub.s32 32, %v6649
        %v6651 = vshrl.u32 683565275, %v6650
        %v6652 = vshll.u32 683565275, %v6649
        %v6653 = vshrl.u32 2475754826, %v6650
        %v6654 = vor.u32 %v6652, %v6653
        %v6655 = vshll.u32 2475754826, %v6649
        %v6656 = vshrl.u32 2131351028, %v6650
        %v6657 = vor.u32 %v6655, %v6656
        %v6658 = vshll.u32 2131351028, %v6649
        %v6659 = vshrl.u32 2102212464, %v6650
        %v6660 = vor.u32 %v6658, %v6659
        %v6661 = vshll.u32 2102212464, %v6649
        %v6662 = vshrl.u32 920167782, %v6650
        %v6663 = vor.u32 %v6661, %v6662
        %v6664 = vshll.u32 920167782, %v6649
        %v6665 = vshrl.u32 1326507024, %v6650
        %v6666 = vor.u32 %v6664, %v6665
        %vm6667 = vcmp.lt.s32.totalorder %v6648, 1
        %vm6668 = vcmp.lt.s32.totalorder %v6648, 2
        %vm6669 = vcmp.lt.s32.totalorder %v6648, 3
        %vm6670 = vcmp.lt.s32.totalorder %v6648, 4
        %v6671 = vsel %vm6667, %v6651, %v6654
        %v6672 = vsel %vm6670, %v6660, 2102212464
        %v6673 = vsel %vm6669, %v6657, %v6672
        %v6674 = vsel %vm6668, %v6671, %v6673
        %v6675 = vsel %vm6667, %v6654, %v6657
        %v6676 = vsel %vm6670, %v6663, 920167782
        %v6677 = vsel %vm6669, %v6660, %v6676
        %v6678 = vsel %vm6668, %v6675, %v6677
        %v6679 = vsel %vm6667, %v6657, %v6660
        %v6680 = vsel %vm6670, %v6666, 1326507024
        %v6681 = vsel %vm6669, %v6663, %v6680
        %v6682 = vsel %vm6668, %v6679, %v6681
        %v6683 = vshll.u32 %v6643, 8
        %v6684 = vmul.u32.u64.compose %v6683, %v6682
        %v6685 = vextract.low.u32 %v6684
        %v6686 = vextract.high.u32 %v6684
        %v6687 = vmul.u32.u64.compose %v6683, %v6678
        %v6688 = vextract.low.u32 %v6687
        %v6689 = vextract.high.u32 %v6687
        %v6690 = vmul.u32 %v6683, %v6674
        %v6691 = vadd.s32 %v6686, %v6688
        %vm6692 = vc.u32 %v6686, %v6688
        %v6693 = vadd.s32 %v6689, 1
        %v6694 = vsel %vm6692, %v6693, %v6689
        %v6695 = vadd.s32 %v6690, %v6694
        %v6696 = vadd.s32 %v6695, 536870912
        %v6697 = vshrl.u32 %v6696, 30
        %v6698 = vshll.u32 %v6697, 30
        %v6699 = vsub.s32 %v6695, %v6698
        %vm6700 = vcmp.lt.s32.totalorder %v6699, 0
        %v6701 = vsub.s32 0, %v6699
        %v6702 = vsel %vm6700, %v6701, %v6699
        %v6703 = vclz %v6702
        %v6704 = vsub.s32 %v6703, 2
        %vm6705 = vcmp.gt.s32.totalorder 0, %v6704
        %v6706 = vsel %vm6705, 0, %v6704
        %v6707 = vsub.s32 32, %v6706
        %v6708 = vshll.u32 %v6699, %v6706
        %v6709 = vshrl.u32 %v6691, %v6707
        %v6710 = vor.u32 %v6708, %v6709
        %v6711 = vsub.s32 4294967266, %v6706
        %v6712 = vadd.s32 %v6711, 127
        %v6713 = vshll.u32 %v6712, 23
        %v6714 = vor.u32 4788187, %v6713
        %v6715 = vand.u32 2147483647, %v6714
        %v6717 = vcvt.s32.f32 %v6710
        %v6718 = vmul.f32 %v6717, %v6715
        %v6719 = vxor.u32 %v6718, 2147483648
        %v6720 = vsel %vm6637, %v6719, %v6718
        %v6721 = vsub.s32 4, %v6697
        %v6722 = vsel %vm6637, %v6721, %v6697
        %v6723 = vsel %vm6636, %v4337, %v6720
        %v6724 = vsel %vm6636, 0, %v6722
        %v6725 = vcosq.f32.pop %v6723
        %v6726 = vsinq.f32.pop %v6723
        %vm6727 = vweird.f32 %v4337
        %v6728 = vadd.s32 %v6724, 3
        %v6729 = vand.u32 %v6728, 3
        %vm6730 = vcmp.lt.s32.totalorder %v6729, 2
        %vm6731 = vcmp.eq.s32.totalorder %v6729, 0
        %v6732 = vxor.u32 %v6726, 2147483648
        %v6733 = vsel %vm6731, %v6725, %v6732
        %vm6734 = vcmp.eq.s32.totalorder %v6729, 2
        %v6735 = vxor.u32 %v6725, 2147483648
        %v6736 = vsel %vm6734, %v6735, %v6726
        %v6737 = vsel %vm6730, %v6733, %v6736
        %v6738 = vsel %vm6727, nan, %v6737
        %v6739 = vand.u32 2147483647, %v4339
        %vm6740 = vcmp.le.f32.partialorder %v6739, 0.7853982
        %vm6741 = vcmp.lt.s32.totalorder %v4339, 0
        %v6742 = vand.u32 %v4339, 2139095040
        %v6743 = vshrl.u32 %v6742, 23
        %v6744 = vsub.s32 %v6743, 127
        %v6745 = vand.u32 2147483647, %v4339
        %v6746 = vand.u32 %v6745, 8388607
        %v6747 = vor.u32 %v6746, 8388608
        %v6748 = vsub.s32 0, %v6747
        %v6749 = vadd.s32 %v6744, 1
        %vm6750 = vcmp.gt.s32.totalorder %v6749, 0
        %v6751 = vsel %vm6750, %v6749, 0
        %v6752 = vshrl.u32 %v6751, 5
        %v6753 = vand.u32 %v6751, 31
        %v6754 = vsub.s32 32, %v6753
        %v6755 = vshrl.u32 683565275, %v6754
        %v6756 = vshll.u32 683565275, %v6753
        %v6757 = vshrl.u32 2475754826, %v6754
        %v6758 = vor.u32 %v6756, %v6757
        %v6759 = vshll.u32 2475754826, %v6753
        %v6760 = vshrl.u32 2131351028, %v6754
        %v6761 = vor.u32 %v6759, %v6760
        %v6762 = vshll.u32 2131351028, %v6753
        %v6763 = vshrl.u32 2102212464, %v6754
        %v6764 = vor.u32 %v6762, %v6763
        %v6765 = vshll.u32 2102212464, %v6753
        %v6766 = vshrl.u32 920167782, %v6754
        %v6767 = vor.u32 %v6765, %v6766
        %v6768 = vshll.u32 920167782, %v6753
        %v6769 = vshrl.u32 1326507024, %v6754
        %v6770 = vor.u32 %v6768, %v6769
        %vm6771 = vcmp.lt.s32.totalorder %v6752, 1
        %vm6772 = vcmp.lt.s32.totalorder %v6752, 2
        %vm6773 = vcmp.lt.s32.totalorder %v6752, 3
        %vm6774 = vcmp.lt.s32.totalorder %v6752, 4
        %v6775 = vsel %vm6771, %v6755, %v6758
        %v6776 = vsel %vm6774, %v6764, 2102212464
        %v6777 = vsel %vm6773, %v6761, %v6776
        %v6778 = vsel %vm6772, %v6775, %v6777
        %v6779 = vsel %vm6771, %v6758, %v6761
        %v6780 = vsel %vm6774, %v6767, 920167782
        %v6781 = vsel %vm6773, %v6764, %v6780
        %v6782 = vsel %vm6772, %v6779, %v6781
        %v6783 = vsel %vm6771, %v6761, %v6764
        %v6784 = vsel %vm6774, %v6770, 1326507024
        %v6785 = vsel %vm6773, %v6767, %v6784
        %v6786 = vsel %vm6772, %v6783, %v6785
        %v6787 = vshll.u32 %v6747, 8
        %v6788 = vmul.u32.u64.compose %v6787, %v6786
        %v6789 = vextract.low.u32 %v6788
        %v6790 = vextract.high.u32 %v6788
        %v6791 = vmul.u32.u64.compose %v6787, %v6782
        %v6792 = vextract.low.u32 %v6791
        %v6793 = vextract.high.u32 %v6791
        %v6794 = vmul.u32 %v6787, %v6778
        %v6795 = vadd.s32 %v6790, %v6792
        %vm6796 = vc.u32 %v6790, %v6792
        %v6797 = vadd.s32 %v6793, 1
        %v6798 = vsel %vm6796, %v6797, %v6793
        %v6799 = vadd.s32 %v6794, %v6798
        %v6800 = vadd.s32 %v6799, 536870912
        %v6801 = vshrl.u32 %v6800, 30
        %v6802 = vshll.u32 %v6801, 30
        %v6803 = vsub.s32 %v6799, %v6802
        %vm6804 = vcmp.lt.s32.totalorder %v6803, 0
        %v6805 = vsub.s32 0, %v6803
        %v6806 = vsel %vm6804, %v6805, %v6803
        %v6807 = vclz %v6806
        %v6808 = vsub.s32 %v6807, 2
        %vm6809 = vcmp.gt.s32.totalorder 0, %v6808
        %v6810 = vsel %vm6809, 0, %v6808
        %v6811 = vsub.s32 32, %v6810
        %v6812 = vshll.u32 %v6803, %v6810
        %v6813 = vshrl.u32 %v6795, %v6811
        %v6814 = vor.u32 %v6812, %v6813
        %v6815 = vsub.s32 4294967266, %v6810
        %v6816 = vadd.s32 %v6815, 127
        %v6817 = vshll.u32 %v6816, 23
        %v6818 = vor.u32 4788187, %v6817
        %v6819 = vand.u32 2147483647, %v6818
        %v6821 = vcvt.s32.f32 %v6814
        %v6822 = vmul.f32 %v6821, %v6819
        %v6823 = vxor.u32 %v6822, 2147483648
        %v6824 = vsel %vm6741, %v6823, %v6822
        %v6825 = vsub.s32 4, %v6801
        %v6826 = vsel %vm6741, %v6825, %v6801
        %v6827 = vsel %vm6740, %v4339, %v6824
        %v6828 = vsel %vm6740, 0, %v6826
        %v6829 = vcosq.f32.pop %v6827
        %v6830 = vsinq.f32.pop %v6827
        %vm6831 = vweird.f32 %v4339
        %v6832 = vadd.s32 %v6828, 3
        %v6833 = vand.u32 %v6832, 3
        %vm6834 = vcmp.lt.s32.totalorder %v6833, 2
        %vm6835 = vcmp.eq.s32.totalorder %v6833, 0
        %v6836 = vxor.u32 %v6830, 2147483648
        %v6837 = vsel %vm6835, %v6829, %v6836
        %vm6838 = vcmp.eq.s32.totalorder %v6833, 2
        %v6839 = vxor.u32 %v6829, 2147483648
        %v6840 = vsel %vm6838, %v6839, %v6830
        %v6841 = vsel %vm6834, %v6837, %v6840
        %v6842 = vsel %vm6831, nan, %v6841
        %v6843 = vand.u32 2147483647, %v4076
        %vm6844 = vcmp.le.f32.partialorder %v6843, 0.7853982
        %vm6845 = vcmp.lt.s32.totalorder %v4076, 0
        %v6846 = vand.u32 %v4076, 2139095040
        %v6847 = vshrl.u32 %v6846, 23
        %v6848 = vsub.s32 %v6847, 127
        %v6849 = vand.u32 2147483647, %v4076
        %v6850 = vand.u32 %v6849, 8388607
        %v6851 = vor.u32 %v6850, 8388608
        %v6852 = vsub.s32 0, %v6851
        %v6853 = vadd.s32 %v6848, 1
        %vm6854 = vcmp.gt.s32.totalorder %v6853, 0
        %v6855 = vsel %vm6854, %v6853, 0
        %v6856 = vshrl.u32 %v6855, 5
        %v6857 = vand.u32 %v6855, 31
        %v6858 = vsub.s32 32, %v6857
        %v6859 = vshrl.u32 683565275, %v6858
        %v6860 = vshll.u32 683565275, %v6857
        %v6861 = vshrl.u32 2475754826, %v6858
        %v6862 = vor.u32 %v6860, %v6861
        %v6863 = vshll.u32 2475754826, %v6857
        %v6864 = vshrl.u32 2131351028, %v6858
        %v6865 = vor.u32 %v6863, %v6864
        %v6866 = vshll.u32 2131351028, %v6857
        %v6867 = vshrl.u32 2102212464, %v6858
        %v6868 = vor.u32 %v6866, %v6867
        %v6869 = vshll.u32 2102212464, %v6857
        %v6870 = vshrl.u32 920167782, %v6858
        %v6871 = vor.u32 %v6869, %v6870
        %v6872 = vshll.u32 920167782, %v6857
        %v6873 = vshrl.u32 1326507024, %v6858
        %v6874 = vor.u32 %v6872, %v6873
        %vm6875 = vcmp.lt.s32.totalorder %v6856, 1
        %vm6876 = vcmp.lt.s32.totalorder %v6856, 2
        %vm6877 = vcmp.lt.s32.totalorder %v6856, 3
        %vm6878 = vcmp.lt.s32.totalorder %v6856, 4
        %v6879 = vsel %vm6875, %v6859, %v6862
        %v6880 = vsel %vm6878, %v6868, 2102212464
        %v6881 = vsel %vm6877, %v6865, %v6880
        %v6882 = vsel %vm6876, %v6879, %v6881
        %v6883 = vsel %vm6875, %v6862, %v6865
        %v6884 = vsel %vm6878, %v6871, 920167782
        %v6885 = vsel %vm6877, %v6868, %v6884
        %v6886 = vsel %vm6876, %v6883, %v6885
        %v6887 = vsel %vm6875, %v6865, %v6868
        %v6888 = vsel %vm6878, %v6874, 1326507024
        %v6889 = vsel %vm6877, %v6871, %v6888
        %v6890 = vsel %vm6876, %v6887, %v6889
        %v6891 = vshll.u32 %v6851, 8
        %v6892 = vmul.u32.u64.compose %v6891, %v6890
        %v6893 = vextract.low.u32 %v6892
        %v6894 = vextract.high.u32 %v6892
        %v6895 = vmul.u32.u64.compose %v6891, %v6886
        %v6896 = vextract.low.u32 %v6895
        %v6897 = vextract.high.u32 %v6895
        %v6898 = vmul.u32 %v6891, %v6882
        %v6899 = vadd.s32 %v6894, %v6896
        %vm6900 = vc.u32 %v6894, %v6896
        %v6901 = vadd.s32 %v6897, 1
        %v6902 = vsel %vm6900, %v6901, %v6897
        %v6903 = vadd.s32 %v6898, %v6902
        %v6904 = vadd.s32 %v6903, 536870912
        %v6905 = vshrl.u32 %v6904, 30
        %v6906 = vshll.u32 %v6905, 30
        %v6907 = vsub.s32 %v6903, %v6906
        %vm6908 = vcmp.lt.s32.totalorder %v6907, 0
        %v6909 = vsub.s32 0, %v6907
        %v6910 = vsel %vm6908, %v6909, %v6907
        %v6911 = vclz %v6910
        %v6912 = vsub.s32 %v6911, 2
        %vm6913 = vcmp.gt.s32.totalorder 0, %v6912
        %v6914 = vsel %vm6913, 0, %v6912
        %v6915 = vsub.s32 32, %v6914
        %v6916 = vshll.u32 %v6907, %v6914
        %v6917 = vshrl.u32 %v6899, %v6915
        %v6918 = vor.u32 %v6916, %v6917
        %v6919 = vsub.s32 4294967266, %v6914
        %v6920 = vadd.s32 %v6919, 127
        %v6921 = vshll.u32 %v6920, 23
        %v6922 = vor.u32 4788187, %v6921
        %v6923 = vand.u32 2147483647, %v6922
        %v6925 = vcvt.s32.f32 %v6918
        %v6926 = vmul.f32 %v6925, %v6923
        %v6927 = vxor.u32 %v6926, 2147483648
        %v6928 = vsel %vm6845, %v6927, %v6926
        %v6929 = vsub.s32 4, %v6905
        %v6930 = vsel %vm6845, %v6929, %v6905
        %v6931 = vsel %vm6844, %v4076, %v6928
        %v6932 = vsel %vm6844, 0, %v6930
        %v6933 = vcosq.f32.pop %v6931
        %v6934 = vsinq.f32.pop %v6931
        %vm6935 = vweird.f32 %v4076
        %v6936 = vadd.s32 %v6932, 3
        %v6937 = vand.u32 %v6936, 3
        %vm6938 = vcmp.lt.s32.totalorder %v6937, 2
        %vm6939 = vcmp.eq.s32.totalorder %v6937, 0
        %v6940 = vxor.u32 %v6934, 2147483648
        %v6941 = vsel %vm6939, %v6933, %v6940
        %vm6942 = vcmp.eq.s32.totalorder %v6937, 2
        %v6943 = vxor.u32 %v6933, 2147483648
        %v6944 = vsel %vm6942, %v6943, %v6934
        %v6945 = vsel %vm6938, %v6941, %v6944
        %v6946 = vsel %vm6935, nan, %v6945
        %v6947 = vand.u32 2147483647, %v4078
        %vm6948 = vcmp.le.f32.partialorder %v6947, 0.7853982
        %vm6949 = vcmp.lt.s32.totalorder %v4078, 0
        %v6950 = vand.u32 %v4078, 2139095040
        %v6951 = vshrl.u32 %v6950, 23
        %v6952 = vsub.s32 %v6951, 127
        %v6953 = vand.u32 2147483647, %v4078
        %v6954 = vand.u32 %v6953, 8388607
        %v6955 = vor.u32 %v6954, 8388608
        %v6956 = vsub.s32 0, %v6955
        %v6957 = vadd.s32 %v6952, 1
        %vm6958 = vcmp.gt.s32.totalorder %v6957, 0
        %v6959 = vsel %vm6958, %v6957, 0
        %v6960 = vshrl.u32 %v6959, 5
        %v6961 = vand.u32 %v6959, 31
        %v6962 = vsub.s32 32, %v6961
        %v6963 = vshrl.u32 683565275, %v6962
        %v6964 = vshll.u32 683565275, %v6961
        %v6965 = vshrl.u32 2475754826, %v6962
        %v6966 = vor.u32 %v6964, %v6965
        %v6967 = vshll.u32 2475754826, %v6961
        %v6968 = vshrl.u32 2131351028, %v6962
        %v6969 = vor.u32 %v6967, %v6968
        %v6970 = vshll.u32 2131351028, %v6961
        %v6971 = vshrl.u32 2102212464, %v6962
        %v6972 = vor.u32 %v6970, %v6971
        %v6973 = vshll.u32 2102212464, %v6961
        %v6974 = vshrl.u32 920167782, %v6962
        %v6975 = vor.u32 %v6973, %v6974
        %v6976 = vshll.u32 920167782, %v6961
        %v6977 = vshrl.u32 1326507024, %v6962
        %v6978 = vor.u32 %v6976, %v6977
        %vm6979 = vcmp.lt.s32.totalorder %v6960, 1
        %vm6980 = vcmp.lt.s32.totalorder %v6960, 2
        %vm6981 = vcmp.lt.s32.totalorder %v6960, 3
        %vm6982 = vcmp.lt.s32.totalorder %v6960, 4
        %v6983 = vsel %vm6979, %v6963, %v6966
        %v6984 = vsel %vm6982, %v6972, 2102212464
        %v6985 = vsel %vm6981, %v6969, %v6984
        %v6986 = vsel %vm6980, %v6983, %v6985
        %v6987 = vsel %vm6979, %v6966, %v6969
        %v6988 = vsel %vm6982, %v6975, 920167782
        %v6989 = vsel %vm6981, %v6972, %v6988
        %v6990 = vsel %vm6980, %v6987, %v6989
        %v6991 = vsel %vm6979, %v6969, %v6972
        %v6992 = vsel %vm6982, %v6978, 1326507024
        %v6993 = vsel %vm6981, %v6975, %v6992
        %v6994 = vsel %vm6980, %v6991, %v6993
        %v6995 = vshll.u32 %v6955, 8
        %v6996 = vmul.u32.u64.compose %v6995, %v6994
        %v6997 = vextract.low.u32 %v6996
        %v6998 = vextract.high.u32 %v6996
        %v6999 = vmul.u32.u64.compose %v6995, %v6990
        %v7000 = vextract.low.u32 %v6999
        %v7001 = vextract.high.u32 %v6999
        %v7002 = vmul.u32 %v6995, %v6986
        %v7003 = vadd.s32 %v6998, %v7000
        %vm7004 = vc.u32 %v6998, %v7000
        %v7005 = vadd.s32 %v7001, 1
        %v7006 = vsel %vm7004, %v7005, %v7001
        %v7007 = vadd.s32 %v7002, %v7006
        %v7008 = vadd.s32 %v7007, 536870912
        %v7009 = vshrl.u32 %v7008, 30
        %v7010 = vshll.u32 %v7009, 30
        %v7011 = vsub.s32 %v7007, %v7010
        %vm7012 = vcmp.lt.s32.totalorder %v7011, 0
        %v7013 = vsub.s32 0, %v7011
        %v7014 = vsel %vm7012, %v7013, %v7011
        %v7015 = vclz %v7014
        %v7016 = vsub.s32 %v7015, 2
        %vm7017 = vcmp.gt.s32.totalorder 0, %v7016
        %v7018 = vsel %vm7017, 0, %v7016
        %v7019 = vsub.s32 32, %v7018
        %v7020 = vshll.u32 %v7011, %v7018
        %v7021 = vshrl.u32 %v7003, %v7019
        %v7022 = vor.u32 %v7020, %v7021
        %v7023 = vsub.s32 4294967266, %v7018
        %v7024 = vadd.s32 %v7023, 127
        %v7025 = vshll.u32 %v7024, 23
        %v7026 = vor.u32 4788187, %v7025
        %v7027 = vand.u32 2147483647, %v7026
        %v7029 = vcvt.s32.f32 %v7022
        %v7030 = vmul.f32 %v7029, %v7027
        %v7031 = vxor.u32 %v7030, 2147483648
        %v7032 = vsel %vm6949, %v7031, %v7030
        %v7033 = vsub.s32 4, %v7009
        %v7034 = vsel %vm6949, %v7033, %v7009
        %v7035 = vsel %vm6948, %v4078, %v7032
        %v7036 = vsel %vm6948, 0, %v7034
        %v7037 = vcosq.f32.pop %v7035
        %v7038 = vsinq.f32.pop %v7035
        %vm7039 = vweird.f32 %v4078
        %v7040 = vadd.s32 %v7036, 3
        %v7041 = vand.u32 %v7040, 3
        %vm7042 = vcmp.lt.s32.totalorder %v7041, 2
        %vm7043 = vcmp.eq.s32.totalorder %v7041, 0
        %v7044 = vxor.u32 %v7038, 2147483648
        %v7045 = vsel %vm7043, %v7037, %v7044
        %vm7046 = vcmp.eq.s32.totalorder %v7041, 2
        %v7047 = vxor.u32 %v7037, 2147483648
        %v7048 = vsel %vm7046, %v7047, %v7038
        %v7049 = vsel %vm7042, %v7045, %v7048
        %v7050 = vsel %vm7039, nan, %v7049
        %v7051 = vand.u32 2147483647, %v4165
        %vm7052 = vcmp.le.f32.partialorder %v7051, 0.7853982
        %vm7053 = vcmp.lt.s32.totalorder %v4165, 0
        %v7054 = vand.u32 %v4165, 2139095040
        %v7055 = vshrl.u32 %v7054, 23
        %v7056 = vsub.s32 %v7055, 127
        %v7057 = vand.u32 2147483647, %v4165
        %v7058 = vand.u32 %v7057, 8388607
        %v7059 = vor.u32 %v7058, 8388608
        %v7060 = vsub.s32 0, %v7059
        %v7061 = vadd.s32 %v7056, 1
        %vm7062 = vcmp.gt.s32.totalorder %v7061, 0
        %v7063 = vsel %vm7062, %v7061, 0
        %v7064 = vshrl.u32 %v7063, 5
        %v7065 = vand.u32 %v7063, 31
        %v7066 = vsub.s32 32, %v7065
        %v7067 = vshrl.u32 683565275, %v7066
        %v7068 = vshll.u32 683565275, %v7065
        %v7069 = vshrl.u32 2475754826, %v7066
        %v7070 = vor.u32 %v7068, %v7069
        %v7071 = vshll.u32 2475754826, %v7065
        %v7072 = vshrl.u32 2131351028, %v7066
        %v7073 = vor.u32 %v7071, %v7072
        %v7074 = vshll.u32 2131351028, %v7065
        %v7075 = vshrl.u32 2102212464, %v7066
        %v7076 = vor.u32 %v7074, %v7075
        %v7077 = vshll.u32 2102212464, %v7065
        %v7078 = vshrl.u32 920167782, %v7066
        %v7079 = vor.u32 %v7077, %v7078
        %v7080 = vshll.u32 920167782, %v7065
        %v7081 = vshrl.u32 1326507024, %v7066
        %v7082 = vor.u32 %v7080, %v7081
        %vm7083 = vcmp.lt.s32.totalorder %v7064, 1
        %vm7084 = vcmp.lt.s32.totalorder %v7064, 2
        %vm7085 = vcmp.lt.s32.totalorder %v7064, 3
        %vm7086 = vcmp.lt.s32.totalorder %v7064, 4
        %v7087 = vsel %vm7083, %v7067, %v7070
        %v7088 = vsel %vm7086, %v7076, 2102212464
        %v7089 = vsel %vm7085, %v7073, %v7088
        %v7090 = vsel %vm7084, %v7087, %v7089
        %v7091 = vsel %vm7083, %v7070, %v7073
        %v7092 = vsel %vm7086, %v7079, 920167782
        %v7093 = vsel %vm7085, %v7076, %v7092
        %v7094 = vsel %vm7084, %v7091, %v7093
        %v7095 = vsel %vm7083, %v7073, %v7076
        %v7096 = vsel %vm7086, %v7082, 1326507024
        %v7097 = vsel %vm7085, %v7079, %v7096
        %v7098 = vsel %vm7084, %v7095, %v7097
        %v7099 = vshll.u32 %v7059, 8
        %v7100 = vmul.u32.u64.compose %v7099, %v7098
        %v7101 = vextract.low.u32 %v7100
        %v7102 = vextract.high.u32 %v7100
        %v7103 = vmul.u32.u64.compose %v7099, %v7094
        %v7104 = vextract.low.u32 %v7103
        %v7105 = vextract.high.u32 %v7103
        %v7106 = vmul.u32 %v7099, %v7090
        %v7107 = vadd.s32 %v7102, %v7104
        %vm7108 = vc.u32 %v7102, %v7104
        %v7109 = vadd.s32 %v7105, 1
        %v7110 = vsel %vm7108, %v7109, %v7105
        %v7111 = vadd.s32 %v7106, %v7110
        %v7112 = vadd.s32 %v7111, 536870912
        %v7113 = vshrl.u32 %v7112, 30
        %v7114 = vshll.u32 %v7113, 30
        %v7115 = vsub.s32 %v7111, %v7114
        %vm7116 = vcmp.lt.s32.totalorder %v7115, 0
        %v7117 = vsub.s32 0, %v7115
        %v7118 = vsel %vm7116, %v7117, %v7115
        %v7119 = vclz %v7118
        %v7120 = vsub.s32 %v7119, 2
        %vm7121 = vcmp.gt.s32.totalorder 0, %v7120
        %v7122 = vsel %vm7121, 0, %v7120
        %v7123 = vsub.s32 32, %v7122
        %v7124 = vshll.u32 %v7115, %v7122
        %v7125 = vshrl.u32 %v7107, %v7123
        %v7126 = vor.u32 %v7124, %v7125
        %v7127 = vsub.s32 4294967266, %v7122
        %v7128 = vadd.s32 %v7127, 127
        %v7129 = vshll.u32 %v7128, 23
        %v7130 = vor.u32 4788187, %v7129
        %v7131 = vand.u32 2147483647, %v7130
        %v7133 = vcvt.s32.f32 %v7126
        %v7134 = vmul.f32 %v7133, %v7131
        %v7135 = vxor.u32 %v7134, 2147483648
        %v7136 = vsel %vm7053, %v7135, %v7134
        %v7137 = vsub.s32 4, %v7113
        %v7138 = vsel %vm7053, %v7137, %v7113
        %v7139 = vsel %vm7052, %v4165, %v7136
        %v7140 = vsel %vm7052, 0, %v7138
        %v7141 = vcosq.f32.pop %v7139
        %v7142 = vsinq.f32.pop %v7139
        %vm7143 = vweird.f32 %v4165
        %v7144 = vadd.s32 %v7140, 3
        %v7145 = vand.u32 %v7144, 3
        %vm7146 = vcmp.lt.s32.totalorder %v7145, 2
        %vm7147 = vcmp.eq.s32.totalorder %v7145, 0
        %v7148 = vxor.u32 %v7142, 2147483648
        %v7149 = vsel %vm7147, %v7141, %v7148
        %vm7150 = vcmp.eq.s32.totalorder %v7145, 2
        %v7151 = vxor.u32 %v7141, 2147483648
        %v7152 = vsel %vm7150, %v7151, %v7142
        %v7153 = vsel %vm7146, %v7149, %v7152
        %v7154 = vsel %vm7143, nan, %v7153
        %v7155 = vand.u32 2147483647, %v4167
        %vm7156 = vcmp.le.f32.partialorder %v7155, 0.7853982
        %vm7157 = vcmp.lt.s32.totalorder %v4167, 0
        %v7158 = vand.u32 %v4167, 2139095040
        %v7159 = vshrl.u32 %v7158, 23
        %v7160 = vsub.s32 %v7159, 127
        %v7161 = vand.u32 2147483647, %v4167
        %v7162 = vand.u32 %v7161, 8388607
        %v7163 = vor.u32 %v7162, 8388608
        %v7164 = vsub.s32 0, %v7163
        %v7165 = vadd.s32 %v7160, 1
        %vm7166 = vcmp.gt.s32.totalorder %v7165, 0
        %v7167 = vsel %vm7166, %v7165, 0
        %v7168 = vshrl.u32 %v7167, 5
        %v7169 = vand.u32 %v7167, 31
        %v7170 = vsub.s32 32, %v7169
        %v7171 = vshrl.u32 683565275, %v7170
        %v7172 = vshll.u32 683565275, %v7169
        %v7173 = vshrl.u32 2475754826, %v7170
        %v7174 = vor.u32 %v7172, %v7173
        %v7175 = vshll.u32 2475754826, %v7169
        %v7176 = vshrl.u32 2131351028, %v7170
        %v7177 = vor.u32 %v7175, %v7176
        %v7178 = vshll.u32 2131351028, %v7169
        %v7179 = vshrl.u32 2102212464, %v7170
        %v7180 = vor.u32 %v7178, %v7179
        %v7181 = vshll.u32 2102212464, %v7169
        %v7182 = vshrl.u32 920167782, %v7170
        %v7183 = vor.u32 %v7181, %v7182
        %v7184 = vshll.u32 920167782, %v7169
        %v7185 = vshrl.u32 1326507024, %v7170
        %v7186 = vor.u32 %v7184, %v7185
        %vm7187 = vcmp.lt.s32.totalorder %v7168, 1
        %vm7188 = vcmp.lt.s32.totalorder %v7168, 2
        %vm7189 = vcmp.lt.s32.totalorder %v7168, 3
        %vm7190 = vcmp.lt.s32.totalorder %v7168, 4
        %v7191 = vsel %vm7187, %v7171, %v7174
        %v7192 = vsel %vm7190, %v7180, 2102212464
        %v7193 = vsel %vm7189, %v7177, %v7192
        %v7194 = vsel %vm7188, %v7191, %v7193
        %v7195 = vsel %vm7187, %v7174, %v7177
        %v7196 = vsel %vm7190, %v7183, 920167782
        %v7197 = vsel %vm7189, %v7180, %v7196
        %v7198 = vsel %vm7188, %v7195, %v7197
        %v7199 = vsel %vm7187, %v7177, %v7180
        %v7200 = vsel %vm7190, %v7186, 1326507024
        %v7201 = vsel %vm7189, %v7183, %v7200
        %v7202 = vsel %vm7188, %v7199, %v7201
        %v7203 = vshll.u32 %v7163, 8
        %v7204 = vmul.u32.u64.compose %v7203, %v7202
        %v7205 = vextract.low.u32 %v7204
        %v7206 = vextract.high.u32 %v7204
        %v7207 = vmul.u32.u64.compose %v7203, %v7198
        %v7208 = vextract.low.u32 %v7207
        %v7209 = vextract.high.u32 %v7207
        %v7210 = vmul.u32 %v7203, %v7194
        %v7211 = vadd.s32 %v7206, %v7208
        %vm7212 = vc.u32 %v7206, %v7208
        %v7213 = vadd.s32 %v7209, 1
        %v7214 = vsel %vm7212, %v7213, %v7209
        %v7215 = vadd.s32 %v7210, %v7214
        %v7216 = vadd.s32 %v7215, 536870912
        %v7217 = vshrl.u32 %v7216, 30
        %v7218 = vshll.u32 %v7217, 30
        %v7219 = vsub.s32 %v7215, %v7218
        %vm7220 = vcmp.lt.s32.totalorder %v7219, 0
        %v7221 = vsub.s32 0, %v7219
        %v7222 = vsel %vm7220, %v7221, %v7219
        %v7223 = vclz %v7222
        %v7224 = vsub.s32 %v7223, 2
        %vm7225 = vcmp.gt.s32.totalorder 0, %v7224
        %v7226 = vsel %vm7225, 0, %v7224
        %v7227 = vsub.s32 32, %v7226
        %v7228 = vshll.u32 %v7219, %v7226
        %v7229 = vshrl.u32 %v7211, %v7227
        %v7230 = vor.u32 %v7228, %v7229
        %v7231 = vsub.s32 4294967266, %v7226
        %v7232 = vadd.s32 %v7231, 127
        %v7233 = vshll.u32 %v7232, 23
        %v7234 = vor.u32 4788187, %v7233
        %v7235 = vand.u32 2147483647, %v7234
        %v7237 = vcvt.s32.f32 %v7230
        %v7238 = vmul.f32 %v7237, %v7235
        %v7239 = vxor.u32 %v7238, 2147483648
        %v7240 = vsel %vm7157, %v7239, %v7238
        %v7241 = vsub.s32 4, %v7217
        %v7242 = vsel %vm7157, %v7241, %v7217
        %v7243 = vsel %vm7156, %v4167, %v7240
        %v7244 = vsel %vm7156, 0, %v7242
        %v7245 = vcosq.f32.pop %v7243
        %v7246 = vsinq.f32.pop %v7243
        %vm7247 = vweird.f32 %v4167
        %v7248 = vadd.s32 %v7244, 3
        %v7249 = vand.u32 %v7248, 3
        %vm7250 = vcmp.lt.s32.totalorder %v7249, 2
        %vm7251 = vcmp.eq.s32.totalorder %v7249, 0
        %v7252 = vxor.u32 %v7246, 2147483648
        %v7253 = vsel %vm7251, %v7245, %v7252
        %vm7254 = vcmp.eq.s32.totalorder %v7249, 2
        %v7255 = vxor.u32 %v7245, 2147483648
        %v7256 = vsel %vm7254, %v7255, %v7246
        %v7257 = vsel %vm7250, %v7253, %v7256
        %v7258 = vsel %vm7247, nan, %v7257
        %v7259 = vand.u32 2147483647, %v4254
        %vm7260 = vcmp.le.f32.partialorder %v7259, 0.7853982
        %vm7261 = vcmp.lt.s32.totalorder %v4254, 0
        %v7262 = vand.u32 %v4254, 2139095040
        %v7263 = vshrl.u32 %v7262, 23
        %v7264 = vsub.s32 %v7263, 127
        %v7265 = vand.u32 2147483647, %v4254
        %v7266 = vand.u32 %v7265, 8388607
        %v7267 = vor.u32 %v7266, 8388608
        %v7268 = vsub.s32 0, %v7267
        %v7269 = vadd.s32 %v7264, 1
        %vm7270 = vcmp.gt.s32.totalorder %v7269, 0
        %v7271 = vsel %vm7270, %v7269, 0
        %v7272 = vshrl.u32 %v7271, 5
        %v7273 = vand.u32 %v7271, 31
        %v7274 = vsub.s32 32, %v7273
        %v7275 = vshrl.u32 683565275, %v7274
        %v7276 = vshll.u32 683565275, %v7273
        %v7277 = vshrl.u32 2475754826, %v7274
        %v7278 = vor.u32 %v7276, %v7277
        %v7279 = vshll.u32 2475754826, %v7273
        %v7280 = vshrl.u32 2131351028, %v7274
        %v7281 = vor.u32 %v7279, %v7280
        %v7282 = vshll.u32 2131351028, %v7273
        %v7283 = vshrl.u32 2102212464, %v7274
        %v7284 = vor.u32 %v7282, %v7283
        %v7285 = vshll.u32 2102212464, %v7273
        %v7286 = vshrl.u32 920167782, %v7274
        %v7287 = vor.u32 %v7285, %v7286
        %v7288 = vshll.u32 920167782, %v7273
        %v7289 = vshrl.u32 1326507024, %v7274
        %v7290 = vor.u32 %v7288, %v7289
        %vm7291 = vcmp.lt.s32.totalorder %v7272, 1
        %vm7292 = vcmp.lt.s32.totalorder %v7272, 2
        %vm7293 = vcmp.lt.s32.totalorder %v7272, 3
        %vm7294 = vcmp.lt.s32.totalorder %v7272, 4
        %v7295 = vsel %vm7291, %v7275, %v7278
        %v7296 = vsel %vm7294, %v7284, 2102212464
        %v7297 = vsel %vm7293, %v7281, %v7296
        %v7298 = vsel %vm7292, %v7295, %v7297
        %v7299 = vsel %vm7291, %v7278, %v7281
        %v7300 = vsel %vm7294, %v7287, 920167782
        %v7301 = vsel %vm7293, %v7284, %v7300
        %v7302 = vsel %vm7292, %v7299, %v7301
        %v7303 = vsel %vm7291, %v7281, %v7284
        %v7304 = vsel %vm7294, %v7290, 1326507024
        %v7305 = vsel %vm7293, %v7287, %v7304
        %v7306 = vsel %vm7292, %v7303, %v7305
        %v7307 = vshll.u32 %v7267, 8
        %v7308 = vmul.u32.u64.compose %v7307, %v7306
        %v7309 = vextract.low.u32 %v7308
        %v7310 = vextract.high.u32 %v7308
        %v7311 = vmul.u32.u64.compose %v7307, %v7302
        %v7312 = vextract.low.u32 %v7311
        %v7313 = vextract.high.u32 %v7311
        %v7314 = vmul.u32 %v7307, %v7298
        %v7315 = vadd.s32 %v7310, %v7312
        %vm7316 = vc.u32 %v7310, %v7312
        %v7317 = vadd.s32 %v7313, 1
        %v7318 = vsel %vm7316, %v7317, %v7313
        %v7319 = vadd.s32 %v7314, %v7318
        %v7320 = vadd.s32 %v7319, 536870912
        %v7321 = vshrl.u32 %v7320, 30
        %v7322 = vshll.u32 %v7321, 30
        %v7323 = vsub.s32 %v7319, %v7322
        %vm7324 = vcmp.lt.s32.totalorder %v7323, 0
        %v7325 = vsub.s32 0, %v7323
        %v7326 = vsel %vm7324, %v7325, %v7323
        %v7327 = vclz %v7326
        %v7328 = vsub.s32 %v7327, 2
        %vm7329 = vcmp.gt.s32.totalorder 0, %v7328
        %v7330 = vsel %vm7329, 0, %v7328
        %v7331 = vsub.s32 32, %v7330
        %v7332 = vshll.u32 %v7323, %v7330
        %v7333 = vshrl.u32 %v7315, %v7331
        %v7334 = vor.u32 %v7332, %v7333
        %v7335 = vsub.s32 4294967266, %v7330
        %v7336 = vadd.s32 %v7335, 127
        %v7337 = vshll.u32 %v7336, 23
        %v7338 = vor.u32 4788187, %v7337
        %v7339 = vand.u32 2147483647, %v7338
        %v7341 = vcvt.s32.f32 %v7334
        %v7342 = vmul.f32 %v7341, %v7339
        %v7343 = vxor.u32 %v7342, 2147483648
        %v7344 = vsel %vm7261, %v7343, %v7342
        %v7345 = vsub.s32 4, %v7321
        %v7346 = vsel %vm7261, %v7345, %v7321
        %v7347 = vsel %vm7260, %v4254, %v7344
        %v7348 = vsel %vm7260, 0, %v7346
        %v7349 = vcosq.f32.pop %v7347
        %v7350 = vsinq.f32.pop %v7347
        %vm7351 = vweird.f32 %v4254
        %v7352 = vadd.s32 %v7348, 3
        %v7353 = vand.u32 %v7352, 3
        %vm7354 = vcmp.lt.s32.totalorder %v7353, 2
        %vm7355 = vcmp.eq.s32.totalorder %v7353, 0
        %v7356 = vxor.u32 %v7350, 2147483648
        %v7357 = vsel %vm7355, %v7349, %v7356
        %vm7358 = vcmp.eq.s32.totalorder %v7353, 2
        %v7359 = vxor.u32 %v7349, 2147483648
        %v7360 = vsel %vm7358, %v7359, %v7350
        %v7361 = vsel %vm7354, %v7357, %v7360
        %v7362 = vsel %vm7351, nan, %v7361
        %v7363 = vand.u32 2147483647, %v4256
        %vm7364 = vcmp.le.f32.partialorder %v7363, 0.7853982
        %vm7365 = vcmp.lt.s32.totalorder %v4256, 0
        %v7366 = vand.u32 %v4256, 2139095040
        %v7367 = vshrl.u32 %v7366, 23
        %v7368 = vsub.s32 %v7367, 127
        %v7369 = vand.u32 2147483647, %v4256
        %v7370 = vand.u32 %v7369, 8388607
        %v7371 = vor.u32 %v7370, 8388608
        %v7372 = vsub.s32 0, %v7371
        %v7373 = vadd.s32 %v7368, 1
        %vm7374 = vcmp.gt.s32.totalorder %v7373, 0
        %v7375 = vsel %vm7374, %v7373, 0
        %v7376 = vshrl.u32 %v7375, 5
        %v7377 = vand.u32 %v7375, 31
        %v7378 = vsub.s32 32, %v7377
        %v7379 = vshrl.u32 683565275, %v7378
        %v7380 = vshll.u32 683565275, %v7377
        %v7381 = vshrl.u32 2475754826, %v7378
        %v7382 = vor.u32 %v7380, %v7381
        %v7383 = vshll.u32 2475754826, %v7377
        %v7384 = vshrl.u32 2131351028, %v7378
        %v7385 = vor.u32 %v7383, %v7384
        %v7386 = vshll.u32 2131351028, %v7377
        %v7387 = vshrl.u32 2102212464, %v7378
        %v7388 = vor.u32 %v7386, %v7387
        %v7389 = vshll.u32 2102212464, %v7377
        %v7390 = vshrl.u32 920167782, %v7378
        %v7391 = vor.u32 %v7389, %v7390
        %v7392 = vshll.u32 920167782, %v7377
        %v7393 = vshrl.u32 1326507024, %v7378
        %v7394 = vor.u32 %v7392, %v7393
        %vm7395 = vcmp.lt.s32.totalorder %v7376, 1
        %vm7396 = vcmp.lt.s32.totalorder %v7376, 2
        %vm7397 = vcmp.lt.s32.totalorder %v7376, 3
        %vm7398 = vcmp.lt.s32.totalorder %v7376, 4
        %v7399 = vsel %vm7395, %v7379, %v7382
        %v7400 = vsel %vm7398, %v7388, 2102212464
        %v7401 = vsel %vm7397, %v7385, %v7400
        %v7402 = vsel %vm7396, %v7399, %v7401
        %v7403 = vsel %vm7395, %v7382, %v7385
        %v7404 = vsel %vm7398, %v7391, 920167782
        %v7405 = vsel %vm7397, %v7388, %v7404
        %v7406 = vsel %vm7396, %v7403, %v7405
        %v7407 = vsel %vm7395, %v7385, %v7388
        %v7408 = vsel %vm7398, %v7394, 1326507024
        %v7409 = vsel %vm7397, %v7391, %v7408
        %v7410 = vsel %vm7396, %v7407, %v7409
        %v7411 = vshll.u32 %v7371, 8
        %v7412 = vmul.u32.u64.compose %v7411, %v7410
        %v7413 = vextract.low.u32 %v7412
        %v7414 = vextract.high.u32 %v7412
        %v7415 = vmul.u32.u64.compose %v7411, %v7406
        %v7416 = vextract.low.u32 %v7415
        %v7417 = vextract.high.u32 %v7415
        %v7418 = vmul.u32 %v7411, %v7402
        %v7419 = vadd.s32 %v7414, %v7416
        %vm7420 = vc.u32 %v7414, %v7416
        %v7421 = vadd.s32 %v7417, 1
        %v7422 = vsel %vm7420, %v7421, %v7417
        %v7423 = vadd.s32 %v7418, %v7422
        %v7424 = vadd.s32 %v7423, 536870912
        %v7425 = vshrl.u32 %v7424, 30
        %v7426 = vshll.u32 %v7425, 30
        %v7427 = vsub.s32 %v7423, %v7426
        %vm7428 = vcmp.lt.s32.totalorder %v7427, 0
        %v7429 = vsub.s32 0, %v7427
        %v7430 = vsel %vm7428, %v7429, %v7427
        %v7431 = vclz %v7430
        %v7432 = vsub.s32 %v7431, 2
        %vm7433 = vcmp.gt.s32.totalorder 0, %v7432
        %v7434 = vsel %vm7433, 0, %v7432
        %v7435 = vsub.s32 32, %v7434
        %v7436 = vshll.u32 %v7427, %v7434
        %v7437 = vshrl.u32 %v7419, %v7435
        %v7438 = vor.u32 %v7436, %v7437
        %v7439 = vsub.s32 4294967266, %v7434
        %v7440 = vadd.s32 %v7439, 127
        %v7441 = vshll.u32 %v7440, 23
        %v7442 = vor.u32 4788187, %v7441
        %v7443 = vand.u32 2147483647, %v7442
        %v7445 = vcvt.s32.f32 %v7438
        %v7446 = vmul.f32 %v7445, %v7443
        %v7447 = vxor.u32 %v7446, 2147483648
        %v7448 = vsel %vm7365, %v7447, %v7446
        %v7449 = vsub.s32 4, %v7425
        %v7450 = vsel %vm7365, %v7449, %v7425
        %v7451 = vsel %vm7364, %v4256, %v7448
        %v7452 = vsel %vm7364, 0, %v7450
        %v7453 = vcosq.f32.pop %v7451
        %v7454 = vsinq.f32.pop %v7451
        %vm7455 = vweird.f32 %v4256
        %v7456 = vadd.s32 %v7452, 3
        %v7457 = vand.u32 %v7456, 3
        %vm7458 = vcmp.lt.s32.totalorder %v7457, 2
        %vm7459 = vcmp.eq.s32.totalorder %v7457, 0
        %v7460 = vxor.u32 %v7454, 2147483648
        %v7461 = vsel %vm7459, %v7453, %v7460
        %vm7462 = vcmp.eq.s32.totalorder %v7457, 2
        %v7463 = vxor.u32 %v7453, 2147483648
        %v7464 = vsel %vm7462, %v7463, %v7454
        %v7465 = vsel %vm7458, %v7461, %v7464
        %v7466 = vsel %vm7455, nan, %v7465
        %v7467 = vand.u32 2147483647, %v4343
        %vm7468 = vcmp.le.f32.partialorder %v7467, 0.7853982
        %vm7469 = vcmp.lt.s32.totalorder %v4343, 0
        %v7470 = vand.u32 %v4343, 2139095040
        %v7471 = vshrl.u32 %v7470, 23
        %v7472 = vsub.s32 %v7471, 127
        %v7473 = vand.u32 2147483647, %v4343
        %v7474 = vand.u32 %v7473, 8388607
        %v7475 = vor.u32 %v7474, 8388608
        %v7476 = vsub.s32 0, %v7475
        %v7477 = vadd.s32 %v7472, 1
        %vm7478 = vcmp.gt.s32.totalorder %v7477, 0
        %v7479 = vsel %vm7478, %v7477, 0
        %v7480 = vshrl.u32 %v7479, 5
        %v7481 = vand.u32 %v7479, 31
        %v7482 = vsub.s32 32, %v7481
        %v7483 = vshrl.u32 683565275, %v7482
        %v7484 = vshll.u32 683565275, %v7481
        %v7485 = vshrl.u32 2475754826, %v7482
        %v7486 = vor.u32 %v7484, %v7485
        %v7487 = vshll.u32 2475754826, %v7481
        %v7488 = vshrl.u32 2131351028, %v7482
        %v7489 = vor.u32 %v7487, %v7488
        %v7490 = vshll.u32 2131351028, %v7481
        %v7491 = vshrl.u32 2102212464, %v7482
        %v7492 = vor.u32 %v7490, %v7491
        %v7493 = vshll.u32 2102212464, %v7481
        %v7494 = vshrl.u32 920167782, %v7482
        %v7495 = vor.u32 %v7493, %v7494
        %v7496 = vshll.u32 920167782, %v7481
        %v7497 = vshrl.u32 1326507024, %v7482
        %v7498 = vor.u32 %v7496, %v7497
        %vm7499 = vcmp.lt.s32.totalorder %v7480, 1
        %vm7500 = vcmp.lt.s32.totalorder %v7480, 2
        %vm7501 = vcmp.lt.s32.totalorder %v7480, 3
        %vm7502 = vcmp.lt.s32.totalorder %v7480, 4
        %v7503 = vsel %vm7499, %v7483, %v7486
        %v7504 = vsel %vm7502, %v7492, 2102212464
        %v7505 = vsel %vm7501, %v7489, %v7504
        %v7506 = vsel %vm7500, %v7503, %v7505
        %v7507 = vsel %vm7499, %v7486, %v7489
        %v7508 = vsel %vm7502, %v7495, 920167782
        %v7509 = vsel %vm7501, %v7492, %v7508
        %v7510 = vsel %vm7500, %v7507, %v7509
        %v7511 = vsel %vm7499, %v7489, %v7492
        %v7512 = vsel %vm7502, %v7498, 1326507024
        %v7513 = vsel %vm7501, %v7495, %v7512
        %v7514 = vsel %vm7500, %v7511, %v7513
        %v7515 = vshll.u32 %v7475, 8
        %v7516 = vmul.u32.u64.compose %v7515, %v7514
        %v7517 = vextract.low.u32 %v7516
        %v7518 = vextract.high.u32 %v7516
        %v7519 = vmul.u32.u64.compose %v7515, %v7510
        %v7520 = vextract.low.u32 %v7519
        %v7521 = vextract.high.u32 %v7519
        %v7522 = vmul.u32 %v7515, %v7506
        %v7523 = vadd.s32 %v7518, %v7520
        %vm7524 = vc.u32 %v7518, %v7520
        %v7525 = vadd.s32 %v7521, 1
        %v7526 = vsel %vm7524, %v7525, %v7521
        %v7527 = vadd.s32 %v7522, %v7526
        %v7528 = vadd.s32 %v7527, 536870912
        %v7529 = vshrl.u32 %v7528, 30
        %v7530 = vshll.u32 %v7529, 30
        %v7531 = vsub.s32 %v7527, %v7530
        %vm7532 = vcmp.lt.s32.totalorder %v7531, 0
        %v7533 = vsub.s32 0, %v7531
        %v7534 = vsel %vm7532, %v7533, %v7531
        %v7535 = vclz %v7534
        %v7536 = vsub.s32 %v7535, 2
        %vm7537 = vcmp.gt.s32.totalorder 0, %v7536
        %v7538 = vsel %vm7537, 0, %v7536
        %v7539 = vsub.s32 32, %v7538
        %v7540 = vshll.u32 %v7531, %v7538
        %v7541 = vshrl.u32 %v7523, %v7539
        %v7542 = vor.u32 %v7540, %v7541
        %v7543 = vsub.s32 4294967266, %v7538
        %v7544 = vadd.s32 %v7543, 127
        %v7545 = vshll.u32 %v7544, 23
        %v7546 = vor.u32 4788187, %v7545
        %v7547 = vand.u32 2147483647, %v7546
        %v7549 = vcvt.s32.f32 %v7542
        %v7550 = vmul.f32 %v7549, %v7547
        %v7551 = vxor.u32 %v7550, 2147483648
        %v7552 = vsel %vm7469, %v7551, %v7550
        %v7553 = vsub.s32 4, %v7529
        %v7554 = vsel %vm7469, %v7553, %v7529
        %v7555 = vsel %vm7468, %v4343, %v7552
        %v7556 = vsel %vm7468, 0, %v7554
        %v7557 = vcosq.f32.pop %v7555
        %v7558 = vsinq.f32.pop %v7555
        %vm7559 = vweird.f32 %v4343
        %v7560 = vadd.s32 %v7556, 3
        %v7561 = vand.u32 %v7560, 3
        %vm7562 = vcmp.lt.s32.totalorder %v7561, 2
        %vm7563 = vcmp.eq.s32.totalorder %v7561, 0
        %v7564 = vxor.u32 %v7558, 2147483648
        %v7565 = vsel %vm7563, %v7557, %v7564
        %vm7566 = vcmp.eq.s32.totalorder %v7561, 2
        %v7567 = vxor.u32 %v7557, 2147483648
        %v7568 = vsel %vm7566, %v7567, %v7558
        %v7569 = vsel %vm7562, %v7565, %v7568
        %v7570 = vsel %vm7559, nan, %v7569
        %v7571 = vand.u32 2147483647, %v4345
        %vm7572 = vcmp.le.f32.partialorder %v7571, 0.7853982
        %vm7573 = vcmp.lt.s32.totalorder %v4345, 0
        %v7574 = vand.u32 %v4345, 2139095040
        %v7575 = vshrl.u32 %v7574, 23
        %v7576 = vsub.s32 %v7575, 127
        %v7577 = vand.u32 2147483647, %v4345
        %v7578 = vand.u32 %v7577, 8388607
        %v7579 = vor.u32 %v7578, 8388608
        %v7580 = vsub.s32 0, %v7579
        %v7581 = vadd.s32 %v7576, 1
        %vm7582 = vcmp.gt.s32.totalorder %v7581, 0
        %v7583 = vsel %vm7582, %v7581, 0
        %v7584 = vshrl.u32 %v7583, 5
        %v7585 = vand.u32 %v7583, 31
        %v7586 = vsub.s32 32, %v7585
        %v7587 = vshrl.u32 683565275, %v7586
        %v7588 = vshll.u32 683565275, %v7585
        %v7589 = vshrl.u32 2475754826, %v7586
        %v7590 = vor.u32 %v7588, %v7589
        %v7591 = vshll.u32 2475754826, %v7585
        %v7592 = vshrl.u32 2131351028, %v7586
        %v7593 = vor.u32 %v7591, %v7592
        %v7594 = vshll.u32 2131351028, %v7585
        %v7595 = vshrl.u32 2102212464, %v7586
        %v7596 = vor.u32 %v7594, %v7595
        %v7597 = vshll.u32 2102212464, %v7585
        %v7598 = vshrl.u32 920167782, %v7586
        %v7599 = vor.u32 %v7597, %v7598
        %v7600 = vshll.u32 920167782, %v7585
        %v7601 = vshrl.u32 1326507024, %v7586
        %v7602 = vor.u32 %v7600, %v7601
        %vm7603 = vcmp.lt.s32.totalorder %v7584, 1
        %vm7604 = vcmp.lt.s32.totalorder %v7584, 2
        %vm7605 = vcmp.lt.s32.totalorder %v7584, 3
        %vm7606 = vcmp.lt.s32.totalorder %v7584, 4
        %v7607 = vsel %vm7603, %v7587, %v7590
        %v7608 = vsel %vm7606, %v7596, 2102212464
        %v7609 = vsel %vm7605, %v7593, %v7608
        %v7610 = vsel %vm7604, %v7607, %v7609
        %v7611 = vsel %vm7603, %v7590, %v7593
        %v7612 = vsel %vm7606, %v7599, 920167782
        %v7613 = vsel %vm7605, %v7596, %v7612
        %v7614 = vsel %vm7604, %v7611, %v7613
        %v7615 = vsel %vm7603, %v7593, %v7596
        %v7616 = vsel %vm7606, %v7602, 1326507024
        %v7617 = vsel %vm7605, %v7599, %v7616
        %v7618 = vsel %vm7604, %v7615, %v7617
        %v7619 = vshll.u32 %v7579, 8
        %v7620 = vmul.u32.u64.compose %v7619, %v7618
        %v7621 = vextract.low.u32 %v7620
        %v7622 = vextract.high.u32 %v7620
        %v7623 = vmul.u32.u64.compose %v7619, %v7614
        %v7624 = vextract.low.u32 %v7623
        %v7625 = vextract.high.u32 %v7623
        %v7626 = vmul.u32 %v7619, %v7610
        %v7627 = vadd.s32 %v7622, %v7624
        %vm7628 = vc.u32 %v7622, %v7624
        %v7629 = vadd.s32 %v7625, 1
        %v7630 = vsel %vm7628, %v7629, %v7625
        %v7631 = vadd.s32 %v7626, %v7630
        %v7632 = vadd.s32 %v7631, 536870912
        %v7633 = vshrl.u32 %v7632, 30
        %v7634 = vshll.u32 %v7633, 30
        %v7635 = vsub.s32 %v7631, %v7634
        %vm7636 = vcmp.lt.s32.totalorder %v7635, 0
        %v7637 = vsub.s32 0, %v7635
        %v7638 = vsel %vm7636, %v7637, %v7635
        %v7639 = vclz %v7638
        %v7640 = vsub.s32 %v7639, 2
        %vm7641 = vcmp.gt.s32.totalorder 0, %v7640
        %v7642 = vsel %vm7641, 0, %v7640
        %v7643 = vsub.s32 32, %v7642
        %v7644 = vshll.u32 %v7635, %v7642
        %v7645 = vshrl.u32 %v7627, %v7643
        %v7646 = vor.u32 %v7644, %v7645
        %v7647 = vsub.s32 4294967266, %v7642
        %v7648 = vadd.s32 %v7647, 127
        %v7649 = vshll.u32 %v7648, 23
        %v7650 = vor.u32 4788187, %v7649
        %v7651 = vand.u32 2147483647, %v7650
        %v7653 = vcvt.s32.f32 %v7646
        %v7654 = vmul.f32 %v7653, %v7651
        %v7655 = vxor.u32 %v7654, 2147483648
        %v7656 = vsel %vm7573, %v7655, %v7654
        %v7657 = vsub.s32 4, %v7633
        %v7658 = vsel %vm7573, %v7657, %v7633
        %v7659 = vsel %vm7572, %v4345, %v7656
        %v7660 = vsel %vm7572, 0, %v7658
        %v7661 = vcosq.f32.pop %v7659
        %v7662 = vsinq.f32.pop %v7659
        %vm7663 = vweird.f32 %v4345
        %v7664 = vadd.s32 %v7660, 3
        %v7665 = vand.u32 %v7664, 3
        %vm7666 = vcmp.lt.s32.totalorder %v7665, 2
        %vm7667 = vcmp.eq.s32.totalorder %v7665, 0
        %v7668 = vxor.u32 %v7662, 2147483648
        %v7669 = vsel %vm7667, %v7661, %v7668
        %vm7670 = vcmp.eq.s32.totalorder %v7665, 2
        %v7671 = vxor.u32 %v7661, 2147483648
        %v7672 = vsel %vm7670, %v7671, %v7662
        %v7673 = vsel %vm7666, %v7669, %v7672
        %v7674 = vsel %vm7663, nan, %v7673
        %v7675 = vld [vmem:[%s5] sm:$0x1]
        %v7676 = vld [vmem:[#allocation2] sm:$0x1]
        %v7677 = vlaneseq
        %v7678 = vshrl.u32 %v7677, 7
        %v7679 = vsub.s32 0, %v7678
        %v7680 = vrot.slane %v7675, %v7679
        %7682 = vbcast.lane.b32.xlu0 %v7680, 256
        %v7683 = vpop.permute.xlu0 %7682
        %s7685 = sor.u32 256, 8
        %7686 = vbcast.lane.b32.xlu0 %v7680, %s7685
        %v7687 = vpop.permute.xlu0 %7686
        %s7689 = sor.u32 256, 16
        %7690 = vbcast.lane.b32.xlu0 %v7680, %s7689
        %v7691 = vpop.permute.xlu0 %7690
        %s7693 = sor.u32 256, 24
        %7694 = vbcast.lane.b32.xlu0 %v7680, %s7693
        %v7695 = vpop.permute.xlu0 %7694
        %v7696 = vmul.f32 %v7683, %v4450
        %v7697 = vmul.f32 %v7683, %v4554
        %v7698 = vmul.f32 %v7683, %v4658
        %v7699 = vmul.f32 %v7683, %v4762
        %v7700 = vmul.f32 %v7683, %v4866
        %v7701 = vmul.f32 %v7683, %v4970
        %v7702 = vmul.f32 %v7683, %v5074
        %v7703 = vmul.f32 %v7683, %v5178
        %v7704 = vmul.f32 %v7687, %v5282
        %v7705 = vmul.f32 %v7687, %v5386
        %v7706 = vmul.f32 %v7687, %v5490
        %v7707 = vmul.f32 %v7687, %v5594
        %v7708 = vmul.f32 %v7687, %v5698
        %v7709 = vmul.f32 %v7687, %v5802
        %v7710 = vmul.f32 %v7687, %v5906
        %v7711 = vmul.f32 %v7687, %v6010
        %v7712 = vmul.f32 %v7691, %v6114
        %v7713 = vmul.f32 %v7691, %v6218
        %v7714 = vmul.f32 %v7691, %v6322
        %v7715 = vmul.f32 %v7691, %v6426
        %v7716 = vmul.f32 %v7691, %v6530
        %v7717 = vmul.f32 %v7691, %v6634
        %v7718 = vmul.f32 %v7691, %v6738
        %v7719 = vmul.f32 %v7691, %v6842
        %v7720 = vmul.f32 %v7695, %v6946
        %v7721 = vmul.f32 %v7695, %v7050
        %v7722 = vmul.f32 %v7695, %v7154
        %v7723 = vmul.f32 %v7695, %v7258
        %v7724 = vmul.f32 %v7695, %v7362
        %v7725 = vmul.f32 %v7695, %v7466
        %v7726 = vmul.f32 %v7695, %v7570
        %v7727 = vmul.f32 %v7695, %v7674
        %v7728 = vadd.f32 %v7696, %v7704
        %v7729 = vadd.f32 %v7728, %v7712
        %v7730 = vadd.f32 %v7729, %v7720
        %v7731 = vrot.slane %v7730, 4
        %v7732 = vadd.f32 %v7730, %v7731
        %v7733 = vrot.slane %v7732, 2
        %v7734 = vadd.f32 %v7732, %v7733
        %v7735 = vrot.slane %v7734, 1
        %v7736 = vadd.f32 %v7734, %v7735
        %v7737 = vadd.f32 %v7697, %v7705
        %v7738 = vadd.f32 %v7737, %v7713
        %v7739 = vadd.f32 %v7738, %v7721
        %v7740 = vrot.slane %v7739, 4
        %v7741 = vadd.f32 %v7739, %v7740
        %v7742 = vrot.slane %v7741, 2
        %v7743 = vadd.f32 %v7741, %v7742
        %v7744 = vrot.slane %v7743, 1
        %v7745 = vadd.f32 %v7743, %v7744
        %v7746 = vadd.f32 %v7698, %v7706
        %v7747 = vadd.f32 %v7746, %v7714
        %v7748 = vadd.f32 %v7747, %v7722
        %v7749 = vrot.slane %v7748, 4
        %v7750 = vadd.f32 %v7748, %v7749
        %v7751 = vrot.slane %v7750, 2
        %v7752 = vadd.f32 %v7750, %v7751
        %v7753 = vrot.slane %v7752, 1
        %v7754 = vadd.f32 %v7752, %v7753
        %v7755 = vadd.f32 %v7699, %v7707
        %v7756 = vadd.f32 %v7755, %v7715
        %v7757 = vadd.f32 %v7756, %v7723
        %v7758 = vrot.slane %v7757, 4
        %v7759 = vadd.f32 %v7757, %v7758
        %v7760 = vrot.slane %v7759, 2
        %v7761 = vadd.f32 %v7759, %v7760
        %v7762 = vrot.slane %v7761, 1
        %v7763 = vadd.f32 %v7761, %v7762
        %v7764 = vadd.f32 %v7700, %v7708
        %v7765 = vadd.f32 %v7764, %v7716
        %v7766 = vadd.f32 %v7765, %v7724
        %v7767 = vrot.slane %v7766, 4
        %v7768 = vadd.f32 %v7766, %v7767
        %v7769 = vrot.slane %v7768, 2
        %v7770 = vadd.f32 %v7768, %v7769
        %v7771 = vrot.slane %v7770, 1
        %v7772 = vadd.f32 %v7770, %v7771
        %v7773 = vadd.f32 %v7701, %v7709
        %v7774 = vadd.f32 %v7773, %v7717
        %v7775 = vadd.f32 %v7774, %v7725
        %v7776 = vrot.slane %v7775, 4
        %v7777 = vadd.f32 %v7775, %v7776
        %v7778 = vrot.slane %v7777, 2
        %v7779 = vadd.f32 %v7777, %v7778
        %v7780 = vrot.slane %v7779, 1
        %v7781 = vadd.f32 %v7779, %v7780
        %v7782 = vadd.f32 %v7702, %v7710
        %v7783 = vadd.f32 %v7782, %v7718
        %v7784 = vadd.f32 %v7783, %v7726
        %v7785 = vrot.slane %v7784, 4
        %v7786 = vadd.f32 %v7784, %v7785
        %v7787 = vrot.slane %v7786, 2
        %v7788 = vadd.f32 %v7786, %v7787
        %v7789 = vrot.slane %v7788, 1
        %v7790 = vadd.f32 %v7788, %v7789
        %v7791 = vadd.f32 %v7703, %v7711
        %v7792 = vadd.f32 %v7791, %v7719
        %v7793 = vadd.f32 %v7792, %v7727
        %v7794 = vrot.slane %v7793, 4
        %v7795 = vadd.f32 %v7793, %v7794
        %v7796 = vrot.slane %v7795, 2
        %v7797 = vadd.f32 %v7795, %v7796
        %v7798 = vrot.slane %v7797, 1
        %v7799 = vadd.f32 %v7797, %v7798
        %7801 = vset.pattern.permute.xlu0 0
        %7802 = vperm.xlu0 %7801, %v7676
        %v7803 = vpop.permute.xlu0 %7802
        %v7805 = vlaneseq
        %v7806 = vshrl.u32 %v7805, 7
        %v7807 = vsub.s32 0, %v7806
        %v7808 = vrot.slane %v7803, %v7807
        %v7809 = vadd.f32 %v7736, %v7808
        %v7810 = vadd.f32 %v7745, %v7808
        %v7811 = vadd.f32 %v7754, %v7808
        %v7812 = vadd.f32 %v7763, %v7808
        %v7813 = vadd.f32 %v7772, %v7808
        %v7814 = vadd.f32 %v7781, %v7808
        %v7815 = vadd.f32 %v7790, %v7808
        %v7816 = vadd.f32 %v7799, %v7808
        %v7825 = vcombine.low %v7809, %v7810
        %v7826 = vcombine.low %v7811, %v7812
        %v7827 = vcombine.low %v7813, %v7814
        %v7828 = vcombine.low %v7815, %v7816
        %v7830 = vunpack.c.l.s4 1966171168
        %v7831 = vunpack.c.0.s8 %v7830
        %v7832 = vlaneseq
        %v7833 = vshrl.u32 %v7832, 7
        %v7834 = vsub.s32 %v7831, %v7833
        %v7835 = vrot.slane %v7825, %v7834
        %v7837 = vunpack.c.l.s4 1966171168
        %v7838 = vunpack.c.0.s8 %v7837
        %v7839 = vlaneseq
        %v7840 = vshrl.u32 %v7839, 7
        %v7841 = vsub.s32 %v7838, %v7840
        %v7842 = vrot.slane %v7826, %v7841
        %v7844 = vunpack.c.l.s4 1966171168
        %v7845 = vunpack.c.0.s8 %v7844
        %v7846 = vlaneseq
        %v7847 = vshrl.u32 %v7846, 7
        %v7848 = vsub.s32 %v7845, %v7847
        %v7849 = vrot.slane %v7827, %v7848
        %v7851 = vunpack.c.l.s4 1966171168
        %v7852 = vunpack.c.0.s8 %v7851
        %v7853 = vlaneseq
        %v7854 = vshrl.u32 %v7853, 7
        %v7855 = vsub.s32 %v7852, %v7854
        %v7856 = vrot.slane %v7828, %v7855
        %v7857 = vcombine.low %v7835, %v7842
        %v7858 = vcombine.low %v7849, %v7856
        %v7860 = vunpack.c.l.s4 1966171168
        %v7861 = vunpack.c.0.s8 %v7860
        %v7862 = vlaneseq
        %v7863 = vshrl.u32 %v7862, 7
        %v7864 = vsub.s32 %v7861, %v7863
        %v7865 = vrot.slane %v7857, %v7864
        %v7867 = vunpack.c.l.s4 1966171168
        %v7868 = vunpack.c.0.s8 %v7867
        %v7869 = vlaneseq
        %v7870 = vshrl.u32 %v7869, 7
        %v7871 = vsub.s32 %v7868, %v7870
        %v7872 = vrot.slane %v7858, %v7871
        %v7873 = vcombine.low %v7865, %v7872
        %7875 = vst [vmem:[%s274] sm:$0xff] %v7873
        %s7876 = sand.u32 %s183, 1
        %s7877 = scalar_lea.sflag [#allocation4], %s7876
        %s7878 = sand.u32 %s183, 1
        %s7879 = smul.addr %s7878, 8
        %s7880 = scalar_lea.vmem [#allocation3], %s7879
        // Predicated region
        $region49: #{tpu_custom_call.1} parent=47 // pred_check
          %p7881 = pneg %p193
        $region50: #{tpu_custom_call.1} parent=47 // pred_check_branch
          %7883 = sbr.rel (%p7881) target = $region52
        $region51: #{tpu_custom_call.1} parent=47 // pred_region
          %s7884 = smul.u32 8, %s23
          %s7886 = ssub.s32 128, 128
          %7887 = vsyncadd %s7877, %s7886
          %s7888 = smul.addr %s7884, 16
          %s7889 = scalar_lea.hbm %s7, %s7888
          %s7891 = sshll.u32 %s7880, 4
          %s7892 = int_to_ptr.vmem [resolvable:$true] %s7891
          %7894 = dma.vmem_to_hbm [thread:$0]  %s7892, 128, %s7889, %s7877
        $region52: #{tpu_custom_call.1} parent=47 // pred_fallthru
          _
      $region48: #{tpu_custom_call.1} parent=5 // pred_fallthru
        _
      %p7895 = scmp.le.s32.totalorder 2, %s18
      // Predicated region
      $region53: #{tpu_custom_call.1} parent=5 // pred_check
        %p7896 = pneg %p7895
      $region54: #{tpu_custom_call.1} parent=5 // pred_check_branch
        %7898 = sbr.rel (%p7896) target = $region56
      $region55: #{tpu_custom_call.1} parent=5 // pred_region
        %s7899 = ssub.s32 %s18, 2
        // Predicated region
        $region57: #{tpu_custom_call.1} parent=55 // pred_check
          %p7900 = pneg %p199
        $region58: #{tpu_custom_call.1} parent=55 // pred_check_branch
          %7902 = sbr.rel (%p7900) target = $region60
        $region59: #{tpu_custom_call.1} parent=55 // pred_region
          %s7903 = sand.u32 %s184, 1
          %s7904 = scalar_lea.sflag [#allocation4], %s7903
          %s7905 = sand.u32 %s184, 1
          %s7906 = smul.addr %s7905, 8
          %s7907 = scalar_lea.vmem [#allocation3], %s7906
          %7908 = dma.done %s7904, 128
        $region60: #{tpu_custom_call.1} parent=55 // pred_fallthru
          _
      $region56: #{tpu_custom_call.1} parent=5 // pred_fallthru
        _
    $region6: #{tpu_custom_call.1} parent=1 // loop_footer
      %s22 = sadd.s32 1, %s18
    $region7: #{tpu_custom_call.1} parent=1 // loop_footer_branch
      %17 = sbr.rel target = $region3
    $region8: #{tpu_custom_call.1} parent=1 // loop_exit
      _
    %7909 = vsyncpa [#allocation4], 1
    %s7910 = scalar_lea.sflag [#allocation4], 1
    %7911 = vsyncpa %s7910, 1

</llo_original>
